<compile_context>
chip_gen: v5e
topology: v5e:2x2
jax: 0.10.0
libtpu: 0.0.40
codegen_flags: <defaults>
</compile_context>

<pallas_src>
import functools

import jax
import jax.numpy as jnp
from jax import lax
from jax.experimental import pallas as pl
from jax.experimental.pallas import tpu as pltpu


def _silu(x):
    return x * jax.nn.sigmoid(x)


def base_block_kernel(x_ref, w1_ref, g1_ref, b1_ref, w2_ref, g2_ref, b2_ref,
                      m_ref, e_ref, o_ref, col_ref, pad_ref,
                      *, NB, H, W, Cin, C, eps, group_size, residual, has_emb):
    """NB batch elements per grid step.

    x_ref   : (NB, H+2, W+2, Cin) f32   spatially pre-padded input (NHWC)
    w1_ref  : (9*Cin, C) bf16           conv1 weights, im2col layout
    w2_ref  : (9*C,  C) bf16            conv2 weights, im2col layout
    g*/b*   : (1, C) f32                GroupNorm gamma / beta
    m_ref   : (C, C) f32                group-membership matrix (group sums via MXU)
    e_ref   : (NB, 1, C) f32            precomputed emb projection per batch elem
    o_ref   : (NB, H, W, C) f32
    col_ref : (NB, H, W, 9*max(Cin,C)) bf16   im2col slab (VMEM scratch)
    pad_ref : (NB, H+2, W+2, C) bf16          re-padded activations for conv2
    """
    HW = H * W
    M = NB * HW
    inv_n = 1.0 / float(HW * group_size)

    def im2col(src_ref, c):
        # scatter the 3x3 taps into the K axis of the im2col slab
        for dy in range(3):
            for dx in range(3):
                k = dy * 3 + dx
                col_ref[:, :, :, k * c:(k + 1) * c] = (
                    src_ref[:, dy:dy + H, dx:dx + W, :].astype(col_ref.dtype))

    def conv(width, w_ref):
        # a single MXU matmul with K = 9*channels; result kept 3-D (NB, HW, C)
        a = col_ref[:, :, :, :width].reshape(M, width)
        return jnp.dot(a, w_ref[...],
                       preferred_element_type=jnp.float32).reshape(NB, HW, C)

    def group_norm(y, gamma, beta):
        # y: (NB, HW, C) f32.  Per-(batch, group) statistics; the group sums
        # are done with a single (NB,C)x(C,C) membership matmul (no cross-lane
        # reductions).  Two-pass (centered) variance avoids E[x^2]-E[x]^2
        # cancellation.
        s = jnp.sum(y, axis=1)                                       # (NB, C)
        mean = jnp.dot(s, m_ref[...],
                       preferred_element_type=jnp.float32) * inv_n   # (NB, C)
        yc = y - mean[:, None, :]
        v = jnp.dot(jnp.sum(yc * yc, axis=1), m_ref[...],
                    preferred_element_type=jnp.float32) * inv_n      # (NB, C)
        scale = lax.rsqrt(v + eps)[:, None, :] * gamma               # (NB, 1, C)
        return yc * scale + beta

    # ---- conv1 -> GroupNorm -> SiLU  (Dropout is identity: inference / p=0) ----
    # TODO(synk): training-mode Dropout not implemented (inference semantics).
    im2col(x_ref, Cin)
    h = conv(9 * Cin, w1_ref)                                        # (NB, HW, C)
    h = _silu(group_norm(h, g1_ref[...], b1_ref[...]))

    # ---- re-pad for conv2: zero only the 1-pixel halo, overwrite interior ----
    zrow = jnp.zeros((NB, 1, W + 2, C), pad_ref.dtype)
    zcol = jnp.zeros((NB, H + 2, 1, C), pad_ref.dtype)
    pad_ref[:, 0:1, :, :] = zrow
    pad_ref[:, H + 1:H + 2, :, :] = zrow
    pad_ref[:, :, 0:1, :] = zcol
    pad_ref[:, :, W + 1:W + 2, :] = zcol
    pad_ref[:, 1:H + 1, 1:W + 1, :] = h.reshape(NB, H, W, C).astype(pad_ref.dtype)

    # ---- conv2 -> GroupNorm [-> residual SiLU] [+ t-emb broadcast add] ----
    im2col(pad_ref, C)
    h = conv(9 * C, w2_ref)                                          # (NB, HW, C)
    h = group_norm(h, g2_ref[...], b2_ref[...])

    if residual:
        x_in = x_ref[:, 1:H + 1, 1:W + 1, :].reshape(NB, HW, C)      # f32 skip path
        h = _silu(x_in + h)
    if has_emb:
        h = h + e_ref[...]                                           # (NB, 1, C) bcast
    o_ref[...] = h.reshape(NB, H, W, C).astype(o_ref.dtype)


def base_block_forward(x_nchw, params, t_emb=None, *, num_groups=32, eps=1e-5,
                       residual=False, block_n=None):
    N, Cin, H, W = x_nchw.shape
    w1, w2 = params["w1"], params["w2"]
    C = w1.shape[-1]
    assert C % num_groups == 0, "GroupNorm(32) needs channels % 32 == 0"
    Cg = C // num_groups
    if residual:
        assert Cin == C, "residual path requires in_channels == out_channels"
    HW = H * W
    has_emb = t_emb is not None

    # Batch-block size: enough rows to fill the MXU M dim, but keep >=2 grid
    # steps when possible (megacore).
    if block_n is None:
        target = max(1, -(-256 // max(HW, 1)))
        cap = target if N == 1 else min(target, max(1, N // 2))
        block_n = max(d for d in range(1, N + 1) if N % d == 0 and d <= cap)
    NB = block_n
    assert N % NB == 0

    # NCHW -> NHWC (f32 for the residual path), spatial zero-pad by 1.
    x = jnp.transpose(x_nchw, (0, 2, 3, 1)).astype(jnp.float32)
    x_pad = jnp.pad(x, ((0, 0), (1, 1), (1, 1), (0, 0)))

    # conv weights in bf16, im2col layout (tap-major, input-channel fastest).
    w1r = w1.astype(jnp.bfloat16).reshape(9 * Cin, C)
    w2r = w2.astype(jnp.bfloat16).reshape(9 * C, C)

    # group-membership matrix: (s @ M)[c] = sum of s over channels in c's group
    grp = jnp.arange(C) // Cg
    Mg = (grp[:, None] == grp[None, :]).astype(jnp.float32)

    # emb_layers (SiLU -> Linear) precomputed once per batch in plain XLA.
    if has_emb:
        e = _silu(t_emb.astype(jnp.float32)) @ params["we"] + params["be"]
    else:
        e = jnp.zeros((N, C), jnp.float32)
    e = e.reshape(N, 1, C)

    kernel = functools.partial(base_block_kernel, NB=NB, H=H, W=W, Cin=Cin, C=C,
                               eps=eps, group_size=Cg, residual=residual,
                               has_emb=has_emb)

    cmax = max(Cin, C)
    # Rough VMEM budget (double-buffered inputs/outputs + scratch) + headroom.
    est = (2 * NB * (H + 2) * (W + 2) * Cin * 4
           + 2 * NB * HW * C * 4
           + 2 * (9 * Cin * C + 9 * C * C) * 2
           + 2 * (C * C + 4 * C + NB * C) * 4
           + NB * HW * 9 * cmax * 2
           + NB * (H + 2) * (W + 2) * C * 2)
    vmem_limit = int(min(max(32 * 2**20, 3 * est), 96 * 2**20))

    flops = 2 * N * HW * 9 * (Cin * C + C * C) + 20 * N * HW * C
    transc = 2 * N * HW * C
    bytes_acc = int(x_pad.size * 4 + w1r.size * 2 + w2r.size * 2
                    + Mg.size * 4 + e.size * 4 + N * HW * C * 4)

    out = pl.pallas_call(
        kernel,
        out_shape=jax.ShapeDtypeStruct((N, H, W, C), jnp.float32),
        grid_spec=pltpu.PrefetchScalarGridSpec(
            num_scalar_prefetch=0,
            grid=(N // NB,),
            in_specs=[
                pl.BlockSpec((NB, H + 2, W + 2, Cin), lambda n: (n, 0, 0, 0)),
                pl.BlockSpec((9 * Cin, C), lambda n: (0, 0)),
                pl.BlockSpec((1, C), lambda n: (0, 0)),
                pl.BlockSpec((1, C), lambda n: (0, 0)),
                pl.BlockSpec((9 * C, C), lambda n: (0, 0)),
                pl.BlockSpec((1, C), lambda n: (0, 0)),
                pl.BlockSpec((1, C), lambda n: (0, 0)),
                pl.BlockSpec((C, C), lambda n: (0, 0)),
                pl.BlockSpec((NB, 1, C), lambda n: (n, 0, 0)),
            ],
            out_specs=pl.BlockSpec((NB, H, W, C), lambda n: (n, 0, 0, 0)),
            scratch_shapes=[
                pltpu.VMEM((NB, H, W, 9 * cmax), jnp.bfloat16),   # im2col slab
                pltpu.VMEM((NB, H + 2, W + 2, C), jnp.bfloat16),  # conv2 re-pad
            ],
        ),
        compiler_params=pltpu.CompilerParams(
            dimension_semantics=("parallel",),
            vmem_limit_bytes=vmem_limit),
        cost_estimate=pl.CostEstimate(flops=flops, transcendentals=transc,
                                      bytes_accessed=bytes_acc),
    )(x_pad, w1r, params["g1"], params["b1"], w2r, params["g2"], params["b2"],
      Mg, e)

    return jnp.transpose(out, (0, 3, 1, 2))                      # back to NCHW


def ref_forward(x_nchw, params, t_emb, *, num_groups=32, eps=1e-5, residual=True):
    """Pure-JAX reference mirroring PyTorch BaseBlock.forward (bf16 MXU inputs,
    f32 accumulation, to match the kernel's precision choices)."""
    x = jnp.transpose(x_nchw, (0, 2, 3, 1)).astype(jnp.float32)

    def conv(v, w):
        return lax.conv_general_dilated(
            v.astype(jnp.bfloat16), w.astype(jnp.bfloat16), (1, 1), "SAME",
            dimension_numbers=("NHWC", "HWIO", "NHWC"),
            preferred_element_type=jnp.float32)

    def gn(y, g, b):
        N, H, W, C = y.shape
        Cg = C // num_groups
        yr = y.reshape(N, H, W, num_groups, Cg)
        mean = yr.mean(axis=(1, 2, 4), keepdims=True)
        var = ((yr - mean) ** 2).mean(axis=(1, 2, 4), keepdims=True)
        yn = ((yr - mean) / jnp.sqrt(var + eps)).reshape(N, H, W, C)
        return yn * g.reshape(1, 1, 1, C) + b.reshape(1, 1, 1, C)

    h = conv(x, params["w1"])
    h = _silu(gn(h, params["g1"], params["b1"]))
    h = conv(h, params["w2"])
    h = gn(h, params["g2"], params["b2"])
    if residual:
        h = _silu(x + h)
    if t_emb is not None:
        e = _silu(t_emb) @ params["we"] + params["be"]
        h = h + e[:, None, None, :]
    return jnp.transpose(h, (0, 3, 1, 2))


if __name__ == "__main__":
    key = jax.random.PRNGKey(0)
    # GroupNorm in the module hardcodes num_groups=32 -> channels % 32 == 0.
    N, Cin, Cout, H, W, d_t = 4, 128, 128, 8, 8, 32
    ks = jax.random.split(key, 6)

    x = jax.random.normal(ks[0], (N, Cin, H, W), jnp.float32)
    t = jax.random.normal(ks[1], (N, d_t), jnp.float32)

    params = dict(
        w1=jax.random.normal(ks[2], (3, 3, Cin, Cout), jnp.float32) * 0.05,
        g1=jnp.ones((1, Cout), jnp.float32),    # GroupNorm affine init: gamma=1
        b1=jnp.zeros((1, Cout), jnp.float32),   #                        beta=0
        w2=jax.random.normal(ks[3], (3, 3, Cout, Cout), jnp.float32) * 0.05,
        g2=jnp.ones((1, Cout), jnp.float32),
        b2=jnp.zeros((1, Cout), jnp.float32),
        we=jax.random.normal(ks[4], (d_t, Cout), jnp.float32) * 0.1,
        be=jax.random.normal(ks[5], (1, Cout), jnp.float32) * 0.1,
    )

    out = base_block_forward(x, params, t, residual=True)
    jax.block_until_ready(out)

    ref = ref_forward(x, params, t, residual=True)
    err = float(jnp.max(jnp.abs(out - ref)))
    assert jnp.allclose(out, ref, atol=5e-3, rtol=5e-3), f"max abs err = {err}"

    print("KERNEL_OK")
</pallas_src>

<mosaic_0001>
module attributes {stable_mosaic.version = 11 : i64} {
  func.func @base_block_kernel(%arg0: i32, %arg1: memref<2x10x10x128xf32, #tpu.memory_space<vmem>>, %arg2: memref<1152x128xbf16, #tpu.memory_space<vmem>>, %arg3: memref<1x128xf32, #tpu.memory_space<vmem>>, %arg4: memref<1x128xf32, #tpu.memory_space<vmem>>, %arg5: memref<1152x128xbf16, #tpu.memory_space<vmem>>, %arg6: memref<1x128xf32, #tpu.memory_space<vmem>>, %arg7: memref<1x128xf32, #tpu.memory_space<vmem>>, %arg8: memref<128x128xf32, #tpu.memory_space<vmem>>, %arg9: memref<2x1x128xf32, #tpu.memory_space<vmem>>, %arg10: memref<2x8x8x128xf32, #tpu.memory_space<vmem>>, %arg11: memref<2x8x8x1152xbf16, #tpu.memory_space<vmem>>, %arg12: memref<2x10x10x128xbf16, #tpu.memory_space<vmem>>) attributes {dimension_semantics = [#tpu.dimension_semantics<parallel>], iteration_bounds = array<i64: 2>, scalar_prefetch = 0 : i64, scratch_operands = 2 : i64, tpu.core_type = #tpu.core_type<tc>, window_params = [{transform_indices = @transform_0, window_bounds = array<i64: 2, 10, 10, 128>}, {pipeline_mode = #tpu.pipeline_mode<synchronous>, transform_indices = @transform_1, window_bounds = array<i64: 1152, 128>}, {pipeline_mode = #tpu.pipeline_mode<synchronous>, transform_indices = @transform_2, window_bounds = array<i64: 1, 128>}, {pipeline_mode = #tpu.pipeline_mode<synchronous>, transform_indices = @transform_3, window_bounds = array<i64: 1, 128>}, {pipeline_mode = #tpu.pipeline_mode<synchronous>, transform_indices = @transform_4, window_bounds = array<i64: 1152, 128>}, {pipeline_mode = #tpu.pipeline_mode<synchronous>, transform_indices = @transform_5, window_bounds = array<i64: 1, 128>}, {pipeline_mode = #tpu.pipeline_mode<synchronous>, transform_indices = @transform_6, window_bounds = array<i64: 1, 128>}, {pipeline_mode = #tpu.pipeline_mode<synchronous>, transform_indices = @transform_7, window_bounds = array<i64: 128, 128>}, {transform_indices = @transform_8, window_bounds = array<i64: 2, 1, 128>}, {transform_indices = @transform_9, window_bounds = array<i64: 2, 8, 8, 128>}]} {
    %c0 = arith.constant 0 : index
    %c0_0 = arith.constant 0 : index
    %c0_1 = arith.constant 0 : index
    %c0_2 = arith.constant 0 : index
    %0 = vector.load %arg1[%c0, %c0_0, %c0_1, %c0_2] : memref<2x10x10x128xf32, #tpu.memory_space<vmem>>, vector<2x8x8x128xf32>
    %1 = arith.truncf %0 : vector<2x8x8x128xf32> to vector<2x8x8x128xbf16>
    %c0_3 = arith.constant 0 : index
    %c0_4 = arith.constant 0 : index
    %c0_5 = arith.constant 0 : index
    %c0_6 = arith.constant 0 : index
    %2 = vector.load %arg11[%c0_3, %c0_4, %c0_5, %c0_6] : memref<2x8x8x1152xbf16, #tpu.memory_space<vmem>>, vector<2x8x8x128xbf16>
    tpu.vector_store %arg11[%c0_3, %c0_4, %c0_5, %c0_6], %1 {strides = array<i32>} : memref<2x8x8x1152xbf16, #tpu.memory_space<vmem>>, vector<2x8x8x128xbf16>,
    %c0_7 = arith.constant 0 : index
    %c0_8 = arith.constant 0 : index
    %c1 = arith.constant 1 : index
    %c0_9 = arith.constant 0 : index
    %3 = vector.load %arg1[%c0_7, %c0_8, %c1, %c0_9] : memref<2x10x10x128xf32, #tpu.memory_space<vmem>>, vector<2x8x8x128xf32>
    %4 = arith.truncf %3 : vector<2x8x8x128xf32> to vector<2x8x8x128xbf16>
    %c0_10 = arith.constant 0 : index
    %c0_11 = arith.constant 0 : index
    %c0_12 = arith.constant 0 : index
    %c128 = arith.constant 128 : index
    %5 = vector.load %arg11[%c0_10, %c0_11, %c0_12, %c128] : memref<2x8x8x1152xbf16, #tpu.memory_space<vmem>>, vector<2x8x8x128xbf16>
    tpu.vector_store %arg11[%c0_10, %c0_11, %c0_12, %c128], %4 {strides = array<i32>} : memref<2x8x8x1152xbf16, #tpu.memory_space<vmem>>, vector<2x8x8x128xbf16>,
    %c0_13 = arith.constant 0 : index
    %c0_14 = arith.constant 0 : index
    %c2 = arith.constant 2 : index
    %c0_15 = arith.constant 0 : index
    %6 = vector.load %arg1[%c0_13, %c0_14, %c2, %c0_15] : memref<2x10x10x128xf32, #tpu.memory_space<vmem>>, vector<2x8x8x128xf32>
    %7 = arith.truncf %6 : vector<2x8x8x128xf32> to vector<2x8x8x128xbf16>
    %c0_16 = arith.constant 0 : index
    %c0_17 = arith.constant 0 : index
    %c0_18 = arith.constant 0 : index
    %c256 = arith.constant 256 : index
    %8 = vector.load %arg11[%c0_16, %c0_17, %c0_18, %c256] : memref<2x8x8x1152xbf16, #tpu.memory_space<vmem>>, vector<2x8x8x128xbf16>
    tpu.vector_store %arg11[%c0_16, %c0_17, %c0_18, %c256], %7 {strides = array<i32>} : memref<2x8x8x1152xbf16, #tpu.memory_space<vmem>>, vector<2x8x8x128xbf16>,
    %c0_19 = arith.constant 0 : index
    %c1_20 = arith.constant 1 : index
    %c0_21 = arith.constant 0 : index
    %c0_22 = arith.constant 0 : index
    %9 = vector.load %arg1[%c0_19, %c1_20, %c0_21, %c0_22] : memref<2x10x10x128xf32, #tpu.memory_space<vmem>>, vector<2x8x8x128xf32>
    %10 = arith.truncf %9 : vector<2x8x8x128xf32> to vector<2x8x8x128xbf16>
    %c0_23 = arith.constant 0 : index
    %c0_24 = arith.constant 0 : index
    %c0_25 = arith.constant 0 : index
    %c384 = arith.constant 384 : index
    %11 = vector.load %arg11[%c0_23, %c0_24, %c0_25, %c384] : memref<2x8x8x1152xbf16, #tpu.memory_space<vmem>>, vector<2x8x8x128xbf16>
    tpu.vector_store %arg11[%c0_23, %c0_24, %c0_25, %c384], %10 {strides = array<i32>} : memref<2x8x8x1152xbf16, #tpu.memory_space<vmem>>, vector<2x8x8x128xbf16>,
    %c0_26 = arith.constant 0 : index
    %c1_27 = arith.constant 1 : index
    %c1_28 = arith.constant 1 : index
    %c0_29 = arith.constant 0 : index
    %12 = vector.load %arg1[%c0_26, %c1_27, %c1_28, %c0_29] : memref<2x10x10x128xf32, #tpu.memory_space<vmem>>, vector<2x8x8x128xf32>
    %13 = arith.truncf %12 : vector<2x8x8x128xf32> to vector<2x8x8x128xbf16>
    %c0_30 = arith.constant 0 : index
    %c0_31 = arith.constant 0 : index
    %c0_32 = arith.constant 0 : index
    %c512 = arith.constant 512 : index
    %14 = vector.load %arg11[%c0_30, %c0_31, %c0_32, %c512] : memref<2x8x8x1152xbf16, #tpu.memory_space<vmem>>, vector<2x8x8x128xbf16>
    tpu.vector_store %arg11[%c0_30, %c0_31, %c0_32, %c512], %13 {strides = array<i32>} : memref<2x8x8x1152xbf16, #tpu.memory_space<vmem>>, vector<2x8x8x128xbf16>,
    %c0_33 = arith.constant 0 : index
    %c1_34 = arith.constant 1 : index
    %c2_35 = arith.constant 2 : index
    %c0_36 = arith.constant 0 : index
    %15 = vector.load %arg1[%c0_33, %c1_34, %c2_35, %c0_36] : memref<2x10x10x128xf32, #tpu.memory_space<vmem>>, vector<2x8x8x128xf32>
    %16 = arith.truncf %15 : vector<2x8x8x128xf32> to vector<2x8x8x128xbf16>
    %c0_37 = arith.constant 0 : index
    %c0_38 = arith.constant 0 : index
    %c0_39 = arith.constant 0 : index
    %c640 = arith.constant 640 : index
    %17 = vector.load %arg11[%c0_37, %c0_38, %c0_39, %c640] : memref<2x8x8x1152xbf16, #tpu.memory_space<vmem>>, vector<2x8x8x128xbf16>
    tpu.vector_store %arg11[%c0_37, %c0_38, %c0_39, %c640], %16 {strides = array<i32>} : memref<2x8x8x1152xbf16, #tpu.memory_space<vmem>>, vector<2x8x8x128xbf16>,
    %c0_40 = arith.constant 0 : index
    %c2_41 = arith.constant 2 : index
    %c0_42 = arith.constant 0 : index
    %c0_43 = arith.constant 0 : index
    %18 = vector.load %arg1[%c0_40, %c2_41, %c0_42, %c0_43] : memref<2x10x10x128xf32, #tpu.memory_space<vmem>>, vector<2x8x8x128xf32>
    %19 = arith.truncf %18 : vector<2x8x8x128xf32> to vector<2x8x8x128xbf16>
    %c0_44 = arith.constant 0 : index
    %c0_45 = arith.constant 0 : index
    %c0_46 = arith.constant 0 : index
    %c768 = arith.constant 768 : index
    %20 = vector.load %arg11[%c0_44, %c0_45, %c0_46, %c768] : memref<2x8x8x1152xbf16, #tpu.memory_space<vmem>>, vector<2x8x8x128xbf16>
    tpu.vector_store %arg11[%c0_44, %c0_45, %c0_46, %c768], %19 {strides = array<i32>} : memref<2x8x8x1152xbf16, #tpu.memory_space<vmem>>, vector<2x8x8x128xbf16>,
    %c0_47 = arith.constant 0 : index
    %c2_48 = arith.constant 2 : index
    %c1_49 = arith.constant 1 : index
    %c0_50 = arith.constant 0 : index
    %21 = vector.load %arg1[%c0_47, %c2_48, %c1_49, %c0_50] : memref<2x10x10x128xf32, #tpu.memory_space<vmem>>, vector<2x8x8x128xf32>
    %22 = arith.truncf %21 : vector<2x8x8x128xf32> to vector<2x8x8x128xbf16>
    %c0_51 = arith.constant 0 : index
    %c0_52 = arith.constant 0 : index
    %c0_53 = arith.constant 0 : index
    %c896 = arith.constant 896 : index
    %23 = vector.load %arg11[%c0_51, %c0_52, %c0_53, %c896] : memref<2x8x8x1152xbf16, #tpu.memory_space<vmem>>, vector<2x8x8x128xbf16>
    tpu.vector_store %arg11[%c0_51, %c0_52, %c0_53, %c896], %22 {strides = array<i32>} : memref<2x8x8x1152xbf16, #tpu.memory_space<vmem>>, vector<2x8x8x128xbf16>,
    %c0_54 = arith.constant 0 : index
    %c2_55 = arith.constant 2 : index
    %c2_56 = arith.constant 2 : index
    %c0_57 = arith.constant 0 : index
    %24 = vector.load %arg1[%c0_54, %c2_55, %c2_56, %c0_57] : memref<2x10x10x128xf32, #tpu.memory_space<vmem>>, vector<2x8x8x128xf32>
    %25 = arith.truncf %24 : vector<2x8x8x128xf32> to vector<2x8x8x128xbf16>
    %c0_58 = arith.constant 0 : index
    %c0_59 = arith.constant 0 : index
    %c0_60 = arith.constant 0 : index
    %c1024 = arith.constant 1024 : index
    %26 = vector.load %arg11[%c0_58, %c0_59, %c0_60, %c1024] : memref<2x8x8x1152xbf16, #tpu.memory_space<vmem>>, vector<2x8x8x128xbf16>
    tpu.vector_store %arg11[%c0_58, %c0_59, %c0_60, %c1024], %25 {strides = array<i32>} : memref<2x8x8x1152xbf16, #tpu.memory_space<vmem>>, vector<2x8x8x128xbf16>,
    %c0_61 = arith.constant 0 : index
    %c0_62 = arith.constant 0 : index
    %c0_63 = arith.constant 0 : index
    %c0_64 = arith.constant 0 : index
    %27 = vector.load %arg11[%c0_61, %c0_62, %c0_63, %c0_64] : memref<2x8x8x1152xbf16, #tpu.memory_space<vmem>>, vector<2x8x8x1152xbf16>
    %28 = vector.shape_cast %27 : vector<2x8x8x1152xbf16> to vector<128x1152xbf16>
    %c0_65 = arith.constant 0 : index
    %c0_66 = arith.constant 0 : index
    %29 = vector.load %arg2[%c0_65, %c0_66] : memref<1152x128xbf16, #tpu.memory_space<vmem>>, vector<1152x128xbf16>
    %cst = arith.constant dense<0.000000e+00> : vector<128x128xf32>
    %30 = tpu.matmul %28, %29, %cst {dimension_numbers = #tpu.dot_dimension_numbers<[1], [0], [0], [1], [0, 0, 1, 1], [], []>} : vector<128x1152xbf16>, vector<1152x128xbf16>, vector<128x128xf32> -> vector<128x128xf32>
    %31 = vector.shape_cast %30 : vector<128x128xf32> to vector<2x64x128xf32>
    %c0_67 = arith.constant 0 : index
    %c0_68 = arith.constant 0 : index
    %32 = vector.load %arg3[%c0_67, %c0_68] : memref<1x128xf32, #tpu.memory_space<vmem>>, vector<1x128xf32>
    %c0_69 = arith.constant 0 : index
    %c0_70 = arith.constant 0 : index
    %33 = vector.load %arg4[%c0_69, %c0_70] : memref<1x128xf32, #tpu.memory_space<vmem>>, vector<1x128xf32>
    %cst_71 = arith.constant dense<0.000000e+00> : vector<2x128xf32>
    %34 = vector.multi_reduction <add>, %31, %cst_71 [1] : vector<2x64x128xf32> to vector<2x128xf32>
    %c0_72 = arith.constant 0 : index
    %c0_73 = arith.constant 0 : index
    %35 = vector.load %arg8[%c0_72, %c0_73] : memref<128x128xf32, #tpu.memory_space<vmem>>, vector<128x128xf32>
    %cst_74 = arith.constant dense<0.000000e+00> : vector<2x128xf32>
    %36 = tpu.matmul %34, %35, %cst_74 {dimension_numbers = #tpu.dot_dimension_numbers<[1], [0], [0], [1], [0, 0, 1, 1], [], []>} : vector<2x128xf32>, vector<128x128xf32>, vector<2x128xf32> -> vector<2x128xf32>
    %cst_75 = arith.constant 3.906250e-03 : f32
    %37 = vector.broadcast %cst_75 : f32 to vector<2x128xf32>
    %38 = arith.mulf %36, %37 : vector<2x128xf32>
    %39 = vector.shape_cast %38 : vector<2x128xf32> to vector<2x1x128xf32>
    %40 = vector.broadcast %39 : vector<2x1x128xf32> to vector<2x64x128xf32>
    %41 = arith.subf %31, %40 : vector<2x64x128xf32>
    %42 = arith.mulf %41, %41 : vector<2x64x128xf32>
    %cst_76 = arith.constant dense<0.000000e+00> : vector<2x128xf32>
    %43 = vector.multi_reduction <add>, %42, %cst_76 [1] : vector<2x64x128xf32> to vector<2x128xf32>
    %c0_77 = arith.constant 0 : index
    %c0_78 = arith.constant 0 : index
    %44 = vector.load %arg8[%c0_77, %c0_78] : memref<128x128xf32, #tpu.memory_space<vmem>>, vector<128x128xf32>
    %cst_79 = arith.constant dense<0.000000e+00> : vector<2x128xf32>
    %45 = tpu.matmul %43, %44, %cst_79 {dimension_numbers = #tpu.dot_dimension_numbers<[1], [0], [0], [1], [0, 0, 1, 1], [], []>} : vector<2x128xf32>, vector<128x128xf32>, vector<2x128xf32> -> vector<2x128xf32>
    %cst_80 = arith.constant 3.906250e-03 : f32
    %46 = vector.broadcast %cst_80 : f32 to vector<2x128xf32>
    %47 = arith.mulf %45, %46 : vector<2x128xf32>
    %cst_81 = arith.constant 9.99999974E-6 : f32
    %48 = vector.broadcast %cst_81 : f32 to vector<2x128xf32>
    %49 = arith.addf %47, %48 : vector<2x128xf32>
    %50 = math.rsqrt %49 : vector<2x128xf32>
    %51 = vector.shape_cast %50 : vector<2x128xf32> to vector<2x1x128xf32>
    %52 = vector.shape_cast %32 : vector<1x128xf32> to vector<1x1x128xf32>
    %53 = vector.broadcast %52 : vector<1x1x128xf32> to vector<2x1x128xf32>
    %54 = arith.mulf %51, %53 : vector<2x1x128xf32>
    %55 = vector.broadcast %54 : vector<2x1x128xf32> to vector<2x64x128xf32>
    %56 = arith.mulf %41, %55 : vector<2x64x128xf32>
    %57 = vector.shape_cast %33 : vector<1x128xf32> to vector<1x1x128xf32>
    %58 = vector.broadcast %57 : vector<1x1x128xf32> to vector<2x64x128xf32>
    %59 = arith.addf %56, %58 : vector<2x64x128xf32>
    %60 = arith.negf %59 : vector<2x64x128xf32>
    %61 = math.exp %60 : vector<2x64x128xf32>
    %cst_82 = arith.constant 1.000000e+00 : f32
    %62 = vector.broadcast %cst_82 : f32 to vector<2x64x128xf32>
    %63 = arith.addf %62, %61 : vector<2x64x128xf32>
    %64 = arith.divf %62, %63 : vector<2x64x128xf32>
    %65 = arith.mulf %59, %64 : vector<2x64x128xf32>
    %cst_83 = arith.constant 0.000000e+00 : bf16
    %66 = vector.broadcast %cst_83 : bf16 to vector<2x1x10x128xbf16>
    %cst_84 = arith.constant 0.000000e+00 : bf16
    %67 = vector.broadcast %cst_84 : bf16 to vector<2x10x1x128xbf16>
    %c0_85 = arith.constant 0 : index
    %c0_86 = arith.constant 0 : index
    %c0_87 = arith.constant 0 : index
    %c0_88 = arith.constant 0 : index
    %68 = vector.load %arg12[%c0_85, %c0_86, %c0_87, %c0_88] : memref<2x10x10x128xbf16, #tpu.memory_space<vmem>>, vector<2x1x10x128xbf16>
    tpu.vector_store %arg12[%c0_85, %c0_86, %c0_87, %c0_88], %66 {strides = array<i32>} : memref<2x10x10x128xbf16, #tpu.memory_space<vmem>>, vector<2x1x10x128xbf16>,
    %c0_89 = arith.constant 0 : index
    %c9 = arith.constant 9 : index
    %c0_90 = arith.constant 0 : index
    %c0_91 = arith.constant 0 : index
    %69 = vector.load %arg12[%c0_89, %c9, %c0_90, %c0_91] : memref<2x10x10x128xbf16, #tpu.memory_space<vmem>>, vector<2x1x10x128xbf16>
    tpu.vector_store %arg12[%c0_89, %c9, %c0_90, %c0_91], %66 {strides = array<i32>} : memref<2x10x10x128xbf16, #tpu.memory_space<vmem>>, vector<2x1x10x128xbf16>,
    %c0_92 = arith.constant 0 : index
    %c0_93 = arith.constant 0 : index
    %c0_94 = arith.constant 0 : index
    %c0_95 = arith.constant 0 : index
    %70 = vector.load %arg12[%c0_92, %c0_93, %c0_94, %c0_95] : memref<2x10x10x128xbf16, #tpu.memory_space<vmem>>, vector<2x10x1x128xbf16>
    tpu.vector_store %arg12[%c0_92, %c0_93, %c0_94, %c0_95], %67 {strides = array<i32>} : memref<2x10x10x128xbf16, #tpu.memory_space<vmem>>, vector<2x10x1x128xbf16>,
    %c0_96 = arith.constant 0 : index
    %c0_97 = arith.constant 0 : index
    %c9_98 = arith.constant 9 : index
    %c0_99 = arith.constant 0 : index
    %71 = vector.load %arg12[%c0_96, %c0_97, %c9_98, %c0_99] : memref<2x10x10x128xbf16, #tpu.memory_space<vmem>>, vector<2x10x1x128xbf16>
    tpu.vector_store %arg12[%c0_96, %c0_97, %c9_98, %c0_99], %67 {strides = array<i32>} : memref<2x10x10x128xbf16, #tpu.memory_space<vmem>>, vector<2x10x1x128xbf16>,
    %72 = vector.shape_cast %65 : vector<2x64x128xf32> to vector<2x8x8x128xf32>
    %73 = arith.truncf %72 : vector<2x8x8x128xf32> to vector<2x8x8x128xbf16>
    %c0_100 = arith.constant 0 : index
    %c1_101 = arith.constant 1 : index
    %c1_102 = arith.constant 1 : index
    %c0_103 = arith.constant 0 : index
    %74 = vector.load %arg12[%c0_100, %c1_101, %c1_102, %c0_103] : memref<2x10x10x128xbf16, #tpu.memory_space<vmem>>, vector<2x8x8x128xbf16>
    tpu.vector_store %arg12[%c0_100, %c1_101, %c1_102, %c0_103], %73 {strides = array<i32>} : memref<2x10x10x128xbf16, #tpu.memory_space<vmem>>, vector<2x8x8x128xbf16>,
    %c0_104 = arith.constant 0 : index
    %c0_105 = arith.constant 0 : index
    %c0_106 = arith.constant 0 : index
    %c0_107 = arith.constant 0 : index
    %75 = vector.load %arg12[%c0_104, %c0_105, %c0_106, %c0_107] : memref<2x10x10x128xbf16, #tpu.memory_space<vmem>>, vector<2x8x8x128xbf16>
    %c0_108 = arith.constant 0 : index
    %c0_109 = arith.constant 0 : index
    %c0_110 = arith.constant 0 : index
    %c0_111 = arith.constant 0 : index
    %76 = vector.load %arg11[%c0_108, %c0_109, %c0_110, %c0_111] : memref<2x8x8x1152xbf16, #tpu.memory_space<vmem>>, vector<2x8x8x128xbf16>
    tpu.vector_store %arg11[%c0_108, %c0_109, %c0_110, %c0_111], %75 {strides = array<i32>} : memref<2x8x8x1152xbf16, #tpu.memory_space<vmem>>, vector<2x8x8x128xbf16>,
    %c0_112 = arith.constant 0 : index
    %c0_113 = arith.constant 0 : index
    %c1_114 = arith.constant 1 : index
    %c0_115 = arith.constant 0 : index
    %77 = vector.load %arg12[%c0_112, %c0_113, %c1_114, %c0_115] : memref<2x10x10x128xbf16, #tpu.memory_space<vmem>>, vector<2x8x8x128xbf16>
    %c0_116 = arith.constant 0 : index
    %c0_117 = arith.constant 0 : index
    %c0_118 = arith.constant 0 : index
    %c128_119 = arith.constant 128 : index
    %78 = vector.load %arg11[%c0_116, %c0_117, %c0_118, %c128_119] : memref<2x8x8x1152xbf16, #tpu.memory_space<vmem>>, vector<2x8x8x128xbf16>
    tpu.vector_store %arg11[%c0_116, %c0_117, %c0_118, %c128_119], %77 {strides = array<i32>} : memref<2x8x8x1152xbf16, #tpu.memory_space<vmem>>, vector<2x8x8x128xbf16>,
    %c0_120 = arith.constant 0 : index
    %c0_121 = arith.constant 0 : index
    %c2_122 = arith.constant 2 : index
    %c0_123 = arith.constant 0 : index
    %79 = vector.load %arg12[%c0_120, %c0_121, %c2_122, %c0_123] : memref<2x10x10x128xbf16, #tpu.memory_space<vmem>>, vector<2x8x8x128xbf16>
    %c0_124 = arith.constant 0 : index
    %c0_125 = arith.constant 0 : index
    %c0_126 = arith.constant 0 : index
    %c256_127 = arith.constant 256 : index
    %80 = vector.load %arg11[%c0_124, %c0_125, %c0_126, %c256_127] : memref<2x8x8x1152xbf16, #tpu.memory_space<vmem>>, vector<2x8x8x128xbf16>
    tpu.vector_store %arg11[%c0_124, %c0_125, %c0_126, %c256_127], %79 {strides = array<i32>} : memref<2x8x8x1152xbf16, #tpu.memory_space<vmem>>, vector<2x8x8x128xbf16>,
    %c0_128 = arith.constant 0 : index
    %c1_129 = arith.constant 1 : index
    %c0_130 = arith.constant 0 : index
    %c0_131 = arith.constant 0 : index
    %81 = vector.load %arg12[%c0_128, %c1_129, %c0_130, %c0_131] : memref<2x10x10x128xbf16, #tpu.memory_space<vmem>>, vector<2x8x8x128xbf16>
    %c0_132 = arith.constant 0 : index
    %c0_133 = arith.constant 0 : index
    %c0_134 = arith.constant 0 : index
    %c384_135 = arith.constant 384 : index
    %82 = vector.load %arg11[%c0_132, %c0_133, %c0_134, %c384_135] : memref<2x8x8x1152xbf16, #tpu.memory_space<vmem>>, vector<2x8x8x128xbf16>
    tpu.vector_store %arg11[%c0_132, %c0_133, %c0_134, %c384_135], %81 {strides = array<i32>} : memref<2x8x8x1152xbf16, #tpu.memory_space<vmem>>, vector<2x8x8x128xbf16>,
    %c0_136 = arith.constant 0 : index
    %c1_137 = arith.constant 1 : index
    %c1_138 = arith.constant 1 : index
    %c0_139 = arith.constant 0 : index
    %83 = vector.load %arg12[%c0_136, %c1_137, %c1_138, %c0_139] : memref<2x10x10x128xbf16, #tpu.memory_space<vmem>>, vector<2x8x8x128xbf16>
    %c0_140 = arith.constant 0 : index
    %c0_141 = arith.constant 0 : index
    %c0_142 = arith.constant 0 : index
    %c512_143 = arith.constant 512 : index
    %84 = vector.load %arg11[%c0_140, %c0_141, %c0_142, %c512_143] : memref<2x8x8x1152xbf16, #tpu.memory_space<vmem>>, vector<2x8x8x128xbf16>
    tpu.vector_store %arg11[%c0_140, %c0_141, %c0_142, %c512_143], %83 {strides = array<i32>} : memref<2x8x8x1152xbf16, #tpu.memory_space<vmem>>, vector<2x8x8x128xbf16>,
    %c0_144 = arith.constant 0 : index
    %c1_145 = arith.constant 1 : index
    %c2_146 = arith.constant 2 : index
    %c0_147 = arith.constant 0 : index
    %85 = vector.load %arg12[%c0_144, %c1_145, %c2_146, %c0_147] : memref<2x10x10x128xbf16, #tpu.memory_space<vmem>>, vector<2x8x8x128xbf16>
    %c0_148 = arith.constant 0 : index
    %c0_149 = arith.constant 0 : index
    %c0_150 = arith.constant 0 : index
    %c640_151 = arith.constant 640 : index
    %86 = vector.load %arg11[%c0_148, %c0_149, %c0_150, %c640_151] : memref<2x8x8x1152xbf16, #tpu.memory_space<vmem>>, vector<2x8x8x128xbf16>
    tpu.vector_store %arg11[%c0_148, %c0_149, %c0_150, %c640_151], %85 {strides = array<i32>} : memref<2x8x8x1152xbf16, #tpu.memory_space<vmem>>, vector<2x8x8x128xbf16>,
    %c0_152 = arith.constant 0 : index
    %c2_153 = arith.constant 2 : index
    %c0_154 = arith.constant 0 : index
    %c0_155 = arith.constant 0 : index
    %87 = vector.load %arg12[%c0_152, %c2_153, %c0_154, %c0_155] : memref<2x10x10x128xbf16, #tpu.memory_space<vmem>>, vector<2x8x8x128xbf16>
    %c0_156 = arith.constant 0 : index
    %c0_157 = arith.constant 0 : index
    %c0_158 = arith.constant 0 : index
    %c768_159 = arith.constant 768 : index
    %88 = vector.load %arg11[%c0_156, %c0_157, %c0_158, %c768_159] : memref<2x8x8x1152xbf16, #tpu.memory_space<vmem>>, vector<2x8x8x128xbf16>
    tpu.vector_store %arg11[%c0_156, %c0_157, %c0_158, %c768_159], %87 {strides = array<i32>} : memref<2x8x8x1152xbf16, #tpu.memory_space<vmem>>, vector<2x8x8x128xbf16>,
    %c0_160 = arith.constant 0 : index
    %c2_161 = arith.constant 2 : index
    %c1_162 = arith.constant 1 : index
    %c0_163 = arith.constant 0 : index
    %89 = vector.load %arg12[%c0_160, %c2_161, %c1_162, %c0_163] : memref<2x10x10x128xbf16, #tpu.memory_space<vmem>>, vector<2x8x8x128xbf16>
    %c0_164 = arith.constant 0 : index
    %c0_165 = arith.constant 0 : index
    %c0_166 = arith.constant 0 : index
    %c896_167 = arith.constant 896 : index
    %90 = vector.load %arg11[%c0_164, %c0_165, %c0_166, %c896_167] : memref<2x8x8x1152xbf16, #tpu.memory_space<vmem>>, vector<2x8x8x128xbf16>
    tpu.vector_store %arg11[%c0_164, %c0_165, %c0_166, %c896_167], %89 {strides = array<i32>} : memref<2x8x8x1152xbf16, #tpu.memory_space<vmem>>, vector<2x8x8x128xbf16>,
    %c0_168 = arith.constant 0 : index
    %c2_169 = arith.constant 2 : index
    %c2_170 = arith.constant 2 : index
    %c0_171 = arith.constant 0 : index
    %91 = vector.load %arg12[%c0_168, %c2_169, %c2_170, %c0_171] : memref<2x10x10x128xbf16, #tpu.memory_space<vmem>>, vector<2x8x8x128xbf16>
    %c0_172 = arith.constant 0 : index
    %c0_173 = arith.constant 0 : index
    %c0_174 = arith.constant 0 : index
    %c1024_175 = arith.constant 1024 : index
    %92 = vector.load %arg11[%c0_172, %c0_173, %c0_174, %c1024_175] : memref<2x8x8x1152xbf16, #tpu.memory_space<vmem>>, vector<2x8x8x128xbf16>
    tpu.vector_store %arg11[%c0_172, %c0_173, %c0_174, %c1024_175], %91 {strides = array<i32>} : memref<2x8x8x1152xbf16, #tpu.memory_space<vmem>>, vector<2x8x8x128xbf16>,
    %c0_176 = arith.constant 0 : index
    %c0_177 = arith.constant 0 : index
    %c0_178 = arith.constant 0 : index
    %c0_179 = arith.constant 0 : index
    %93 = vector.load %arg11[%c0_176, %c0_177, %c0_178, %c0_179] : memref<2x8x8x1152xbf16, #tpu.memory_space<vmem>>, vector<2x8x8x1152xbf16>
    %94 = vector.shape_cast %93 : vector<2x8x8x1152xbf16> to vector<128x1152xbf16>
    %c0_180 = arith.constant 0 : index
    %c0_181 = arith.constant 0 : index
    %95 = vector.load %arg5[%c0_180, %c0_181] : memref<1152x128xbf16, #tpu.memory_space<vmem>>, vector<1152x128xbf16>
    %cst_182 = arith.constant dense<0.000000e+00> : vector<128x128xf32>
    %96 = tpu.matmul %94, %95, %cst_182 {dimension_numbers = #tpu.dot_dimension_numbers<[1], [0], [0], [1], [0, 0, 1, 1], [], []>} : vector<128x1152xbf16>, vector<1152x128xbf16>, vector<128x128xf32> -> vector<128x128xf32>
    %97 = vector.shape_cast %96 : vector<128x128xf32> to vector<2x64x128xf32>
    %c0_183 = arith.constant 0 : index
    %c0_184 = arith.constant 0 : index
    %98 = vector.load %arg6[%c0_183, %c0_184] : memref<1x128xf32, #tpu.memory_space<vmem>>, vector<1x128xf32>
    %c0_185 = arith.constant 0 : index
    %c0_186 = arith.constant 0 : index
    %99 = vector.load %arg7[%c0_185, %c0_186] : memref<1x128xf32, #tpu.memory_space<vmem>>, vector<1x128xf32>
    %cst_187 = arith.constant dense<0.000000e+00> : vector<2x128xf32>
    %100 = vector.multi_reduction <add>, %97, %cst_187 [1] : vector<2x64x128xf32> to vector<2x128xf32>
    %c0_188 = arith.constant 0 : index
    %c0_189 = arith.constant 0 : index
    %101 = vector.load %arg8[%c0_188, %c0_189] : memref<128x128xf32, #tpu.memory_space<vmem>>, vector<128x128xf32>
    %cst_190 = arith.constant dense<0.000000e+00> : vector<2x128xf32>
    %102 = tpu.matmul %100, %101, %cst_190 {dimension_numbers = #tpu.dot_dimension_numbers<[1], [0], [0], [1], [0, 0, 1, 1], [], []>} : vector<2x128xf32>, vector<128x128xf32>, vector<2x128xf32> -> vector<2x128xf32>
    %cst_191 = arith.constant 3.906250e-03 : f32
    %103 = vector.broadcast %cst_191 : f32 to vector<2x128xf32>
    %104 = arith.mulf %102, %103 : vector<2x128xf32>
    %105 = vector.shape_cast %104 : vector<2x128xf32> to vector<2x1x128xf32>
    %106 = vector.broadcast %105 : vector<2x1x128xf32> to vector<2x64x128xf32>
    %107 = arith.subf %97, %106 : vector<2x64x128xf32>
    %108 = arith.mulf %107, %107 : vector<2x64x128xf32>
    %cst_192 = arith.constant dense<0.000000e+00> : vector<2x128xf32>
    %109 = vector.multi_reduction <add>, %108, %cst_192 [1] : vector<2x64x128xf32> to vector<2x128xf32>
    %c0_193 = arith.constant 0 : index
    %c0_194 = arith.constant 0 : index
    %110 = vector.load %arg8[%c0_193, %c0_194] : memref<128x128xf32, #tpu.memory_space<vmem>>, vector<128x128xf32>
    %cst_195 = arith.constant dense<0.000000e+00> : vector<2x128xf32>
    %111 = tpu.matmul %109, %110, %cst_195 {dimension_numbers = #tpu.dot_dimension_numbers<[1], [0], [0], [1], [0, 0, 1, 1], [], []>} : vector<2x128xf32>, vector<128x128xf32>, vector<2x128xf32> -> vector<2x128xf32>
    %cst_196 = arith.constant 3.906250e-03 : f32
    %112 = vector.broadcast %cst_196 : f32 to vector<2x128xf32>
    %113 = arith.mulf %111, %112 : vector<2x128xf32>
    %cst_197 = arith.constant 9.99999974E-6 : f32
    %114 = vector.broadcast %cst_197 : f32 to vector<2x128xf32>
    %115 = arith.addf %113, %114 : vector<2x128xf32>
    %116 = math.rsqrt %115 : vector<2x128xf32>
    %117 = vector.shape_cast %116 : vector<2x128xf32> to vector<2x1x128xf32>
    %118 = vector.shape_cast %98 : vector<1x128xf32> to vector<1x1x128xf32>
    %119 = vector.broadcast %118 : vector<1x1x128xf32> to vector<2x1x128xf32>
    %120 = arith.mulf %117, %119 : vector<2x1x128xf32>
    %121 = vector.broadcast %120 : vector<2x1x128xf32> to vector<2x64x128xf32>
    %122 = arith.mulf %107, %121 : vector<2x64x128xf32>
    %123 = vector.shape_cast %99 : vector<1x128xf32> to vector<1x1x128xf32>
    %124 = vector.broadcast %123 : vector<1x1x128xf32> to vector<2x64x128xf32>
    %125 = arith.addf %122, %124 : vector<2x64x128xf32>
    %c0_198 = arith.constant 0 : index
    %c1_199 = arith.constant 1 : index
    %c1_200 = arith.constant 1 : index
    %c0_201 = arith.constant 0 : index
    %126 = vector.load %arg1[%c0_198, %c1_199, %c1_200, %c0_201] : memref<2x10x10x128xf32, #tpu.memory_space<vmem>>, vector<2x8x8x128xf32>
    %127 = vector.shape_cast %126 : vector<2x8x8x128xf32> to vector<2x64x128xf32>
    %128 = arith.addf %127, %125 : vector<2x64x128xf32>
    %129 = arith.negf %128 : vector<2x64x128xf32>
    %130 = math.exp %129 : vector<2x64x128xf32>
    %cst_202 = arith.constant 1.000000e+00 : f32
    %131 = vector.broadcast %cst_202 : f32 to vector<2x64x128xf32>
    %132 = arith.addf %131, %130 : vector<2x64x128xf32>
    %133 = arith.divf %131, %132 : vector<2x64x128xf32>
    %134 = arith.mulf %128, %133 : vector<2x64x128xf32>
    %c0_203 = arith.constant 0 : index
    %c0_204 = arith.constant 0 : index
    %c0_205 = arith.constant 0 : index
    %135 = vector.load %arg9[%c0_203, %c0_204, %c0_205] : memref<2x1x128xf32, #tpu.memory_space<vmem>>, vector<2x1x128xf32>
    %136 = vector.broadcast %135 : vector<2x1x128xf32> to vector<2x64x128xf32>
    %137 = arith.addf %134, %136 : vector<2x64x128xf32>
    %138 = vector.shape_cast %137 : vector<2x64x128xf32> to vector<2x8x8x128xf32>
    %c0_206 = arith.constant 0 : index
    %c0_207 = arith.constant 0 : index
    %c0_208 = arith.constant 0 : index
    %c0_209 = arith.constant 0 : index
    %139 = vector.load %arg10[%c0_206, %c0_207, %c0_208, %c0_209] : memref<2x8x8x128xf32, #tpu.memory_space<vmem>>, vector<2x8x8x128xf32>
    tpu.vector_store %arg10[%c0_206, %c0_207, %c0_208, %c0_209], %138 {strides = array<i32>} : memref<2x8x8x128xf32, #tpu.memory_space<vmem>>, vector<2x8x8x128xf32>,
    return
  }
  func.func @transform_0(%arg0: i32) -> (i32, i32, i32, i32) {
    %c0_i32 = arith.constant 0 : i32
    %c0_i32_0 = arith.constant 0 : i32
    %c0_i32_1 = arith.constant 0 : i32
    %c0_i32_2 = arith.constant 0 : i32
    return %arg0, %c0_i32, %c0_i32_0, %c0_i32_1 : i32, i32, i32, i32
  }
  func.func @transform_1(%arg0: i32) -> (i32, i32) {
    %c0_i32 = arith.constant 0 : i32
    %c0_i32_0 = arith.constant 0 : i32
    %c0_i32_1 = arith.constant 0 : i32
    return %c0_i32, %c0_i32_0 : i32, i32
  }
  func.func @transform_2(%arg0: i32) -> (i32, i32) {
    %c0_i32 = arith.constant 0 : i32
    %c0_i32_0 = arith.constant 0 : i32
    %c0_i32_1 = arith.constant 0 : i32
    return %c0_i32, %c0_i32_0 : i32, i32
  }
  func.func @transform_3(%arg0: i32) -> (i32, i32) {
    %c0_i32 = arith.constant 0 : i32
    %c0_i32_0 = arith.constant 0 : i32
    %c0_i32_1 = arith.constant 0 : i32
    return %c0_i32, %c0_i32_0 : i32, i32
  }
  func.func @transform_4(%arg0: i32) -> (i32, i32) {
    %c0_i32 = arith.constant 0 : i32
    %c0_i32_0 = arith.constant 0 : i32
    %c0_i32_1 = arith.constant 0 : i32
    return %c0_i32, %c0_i32_0 : i32, i32
  }
  func.func @transform_5(%arg0: i32) -> (i32, i32) {
    %c0_i32 = arith.constant 0 : i32
    %c0_i32_0 = arith.constant 0 : i32
    %c0_i32_1 = arith.constant 0 : i32
    return %c0_i32, %c0_i32_0 : i32, i32
  }
  func.func @transform_6(%arg0: i32) -> (i32, i32) {
    %c0_i32 = arith.constant 0 : i32
    %c0_i32_0 = arith.constant 0 : i32
    %c0_i32_1 = arith.constant 0 : i32
    return %c0_i32, %c0_i32_0 : i32, i32
  }
  func.func @transform_7(%arg0: i32) -> (i32, i32) {
    %c0_i32 = arith.constant 0 : i32
    %c0_i32_0 = arith.constant 0 : i32
    %c0_i32_1 = arith.constant 0 : i32
    return %c0_i32, %c0_i32_0 : i32, i32
  }
  func.func @transform_8(%arg0: i32) -> (i32, i32, i32) {
    %c0_i32 = arith.constant 0 : i32
    %c0_i32_0 = arith.constant 0 : i32
    %c0_i32_1 = arith.constant 0 : i32
    return %arg0, %c0_i32, %c0_i32_0 : i32, i32, i32
  }
  func.func @transform_9(%arg0: i32) -> (i32, i32, i32, i32) {
    %c0_i32 = arith.constant 0 : i32
    %c0_i32_0 = arith.constant 0 : i32
    %c0_i32_1 = arith.constant 0 : i32
    %c0_i32_2 = arith.constant 0 : i32
    return %arg0, %c0_i32, %c0_i32_0, %c0_i32_1 : i32, i32, i32, i32
  }
}

</mosaic_0001>

<llo_original>
// kernel: tpu_custom_call.1
$region0: #{tpu_custom_call.1}
  #allocation0 [shape = 'u32[]', space=smem, size = 0x4, offset = 0x4, fixed_abs, tag = 'smem constant byte address 0x4 - core index']
  #allocation1 [shape = 'u32[72,128]{1,0:T(1,128)}', space=vmem, size = 0x9000, scoped, tag = 'internal scratch']
  #allocation2 [shape = 'bf16[2,8,8,1152]{3,2,1,0:T(8,128)(2,1)}', space=vmem, size = 0x48000, scoped, tag = 'scratch operand']
  #allocation3 [shape = 'bf16[2,10,10,128]{3,2,1,0:T(8,128)(2,1)}', space=vmem, size = 0x14000, scoped, tag = 'scratch operand']
  %s0 = inlined_call_operand.vmem [shape: f32[4,10,10,128], index: 0, kind: input, shape index: {}]
  %s1 = inlined_call_operand.vmem [shape: bf16[1152,128], index: 1, kind: input, shape index: {}]
  %s2 = inlined_call_operand.vmem [shape: f32[1,128], index: 2, kind: input, shape index: {}]
  %s3 = inlined_call_operand.vmem [shape: f32[1,128], index: 3, kind: input, shape index: {}]
  %s4 = inlined_call_operand.hbm [shape: bf16[1152,128], index: 4, kind: input, shape index: {}]
  %s5 = inlined_call_operand.vmem [shape: f32[1,128], index: 5, kind: input, shape index: {}]
  %s6 = inlined_call_operand.vmem [shape: f32[1,128], index: 6, kind: input, shape index: {}]
  %s7 = inlined_call_operand.vmem [shape: f32[128,128], index: 7, kind: input, shape index: {}]
  %s8 = inlined_call_operand.vmem [shape: f32[4,1,128], index: 8, kind: input, shape index: {}]
  %s9 = inlined_call_operand.hbm [shape: f32[4,8,8,128], index: 9, kind: output, shape index: {}]
  %s10 = sld [smem:[#allocation0]]
  $region73: #{tpu_custom_call.1} parent=0
    _
  %s12 = ssub.s32 1, %s10
  %s13 = scalar_select 0, %s12, %s10
  $region1: #{tpu_custom_call.1} parent=0
    #allocation4 [shape = 'u8[294912]{0}', space=vmem, size = 0x48000, scoped, tag = 'input window, operand 4, single buffered']
    #allocation5 [shape = 's32[2]{0}', space=sflag, size = 0x8, scoped, tag = 'scoped memory for tpu_custom_call.1']
    #allocation6 [shape = 's32[2]{0}', space=sflag, size = 0x8, scoped, tag = 'scoped memory for tpu_custom_call.1']
    #allocation7 [shape = 'u8[131072]{0}', space=vmem, size = 0x20000, scoped, tag = 'output window, operand 0']
    %14 = vsyncpa [#allocation5], 0
    %15 = vsyncpa [#allocation6], 0
    %s16 = scalar_lea.sflag [#allocation6], 1
    %17 = vsyncpa %s16, 0
    loop: start=0, step=1, limit=4
    $region2: #{tpu_custom_call.1} parent=1 // loop_pre_header
      _
    $region3: #{tpu_custom_call.1} parent=1 // loop_header
      %s19 = sphi 0, %s23
      %p20 = scmp.ge.s32.totalorder %s19, 4
      %s29 = sphi 0, %s31
      %s32 = sphi 0, %s29
      %s33 = sphi 0, %s32
      %s49 = sphi 0, %s33
      %s53 = sphi 0, %s53
      %s55 = sphi 0, %s53
      %s56 = sphi 0, %s55
      %s70 = sphi 0, %s56
      %s74 = sphi 0, %s74
      %s76 = sphi 0, %s74
      %s77 = sphi 0, %s76
      %s91 = sphi 0, %s77
      %s95 = sphi 0, %s95
      %s97 = sphi 0, %s95
      %s98 = sphi 0, %s97
      %s112 = sphi 0, %s98
      %s116 = sphi 0, %s116
      %s118 = sphi 0, %s116
      %s119 = sphi 0, %s118
      %s133 = sphi 0, %s119
      %s137 = sphi 0, %s137
      %s139 = sphi 0, %s137
      %s140 = sphi 0, %s139
      %s154 = sphi 0, %s140
      %s158 = sphi 0, %s158
      %s160 = sphi 0, %s158
      %s161 = sphi 0, %s160
      %s175 = sphi 0, %s161
      %s179 = sphi 0, %s179
      %s181 = sphi 0, %s179
      %s182 = sphi 0, %s181
      %s196 = sphi 0, %s182
      %s202 = sphi 0, %s204
      %s205 = sphi 0, %s202
      %s206 = sphi 0, %s205
      %s222 = sphi 0, %s206
      %s228 = sphi 0, %s230
      %s231 = sphi 0, %s228
      %s232 = sphi 0, %s231
      %s248 = sphi 0, %s232
    $region4: #{tpu_custom_call.1} parent=1 // loop_header_branch
      %22 = sbr.rel (%p20) target = $region8
    $region5: #{tpu_custom_call.1} parent=1 // loop_body
      %s24 = ssub.s32 %s19, 1
      %s25 = ssub.s32 %s19, 2
      %s26 = sadd.s32 %s19, 1
      %s27 = ssub.s32 %s19, %s26
      %p28 = scmp.eq.s32.totalorder %s27, 0
      %s30 = sadd.s32 %s29, 1
      %s31 = scalar_select %p28, %s29, %s30
      %p34 = pneg %p28
      %p35 = scmp.eq.s32.totalorder %s19, 1
      %p36 = por %p34, %p35
      %p37 = scmp.ne.s32.totalorder %s29, %s32
      %p38 = scmp.eq.s32.totalorder %s19, 0
      %p39 = por %p37, %p38
      %p40 = scmp.ne.s32.totalorder %s29, %s32
      %p41 = scmp.eq.s32.totalorder %s24, 1
      %p42 = por %p40, %p41
      %p43 = scmp.ne.s32.totalorder %s32, %s33
      %p44 = scmp.eq.s32.totalorder %s24, 0
      %p45 = por %p43, %p44
      %p46 = scmp.ne.s32.totalorder %s32, %s33
      %p47 = scmp.eq.s32.totalorder %s25, 1
      %p48 = por %p46, %p47
      %p50 = scmp.ne.s32.totalorder %s33, %s49
      %p51 = scmp.eq.s32.totalorder %s25, 0
      %p52 = por %p50, %p51
      %s54 = sadd.s32 %s53, 1
      %p57 = scmp.eq.s32.totalorder %s19, 1
      %p58 = scmp.ne.s32.totalorder %s53, %s55
      %p59 = scmp.eq.s32.totalorder %s19, 0
      %p60 = por %p58, %p59
      %p61 = scmp.ne.s32.totalorder %s53, %s55
      %p62 = scmp.eq.s32.totalorder %s24, 1
      %p63 = por %p61, %p62
      %p64 = scmp.ne.s32.totalorder %s55, %s56
      %p65 = scmp.eq.s32.totalorder %s24, 0
      %p66 = por %p64, %p65
      %p67 = scmp.ne.s32.totalorder %s55, %s56
      %p68 = scmp.eq.s32.totalorder %s25, 1
      %p69 = por %p67, %p68
      %p71 = scmp.ne.s32.totalorder %s56, %s70
      %p72 = scmp.eq.s32.totalorder %s25, 0
      %p73 = por %p71, %p72
      %s75 = sadd.s32 %s74, 1
      %p78 = scmp.eq.s32.totalorder %s19, 1
      %p79 = scmp.ne.s32.totalorder %s74, %s76
      %p80 = scmp.eq.s32.totalorder %s19, 0
      %p81 = por %p79, %p80
      %p82 = scmp.ne.s32.totalorder %s74, %s76
      %p83 = scmp.eq.s32.totalorder %s24, 1
      %p84 = por %p82, %p83
      %p85 = scmp.ne.s32.totalorder %s76, %s77
      %p86 = scmp.eq.s32.totalorder %s24, 0
      %p87 = por %p85, %p86
      %p88 = scmp.ne.s32.totalorder %s76, %s77
      %p89 = scmp.eq.s32.totalorder %s25, 1
      %p90 = por %p88, %p89
      %p92 = scmp.ne.s32.totalorder %s77, %s91
      %p93 = scmp.eq.s32.totalorder %s25, 0
      %p94 = por %p92, %p93
      %s96 = sadd.s32 %s95, 1
      %p99 = scmp.eq.s32.totalorder %s19, 1
      %p100 = scmp.ne.s32.totalorder %s95, %s97
      %p101 = scmp.eq.s32.totalorder %s19, 0
      %p102 = por %p100, %p101
      %p103 = scmp.ne.s32.totalorder %s95, %s97
      %p104 = scmp.eq.s32.totalorder %s24, 1
      %p105 = por %p103, %p104
      %p106 = scmp.ne.s32.totalorder %s97, %s98
      %p107 = scmp.eq.s32.totalorder %s24, 0
      %p108 = por %p106, %p107
      %p109 = scmp.ne.s32.totalorder %s97, %s98
      %p110 = scmp.eq.s32.totalorder %s25, 1
      %p111 = por %p109, %p110
      %p113 = scmp.ne.s32.totalorder %s98, %s112
      %p114 = scmp.eq.s32.totalorder %s25, 0
      %p115 = por %p113, %p114
      %s117 = sadd.s32 %s116, 1
      %p120 = scmp.eq.s32.totalorder %s19, 1
      %p121 = scmp.ne.s32.totalorder %s116, %s118
      %p122 = scmp.eq.s32.totalorder %s19, 0
      %p123 = por %p121, %p122
      %p124 = scmp.ne.s32.totalorder %s116, %s118
      %p125 = scmp.eq.s32.totalorder %s24, 1
      %p126 = por %p124, %p125
      %p127 = scmp.ne.s32.totalorder %s118, %s119
      %p128 = scmp.eq.s32.totalorder %s24, 0
      %p129 = por %p127, %p128
      %p130 = scmp.ne.s32.totalorder %s118, %s119
      %p131 = scmp.eq.s32.totalorder %s25, 1
      %p132 = por %p130, %p131
      %p134 = scmp.ne.s32.totalorder %s119, %s133
      %p135 = scmp.eq.s32.totalorder %s25, 0
      %p136 = por %p134, %p135
      %s138 = sadd.s32 %s137, 1
      %p141 = scmp.eq.s32.totalorder %s19, 1
      %p142 = scmp.ne.s32.totalorder %s137, %s139
      %p143 = scmp.eq.s32.totalorder %s19, 0
      %p144 = por %p142, %p143
      %p145 = scmp.ne.s32.totalorder %s137, %s139
      %p146 = scmp.eq.s32.totalorder %s24, 1
      %p147 = por %p145, %p146
      %p148 = scmp.ne.s32.totalorder %s139, %s140
      %p149 = scmp.eq.s32.totalorder %s24, 0
      %p150 = por %p148, %p149
      %p151 = scmp.ne.s32.totalorder %s139, %s140
      %p152 = scmp.eq.s32.totalorder %s25, 1
      %p153 = por %p151, %p152
      %p155 = scmp.ne.s32.totalorder %s140, %s154
      %p156 = scmp.eq.s32.totalorder %s25, 0
      %p157 = por %p155, %p156
      %s159 = sadd.s32 %s158, 1
      %p162 = scmp.eq.s32.totalorder %s19, 1
      %p163 = scmp.ne.s32.totalorder %s158, %s160
      %p164 = scmp.eq.s32.totalorder %s19, 0
      %p165 = por %p163, %p164
      %p166 = scmp.ne.s32.totalorder %s158, %s160
      %p167 = scmp.eq.s32.totalorder %s24, 1
      %p168 = por %p166, %p167
      %p169 = scmp.ne.s32.totalorder %s160, %s161
      %p170 = scmp.eq.s32.totalorder %s24, 0
      %p171 = por %p169, %p170
      %p172 = scmp.ne.s32.totalorder %s160, %s161
      %p173 = scmp.eq.s32.totalorder %s25, 1
      %p174 = por %p172, %p173
      %p176 = scmp.ne.s32.totalorder %s161, %s175
      %p177 = scmp.eq.s32.totalorder %s25, 0
      %p178 = por %p176, %p177
      %s180 = sadd.s32 %s179, 1
      %p183 = scmp.eq.s32.totalorder %s19, 1
      %p184 = scmp.ne.s32.totalorder %s179, %s181
      %p185 = scmp.eq.s32.totalorder %s19, 0
      %p186 = por %p184, %p185
      %p187 = scmp.ne.s32.totalorder %s179, %s181
      %p188 = scmp.eq.s32.totalorder %s24, 1
      %p189 = por %p187, %p188
      %p190 = scmp.ne.s32.totalorder %s181, %s182
      %p191 = scmp.eq.s32.totalorder %s24, 0
      %p192 = por %p190, %p191
      %p193 = scmp.ne.s32.totalorder %s181, %s182
      %p194 = scmp.eq.s32.totalorder %s25, 1
      %p195 = por %p193, %p194
      %p197 = scmp.ne.s32.totalorder %s182, %s196
      %p198 = scmp.eq.s32.totalorder %s25, 0
      %p199 = por %p197, %p198
      %s200 = ssub.s32 %s19, %s26
      %p201 = scmp.eq.s32.totalorder %s200, 0
      %s203 = sadd.s32 %s202, 1
      %s204 = scalar_select %p201, %s202, %s203
      %p207 = pneg %p201
      %p208 = scmp.eq.s32.totalorder %s19, 1
      %p209 = por %p207, %p208
      %p210 = scmp.ne.s32.totalorder %s202, %s205
      %p211 = scmp.eq.s32.totalorder %s19, 0
      %p212 = por %p210, %p211
      %p213 = scmp.ne.s32.totalorder %s202, %s205
      %p214 = scmp.eq.s32.totalorder %s24, 1
      %p215 = por %p213, %p214
      %p216 = scmp.ne.s32.totalorder %s205, %s206
      %p217 = scmp.eq.s32.totalorder %s24, 0
      %p218 = por %p216, %p217
      %p219 = scmp.ne.s32.totalorder %s205, %s206
      %p220 = scmp.eq.s32.totalorder %s25, 1
      %p221 = por %p219, %p220
      %p223 = scmp.ne.s32.totalorder %s206, %s222
      %p224 = scmp.eq.s32.totalorder %s25, 0
      %p225 = por %p223, %p224
      %s226 = ssub.s32 %s19, %s26
      %p227 = scmp.eq.s32.totalorder %s226, 0
      %s229 = sadd.s32 %s228, 1
      %s230 = scalar_select %p227, %s228, %s229
      %p233 = pneg %p227
      %p234 = scmp.eq.s32.totalorder %s19, 1
      %p235 = por %p233, %p234
      %p236 = scmp.ne.s32.totalorder %s228, %s231
      %p237 = scmp.eq.s32.totalorder %s19, 0
      %p238 = por %p236, %p237
      %p239 = scmp.ne.s32.totalorder %s228, %s231
      %p240 = scmp.eq.s32.totalorder %s24, 1
      %p241 = por %p239, %p240
      %p242 = scmp.ne.s32.totalorder %s231, %s232
      %p243 = scmp.eq.s32.totalorder %s24, 0
      %p244 = por %p242, %p243
      %p245 = scmp.ne.s32.totalorder %s231, %s232
      %p246 = scmp.eq.s32.totalorder %s25, 1
      %p247 = por %p245, %p246
      %p249 = scmp.ne.s32.totalorder %s232, %s248
      %p250 = scmp.eq.s32.totalorder %s25, 0
      %p251 = por %p249, %p250
      %p252 = scmp.le.s32.totalorder 1, %s19
      %p253 = scmp.lt.s32.totalorder %s19, 3
      %p254 = pnand %p252, %p253
      %p255 = pneg %p254
      // Predicated region
      $region9: #{tpu_custom_call.1} parent=5 // pred_check
        _
      $region10: #{tpu_custom_call.1} parent=5 // pred_check_branch
        %257 = sbr.rel (%p254) target = $region12
      $region11: #{tpu_custom_call.1} parent=5 // pred_region
        %s258 = ssub.s32 %s19, 1
        // Predicated region
        $region13: #{tpu_custom_call.1} parent=11 // pred_check
          %p259 = pneg %p66
        $region14: #{tpu_custom_call.1} parent=11 // pred_check_branch
          %261 = sbr.rel (%p259) target = $region16
        $region15: #{tpu_custom_call.1} parent=11 // pred_region
          _
        $region16: #{tpu_custom_call.1} parent=11 // pred_fallthru
          _
        // Predicated region
        $region17: #{tpu_custom_call.1} parent=11 // pred_check
          %p262 = pneg %p87
        $region18: #{tpu_custom_call.1} parent=11 // pred_check_branch
          %264 = sbr.rel (%p262) target = $region20
        $region19: #{tpu_custom_call.1} parent=11 // pred_region
          _
        $region20: #{tpu_custom_call.1} parent=11 // pred_fallthru
          _
        // Predicated region
        $region21: #{tpu_custom_call.1} parent=11 // pred_check
          %p265 = pneg %p108
        $region22: #{tpu_custom_call.1} parent=11 // pred_check_branch
          %267 = sbr.rel (%p265) target = $region24
        $region23: #{tpu_custom_call.1} parent=11 // pred_region
          _
        $region24: #{tpu_custom_call.1} parent=11 // pred_fallthru
          _
        // Predicated region
        $region25: #{tpu_custom_call.1} parent=11 // pred_check
          %p268 = pneg %p129
        $region26: #{tpu_custom_call.1} parent=11 // pred_check_branch
          %270 = sbr.rel (%p268) target = $region28
        $region27: #{tpu_custom_call.1} parent=11 // pred_region
          %272 = vsyncadd [#allocation5], 0
          %s273 = sshll.u32 %s4, 4
          %s274 = int_to_ptr.hbm [resolvable:$true] %s273
          %s275 = sshll.u32 [#allocation4], 4
          %s276 = int_to_ptr.vmem [resolvable:$true] %s275
          %281 = dma.hbm_to_vmem [thread:$0]  %s274, 9216, %s276, [#allocation5], 64, 64, 4
        $region28: #{tpu_custom_call.1} parent=11 // pred_fallthru
          _
        // Predicated region
        $region29: #{tpu_custom_call.1} parent=11 // pred_check
          %p282 = pneg %p150
        $region30: #{tpu_custom_call.1} parent=11 // pred_check_branch
          %284 = sbr.rel (%p282) target = $region32
        $region31: #{tpu_custom_call.1} parent=11 // pred_region
          _
        $region32: #{tpu_custom_call.1} parent=11 // pred_fallthru
          _
        // Predicated region
        $region33: #{tpu_custom_call.1} parent=11 // pred_check
          %p285 = pneg %p171
        $region34: #{tpu_custom_call.1} parent=11 // pred_check_branch
          %287 = sbr.rel (%p285) target = $region36
        $region35: #{tpu_custom_call.1} parent=11 // pred_region
          _
        $region36: #{tpu_custom_call.1} parent=11 // pred_fallthru
          _
        // Predicated region
        $region37: #{tpu_custom_call.1} parent=11 // pred_check
          %p288 = pneg %p192
        $region38: #{tpu_custom_call.1} parent=11 // pred_check_branch
          %290 = sbr.rel (%p288) target = $region40
        $region39: #{tpu_custom_call.1} parent=11 // pred_region
          _
        $region40: #{tpu_custom_call.1} parent=11 // pred_fallthru
          _
      $region12: #{tpu_custom_call.1} parent=5 // pred_fallthru
        _
      %p291 = scmp.lt.s32.totalorder %s19, 2
      // Predicated region
      $region41: #{tpu_custom_call.1} parent=5 // pred_check
        %p292 = pneg %p291
      $region42: #{tpu_custom_call.1} parent=5 // pred_check_branch
        %294 = sbr.rel (%p292) target = $region44
      $region43: #{tpu_custom_call.1} parent=5 // pred_region
        // Predicated region
        $region45: #{tpu_custom_call.1} parent=43 // pred_check
          %p295 = pneg %p39
        $region46: #{tpu_custom_call.1} parent=43 // pred_check_branch
          %297 = sbr.rel (%p295) target = $region48
        $region47: #{tpu_custom_call.1} parent=43 // pred_region
          %s298 = smul.u32 2, %s19
          %p299 = scmp.lt.s32.totalorder %s298, 3
          %s300 = scalar_select %p299, %s298, 3
          %s301 = smul.addr %s300, 20
          %s302 = smul.addr %s301, 8
          %s303 = scalar_lea.vmem %s0, %s302
          %s304 = smul.u32 2, %s19
        $region48: #{tpu_custom_call.1} parent=43 // pred_fallthru
          _
        // Predicated region
        $region49: #{tpu_custom_call.1} parent=43 // pred_check
          %p305 = pneg %p212
        $region50: #{tpu_custom_call.1} parent=43 // pred_check_branch
          %307 = sbr.rel (%p305) target = $region52
        $region51: #{tpu_custom_call.1} parent=43 // pred_region
          %s308 = smul.u32 2, %s19
          %p309 = scmp.lt.s32.totalorder %s308, 3
          %s310 = scalar_select %p309, %s308, 3
          %s311 = scalar_lea.vmem %s8, %s310
          %s312 = smul.u32 2, %s19
        $region52: #{tpu_custom_call.1} parent=43 // pred_fallthru
          _
      $region44: #{tpu_custom_call.1} parent=5 // pred_fallthru
        _
      %p313 = scmp.le.s32.totalorder 1, %s19
      %p314 = scmp.lt.s32.totalorder %s19, 3
      %p315 = pnand %p313, %p314
      %p316 = pneg %p315
      // Predicated region
      $region53: #{tpu_custom_call.1} parent=5 // pred_check
        _
      $region54: #{tpu_custom_call.1} parent=5 // pred_check_branch
        %318 = sbr.rel (%p315) target = $region56
      $region55: #{tpu_custom_call.1} parent=5 // pred_region
        %s319 = ssub.s32 %s19, 1
        // Predicated region
        $region57: #{tpu_custom_call.1} parent=55 // pred_check
          %p320 = pneg %p129
        $region58: #{tpu_custom_call.1} parent=55 // pred_check_branch
          %322 = sbr.rel (%p320) target = $region60
        $region59: #{tpu_custom_call.1} parent=55 // pred_region
          %324 = dma.done [#allocation5], 9216
        $region60: #{tpu_custom_call.1} parent=55 // pred_fallthru
          _
        %s325 = smul.u32 2, %s24
        %p326 = scmp.lt.s32.totalorder %s325, 3
        %s327 = scalar_select %p326, %s325, 3
        %s328 = smul.addr %s327, 20
        %s329 = smul.addr %s328, 8
        %s330 = scalar_lea.vmem %s0, %s329
        %p331 = pneg %p45
        %p332 = pneg %p42
        %p333 = pneg %p66
        %p334 = pneg %p63
        %p335 = pneg %p87
        %p336 = pneg %p84
        %p337 = pneg %p108
        %p338 = pneg %p105
        %p339 = pneg %p129
        %p340 = pneg %p126
        %p341 = pneg %p150
        %p342 = pneg %p147
        %p343 = pneg %p171
        %p344 = pneg %p168
        %p345 = pneg %p192
        %p346 = pneg %p189
        %s347 = smul.u32 2, %s24
        %p348 = scmp.lt.s32.totalorder %s347, 3
        %s349 = scalar_select %p348, %s347, 3
        %s350 = scalar_lea.vmem %s8, %s349
        %p351 = pneg %p218
        %p352 = pneg %p215
        %p353 = pneg %p244
        %p354 = pneg %p241
        %s355 = sand.u32 %s231, 1
        %s356 = scalar_lea.sflag [#allocation6], %s355
        %s357 = sand.u32 %s231, 1
        %s358 = smul.addr %s357, 128
        %s359 = scalar_lea.vmem [#allocation7], %s358
        %s360 = smul.u32 2, %s24
        %p361 = scmp.lt.s32.totalorder %s360, 3
        %s362 = scalar_select %p361, %s360, 3
        %s363 = smul.addr %s362, 20
        %s364 = smul.addr %s363, 8
        %s365 = scalar_lea.vmem %s0, %s364
        %s366 = smul.u32 2, %s24
        %s367 = smul.u32 2, %s24
        %p368 = scmp.lt.s32.totalorder %s367, 3
        %s369 = scalar_select %p368, %s367, 3
        %s370 = scalar_lea.vmem %s8, %s369
        %s371 = smul.u32 2, %s24
        %s372 = smul.u32 2, %s24
        %v374 = vld [vmem:[%s365] sm:$0xff]
        %v375 = vld [vmem:[%s365 + $0x10] sm:$0xff]
        %v376 = vld [vmem:[%s365 + $0x20] sm:$0xff]
        %v377 = vld [vmem:[%s365 + $0x30] sm:$0xff]
        %v378 = vld [vmem:[%s365 + $0x40] sm:$0xff]
        %v379 = vld [vmem:[%s365 + $0x50] sm:$0xff]
        %v380 = vld [vmem:[%s365 + $0x60] sm:$0xff]
        %v381 = vld [vmem:[%s365 + $0x70] sm:$0xff]
        %v382 = vld [vmem:[%s365 + $0xa0] sm:$0xff]
        %v383 = vld [vmem:[%s365 + $0xb0] sm:$0xff]
        %v384 = vld [vmem:[%s365 + $0xc0] sm:$0xff]
        %v385 = vld [vmem:[%s365 + $0xd0] sm:$0xff]
        %v386 = vld [vmem:[%s365 + $0xe0] sm:$0xff]
        %v387 = vld [vmem:[%s365 + $0xf0] sm:$0xff]
        %v388 = vld [vmem:[%s365 + $0x100] sm:$0xff]
        %v389 = vld [vmem:[%s365 + $0x110] sm:$0xff]
        %v390 = vpack.c.bf16 %v374, %v374
        %v391 = vpack.c.bf16 %v375, %v375
        %v392 = vpack.c.bf16 %v376, %v376
        %v393 = vpack.c.bf16 %v377, %v377
        %v394 = vpack.c.bf16 %v378, %v378
        %v395 = vpack.c.bf16 %v379, %v379
        %v396 = vpack.c.bf16 %v380, %v380
        %v397 = vpack.c.bf16 %v381, %v381
        %v398 = vpack.c.bf16 %v382, %v382
        %v399 = vpack.c.bf16 %v383, %v383
        %v400 = vpack.c.bf16 %v384, %v384
        %v401 = vpack.c.bf16 %v385, %v385
        %v402 = vpack.c.bf16 %v386, %v386
        %v403 = vpack.c.bf16 %v387, %v387
        %v404 = vpack.c.bf16 %v388, %v388
        %v405 = vpack.c.bf16 %v389, %v389
        %406 = vst [vmem:[#allocation2] sm:$0xf] %v390
        %407 = vst [vmem:[#allocation2 + $0x24] sm:$0xf] %v391
        %408 = vst [vmem:[#allocation2 + $0x48] sm:$0xf] %v392
        %409 = vst [vmem:[#allocation2 + $0x6c] sm:$0xf] %v393
        %410 = vst [vmem:[#allocation2 + $0x90] sm:$0xf] %v394
        %411 = vst [vmem:[#allocation2 + $0xb4] sm:$0xf] %v395
        %412 = vst [vmem:[#allocation2 + $0xd8] sm:$0xf] %v396
        %413 = vst [vmem:[#allocation2 + $0xfc] sm:$0xf] %v397
        %414 = vst [vmem:[#allocation2 + $0x120] sm:$0xf] %v398
        %415 = vst [vmem:[#allocation2 + $0x144] sm:$0xf] %v399
        %416 = vst [vmem:[#allocation2 + $0x168] sm:$0xf] %v400
        %417 = vst [vmem:[#allocation2 + $0x18c] sm:$0xf] %v401
        %418 = vst [vmem:[#allocation2 + $0x1b0] sm:$0xf] %v402
        %419 = vst [vmem:[#allocation2 + $0x1d4] sm:$0xf] %v403
        %420 = vst [vmem:[#allocation2 + $0x1f8] sm:$0xf] %v404
        %421 = vst [vmem:[#allocation2 + $0x21c] sm:$0xf] %v405
        %v422 = vld [vmem:[%s365 + $0x1] sm:$0xff]
        %v423 = vld [vmem:[%s365 + $0x11] sm:$0xff]
        %v424 = vld [vmem:[%s365 + $0x21] sm:$0xff]
        %v425 = vld [vmem:[%s365 + $0x31] sm:$0xff]
        %v426 = vld [vmem:[%s365 + $0x41] sm:$0xff]
        %v427 = vld [vmem:[%s365 + $0x51] sm:$0xff]
        %v428 = vld [vmem:[%s365 + $0x61] sm:$0xff]
        %v429 = vld [vmem:[%s365 + $0x71] sm:$0xff]
        %v430 = vld [vmem:[%s365 + $0xa1] sm:$0xff]
        %v431 = vld [vmem:[%s365 + $0xb1] sm:$0xff]
        %v432 = vld [vmem:[%s365 + $0xc1] sm:$0xff]
        %v433 = vld [vmem:[%s365 + $0xd1] sm:$0xff]
        %v434 = vld [vmem:[%s365 + $0xe1] sm:$0xff]
        %v435 = vld [vmem:[%s365 + $0xf1] sm:$0xff]
        %v436 = vld [vmem:[%s365 + $0x101] sm:$0xff]
        %v437 = vld [vmem:[%s365 + $0x111] sm:$0xff]
        %v438 = vpack.c.bf16 %v422, %v422
        %v439 = vpack.c.bf16 %v423, %v423
        %v440 = vpack.c.bf16 %v424, %v424
        %v441 = vpack.c.bf16 %v425, %v425
        %v442 = vpack.c.bf16 %v426, %v426
        %v443 = vpack.c.bf16 %v427, %v427
        %v444 = vpack.c.bf16 %v428, %v428
        %v445 = vpack.c.bf16 %v429, %v429
        %v446 = vpack.c.bf16 %v430, %v430
        %v447 = vpack.c.bf16 %v431, %v431
        %v448 = vpack.c.bf16 %v432, %v432
        %v449 = vpack.c.bf16 %v433, %v433
        %v450 = vpack.c.bf16 %v434, %v434
        %v451 = vpack.c.bf16 %v435, %v435
        %v452 = vpack.c.bf16 %v436, %v436
        %v453 = vpack.c.bf16 %v437, %v437
        %454 = vst [vmem:[#allocation2 + $0x4] sm:$0xf] %v438
        %455 = vst [vmem:[#allocation2 + $0x28] sm:$0xf] %v439
        %456 = vst [vmem:[#allocation2 + $0x4c] sm:$0xf] %v440
        %457 = vst [vmem:[#allocation2 + $0x70] sm:$0xf] %v441
        %458 = vst [vmem:[#allocation2 + $0x94] sm:$0xf] %v442
        %459 = vst [vmem:[#allocation2 + $0xb8] sm:$0xf] %v443
        %460 = vst [vmem:[#allocation2 + $0xdc] sm:$0xf] %v444
        %461 = vst [vmem:[#allocation2 + $0x100] sm:$0xf] %v445
        %462 = vst [vmem:[#allocation2 + $0x124] sm:$0xf] %v446
        %463 = vst [vmem:[#allocation2 + $0x148] sm:$0xf] %v447
        %464 = vst [vmem:[#allocation2 + $0x16c] sm:$0xf] %v448
        %465 = vst [vmem:[#allocation2 + $0x190] sm:$0xf] %v449
        %466 = vst [vmem:[#allocation2 + $0x1b4] sm:$0xf] %v450
        %467 = vst [vmem:[#allocation2 + $0x1d8] sm:$0xf] %v451
        %468 = vst [vmem:[#allocation2 + $0x1fc] sm:$0xf] %v452
        %469 = vst [vmem:[#allocation2 + $0x220] sm:$0xf] %v453
        %v470 = vld [vmem:[%s365 + $0x2] sm:$0xff]
        %v471 = vld [vmem:[%s365 + $0x12] sm:$0xff]
        %v472 = vld [vmem:[%s365 + $0x22] sm:$0xff]
        %v473 = vld [vmem:[%s365 + $0x32] sm:$0xff]
        %v474 = vld [vmem:[%s365 + $0x42] sm:$0xff]
        %v475 = vld [vmem:[%s365 + $0x52] sm:$0xff]
        %v476 = vld [vmem:[%s365 + $0x62] sm:$0xff]
        %v477 = vld [vmem:[%s365 + $0x72] sm:$0xff]
        %v478 = vld [vmem:[%s365 + $0xa2] sm:$0xff]
        %v479 = vld [vmem:[%s365 + $0xb2] sm:$0xff]
        %v480 = vld [vmem:[%s365 + $0xc2] sm:$0xff]
        %v481 = vld [vmem:[%s365 + $0xd2] sm:$0xff]
        %v482 = vld [vmem:[%s365 + $0xe2] sm:$0xff]
        %v483 = vld [vmem:[%s365 + $0xf2] sm:$0xff]
        %v484 = vld [vmem:[%s365 + $0x102] sm:$0xff]
        %v485 = vld [vmem:[%s365 + $0x112] sm:$0xff]
        %v486 = vpack.c.bf16 %v470, %v470
        %v487 = vpack.c.bf16 %v471, %v471
        %v488 = vpack.c.bf16 %v472, %v472
        %v489 = vpack.c.bf16 %v473, %v473
        %v490 = vpack.c.bf16 %v474, %v474
        %v491 = vpack.c.bf16 %v475, %v475
        %v492 = vpack.c.bf16 %v476, %v476
        %v493 = vpack.c.bf16 %v477, %v477
        %v494 = vpack.c.bf16 %v478, %v478
        %v495 = vpack.c.bf16 %v479, %v479
        %v496 = vpack.c.bf16 %v480, %v480
        %v497 = vpack.c.bf16 %v481, %v481
        %v498 = vpack.c.bf16 %v482, %v482
        %v499 = vpack.c.bf16 %v483, %v483
        %v500 = vpack.c.bf16 %v484, %v484
        %v501 = vpack.c.bf16 %v485, %v485
        %502 = vst [vmem:[#allocation2 + $0x8] sm:$0xf] %v486
        %503 = vst [vmem:[#allocation2 + $0x2c] sm:$0xf] %v487
        %504 = vst [vmem:[#allocation2 + $0x50] sm:$0xf] %v488
        %505 = vst [vmem:[#allocation2 + $0x74] sm:$0xf] %v489
        %506 = vst [vmem:[#allocation2 + $0x98] sm:$0xf] %v490
        %507 = vst [vmem:[#allocation2 + $0xbc] sm:$0xf] %v491
        %508 = vst [vmem:[#allocation2 + $0xe0] sm:$0xf] %v492
        %509 = vst [vmem:[#allocation2 + $0x104] sm:$0xf] %v493
        %510 = vst [vmem:[#allocation2 + $0x128] sm:$0xf] %v494
        %511 = vst [vmem:[#allocation2 + $0x14c] sm:$0xf] %v495
        %512 = vst [vmem:[#allocation2 + $0x170] sm:$0xf] %v496
        %513 = vst [vmem:[#allocation2 + $0x194] sm:$0xf] %v497
        %514 = vst [vmem:[#allocation2 + $0x1b8] sm:$0xf] %v498
        %515 = vst [vmem:[#allocation2 + $0x1dc] sm:$0xf] %v499
        %516 = vst [vmem:[#allocation2 + $0x200] sm:$0xf] %v500
        %517 = vst [vmem:[#allocation2 + $0x224] sm:$0xf] %v501
        %s518 = scalar_lea.vmem %s365, 16
        %v519 = vld [vmem:[%s518] sm:$0xff]
        %v520 = vld [vmem:[%s518 + $0x10] sm:$0xff]
        %v521 = vld [vmem:[%s518 + $0x20] sm:$0xff]
        %v522 = vld [vmem:[%s518 + $0x30] sm:$0xff]
        %v523 = vld [vmem:[%s518 + $0x40] sm:$0xff]
        %v524 = vld [vmem:[%s518 + $0x50] sm:$0xff]
        %v525 = vld [vmem:[%s518 + $0x60] sm:$0xff]
        %v526 = vld [vmem:[%s518 + $0x70] sm:$0xff]
        %v527 = vld [vmem:[%s518 + $0xa0] sm:$0xff]
        %v528 = vld [vmem:[%s518 + $0xb0] sm:$0xff]
        %v529 = vld [vmem:[%s518 + $0xc0] sm:$0xff]
        %v530 = vld [vmem:[%s518 + $0xd0] sm:$0xff]
        %v531 = vld [vmem:[%s518 + $0xe0] sm:$0xff]
        %v532 = vld [vmem:[%s518 + $0xf0] sm:$0xff]
        %v533 = vld [vmem:[%s518 + $0x100] sm:$0xff]
        %v534 = vld [vmem:[%s518 + $0x110] sm:$0xff]
        %v535 = vpack.c.bf16 %v519, %v519
        %v536 = vpack.c.bf16 %v520, %v520
        %v537 = vpack.c.bf16 %v521, %v521
        %v538 = vpack.c.bf16 %v522, %v522
        %v539 = vpack.c.bf16 %v523, %v523
        %v540 = vpack.c.bf16 %v524, %v524
        %v541 = vpack.c.bf16 %v525, %v525
        %v542 = vpack.c.bf16 %v526, %v526
        %v543 = vpack.c.bf16 %v527, %v527
        %v544 = vpack.c.bf16 %v528, %v528
        %v545 = vpack.c.bf16 %v529, %v529
        %v546 = vpack.c.bf16 %v530, %v530
        %v547 = vpack.c.bf16 %v531, %v531
        %v548 = vpack.c.bf16 %v532, %v532
        %v549 = vpack.c.bf16 %v533, %v533
        %v550 = vpack.c.bf16 %v534, %v534
        %551 = vst [vmem:[#allocation2 + $0xc] sm:$0xf] %v535
        %552 = vst [vmem:[#allocation2 + $0x30] sm:$0xf] %v536
        %553 = vst [vmem:[#allocation2 + $0x54] sm:$0xf] %v537
        %554 = vst [vmem:[#allocation2 + $0x78] sm:$0xf] %v538
        %555 = vst [vmem:[#allocation2 + $0x9c] sm:$0xf] %v539
        %556 = vst [vmem:[#allocation2 + $0xc0] sm:$0xf] %v540
        %557 = vst [vmem:[#allocation2 + $0xe4] sm:$0xf] %v541
        %558 = vst [vmem:[#allocation2 + $0x108] sm:$0xf] %v542
        %559 = vst [vmem:[#allocation2 + $0x12c] sm:$0xf] %v543
        %560 = vst [vmem:[#allocation2 + $0x150] sm:$0xf] %v544
        %561 = vst [vmem:[#allocation2 + $0x174] sm:$0xf] %v545
        %562 = vst [vmem:[#allocation2 + $0x198] sm:$0xf] %v546
        %563 = vst [vmem:[#allocation2 + $0x1bc] sm:$0xf] %v547
        %564 = vst [vmem:[#allocation2 + $0x1e0] sm:$0xf] %v548
        %565 = vst [vmem:[#allocation2 + $0x204] sm:$0xf] %v549
        %566 = vst [vmem:[#allocation2 + $0x228] sm:$0xf] %v550
        %v567 = vld [vmem:[%s518 + $0x1] sm:$0xff]
        %v568 = vld [vmem:[%s518 + $0x11] sm:$0xff]
        %v569 = vld [vmem:[%s518 + $0x21] sm:$0xff]
        %v570 = vld [vmem:[%s518 + $0x31] sm:$0xff]
        %v571 = vld [vmem:[%s518 + $0x41] sm:$0xff]
        %v572 = vld [vmem:[%s518 + $0x51] sm:$0xff]
        %v573 = vld [vmem:[%s518 + $0x61] sm:$0xff]
        %v574 = vld [vmem:[%s518 + $0x71] sm:$0xff]
        %v575 = vld [vmem:[%s518 + $0xa1] sm:$0xff]
        %v576 = vld [vmem:[%s518 + $0xb1] sm:$0xff]
        %v577 = vld [vmem:[%s518 + $0xc1] sm:$0xff]
        %v578 = vld [vmem:[%s518 + $0xd1] sm:$0xff]
        %v579 = vld [vmem:[%s518 + $0xe1] sm:$0xff]
        %v580 = vld [vmem:[%s518 + $0xf1] sm:$0xff]
        %v581 = vld [vmem:[%s518 + $0x101] sm:$0xff]
        %v582 = vld [vmem:[%s518 + $0x111] sm:$0xff]
        %v583 = vpack.c.bf16 %v567, %v567
        %v584 = vpack.c.bf16 %v568, %v568
        %v585 = vpack.c.bf16 %v569, %v569
        %v586 = vpack.c.bf16 %v570, %v570
        %v587 = vpack.c.bf16 %v571, %v571
        %v588 = vpack.c.bf16 %v572, %v572
        %v589 = vpack.c.bf16 %v573, %v573
        %v590 = vpack.c.bf16 %v574, %v574
        %v591 = vpack.c.bf16 %v575, %v575
        %v592 = vpack.c.bf16 %v576, %v576
        %v593 = vpack.c.bf16 %v577, %v577
        %v594 = vpack.c.bf16 %v578, %v578
        %v595 = vpack.c.bf16 %v579, %v579
        %v596 = vpack.c.bf16 %v580, %v580
        %v597 = vpack.c.bf16 %v581, %v581
        %v598 = vpack.c.bf16 %v582, %v582
        %599 = vst [vmem:[#allocation2 + $0x10] sm:$0xf] %v583
        %600 = vst [vmem:[#allocation2 + $0x34] sm:$0xf] %v584
        %601 = vst [vmem:[#allocation2 + $0x58] sm:$0xf] %v585
        %602 = vst [vmem:[#allocation2 + $0x7c] sm:$0xf] %v586
        %603 = vst [vmem:[#allocation2 + $0xa0] sm:$0xf] %v587
        %604 = vst [vmem:[#allocation2 + $0xc4] sm:$0xf] %v588
        %605 = vst [vmem:[#allocation2 + $0xe8] sm:$0xf] %v589
        %606 = vst [vmem:[#allocation2 + $0x10c] sm:$0xf] %v590
        %607 = vst [vmem:[#allocation2 + $0x130] sm:$0xf] %v591
        %608 = vst [vmem:[#allocation2 + $0x154] sm:$0xf] %v592
        %609 = vst [vmem:[#allocation2 + $0x178] sm:$0xf] %v593
        %610 = vst [vmem:[#allocation2 + $0x19c] sm:$0xf] %v594
        %611 = vst [vmem:[#allocation2 + $0x1c0] sm:$0xf] %v595
        %612 = vst [vmem:[#allocation2 + $0x1e4] sm:$0xf] %v596
        %613 = vst [vmem:[#allocation2 + $0x208] sm:$0xf] %v597
        %614 = vst [vmem:[#allocation2 + $0x22c] sm:$0xf] %v598
        %v615 = vld [vmem:[%s518 + $0x2] sm:$0xff]
        %v616 = vld [vmem:[%s518 + $0x12] sm:$0xff]
        %v617 = vld [vmem:[%s518 + $0x22] sm:$0xff]
        %v618 = vld [vmem:[%s518 + $0x32] sm:$0xff]
        %v619 = vld [vmem:[%s518 + $0x42] sm:$0xff]
        %v620 = vld [vmem:[%s518 + $0x52] sm:$0xff]
        %v621 = vld [vmem:[%s518 + $0x62] sm:$0xff]
        %v622 = vld [vmem:[%s518 + $0x72] sm:$0xff]
        %v623 = vld [vmem:[%s518 + $0xa2] sm:$0xff]
        %v624 = vld [vmem:[%s518 + $0xb2] sm:$0xff]
        %v625 = vld [vmem:[%s518 + $0xc2] sm:$0xff]
        %v626 = vld [vmem:[%s518 + $0xd2] sm:$0xff]
        %v627 = vld [vmem:[%s518 + $0xe2] sm:$0xff]
        %v628 = vld [vmem:[%s518 + $0xf2] sm:$0xff]
        %v629 = vld [vmem:[%s518 + $0x102] sm:$0xff]
        %v630 = vld [vmem:[%s518 + $0x112] sm:$0xff]
        %v631 = vpack.c.bf16 %v615, %v615
        %v632 = vpack.c.bf16 %v616, %v616
        %v633 = vpack.c.bf16 %v617, %v617
        %v634 = vpack.c.bf16 %v618, %v618
        %v635 = vpack.c.bf16 %v619, %v619
        %v636 = vpack.c.bf16 %v620, %v620
        %v637 = vpack.c.bf16 %v621, %v621
        %v638 = vpack.c.bf16 %v622, %v622
        %v639 = vpack.c.bf16 %v623, %v623
        %v640 = vpack.c.bf16 %v624, %v624
        %v641 = vpack.c.bf16 %v625, %v625
        %v642 = vpack.c.bf16 %v626, %v626
        %v643 = vpack.c.bf16 %v627, %v627
        %v644 = vpack.c.bf16 %v628, %v628
        %v645 = vpack.c.bf16 %v629, %v629
        %v646 = vpack.c.bf16 %v630, %v630
        %647 = vst [vmem:[#allocation2 + $0x14] sm:$0xf] %v631
        %648 = vst [vmem:[#allocation2 + $0x38] sm:$0xf] %v632
        %649 = vst [vmem:[#allocation2 + $0x5c] sm:$0xf] %v633
        %650 = vst [vmem:[#allocation2 + $0x80] sm:$0xf] %v634
        %651 = vst [vmem:[#allocation2 + $0xa4] sm:$0xf] %v635
        %652 = vst [vmem:[#allocation2 + $0xc8] sm:$0xf] %v636
        %653 = vst [vmem:[#allocation2 + $0xec] sm:$0xf] %v637
        %654 = vst [vmem:[#allocation2 + $0x110] sm:$0xf] %v638
        %655 = vst [vmem:[#allocation2 + $0x134] sm:$0xf] %v639
        %656 = vst [vmem:[#allocation2 + $0x158] sm:$0xf] %v640
        %657 = vst [vmem:[#allocation2 + $0x17c] sm:$0xf] %v641
        %658 = vst [vmem:[#allocation2 + $0x1a0] sm:$0xf] %v642
        %659 = vst [vmem:[#allocation2 + $0x1c4] sm:$0xf] %v643
        %660 = vst [vmem:[#allocation2 + $0x1e8] sm:$0xf] %v644
        %661 = vst [vmem:[#allocation2 + $0x20c] sm:$0xf] %v645
        %662 = vst [vmem:[#allocation2 + $0x230] sm:$0xf] %v646
        %s663 = scalar_lea.vmem %s365, 32
        %v664 = vld [vmem:[%s663] sm:$0xff]
        %v665 = vld [vmem:[%s663 + $0x10] sm:$0xff]
        %v666 = vld [vmem:[%s663 + $0x20] sm:$0xff]
        %v667 = vld [vmem:[%s663 + $0x30] sm:$0xff]
        %v668 = vld [vmem:[%s663 + $0x40] sm:$0xff]
        %v669 = vld [vmem:[%s663 + $0x50] sm:$0xff]
        %v670 = vld [vmem:[%s663 + $0x60] sm:$0xff]
        %v671 = vld [vmem:[%s663 + $0x70] sm:$0xff]
        %v672 = vld [vmem:[%s663 + $0xa0] sm:$0xff]
        %v673 = vld [vmem:[%s663 + $0xb0] sm:$0xff]
        %v674 = vld [vmem:[%s663 + $0xc0] sm:$0xff]
        %v675 = vld [vmem:[%s663 + $0xd0] sm:$0xff]
        %v676 = vld [vmem:[%s663 + $0xe0] sm:$0xff]
        %v677 = vld [vmem:[%s663 + $0xf0] sm:$0xff]
        %v678 = vld [vmem:[%s663 + $0x100] sm:$0xff]
        %v679 = vld [vmem:[%s663 + $0x110] sm:$0xff]
        %v680 = vpack.c.bf16 %v664, %v664
        %v681 = vpack.c.bf16 %v665, %v665
        %v682 = vpack.c.bf16 %v666, %v666
        %v683 = vpack.c.bf16 %v667, %v667
        %v684 = vpack.c.bf16 %v668, %v668
        %v685 = vpack.c.bf16 %v669, %v669
        %v686 = vpack.c.bf16 %v670, %v670
        %v687 = vpack.c.bf16 %v671, %v671
        %v688 = vpack.c.bf16 %v672, %v672
        %v689 = vpack.c.bf16 %v673, %v673
        %v690 = vpack.c.bf16 %v674, %v674
        %v691 = vpack.c.bf16 %v675, %v675
        %v692 = vpack.c.bf16 %v676, %v676
        %v693 = vpack.c.bf16 %v677, %v677
        %v694 = vpack.c.bf16 %v678, %v678
        %v695 = vpack.c.bf16 %v679, %v679
        %696 = vst [vmem:[#allocation2 + $0x18] sm:$0xf] %v680
        %697 = vst [vmem:[#allocation2 + $0x3c] sm:$0xf] %v681
        %698 = vst [vmem:[#allocation2 + $0x60] sm:$0xf] %v682
        %699 = vst [vmem:[#allocation2 + $0x84] sm:$0xf] %v683
        %700 = vst [vmem:[#allocation2 + $0xa8] sm:$0xf] %v684
        %701 = vst [vmem:[#allocation2 + $0xcc] sm:$0xf] %v685
        %702 = vst [vmem:[#allocation2 + $0xf0] sm:$0xf] %v686
        %703 = vst [vmem:[#allocation2 + $0x114] sm:$0xf] %v687
        %704 = vst [vmem:[#allocation2 + $0x138] sm:$0xf] %v688
        %705 = vst [vmem:[#allocation2 + $0x15c] sm:$0xf] %v689
        %706 = vst [vmem:[#allocation2 + $0x180] sm:$0xf] %v690
        %707 = vst [vmem:[#allocation2 + $0x1a4] sm:$0xf] %v691
        %708 = vst [vmem:[#allocation2 + $0x1c8] sm:$0xf] %v692
        %709 = vst [vmem:[#allocation2 + $0x1ec] sm:$0xf] %v693
        %710 = vst [vmem:[#allocation2 + $0x210] sm:$0xf] %v694
        %711 = vst [vmem:[#allocation2 + $0x234] sm:$0xf] %v695
        %v712 = vld [vmem:[%s663 + $0x1] sm:$0xff]
        %v713 = vld [vmem:[%s663 + $0x11] sm:$0xff]
        %v714 = vld [vmem:[%s663 + $0x21] sm:$0xff]
        %v715 = vld [vmem:[%s663 + $0x31] sm:$0xff]
        %v716 = vld [vmem:[%s663 + $0x41] sm:$0xff]
        %v717 = vld [vmem:[%s663 + $0x51] sm:$0xff]
        %v718 = vld [vmem:[%s663 + $0x61] sm:$0xff]
        %v719 = vld [vmem:[%s663 + $0x71] sm:$0xff]
        %v720 = vld [vmem:[%s663 + $0xa1] sm:$0xff]
        %v721 = vld [vmem:[%s663 + $0xb1] sm:$0xff]
        %v722 = vld [vmem:[%s663 + $0xc1] sm:$0xff]
        %v723 = vld [vmem:[%s663 + $0xd1] sm:$0xff]
        %v724 = vld [vmem:[%s663 + $0xe1] sm:$0xff]
        %v725 = vld [vmem:[%s663 + $0xf1] sm:$0xff]
        %v726 = vld [vmem:[%s663 + $0x101] sm:$0xff]
        %v727 = vld [vmem:[%s663 + $0x111] sm:$0xff]
        %v728 = vpack.c.bf16 %v712, %v712
        %v729 = vpack.c.bf16 %v713, %v713
        %v730 = vpack.c.bf16 %v714, %v714
        %v731 = vpack.c.bf16 %v715, %v715
        %v732 = vpack.c.bf16 %v716, %v716
        %v733 = vpack.c.bf16 %v717, %v717
        %v734 = vpack.c.bf16 %v718, %v718
        %v735 = vpack.c.bf16 %v719, %v719
        %v736 = vpack.c.bf16 %v720, %v720
        %v737 = vpack.c.bf16 %v721, %v721
        %v738 = vpack.c.bf16 %v722, %v722
        %v739 = vpack.c.bf16 %v723, %v723
        %v740 = vpack.c.bf16 %v724, %v724
        %v741 = vpack.c.bf16 %v725, %v725
        %v742 = vpack.c.bf16 %v726, %v726
        %v743 = vpack.c.bf16 %v727, %v727
        %744 = vst [vmem:[#allocation2 + $0x1c] sm:$0xf] %v728
        %745 = vst [vmem:[#allocation2 + $0x40] sm:$0xf] %v729
        %746 = vst [vmem:[#allocation2 + $0x64] sm:$0xf] %v730
        %747 = vst [vmem:[#allocation2 + $0x88] sm:$0xf] %v731
        %748 = vst [vmem:[#allocation2 + $0xac] sm:$0xf] %v732
        %749 = vst [vmem:[#allocation2 + $0xd0] sm:$0xf] %v733
        %750 = vst [vmem:[#allocation2 + $0xf4] sm:$0xf] %v734
        %751 = vst [vmem:[#allocation2 + $0x118] sm:$0xf] %v735
        %752 = vst [vmem:[#allocation2 + $0x13c] sm:$0xf] %v736
        %753 = vst [vmem:[#allocation2 + $0x160] sm:$0xf] %v737
        %754 = vst [vmem:[#allocation2 + $0x184] sm:$0xf] %v738
        %755 = vst [vmem:[#allocation2 + $0x1a8] sm:$0xf] %v739
        %756 = vst [vmem:[#allocation2 + $0x1cc] sm:$0xf] %v740
        %757 = vst [vmem:[#allocation2 + $0x1f0] sm:$0xf] %v741
        %758 = vst [vmem:[#allocation2 + $0x214] sm:$0xf] %v742
        %759 = vst [vmem:[#allocation2 + $0x238] sm:$0xf] %v743
        %v760 = vld [vmem:[%s663 + $0x2] sm:$0xff]
        %v761 = vld [vmem:[%s663 + $0x12] sm:$0xff]
        %v762 = vld [vmem:[%s663 + $0x22] sm:$0xff]
        %v763 = vld [vmem:[%s663 + $0x32] sm:$0xff]
        %v764 = vld [vmem:[%s663 + $0x42] sm:$0xff]
        %v765 = vld [vmem:[%s663 + $0x52] sm:$0xff]
        %v766 = vld [vmem:[%s663 + $0x62] sm:$0xff]
        %v767 = vld [vmem:[%s663 + $0x72] sm:$0xff]
        %v768 = vld [vmem:[%s663 + $0xa2] sm:$0xff]
        %v769 = vld [vmem:[%s663 + $0xb2] sm:$0xff]
        %v770 = vld [vmem:[%s663 + $0xc2] sm:$0xff]
        %v771 = vld [vmem:[%s663 + $0xd2] sm:$0xff]
        %v772 = vld [vmem:[%s663 + $0xe2] sm:$0xff]
        %v773 = vld [vmem:[%s663 + $0xf2] sm:$0xff]
        %v774 = vld [vmem:[%s663 + $0x102] sm:$0xff]
        %v775 = vld [vmem:[%s663 + $0x112] sm:$0xff]
        %v776 = vpack.c.bf16 %v760, %v760
        %v777 = vpack.c.bf16 %v761, %v761
        %v778 = vpack.c.bf16 %v762, %v762
        %v779 = vpack.c.bf16 %v763, %v763
        %v780 = vpack.c.bf16 %v764, %v764
        %v781 = vpack.c.bf16 %v765, %v765
        %v782 = vpack.c.bf16 %v766, %v766
        %v783 = vpack.c.bf16 %v767, %v767
        %v784 = vpack.c.bf16 %v768, %v768
        %v785 = vpack.c.bf16 %v769, %v769
        %v786 = vpack.c.bf16 %v770, %v770
        %v787 = vpack.c.bf16 %v771, %v771
        %v788 = vpack.c.bf16 %v772, %v772
        %v789 = vpack.c.bf16 %v773, %v773
        %v790 = vpack.c.bf16 %v774, %v774
        %v791 = vpack.c.bf16 %v775, %v775
        %792 = vst [vmem:[#allocation2 + $0x20] sm:$0xf] %v776
        %793 = vst [vmem:[#allocation2 + $0x44] sm:$0xf] %v777
        %794 = vst [vmem:[#allocation2 + $0x68] sm:$0xf] %v778
        %795 = vst [vmem:[#allocation2 + $0x8c] sm:$0xf] %v779
        %796 = vst [vmem:[#allocation2 + $0xb0] sm:$0xf] %v780
        %797 = vst [vmem:[#allocation2 + $0xd4] sm:$0xf] %v781
        %798 = vst [vmem:[#allocation2 + $0xf8] sm:$0xf] %v782
        %799 = vst [vmem:[#allocation2 + $0x11c] sm:$0xf] %v783
        %800 = vst [vmem:[#allocation2 + $0x140] sm:$0xf] %v784
        %801 = vst [vmem:[#allocation2 + $0x164] sm:$0xf] %v785
        %802 = vst [vmem:[#allocation2 + $0x188] sm:$0xf] %v786
        %803 = vst [vmem:[#allocation2 + $0x1ac] sm:$0xf] %v787
        %804 = vst [vmem:[#allocation2 + $0x1d0] sm:$0xf] %v788
        %805 = vst [vmem:[#allocation2 + $0x1f4] sm:$0xf] %v789
        %806 = vst [vmem:[#allocation2 + $0x218] sm:$0xf] %v790
        %807 = vst [vmem:[#allocation2 + $0x23c] sm:$0xf] %v791
        %v808 = vld [vmem:[#allocation2] sm:$0xff]
        %v809 = vld [vmem:[#allocation2 + $0x8] sm:$0xff]
        %v810 = vld [vmem:[#allocation2 + $0x10] sm:$0xff]
        %v811 = vld [vmem:[#allocation2 + $0x18] sm:$0xff]
        %v812 = vld [vmem:[#allocation2 + $0x20] sm:$0xf]
        %v813 = vld [vmem:[#allocation2 + $0x24] sm:$0xff]
        %v814 = vld [vmem:[#allocation2 + $0x2c] sm:$0xff]
        %v815 = vld [vmem:[#allocation2 + $0x34] sm:$0xff]
        %v816 = vld [vmem:[#allocation2 + $0x3c] sm:$0xff]
        %v817 = vld [vmem:[#allocation2 + $0x44] sm:$0xf]
        %v818 = vld [vmem:[#allocation2 + $0x48] sm:$0xff]
        %v819 = vld [vmem:[#allocation2 + $0x50] sm:$0xff]
        %v820 = vld [vmem:[#allocation2 + $0x58] sm:$0xff]
        %v821 = vld [vmem:[#allocation2 + $0x60] sm:$0xff]
        %v822 = vld [vmem:[#allocation2 + $0x68] sm:$0xf]
        %v823 = vld [vmem:[#allocation2 + $0x6c] sm:$0xff]
        %v824 = vld [vmem:[#allocation2 + $0x74] sm:$0xff]
        %v825 = vld [vmem:[#allocation2 + $0x7c] sm:$0xff]
        %v826 = vld [vmem:[#allocation2 + $0x84] sm:$0xff]
        %v827 = vld [vmem:[#allocation2 + $0x8c] sm:$0xf]
        %v828 = vld [vmem:[#allocation2 + $0x90] sm:$0xff]
        %v829 = vld [vmem:[#allocation2 + $0x98] sm:$0xff]
        %v830 = vld [vmem:[#allocation2 + $0xa0] sm:$0xff]
        %v831 = vld [vmem:[#allocation2 + $0xa8] sm:$0xff]
        %v832 = vld [vmem:[#allocation2 + $0xb0] sm:$0xf]
        %v833 = vld [vmem:[#allocation2 + $0xb4] sm:$0xff]
        %v834 = vld [vmem:[#allocation2 + $0xbc] sm:$0xff]
        %v835 = vld [vmem:[#allocation2 + $0xc4] sm:$0xff]
        %v836 = vld [vmem:[#allocation2 + $0xcc] sm:$0xff]
        %v837 = vld [vmem:[#allocation2 + $0xd4] sm:$0xf]
        %v838 = vld [vmem:[#allocation2 + $0xd8] sm:$0xff]
        %v839 = vld [vmem:[#allocation2 + $0xe0] sm:$0xff]
        %v840 = vld [vmem:[#allocation2 + $0xe8] sm:$0xff]
        %v841 = vld [vmem:[#allocation2 + $0xf0] sm:$0xff]
        %v842 = vld [vmem:[#allocation2 + $0xf8] sm:$0xf]
        %v843 = vld [vmem:[#allocation2 + $0xfc] sm:$0xff]
        %v844 = vld [vmem:[#allocation2 + $0x104] sm:$0xff]
        %v845 = vld [vmem:[#allocation2 + $0x10c] sm:$0xff]
        %v846 = vld [vmem:[#allocation2 + $0x114] sm:$0xff]
        %v847 = vld [vmem:[#allocation2 + $0x11c] sm:$0xf]
        %v848 = vld [vmem:[#allocation2 + $0x120] sm:$0xff]
        %v849 = vld [vmem:[#allocation2 + $0x128] sm:$0xff]
        %v850 = vld [vmem:[#allocation2 + $0x130] sm:$0xff]
        %v851 = vld [vmem:[#allocation2 + $0x138] sm:$0xff]
        %v852 = vld [vmem:[#allocation2 + $0x140] sm:$0xf]
        %v853 = vld [vmem:[#allocation2 + $0x144] sm:$0xff]
        %v854 = vld [vmem:[#allocation2 + $0x14c] sm:$0xff]
        %v855 = vld [vmem:[#allocation2 + $0x154] sm:$0xff]
        %v856 = vld [vmem:[#allocation2 + $0x15c] sm:$0xff]
        %v857 = vld [vmem:[#allocation2 + $0x164] sm:$0xf]
        %v858 = vld [vmem:[#allocation2 + $0x168] sm:$0xff]
        %v859 = vld [vmem:[#allocation2 + $0x170] sm:$0xff]
        %v860 = vld [vmem:[#allocation2 + $0x178] sm:$0xff]
        %v861 = vld [vmem:[#allocation2 + $0x180] sm:$0xff]
        %v862 = vld [vmem:[#allocation2 + $0x188] sm:$0xf]
        %v863 = vld [vmem:[#allocation2 + $0x18c] sm:$0xff]
        %v864 = vld [vmem:[#allocation2 + $0x194] sm:$0xff]
        %v865 = vld [vmem:[#allocation2 + $0x19c] sm:$0xff]
        %v866 = vld [vmem:[#allocation2 + $0x1a4] sm:$0xff]
        %v867 = vld [vmem:[#allocation2 + $0x1ac] sm:$0xf]
        %v868 = vld [vmem:[#allocation2 + $0x1b0] sm:$0xff]
        %v869 = vld [vmem:[#allocation2 + $0x1b8] sm:$0xff]
        %v870 = vld [vmem:[#allocation2 + $0x1c0] sm:$0xff]
        %v871 = vld [vmem:[#allocation2 + $0x1c8] sm:$0xff]
        %v872 = vld [vmem:[#allocation2 + $0x1d0] sm:$0xf]
        %v873 = vld [vmem:[#allocation2 + $0x1d4] sm:$0xff]
        %v874 = vld [vmem:[#allocation2 + $0x1dc] sm:$0xff]
        %v875 = vld [vmem:[#allocation2 + $0x1e4] sm:$0xff]
        %v876 = vld [vmem:[#allocation2 + $0x1ec] sm:$0xff]
        %v877 = vld [vmem:[#allocation2 + $0x1f4] sm:$0xf]
        %v878 = vld [vmem:[#allocation2 + $0x1f8] sm:$0xff]
        %v879 = vld [vmem:[#allocation2 + $0x200] sm:$0xff]
        %v880 = vld [vmem:[#allocation2 + $0x208] sm:$0xff]
        %v881 = vld [vmem:[#allocation2 + $0x210] sm:$0xff]
        %v882 = vld [vmem:[#allocation2 + $0x218] sm:$0xf]
        %v883 = vld [vmem:[#allocation2 + $0x21c] sm:$0xff]
        %v884 = vld [vmem:[#allocation2 + $0x224] sm:$0xff]
        %v885 = vld [vmem:[#allocation2 + $0x22c] sm:$0xff]
        %v886 = vld [vmem:[#allocation2 + $0x234] sm:$0xff]
        %v887 = vld [vmem:[#allocation2 + $0x23c] sm:$0xf]
        %v888 = vld [vmem:[%s1] sm:$0xf]
        %v889 = vld [vmem:[%s1 + $0x4] sm:$0xf]
        %v890 = vld [vmem:[%s1 + $0x8] sm:$0xf]
        %v891 = vld [vmem:[%s1 + $0xc] sm:$0xf]
        %v892 = vld [vmem:[%s1 + $0x10] sm:$0xf]
        %v893 = vld [vmem:[%s1 + $0x14] sm:$0xf]
        %v894 = vld [vmem:[%s1 + $0x18] sm:$0xf]
        %v895 = vld [vmem:[%s1 + $0x1c] sm:$0xf]
        %v896 = vld [vmem:[%s1 + $0x20] sm:$0xf]
        %v897 = vld [vmem:[%s1 + $0x24] sm:$0xf]
        %v898 = vld [vmem:[%s1 + $0x28] sm:$0xf]
        %v899 = vld [vmem:[%s1 + $0x2c] sm:$0xf]
        %v900 = vld [vmem:[%s1 + $0x30] sm:$0xf]
        %v901 = vld [vmem:[%s1 + $0x34] sm:$0xf]
        %v902 = vld [vmem:[%s1 + $0x38] sm:$0xf]
        %v903 = vld [vmem:[%s1 + $0x3c] sm:$0xf]
        %v904 = vld [vmem:[%s1 + $0x40] sm:$0xf]
        %v905 = vld [vmem:[%s1 + $0x44] sm:$0xf]
        %v906 = vld [vmem:[%s1 + $0x48] sm:$0xf]
        %v907 = vld [vmem:[%s1 + $0x4c] sm:$0xf]
        %v908 = vld [vmem:[%s1 + $0x50] sm:$0xf]
        %v909 = vld [vmem:[%s1 + $0x54] sm:$0xf]
        %v910 = vld [vmem:[%s1 + $0x58] sm:$0xf]
        %v911 = vld [vmem:[%s1 + $0x5c] sm:$0xf]
        %v912 = vld [vmem:[%s1 + $0x60] sm:$0xf]
        %v913 = vld [vmem:[%s1 + $0x64] sm:$0xf]
        %v914 = vld [vmem:[%s1 + $0x68] sm:$0xf]
        %v915 = vld [vmem:[%s1 + $0x6c] sm:$0xf]
        %v916 = vld [vmem:[%s1 + $0x70] sm:$0xf]
        %v917 = vld [vmem:[%s1 + $0x74] sm:$0xf]
        %v918 = vld [vmem:[%s1 + $0x78] sm:$0xf]
        %v919 = vld [vmem:[%s1 + $0x7c] sm:$0xf]
        %v920 = vld [vmem:[%s1 + $0x80] sm:$0xf]
        %v921 = vld [vmem:[%s1 + $0x84] sm:$0xf]
        %v922 = vld [vmem:[%s1 + $0x88] sm:$0xf]
        %v923 = vld [vmem:[%s1 + $0x8c] sm:$0xf]
        %v924 = vld [vmem:[%s1 + $0x90] sm:$0xf]
        %v925 = vld [vmem:[%s1 + $0x94] sm:$0xf]
        %v926 = vld [vmem:[%s1 + $0x98] sm:$0xf]
        %v927 = vld [vmem:[%s1 + $0x9c] sm:$0xf]
        %v928 = vld [vmem:[%s1 + $0xa0] sm:$0xf]
        %v929 = vld [vmem:[%s1 + $0xa4] sm:$0xf]
        %v930 = vld [vmem:[%s1 + $0xa8] sm:$0xf]
        %v931 = vld [vmem:[%s1 + $0xac] sm:$0xf]
        %v932 = vld [vmem:[%s1 + $0xb0] sm:$0xf]
        %v933 = vld [vmem:[%s1 + $0xb4] sm:$0xf]
        %v934 = vld [vmem:[%s1 + $0xb8] sm:$0xf]
        %v935 = vld [vmem:[%s1 + $0xbc] sm:$0xf]
        %v936 = vld [vmem:[%s1 + $0xc0] sm:$0xf]
        %v937 = vld [vmem:[%s1 + $0xc4] sm:$0xf]
        %v938 = vld [vmem:[%s1 + $0xc8] sm:$0xf]
        %v939 = vld [vmem:[%s1 + $0xcc] sm:$0xf]
        %v940 = vld [vmem:[%s1 + $0xd0] sm:$0xf]
        %v941 = vld [vmem:[%s1 + $0xd4] sm:$0xf]
        %v942 = vld [vmem:[%s1 + $0xd8] sm:$0xf]
        %v943 = vld [vmem:[%s1 + $0xdc] sm:$0xf]
        %v944 = vld [vmem:[%s1 + $0xe0] sm:$0xf]
        %v945 = vld [vmem:[%s1 + $0xe4] sm:$0xf]
        %v946 = vld [vmem:[%s1 + $0xe8] sm:$0xf]
        %v947 = vld [vmem:[%s1 + $0xec] sm:$0xf]
        %v948 = vld [vmem:[%s1 + $0xf0] sm:$0xf]
        %v949 = vld [vmem:[%s1 + $0xf4] sm:$0xf]
        %v950 = vld [vmem:[%s1 + $0xf8] sm:$0xf]
        %v951 = vld [vmem:[%s1 + $0xfc] sm:$0xf]
        %v952 = vld [vmem:[%s1 + $0x100] sm:$0xf]
        %v953 = vld [vmem:[%s1 + $0x104] sm:$0xf]
        %v954 = vld [vmem:[%s1 + $0x108] sm:$0xf]
        %v955 = vld [vmem:[%s1 + $0x10c] sm:$0xf]
        %v956 = vld [vmem:[%s1 + $0x110] sm:$0xf]
        %v957 = vld [vmem:[%s1 + $0x114] sm:$0xf]
        %v958 = vld [vmem:[%s1 + $0x118] sm:$0xf]
        %v959 = vld [vmem:[%s1 + $0x11c] sm:$0xf]
        %v960 = vld [vmem:[%s1 + $0x120] sm:$0xf]
        %v961 = vld [vmem:[%s1 + $0x124] sm:$0xf]
        %v962 = vld [vmem:[%s1 + $0x128] sm:$0xf]
        %v963 = vld [vmem:[%s1 + $0x12c] sm:$0xf]
        %v964 = vld [vmem:[%s1 + $0x130] sm:$0xf]
        %v965 = vld [vmem:[%s1 + $0x134] sm:$0xf]
        %v966 = vld [vmem:[%s1 + $0x138] sm:$0xf]
        %v967 = vld [vmem:[%s1 + $0x13c] sm:$0xf]
        %v968 = vld [vmem:[%s1 + $0x140] sm:$0xf]
        %v969 = vld [vmem:[%s1 + $0x144] sm:$0xf]
        %v970 = vld [vmem:[%s1 + $0x148] sm:$0xf]
        %v971 = vld [vmem:[%s1 + $0x14c] sm:$0xf]
        %v972 = vld [vmem:[%s1 + $0x150] sm:$0xf]
        %v973 = vld [vmem:[%s1 + $0x154] sm:$0xf]
        %v974 = vld [vmem:[%s1 + $0x158] sm:$0xf]
        %v975 = vld [vmem:[%s1 + $0x15c] sm:$0xf]
        %v976 = vld [vmem:[%s1 + $0x160] sm:$0xf]
        %v977 = vld [vmem:[%s1 + $0x164] sm:$0xf]
        %v978 = vld [vmem:[%s1 + $0x168] sm:$0xf]
        %v979 = vld [vmem:[%s1 + $0x16c] sm:$0xf]
        %v980 = vld [vmem:[%s1 + $0x170] sm:$0xf]
        %v981 = vld [vmem:[%s1 + $0x174] sm:$0xf]
        %v982 = vld [vmem:[%s1 + $0x178] sm:$0xf]
        %v983 = vld [vmem:[%s1 + $0x17c] sm:$0xf]
        %v984 = vld [vmem:[%s1 + $0x180] sm:$0xf]
        %v985 = vld [vmem:[%s1 + $0x184] sm:$0xf]
        %v986 = vld [vmem:[%s1 + $0x188] sm:$0xf]
        %v987 = vld [vmem:[%s1 + $0x18c] sm:$0xf]
        %v988 = vld [vmem:[%s1 + $0x190] sm:$0xf]
        %v989 = vld [vmem:[%s1 + $0x194] sm:$0xf]
        %v990 = vld [vmem:[%s1 + $0x198] sm:$0xf]
        %v991 = vld [vmem:[%s1 + $0x19c] sm:$0xf]
        %v992 = vld [vmem:[%s1 + $0x1a0] sm:$0xf]
        %v993 = vld [vmem:[%s1 + $0x1a4] sm:$0xf]
        %v994 = vld [vmem:[%s1 + $0x1a8] sm:$0xf]
        %v995 = vld [vmem:[%s1 + $0x1ac] sm:$0xf]
        %v996 = vld [vmem:[%s1 + $0x1b0] sm:$0xf]
        %v997 = vld [vmem:[%s1 + $0x1b4] sm:$0xf]
        %v998 = vld [vmem:[%s1 + $0x1b8] sm:$0xf]
        %v999 = vld [vmem:[%s1 + $0x1bc] sm:$0xf]
        %v1000 = vld [vmem:[%s1 + $0x1c0] sm:$0xf]
        %v1001 = vld [vmem:[%s1 + $0x1c4] sm:$0xf]
        %v1002 = vld [vmem:[%s1 + $0x1c8] sm:$0xf]
        %v1003 = vld [vmem:[%s1 + $0x1cc] sm:$0xf]
        %v1004 = vld [vmem:[%s1 + $0x1d0] sm:$0xf]
        %v1005 = vld [vmem:[%s1 + $0x1d4] sm:$0xf]
        %v1006 = vld [vmem:[%s1 + $0x1d8] sm:$0xf]
        %v1007 = vld [vmem:[%s1 + $0x1dc] sm:$0xf]
        %v1008 = vld [vmem:[%s1 + $0x1e0] sm:$0xf]
        %v1009 = vld [vmem:[%s1 + $0x1e4] sm:$0xf]
        %v1010 = vld [vmem:[%s1 + $0x1e8] sm:$0xf]
        %v1011 = vld [vmem:[%s1 + $0x1ec] sm:$0xf]
        %v1012 = vld [vmem:[%s1 + $0x1f0] sm:$0xf]
        %v1013 = vld [vmem:[%s1 + $0x1f4] sm:$0xf]
        %v1014 = vld [vmem:[%s1 + $0x1f8] sm:$0xf]
        %v1015 = vld [vmem:[%s1 + $0x1fc] sm:$0xf]
        %v1016 = vld [vmem:[%s1 + $0x200] sm:$0xf]
        %v1017 = vld [vmem:[%s1 + $0x204] sm:$0xf]
        %v1018 = vld [vmem:[%s1 + $0x208] sm:$0xf]
        %v1019 = vld [vmem:[%s1 + $0x20c] sm:$0xf]
        %v1020 = vld [vmem:[%s1 + $0x210] sm:$0xf]
        %v1021 = vld [vmem:[%s1 + $0x214] sm:$0xf]
        %v1022 = vld [vmem:[%s1 + $0x218] sm:$0xf]
        %v1023 = vld [vmem:[%s1 + $0x21c] sm:$0xf]
        %v1024 = vld [vmem:[%s1 + $0x220] sm:$0xf]
        %v1025 = vld [vmem:[%s1 + $0x224] sm:$0xf]
        %v1026 = vld [vmem:[%s1 + $0x228] sm:$0xf]
        %v1027 = vld [vmem:[%s1 + $0x22c] sm:$0xf]
        %v1028 = vld [vmem:[%s1 + $0x230] sm:$0xf]
        %v1029 = vld [vmem:[%s1 + $0x234] sm:$0xf]
        %v1030 = vld [vmem:[%s1 + $0x238] sm:$0xf]
        %v1031 = vld [vmem:[%s1 + $0x23c] sm:$0xf]
        %v1112 = vunpack.c.l.b16 %v808
        %v1113 = vunpack.c.h.b16 %v808
        %v1114 = vunpack.c.l.b16 %v809
        %v1115 = vunpack.c.h.b16 %v809
        %v1116 = vunpack.c.l.b16 %v810
        %v1117 = vunpack.c.h.b16 %v810
        %v1118 = vunpack.c.l.b16 %v811
        %v1119 = vunpack.c.h.b16 %v811
        %v1120 = vunpack.c.l.b16 %v812
        %v1121 = vunpack.c.l.b16 %v813
        %v1122 = vunpack.c.h.b16 %v813
        %v1123 = vunpack.c.l.b16 %v814
        %v1124 = vunpack.c.h.b16 %v814
        %v1125 = vunpack.c.l.b16 %v815
        %v1126 = vunpack.c.h.b16 %v815
        %v1127 = vunpack.c.l.b16 %v816
        %v1128 = vunpack.c.h.b16 %v816
        %v1129 = vunpack.c.l.b16 %v817
        %v1130 = vunpack.c.l.b16 %v818
        %v1131 = vunpack.c.h.b16 %v818
        %v1132 = vunpack.c.l.b16 %v819
        %v1133 = vunpack.c.h.b16 %v819
        %v1134 = vunpack.c.l.b16 %v820
        %v1135 = vunpack.c.h.b16 %v820
        %v1136 = vunpack.c.l.b16 %v821
        %v1137 = vunpack.c.h.b16 %v821
        %v1138 = vunpack.c.l.b16 %v822
        %v1139 = vunpack.c.l.b16 %v823
        %v1140 = vunpack.c.h.b16 %v823
        %v1141 = vunpack.c.l.b16 %v824
        %v1142 = vunpack.c.h.b16 %v824
        %v1143 = vunpack.c.l.b16 %v825
        %v1144 = vunpack.c.h.b16 %v825
        %v1145 = vunpack.c.l.b16 %v826
        %v1146 = vunpack.c.h.b16 %v826
        %v1147 = vunpack.c.l.b16 %v827
        %v1148 = vunpack.c.l.b16 %v828
        %v1149 = vunpack.c.h.b16 %v828
        %v1150 = vunpack.c.l.b16 %v829
        %v1151 = vunpack.c.h.b16 %v829
        %v1152 = vunpack.c.l.b16 %v830
        %v1153 = vunpack.c.h.b16 %v830
        %v1154 = vunpack.c.l.b16 %v831
        %v1155 = vunpack.c.h.b16 %v831
        %v1156 = vunpack.c.l.b16 %v832
        %v1157 = vunpack.c.l.b16 %v833
        %v1158 = vunpack.c.h.b16 %v833
        %v1159 = vunpack.c.l.b16 %v834
        %v1160 = vunpack.c.h.b16 %v834
        %v1161 = vunpack.c.l.b16 %v835
        %v1162 = vunpack.c.h.b16 %v835
        %v1163 = vunpack.c.l.b16 %v836
        %v1164 = vunpack.c.h.b16 %v836
        %v1165 = vunpack.c.l.b16 %v837
        %v1166 = vunpack.c.l.b16 %v838
        %v1167 = vunpack.c.h.b16 %v838
        %v1168 = vunpack.c.l.b16 %v839
        %v1169 = vunpack.c.h.b16 %v839
        %v1170 = vunpack.c.l.b16 %v840
        %v1171 = vunpack.c.h.b16 %v840
        %v1172 = vunpack.c.l.b16 %v841
        %v1173 = vunpack.c.h.b16 %v841
        %v1174 = vunpack.c.l.b16 %v842
        %v1175 = vunpack.c.l.b16 %v843
        %v1176 = vunpack.c.h.b16 %v843
        %v1177 = vunpack.c.l.b16 %v844
        %v1178 = vunpack.c.h.b16 %v844
        %v1179 = vunpack.c.l.b16 %v845
        %v1180 = vunpack.c.h.b16 %v845
        %v1181 = vunpack.c.l.b16 %v846
        %v1182 = vunpack.c.h.b16 %v846
        %v1183 = vunpack.c.l.b16 %v847
        %v1184 = vunpack.c.l.b16 %v848
        %v1185 = vunpack.c.h.b16 %v848
        %v1186 = vunpack.c.l.b16 %v849
        %v1187 = vunpack.c.h.b16 %v849
        %v1188 = vunpack.c.l.b16 %v850
        %v1189 = vunpack.c.h.b16 %v850
        %v1190 = vunpack.c.l.b16 %v851
        %v1191 = vunpack.c.h.b16 %v851
        %v1192 = vunpack.c.l.b16 %v852
        %v1193 = vunpack.c.l.b16 %v853
        %v1194 = vunpack.c.h.b16 %v853
        %v1195 = vunpack.c.l.b16 %v854
        %v1196 = vunpack.c.h.b16 %v854
        %v1197 = vunpack.c.l.b16 %v855
        %v1198 = vunpack.c.h.b16 %v855
        %v1199 = vunpack.c.l.b16 %v856
        %v1200 = vunpack.c.h.b16 %v856
        %v1201 = vunpack.c.l.b16 %v857
        %v1202 = vunpack.c.l.b16 %v858
        %v1203 = vunpack.c.h.b16 %v858
        %v1204 = vunpack.c.l.b16 %v859
        %v1205 = vunpack.c.h.b16 %v859
        %v1206 = vunpack.c.l.b16 %v860
        %v1207 = vunpack.c.h.b16 %v860
        %v1208 = vunpack.c.l.b16 %v861
        %v1209 = vunpack.c.h.b16 %v861
        %v1210 = vunpack.c.l.b16 %v862
        %v1211 = vunpack.c.l.b16 %v863
        %v1212 = vunpack.c.h.b16 %v863
        %v1213 = vunpack.c.l.b16 %v864
        %v1214 = vunpack.c.h.b16 %v864
        %v1215 = vunpack.c.l.b16 %v865
        %v1216 = vunpack.c.h.b16 %v865
        %v1217 = vunpack.c.l.b16 %v866
        %v1218 = vunpack.c.h.b16 %v866
        %v1219 = vunpack.c.l.b16 %v867
        %v1220 = vunpack.c.l.b16 %v868
        %v1221 = vunpack.c.h.b16 %v868
        %v1222 = vunpack.c.l.b16 %v869
        %v1223 = vunpack.c.h.b16 %v869
        %v1224 = vunpack.c.l.b16 %v870
        %v1225 = vunpack.c.h.b16 %v870
        %v1226 = vunpack.c.l.b16 %v871
        %v1227 = vunpack.c.h.b16 %v871
        %v1228 = vunpack.c.l.b16 %v872
        %v1229 = vunpack.c.l.b16 %v873
        %v1230 = vunpack.c.h.b16 %v873
        %v1231 = vunpack.c.l.b16 %v874
        %v1232 = vunpack.c.h.b16 %v874
        %v1233 = vunpack.c.l.b16 %v875
        %v1234 = vunpack.c.h.b16 %v875
        %v1235 = vunpack.c.l.b16 %v876
        %v1236 = vunpack.c.h.b16 %v876
        %v1237 = vunpack.c.l.b16 %v877
        %v1238 = vunpack.c.l.b16 %v878
        %v1239 = vunpack.c.h.b16 %v878
        %v1240 = vunpack.c.l.b16 %v879
        %v1241 = vunpack.c.h.b16 %v879
        %v1242 = vunpack.c.l.b16 %v880
        %v1243 = vunpack.c.h.b16 %v880
        %v1244 = vunpack.c.l.b16 %v881
        %v1245 = vunpack.c.h.b16 %v881
        %v1246 = vunpack.c.l.b16 %v882
        %v1247 = vunpack.c.l.b16 %v883
        %v1248 = vunpack.c.h.b16 %v883
        %v1249 = vunpack.c.l.b16 %v884
        %v1250 = vunpack.c.h.b16 %v884
        %v1251 = vunpack.c.l.b16 %v885
        %v1252 = vunpack.c.h.b16 %v885
        %v1253 = vunpack.c.l.b16 %v886
        %v1254 = vunpack.c.h.b16 %v886
        %v1255 = vunpack.c.l.b16 %v887
        %v1256 = vpack.c.b16 %v1121, %v1112
        %v1257 = vpack.c.b16 %v1122, %v1113
        %v1258 = vpack.c.b16 %v1123, %v1114
        %v1259 = vpack.c.b16 %v1124, %v1115
        %v1260 = vpack.c.b16 %v1125, %v1116
        %v1261 = vpack.c.b16 %v1126, %v1117
        %v1262 = vpack.c.b16 %v1127, %v1118
        %v1263 = vpack.c.b16 %v1128, %v1119
        %v1264 = vpack.c.b16 %v1129, %v1120
        %v1265 = vpack.c.b16 %v1139, %v1130
        %v1266 = vpack.c.b16 %v1140, %v1131
        %v1267 = vpack.c.b16 %v1141, %v1132
        %v1268 = vpack.c.b16 %v1142, %v1133
        %v1269 = vpack.c.b16 %v1143, %v1134
        %v1270 = vpack.c.b16 %v1144, %v1135
        %v1271 = vpack.c.b16 %v1145, %v1136
        %v1272 = vpack.c.b16 %v1146, %v1137
        %v1273 = vpack.c.b16 %v1147, %v1138
        %v1274 = vpack.c.b16 %v1157, %v1148
        %v1275 = vpack.c.b16 %v1158, %v1149
        %v1276 = vpack.c.b16 %v1159, %v1150
        %v1277 = vpack.c.b16 %v1160, %v1151
        %v1278 = vpack.c.b16 %v1161, %v1152
        %v1279 = vpack.c.b16 %v1162, %v1153
        %v1280 = vpack.c.b16 %v1163, %v1154
        %v1281 = vpack.c.b16 %v1164, %v1155
        %v1282 = vpack.c.b16 %v1165, %v1156
        %v1283 = vpack.c.b16 %v1175, %v1166
        %v1284 = vpack.c.b16 %v1176, %v1167
        %v1285 = vpack.c.b16 %v1177, %v1168
        %v1286 = vpack.c.b16 %v1178, %v1169
        %v1287 = vpack.c.b16 %v1179, %v1170
        %v1288 = vpack.c.b16 %v1180, %v1171
        %v1289 = vpack.c.b16 %v1181, %v1172
        %v1290 = vpack.c.b16 %v1182, %v1173
        %v1291 = vpack.c.b16 %v1183, %v1174
        %v1292 = vpack.c.b16 %v1193, %v1184
        %v1293 = vpack.c.b16 %v1194, %v1185
        %v1294 = vpack.c.b16 %v1195, %v1186
        %v1295 = vpack.c.b16 %v1196, %v1187
        %v1296 = vpack.c.b16 %v1197, %v1188
        %v1297 = vpack.c.b16 %v1198, %v1189
        %v1298 = vpack.c.b16 %v1199, %v1190
        %v1299 = vpack.c.b16 %v1200, %v1191
        %v1300 = vpack.c.b16 %v1201, %v1192
        %v1301 = vpack.c.b16 %v1211, %v1202
        %v1302 = vpack.c.b16 %v1212, %v1203
        %v1303 = vpack.c.b16 %v1213, %v1204
        %v1304 = vpack.c.b16 %v1214, %v1205
        %v1305 = vpack.c.b16 %v1215, %v1206
        %v1306 = vpack.c.b16 %v1216, %v1207
        %v1307 = vpack.c.b16 %v1217, %v1208
        %v1308 = vpack.c.b16 %v1218, %v1209
        %v1309 = vpack.c.b16 %v1219, %v1210
        %v1310 = vpack.c.b16 %v1229, %v1220
        %v1311 = vpack.c.b16 %v1230, %v1221
        %v1312 = vpack.c.b16 %v1231, %v1222
        %v1313 = vpack.c.b16 %v1232, %v1223
        %v1314 = vpack.c.b16 %v1233, %v1224
        %v1315 = vpack.c.b16 %v1234, %v1225
        %v1316 = vpack.c.b16 %v1235, %v1226
        %v1317 = vpack.c.b16 %v1236, %v1227
        %v1318 = vpack.c.b16 %v1237, %v1228
        %v1319 = vpack.c.b16 %v1247, %v1238
        %v1320 = vpack.c.b16 %v1248, %v1239
        %v1321 = vpack.c.b16 %v1249, %v1240
        %v1322 = vpack.c.b16 %v1250, %v1241
        %v1323 = vpack.c.b16 %v1251, %v1242
        %v1324 = vpack.c.b16 %v1252, %v1243
        %v1325 = vpack.c.b16 %v1253, %v1244
        %v1326 = vpack.c.b16 %v1254, %v1245
        %v1327 = vpack.c.b16 %v1255, %v1246
        %v1544 = vunpack.c.l.b16 %v888
        %v1545 = vunpack.c.l.b16 %v889
        %v1546 = vunpack.c.l.b16 %v890
        %v1547 = vunpack.c.l.b16 %v891
        %v1548 = vunpack.c.l.b16 %v892
        %v1549 = vunpack.c.l.b16 %v893
        %v1550 = vunpack.c.l.b16 %v894
        %v1551 = vunpack.c.l.b16 %v895
        %v1552 = vunpack.c.l.b16 %v896
        %v1553 = vunpack.c.l.b16 %v897
        %v1554 = vunpack.c.l.b16 %v898
        %v1555 = vunpack.c.l.b16 %v899
        %v1556 = vunpack.c.l.b16 %v900
        %v1557 = vunpack.c.l.b16 %v901
        %v1558 = vunpack.c.l.b16 %v902
        %v1559 = vunpack.c.l.b16 %v903
        %v1560 = vunpack.c.l.b16 %v904
        %v1561 = vunpack.c.l.b16 %v905
        %v1562 = vunpack.c.l.b16 %v906
        %v1563 = vunpack.c.l.b16 %v907
        %v1564 = vunpack.c.l.b16 %v908
        %v1565 = vunpack.c.l.b16 %v909
        %v1566 = vunpack.c.l.b16 %v910
        %v1567 = vunpack.c.l.b16 %v911
        %v1568 = vunpack.c.l.b16 %v912
        %v1569 = vunpack.c.l.b16 %v913
        %v1570 = vunpack.c.l.b16 %v914
        %v1571 = vunpack.c.l.b16 %v915
        %v1572 = vunpack.c.l.b16 %v916
        %v1573 = vunpack.c.l.b16 %v917
        %v1574 = vunpack.c.l.b16 %v918
        %v1575 = vunpack.c.l.b16 %v919
        %v1576 = vunpack.c.l.b16 %v920
        %v1577 = vunpack.c.l.b16 %v921
        %v1578 = vunpack.c.l.b16 %v922
        %v1579 = vunpack.c.l.b16 %v923
        %v1580 = vunpack.c.l.b16 %v924
        %v1581 = vunpack.c.l.b16 %v925
        %v1582 = vunpack.c.l.b16 %v926
        %v1583 = vunpack.c.l.b16 %v927
        %v1584 = vunpack.c.l.b16 %v928
        %v1585 = vunpack.c.l.b16 %v929
        %v1586 = vunpack.c.l.b16 %v930
        %v1587 = vunpack.c.l.b16 %v931
        %v1588 = vunpack.c.l.b16 %v932
        %v1589 = vunpack.c.l.b16 %v933
        %v1590 = vunpack.c.l.b16 %v934
        %v1591 = vunpack.c.l.b16 %v935
        %v1592 = vunpack.c.l.b16 %v936
        %v1593 = vunpack.c.l.b16 %v937
        %v1594 = vunpack.c.l.b16 %v938
        %v1595 = vunpack.c.l.b16 %v939
        %v1596 = vunpack.c.l.b16 %v940
        %v1597 = vunpack.c.l.b16 %v941
        %v1598 = vunpack.c.l.b16 %v942
        %v1599 = vunpack.c.l.b16 %v943
        %v1600 = vunpack.c.l.b16 %v944
        %v1601 = vunpack.c.l.b16 %v945
        %v1602 = vunpack.c.l.b16 %v946
        %v1603 = vunpack.c.l.b16 %v947
        %v1604 = vunpack.c.l.b16 %v948
        %v1605 = vunpack.c.l.b16 %v949
        %v1606 = vunpack.c.l.b16 %v950
        %v1607 = vunpack.c.l.b16 %v951
        %v1608 = vunpack.c.l.b16 %v952
        %v1609 = vunpack.c.l.b16 %v953
        %v1610 = vunpack.c.l.b16 %v954
        %v1611 = vunpack.c.l.b16 %v955
        %v1612 = vunpack.c.l.b16 %v956
        %v1613 = vunpack.c.l.b16 %v957
        %v1614 = vunpack.c.l.b16 %v958
        %v1615 = vunpack.c.l.b16 %v959
        %v1616 = vunpack.c.l.b16 %v960
        %v1617 = vunpack.c.l.b16 %v961
        %v1618 = vunpack.c.l.b16 %v962
        %v1619 = vunpack.c.l.b16 %v963
        %v1620 = vunpack.c.l.b16 %v964
        %v1621 = vunpack.c.l.b16 %v965
        %v1622 = vunpack.c.l.b16 %v966
        %v1623 = vunpack.c.l.b16 %v967
        %v1624 = vunpack.c.l.b16 %v968
        %v1625 = vunpack.c.l.b16 %v969
        %v1626 = vunpack.c.l.b16 %v970
        %v1627 = vunpack.c.l.b16 %v971
        %v1628 = vunpack.c.l.b16 %v972
        %v1629 = vunpack.c.l.b16 %v973
        %v1630 = vunpack.c.l.b16 %v974
        %v1631 = vunpack.c.l.b16 %v975
        %v1632 = vunpack.c.l.b16 %v976
        %v1633 = vunpack.c.l.b16 %v977
        %v1634 = vunpack.c.l.b16 %v978
        %v1635 = vunpack.c.l.b16 %v979
        %v1636 = vunpack.c.l.b16 %v980
        %v1637 = vunpack.c.l.b16 %v981
        %v1638 = vunpack.c.l.b16 %v982
        %v1639 = vunpack.c.l.b16 %v983
        %v1640 = vunpack.c.l.b16 %v984
        %v1641 = vunpack.c.l.b16 %v985
        %v1642 = vunpack.c.l.b16 %v986
        %v1643 = vunpack.c.l.b16 %v987
        %v1644 = vunpack.c.l.b16 %v988
        %v1645 = vunpack.c.l.b16 %v989
        %v1646 = vunpack.c.l.b16 %v990
        %v1647 = vunpack.c.l.b16 %v991
        %v1648 = vunpack.c.l.b16 %v992
        %v1649 = vunpack.c.l.b16 %v993
        %v1650 = vunpack.c.l.b16 %v994
        %v1651 = vunpack.c.l.b16 %v995
        %v1652 = vunpack.c.l.b16 %v996
        %v1653 = vunpack.c.l.b16 %v997
        %v1654 = vunpack.c.l.b16 %v998
        %v1655 = vunpack.c.l.b16 %v999
        %v1656 = vunpack.c.l.b16 %v1000
        %v1657 = vunpack.c.l.b16 %v1001
        %v1658 = vunpack.c.l.b16 %v1002
        %v1659 = vunpack.c.l.b16 %v1003
        %v1660 = vunpack.c.l.b16 %v1004
        %v1661 = vunpack.c.l.b16 %v1005
        %v1662 = vunpack.c.l.b16 %v1006
        %v1663 = vunpack.c.l.b16 %v1007
        %v1664 = vunpack.c.l.b16 %v1008
        %v1665 = vunpack.c.l.b16 %v1009
        %v1666 = vunpack.c.l.b16 %v1010
        %v1667 = vunpack.c.l.b16 %v1011
        %v1668 = vunpack.c.l.b16 %v1012
        %v1669 = vunpack.c.l.b16 %v1013
        %v1670 = vunpack.c.l.b16 %v1014
        %v1671 = vunpack.c.l.b16 %v1015
        %v1672 = vunpack.c.l.b16 %v1016
        %v1673 = vunpack.c.l.b16 %v1017
        %v1674 = vunpack.c.l.b16 %v1018
        %v1675 = vunpack.c.l.b16 %v1019
        %v1676 = vunpack.c.l.b16 %v1020
        %v1677 = vunpack.c.l.b16 %v1021
        %v1678 = vunpack.c.l.b16 %v1022
        %v1679 = vunpack.c.l.b16 %v1023
        %v1680 = vunpack.c.l.b16 %v1024
        %v1681 = vunpack.c.l.b16 %v1025
        %v1682 = vunpack.c.l.b16 %v1026
        %v1683 = vunpack.c.l.b16 %v1027
        %v1684 = vunpack.c.l.b16 %v1028
        %v1685 = vunpack.c.l.b16 %v1029
        %v1686 = vunpack.c.l.b16 %v1030
        %v1687 = vunpack.c.l.b16 %v1031
        %v1688 = vpack.c.b16 %v1545, %v1544
        %v1689 = vpack.c.b16 %v1547, %v1546
        %v1690 = vpack.c.b16 %v1549, %v1548
        %v1691 = vpack.c.b16 %v1551, %v1550
        %v1692 = vpack.c.b16 %v1553, %v1552
        %v1693 = vpack.c.b16 %v1555, %v1554
        %v1694 = vpack.c.b16 %v1557, %v1556
        %v1695 = vpack.c.b16 %v1559, %v1558
        %v1696 = vpack.c.b16 %v1561, %v1560
        %v1697 = vpack.c.b16 %v1563, %v1562
        %v1698 = vpack.c.b16 %v1565, %v1564
        %v1699 = vpack.c.b16 %v1567, %v1566
        %v1700 = vpack.c.b16 %v1569, %v1568
        %v1701 = vpack.c.b16 %v1571, %v1570
        %v1702 = vpack.c.b16 %v1573, %v1572
        %v1703 = vpack.c.b16 %v1575, %v1574
        %v1704 = vpack.c.b16 %v1577, %v1576
        %v1705 = vpack.c.b16 %v1579, %v1578
        %v1706 = vpack.c.b16 %v1581, %v1580
        %v1707 = vpack.c.b16 %v1583, %v1582
        %v1708 = vpack.c.b16 %v1585, %v1584
        %v1709 = vpack.c.b16 %v1587, %v1586
        %v1710 = vpack.c.b16 %v1589, %v1588
        %v1711 = vpack.c.b16 %v1591, %v1590
        %v1712 = vpack.c.b16 %v1593, %v1592
        %v1713 = vpack.c.b16 %v1595, %v1594
        %v1714 = vpack.c.b16 %v1597, %v1596
        %v1715 = vpack.c.b16 %v1599, %v1598
        %v1716 = vpack.c.b16 %v1601, %v1600
        %v1717 = vpack.c.b16 %v1603, %v1602
        %v1718 = vpack.c.b16 %v1605, %v1604
        %v1719 = vpack.c.b16 %v1607, %v1606
        %v1720 = vpack.c.b16 %v1609, %v1608
        %v1721 = vpack.c.b16 %v1611, %v1610
        %v1722 = vpack.c.b16 %v1613, %v1612
        %v1723 = vpack.c.b16 %v1615, %v1614
        %v1724 = vpack.c.b16 %v1617, %v1616
        %v1725 = vpack.c.b16 %v1619, %v1618
        %v1726 = vpack.c.b16 %v1621, %v1620
        %v1727 = vpack.c.b16 %v1623, %v1622
        %v1728 = vpack.c.b16 %v1625, %v1624
        %v1729 = vpack.c.b16 %v1627, %v1626
        %v1730 = vpack.c.b16 %v1629, %v1628
        %v1731 = vpack.c.b16 %v1631, %v1630
        %v1732 = vpack.c.b16 %v1633, %v1632
        %v1733 = vpack.c.b16 %v1635, %v1634
        %v1734 = vpack.c.b16 %v1637, %v1636
        %v1735 = vpack.c.b16 %v1639, %v1638
        %v1736 = vpack.c.b16 %v1641, %v1640
        %v1737 = vpack.c.b16 %v1643, %v1642
        %v1738 = vpack.c.b16 %v1645, %v1644
        %v1739 = vpack.c.b16 %v1647, %v1646
        %v1740 = vpack.c.b16 %v1649, %v1648
        %v1741 = vpack.c.b16 %v1651, %v1650
        %v1742 = vpack.c.b16 %v1653, %v1652
        %v1743 = vpack.c.b16 %v1655, %v1654
        %v1744 = vpack.c.b16 %v1657, %v1656
        %v1745 = vpack.c.b16 %v1659, %v1658
        %v1746 = vpack.c.b16 %v1661, %v1660
        %v1747 = vpack.c.b16 %v1663, %v1662
        %v1748 = vpack.c.b16 %v1665, %v1664
        %v1749 = vpack.c.b16 %v1667, %v1666
        %v1750 = vpack.c.b16 %v1669, %v1668
        %v1751 = vpack.c.b16 %v1671, %v1670
        %v1752 = vpack.c.b16 %v1673, %v1672
        %v1753 = vpack.c.b16 %v1675, %v1674
        %v1754 = vpack.c.b16 %v1677, %v1676
        %v1755 = vpack.c.b16 %v1679, %v1678
        %v1756 = vpack.c.b16 %v1681, %v1680
        %v1757 = vpack.c.b16 %v1683, %v1682
        %v1758 = vpack.c.b16 %v1685, %v1684
        %v1759 = vpack.c.b16 %v1687, %v1686
        %1832 = vmatpush.bf16.msra.mxu0 %v1695
        %1833 = vmatpush.bf16.msra.mxu0 %v1694
        %1834 = vmatpush.bf16.msra.mxu0 %v1693
        %1835 = vmatpush.bf16.msra.mxu0 %v1692
        %1836 = vmatpush.bf16.msra.mxu0 %v1691
        %1837 = vmatpush.bf16.msra.mxu0 %v1690
        %1838 = vmatpush.bf16.msra.mxu0 %v1689
        %1839 = vmatpush.bf16.msra.mxu0 %v1688
        %1840 = vmatmul.bf16.gmra.mxu0 %v1256
        %v1841 = vpop.f32.mrf.mxu0
        %v1842 = vadd.f32 0.0, %v1841
        %v1843 = vpop.f32.mrf.mxu0
        %v1844 = vadd.f32 0.0, %v1843
        %1845 = vmatmul.bf16.gmra.mxu0 %v1265
        %v1846 = vpop.f32.mrf.mxu0
        %v1847 = vadd.f32 0.0, %v1846
        %v1848 = vpop.f32.mrf.mxu0
        %v1849 = vadd.f32 0.0, %v1848
        %1850 = vmatmul.bf16.gmra.mxu0 %v1274
        %v1851 = vpop.f32.mrf.mxu0
        %v1852 = vadd.f32 0.0, %v1851
        %v1853 = vpop.f32.mrf.mxu0
        %v1854 = vadd.f32 0.0, %v1853
        %1855 = vmatmul.bf16.gmra.mxu0 %v1283
        %v1856 = vpop.f32.mrf.mxu0
        %v1857 = vadd.f32 0.0, %v1856
        %v1858 = vpop.f32.mrf.mxu0
        %v1859 = vadd.f32 0.0, %v1858
        %1860 = vmatmul.bf16.gmra.mxu0 %v1292
        %v1861 = vpop.f32.mrf.mxu0
        %v1862 = vadd.f32 0.0, %v1861
        %v1863 = vpop.f32.mrf.mxu0
        %v1864 = vadd.f32 0.0, %v1863
        %1865 = vmatmul.bf16.gmra.mxu0 %v1301
        %v1866 = vpop.f32.mrf.mxu0
        %v1867 = vadd.f32 0.0, %v1866
        %v1868 = vpop.f32.mrf.mxu0
        %v1869 = vadd.f32 0.0, %v1868
        %1870 = vmatmul.bf16.gmra.mxu0 %v1310
        %v1871 = vpop.f32.mrf.mxu0
        %v1872 = vadd.f32 0.0, %v1871
        %v1873 = vpop.f32.mrf.mxu0
        %v1874 = vadd.f32 0.0, %v1873
        %1875 = vmatmul.bf16.gmra.mxu0 %v1319
        %v1876 = vpop.f32.mrf.mxu0
        %v1877 = vadd.f32 0.0, %v1876
        %v1878 = vpop.f32.mrf.mxu0
        %v1879 = vadd.f32 0.0, %v1878
        %1880 = vdwg.mxu0
        %1881 = vmatpush.bf16.msra.mxu0 %v1703
        %1882 = vmatpush.bf16.msra.mxu0 %v1702
        %1883 = vmatpush.bf16.msra.mxu0 %v1701
        %1884 = vmatpush.bf16.msra.mxu0 %v1700
        %1885 = vmatpush.bf16.msra.mxu0 %v1699
        %1886 = vmatpush.bf16.msra.mxu0 %v1698
        %1887 = vmatpush.bf16.msra.mxu0 %v1697
        %1888 = vmatpush.bf16.msra.mxu0 %v1696
        %1889 = vmatmul.bf16.gmra.mxu0 %v1257
        %v1890 = vpop.f32.mrf.mxu0
        %v1891 = vadd.f32 %v1842, %v1890
        %v1892 = vpop.f32.mrf.mxu0
        %v1893 = vadd.f32 %v1844, %v1892
        %1894 = vmatmul.bf16.gmra.mxu0 %v1266
        %v1895 = vpop.f32.mrf.mxu0
        %v1896 = vadd.f32 %v1847, %v1895
        %v1897 = vpop.f32.mrf.mxu0
        %v1898 = vadd.f32 %v1849, %v1897
        %1899 = vmatmul.bf16.gmra.mxu0 %v1275
        %v1900 = vpop.f32.mrf.mxu0
        %v1901 = vadd.f32 %v1852, %v1900
        %v1902 = vpop.f32.mrf.mxu0
        %v1903 = vadd.f32 %v1854, %v1902
        %1904 = vmatmul.bf16.gmra.mxu0 %v1284
        %v1905 = vpop.f32.mrf.mxu0
        %v1906 = vadd.f32 %v1857, %v1905
        %v1907 = vpop.f32.mrf.mxu0
        %v1908 = vadd.f32 %v1859, %v1907
        %1909 = vmatmul.bf16.gmra.mxu0 %v1293
        %v1910 = vpop.f32.mrf.mxu0
        %v1911 = vadd.f32 %v1862, %v1910
        %v1912 = vpop.f32.mrf.mxu0
        %v1913 = vadd.f32 %v1864, %v1912
        %1914 = vmatmul.bf16.gmra.mxu0 %v1302
        %v1915 = vpop.f32.mrf.mxu0
        %v1916 = vadd.f32 %v1867, %v1915
        %v1917 = vpop.f32.mrf.mxu0
        %v1918 = vadd.f32 %v1869, %v1917
        %1919 = vmatmul.bf16.gmra.mxu0 %v1311
        %v1920 = vpop.f32.mrf.mxu0
        %v1921 = vadd.f32 %v1872, %v1920
        %v1922 = vpop.f32.mrf.mxu0
        %v1923 = vadd.f32 %v1874, %v1922
        %1924 = vmatmul.bf16.gmra.mxu0 %v1320
        %v1925 = vpop.f32.mrf.mxu0
        %v1926 = vadd.f32 %v1877, %v1925
        %v1927 = vpop.f32.mrf.mxu0
        %v1928 = vadd.f32 %v1879, %v1927
        %1929 = vdwg.mxu0
        %1930 = vmatpush.bf16.msra.mxu0 %v1711
        %1931 = vmatpush.bf16.msra.mxu0 %v1710
        %1932 = vmatpush.bf16.msra.mxu0 %v1709
        %1933 = vmatpush.bf16.msra.mxu0 %v1708
        %1934 = vmatpush.bf16.msra.mxu0 %v1707
        %1935 = vmatpush.bf16.msra.mxu0 %v1706
        %1936 = vmatpush.bf16.msra.mxu0 %v1705
        %1937 = vmatpush.bf16.msra.mxu0 %v1704
        %1938 = vmatmul.bf16.gmra.mxu0 %v1258
        %v1939 = vpop.f32.mrf.mxu0
        %v1940 = vadd.f32 %v1891, %v1939
        %v1941 = vpop.f32.mrf.mxu0
        %v1942 = vadd.f32 %v1893, %v1941
        %1943 = vmatmul.bf16.gmra.mxu0 %v1267
        %v1944 = vpop.f32.mrf.mxu0
        %v1945 = vadd.f32 %v1896, %v1944
        %v1946 = vpop.f32.mrf.mxu0
        %v1947 = vadd.f32 %v1898, %v1946
        %1948 = vmatmul.bf16.gmra.mxu0 %v1276
        %v1949 = vpop.f32.mrf.mxu0
        %v1950 = vadd.f32 %v1901, %v1949
        %v1951 = vpop.f32.mrf.mxu0
        %v1952 = vadd.f32 %v1903, %v1951
        %1953 = vmatmul.bf16.gmra.mxu0 %v1285
        %v1954 = vpop.f32.mrf.mxu0
        %v1955 = vadd.f32 %v1906, %v1954
        %v1956 = vpop.f32.mrf.mxu0
        %v1957 = vadd.f32 %v1908, %v1956
        %1958 = vmatmul.bf16.gmra.mxu0 %v1294
        %v1959 = vpop.f32.mrf.mxu0
        %v1960 = vadd.f32 %v1911, %v1959
        %v1961 = vpop.f32.mrf.mxu0
        %v1962 = vadd.f32 %v1913, %v1961
        %1963 = vmatmul.bf16.gmra.mxu0 %v1303
        %v1964 = vpop.f32.mrf.mxu0
        %v1965 = vadd.f32 %v1916, %v1964
        %v1966 = vpop.f32.mrf.mxu0
        %v1967 = vadd.f32 %v1918, %v1966
        %1968 = vmatmul.bf16.gmra.mxu0 %v1312
        %v1969 = vpop.f32.mrf.mxu0
        %v1970 = vadd.f32 %v1921, %v1969
        %v1971 = vpop.f32.mrf.mxu0
        %v1972 = vadd.f32 %v1923, %v1971
        %1973 = vmatmul.bf16.gmra.mxu0 %v1321
        %v1974 = vpop.f32.mrf.mxu0
        %v1975 = vadd.f32 %v1926, %v1974
        %v1976 = vpop.f32.mrf.mxu0
        %v1977 = vadd.f32 %v1928, %v1976
        %1978 = vdwg.mxu0
        %1979 = vmatpush.bf16.msra.mxu0 %v1719
        %1980 = vmatpush.bf16.msra.mxu0 %v1718
        %1981 = vmatpush.bf16.msra.mxu0 %v1717
        %1982 = vmatpush.bf16.msra.mxu0 %v1716
        %1983 = vmatpush.bf16.msra.mxu0 %v1715
        %1984 = vmatpush.bf16.msra.mxu0 %v1714
        %1985 = vmatpush.bf16.msra.mxu0 %v1713
        %1986 = vmatpush.bf16.msra.mxu0 %v1712
        %1987 = vmatmul.bf16.gmra.mxu0 %v1259
        %v1988 = vpop.f32.mrf.mxu0
        %v1989 = vadd.f32 %v1940, %v1988
        %v1990 = vpop.f32.mrf.mxu0
        %v1991 = vadd.f32 %v1942, %v1990
        %1992 = vmatmul.bf16.gmra.mxu0 %v1268
        %v1993 = vpop.f32.mrf.mxu0
        %v1994 = vadd.f32 %v1945, %v1993
        %v1995 = vpop.f32.mrf.mxu0
        %v1996 = vadd.f32 %v1947, %v1995
        %1997 = vmatmul.bf16.gmra.mxu0 %v1277
        %v1998 = vpop.f32.mrf.mxu0
        %v1999 = vadd.f32 %v1950, %v1998
        %v2000 = vpop.f32.mrf.mxu0
        %v2001 = vadd.f32 %v1952, %v2000
        %2002 = vmatmul.bf16.gmra.mxu0 %v1286
        %v2003 = vpop.f32.mrf.mxu0
        %v2004 = vadd.f32 %v1955, %v2003
        %v2005 = vpop.f32.mrf.mxu0
        %v2006 = vadd.f32 %v1957, %v2005
        %2007 = vmatmul.bf16.gmra.mxu0 %v1295
        %v2008 = vpop.f32.mrf.mxu0
        %v2009 = vadd.f32 %v1960, %v2008
        %v2010 = vpop.f32.mrf.mxu0
        %v2011 = vadd.f32 %v1962, %v2010
        %2012 = vmatmul.bf16.gmra.mxu0 %v1304
        %v2013 = vpop.f32.mrf.mxu0
        %v2014 = vadd.f32 %v1965, %v2013
        %v2015 = vpop.f32.mrf.mxu0
        %v2016 = vadd.f32 %v1967, %v2015
        %2017 = vmatmul.bf16.gmra.mxu0 %v1313
        %v2018 = vpop.f32.mrf.mxu0
        %v2019 = vadd.f32 %v1970, %v2018
        %v2020 = vpop.f32.mrf.mxu0
        %v2021 = vadd.f32 %v1972, %v2020
        %2022 = vmatmul.bf16.gmra.mxu0 %v1322
        %v2023 = vpop.f32.mrf.mxu0
        %v2024 = vadd.f32 %v1975, %v2023
        %v2025 = vpop.f32.mrf.mxu0
        %v2026 = vadd.f32 %v1977, %v2025
        %2027 = vdwg.mxu0
        %2028 = vmatpush.bf16.msra.mxu0 %v1727
        %2029 = vmatpush.bf16.msra.mxu0 %v1726
        %2030 = vmatpush.bf16.msra.mxu0 %v1725
        %2031 = vmatpush.bf16.msra.mxu0 %v1724
        %2032 = vmatpush.bf16.msra.mxu0 %v1723
        %2033 = vmatpush.bf16.msra.mxu0 %v1722
        %2034 = vmatpush.bf16.msra.mxu0 %v1721
        %2035 = vmatpush.bf16.msra.mxu0 %v1720
        %2036 = vmatmul.bf16.gmra.mxu0 %v1260
        %v2037 = vpop.f32.mrf.mxu0
        %v2038 = vadd.f32 %v1989, %v2037
        %v2039 = vpop.f32.mrf.mxu0
        %v2040 = vadd.f32 %v1991, %v2039
        %2041 = vmatmul.bf16.gmra.mxu0 %v1269
        %v2042 = vpop.f32.mrf.mxu0
        %v2043 = vadd.f32 %v1994, %v2042
        %v2044 = vpop.f32.mrf.mxu0
        %v2045 = vadd.f32 %v1996, %v2044
        %2046 = vmatmul.bf16.gmra.mxu0 %v1278
        %v2047 = vpop.f32.mrf.mxu0
        %v2048 = vadd.f32 %v1999, %v2047
        %v2049 = vpop.f32.mrf.mxu0
        %v2050 = vadd.f32 %v2001, %v2049
        %2051 = vmatmul.bf16.gmra.mxu0 %v1287
        %v2052 = vpop.f32.mrf.mxu0
        %v2053 = vadd.f32 %v2004, %v2052
        %v2054 = vpop.f32.mrf.mxu0
        %v2055 = vadd.f32 %v2006, %v2054
        %2056 = vmatmul.bf16.gmra.mxu0 %v1296
        %v2057 = vpop.f32.mrf.mxu0
        %v2058 = vadd.f32 %v2009, %v2057
        %v2059 = vpop.f32.mrf.mxu0
        %v2060 = vadd.f32 %v2011, %v2059
        %2061 = vmatmul.bf16.gmra.mxu0 %v1305
        %v2062 = vpop.f32.mrf.mxu0
        %v2063 = vadd.f32 %v2014, %v2062
        %v2064 = vpop.f32.mrf.mxu0
        %v2065 = vadd.f32 %v2016, %v2064
        %2066 = vmatmul.bf16.gmra.mxu0 %v1314
        %v2067 = vpop.f32.mrf.mxu0
        %v2068 = vadd.f32 %v2019, %v2067
        %v2069 = vpop.f32.mrf.mxu0
        %v2070 = vadd.f32 %v2021, %v2069
        %2071 = vmatmul.bf16.gmra.mxu0 %v1323
        %v2072 = vpop.f32.mrf.mxu0
        %v2073 = vadd.f32 %v2024, %v2072
        %v2074 = vpop.f32.mrf.mxu0
        %v2075 = vadd.f32 %v2026, %v2074
        %2076 = vdwg.mxu0
        %2077 = vmatpush.bf16.msra.mxu0 %v1735
        %2078 = vmatpush.bf16.msra.mxu0 %v1734
        %2079 = vmatpush.bf16.msra.mxu0 %v1733
        %2080 = vmatpush.bf16.msra.mxu0 %v1732
        %2081 = vmatpush.bf16.msra.mxu0 %v1731
        %2082 = vmatpush.bf16.msra.mxu0 %v1730
        %2083 = vmatpush.bf16.msra.mxu0 %v1729
        %2084 = vmatpush.bf16.msra.mxu0 %v1728
        %2085 = vmatmul.bf16.gmra.mxu0 %v1261
        %v2086 = vpop.f32.mrf.mxu0
        %v2087 = vadd.f32 %v2038, %v2086
        %v2088 = vpop.f32.mrf.mxu0
        %v2089 = vadd.f32 %v2040, %v2088
        %2090 = vmatmul.bf16.gmra.mxu0 %v1270
        %v2091 = vpop.f32.mrf.mxu0
        %v2092 = vadd.f32 %v2043, %v2091
        %v2093 = vpop.f32.mrf.mxu0
        %v2094 = vadd.f32 %v2045, %v2093
        %2095 = vmatmul.bf16.gmra.mxu0 %v1279
        %v2096 = vpop.f32.mrf.mxu0
        %v2097 = vadd.f32 %v2048, %v2096
        %v2098 = vpop.f32.mrf.mxu0
        %v2099 = vadd.f32 %v2050, %v2098
        %2100 = vmatmul.bf16.gmra.mxu0 %v1288
        %v2101 = vpop.f32.mrf.mxu0
        %v2102 = vadd.f32 %v2053, %v2101
        %v2103 = vpop.f32.mrf.mxu0
        %v2104 = vadd.f32 %v2055, %v2103
        %2105 = vmatmul.bf16.gmra.mxu0 %v1297
        %v2106 = vpop.f32.mrf.mxu0
        %v2107 = vadd.f32 %v2058, %v2106
        %v2108 = vpop.f32.mrf.mxu0
        %v2109 = vadd.f32 %v2060, %v2108
        %2110 = vmatmul.bf16.gmra.mxu0 %v1306
        %v2111 = vpop.f32.mrf.mxu0
        %v2112 = vadd.f32 %v2063, %v2111
        %v2113 = vpop.f32.mrf.mxu0
        %v2114 = vadd.f32 %v2065, %v2113
        %2115 = vmatmul.bf16.gmra.mxu0 %v1315
        %v2116 = vpop.f32.mrf.mxu0
        %v2117 = vadd.f32 %v2068, %v2116
        %v2118 = vpop.f32.mrf.mxu0
        %v2119 = vadd.f32 %v2070, %v2118
        %2120 = vmatmul.bf16.gmra.mxu0 %v1324
        %v2121 = vpop.f32.mrf.mxu0
        %v2122 = vadd.f32 %v2073, %v2121
        %v2123 = vpop.f32.mrf.mxu0
        %v2124 = vadd.f32 %v2075, %v2123
        %2125 = vdwg.mxu0
        %2126 = vmatpush.bf16.msra.mxu0 %v1743
        %2127 = vmatpush.bf16.msra.mxu0 %v1742
        %2128 = vmatpush.bf16.msra.mxu0 %v1741
        %2129 = vmatpush.bf16.msra.mxu0 %v1740
        %2130 = vmatpush.bf16.msra.mxu0 %v1739
        %2131 = vmatpush.bf16.msra.mxu0 %v1738
        %2132 = vmatpush.bf16.msra.mxu0 %v1737
        %2133 = vmatpush.bf16.msra.mxu0 %v1736
        %2134 = vmatmul.bf16.gmra.mxu0 %v1262
        %v2135 = vpop.f32.mrf.mxu0
        %v2136 = vadd.f32 %v2087, %v2135
        %v2137 = vpop.f32.mrf.mxu0
        %v2138 = vadd.f32 %v2089, %v2137
        %2139 = vmatmul.bf16.gmra.mxu0 %v1271
        %v2140 = vpop.f32.mrf.mxu0
        %v2141 = vadd.f32 %v2092, %v2140
        %v2142 = vpop.f32.mrf.mxu0
        %v2143 = vadd.f32 %v2094, %v2142
        %2144 = vmatmul.bf16.gmra.mxu0 %v1280
        %v2145 = vpop.f32.mrf.mxu0
        %v2146 = vadd.f32 %v2097, %v2145
        %v2147 = vpop.f32.mrf.mxu0
        %v2148 = vadd.f32 %v2099, %v2147
        %2149 = vmatmul.bf16.gmra.mxu0 %v1289
        %v2150 = vpop.f32.mrf.mxu0
        %v2151 = vadd.f32 %v2102, %v2150
        %v2152 = vpop.f32.mrf.mxu0
        %v2153 = vadd.f32 %v2104, %v2152
        %2154 = vmatmul.bf16.gmra.mxu0 %v1298
        %v2155 = vpop.f32.mrf.mxu0
        %v2156 = vadd.f32 %v2107, %v2155
        %v2157 = vpop.f32.mrf.mxu0
        %v2158 = vadd.f32 %v2109, %v2157
        %2159 = vmatmul.bf16.gmra.mxu0 %v1307
        %v2160 = vpop.f32.mrf.mxu0
        %v2161 = vadd.f32 %v2112, %v2160
        %v2162 = vpop.f32.mrf.mxu0
        %v2163 = vadd.f32 %v2114, %v2162
        %2164 = vmatmul.bf16.gmra.mxu0 %v1316
        %v2165 = vpop.f32.mrf.mxu0
        %v2166 = vadd.f32 %v2117, %v2165
        %v2167 = vpop.f32.mrf.mxu0
        %v2168 = vadd.f32 %v2119, %v2167
        %2169 = vmatmul.bf16.gmra.mxu0 %v1325
        %v2170 = vpop.f32.mrf.mxu0
        %v2171 = vadd.f32 %v2122, %v2170
        %v2172 = vpop.f32.mrf.mxu0
        %v2173 = vadd.f32 %v2124, %v2172
        %2174 = vdwg.mxu0
        %2175 = vmatpush.bf16.msra.mxu0 %v1751
        %2176 = vmatpush.bf16.msra.mxu0 %v1750
        %2177 = vmatpush.bf16.msra.mxu0 %v1749
        %2178 = vmatpush.bf16.msra.mxu0 %v1748
        %2179 = vmatpush.bf16.msra.mxu0 %v1747
        %2180 = vmatpush.bf16.msra.mxu0 %v1746
        %2181 = vmatpush.bf16.msra.mxu0 %v1745
        %2182 = vmatpush.bf16.msra.mxu0 %v1744
        %2183 = vmatmul.bf16.gmra.mxu0 %v1263
        %v2184 = vpop.f32.mrf.mxu0
        %v2185 = vadd.f32 %v2136, %v2184
        %v2186 = vpop.f32.mrf.mxu0
        %v2187 = vadd.f32 %v2138, %v2186
        %2188 = vmatmul.bf16.gmra.mxu0 %v1272
        %v2189 = vpop.f32.mrf.mxu0
        %v2190 = vadd.f32 %v2141, %v2189
        %v2191 = vpop.f32.mrf.mxu0
        %v2192 = vadd.f32 %v2143, %v2191
        %2193 = vmatmul.bf16.gmra.mxu0 %v1281
        %v2194 = vpop.f32.mrf.mxu0
        %v2195 = vadd.f32 %v2146, %v2194
        %v2196 = vpop.f32.mrf.mxu0
        %v2197 = vadd.f32 %v2148, %v2196
        %2198 = vmatmul.bf16.gmra.mxu0 %v1290
        %v2199 = vpop.f32.mrf.mxu0
        %v2200 = vadd.f32 %v2151, %v2199
        %v2201 = vpop.f32.mrf.mxu0
        %v2202 = vadd.f32 %v2153, %v2201
        %2203 = vmatmul.bf16.gmra.mxu0 %v1299
        %v2204 = vpop.f32.mrf.mxu0
        %v2205 = vadd.f32 %v2156, %v2204
        %v2206 = vpop.f32.mrf.mxu0
        %v2207 = vadd.f32 %v2158, %v2206
        %2208 = vmatmul.bf16.gmra.mxu0 %v1308
        %v2209 = vpop.f32.mrf.mxu0
        %v2210 = vadd.f32 %v2161, %v2209
        %v2211 = vpop.f32.mrf.mxu0
        %v2212 = vadd.f32 %v2163, %v2211
        %2213 = vmatmul.bf16.gmra.mxu0 %v1317
        %v2214 = vpop.f32.mrf.mxu0
        %v2215 = vadd.f32 %v2166, %v2214
        %v2216 = vpop.f32.mrf.mxu0
        %v2217 = vadd.f32 %v2168, %v2216
        %2218 = vmatmul.bf16.gmra.mxu0 %v1326
        %v2219 = vpop.f32.mrf.mxu0
        %v2220 = vadd.f32 %v2171, %v2219
        %v2221 = vpop.f32.mrf.mxu0
        %v2222 = vadd.f32 %v2173, %v2221
        %2223 = vdwg.mxu0
        %2224 = vmatpush.bf16.msra.mxu0 %v1759
        %2225 = vmatpush.bf16.msra.mxu0 %v1758
        %2226 = vmatpush.bf16.msra.mxu0 %v1757
        %2227 = vmatpush.bf16.msra.mxu0 %v1756
        %2228 = vmatpush.bf16.msra.mxu0 %v1755
        %2229 = vmatpush.bf16.msra.mxu0 %v1754
        %2230 = vmatpush.bf16.msra.mxu0 %v1753
        %2231 = vmatpush.bf16.msra.mxu0 %v1752
        %2232 = vmatmul.bf16.gmra.mxu0 %v1264
        %v2233 = vpop.f32.mrf.mxu0
        %v2234 = vadd.f32 %v2185, %v2233
        %v2235 = vpop.f32.mrf.mxu0
        %v2236 = vadd.f32 %v2187, %v2235
        %2237 = vmatmul.bf16.gmra.mxu0 %v1273
        %v2238 = vpop.f32.mrf.mxu0
        %v2239 = vadd.f32 %v2190, %v2238
        %v2240 = vpop.f32.mrf.mxu0
        %v2241 = vadd.f32 %v2192, %v2240
        %2242 = vmatmul.bf16.gmra.mxu0 %v1282
        %v2243 = vpop.f32.mrf.mxu0
        %v2244 = vadd.f32 %v2195, %v2243
        %v2245 = vpop.f32.mrf.mxu0
        %v2246 = vadd.f32 %v2197, %v2245
        %2247 = vmatmul.bf16.gmra.mxu0 %v1291
        %v2248 = vpop.f32.mrf.mxu0
        %v2249 = vadd.f32 %v2200, %v2248
        %v2250 = vpop.f32.mrf.mxu0
        %v2251 = vadd.f32 %v2202, %v2250
        %2252 = vmatmul.bf16.gmra.mxu0 %v1300
        %v2253 = vpop.f32.mrf.mxu0
        %v2254 = vadd.f32 %v2205, %v2253
        %v2255 = vpop.f32.mrf.mxu0
        %v2256 = vadd.f32 %v2207, %v2255
        %2257 = vmatmul.bf16.gmra.mxu0 %v1309
        %v2258 = vpop.f32.mrf.mxu0
        %v2259 = vadd.f32 %v2210, %v2258
        %v2260 = vpop.f32.mrf.mxu0
        %v2261 = vadd.f32 %v2212, %v2260
        %2262 = vmatmul.bf16.gmra.mxu0 %v1318
        %v2263 = vpop.f32.mrf.mxu0
        %v2264 = vadd.f32 %v2215, %v2263
        %v2265 = vpop.f32.mrf.mxu0
        %v2266 = vadd.f32 %v2217, %v2265
        %2267 = vmatmul.bf16.gmra.mxu0 %v1327
        %v2268 = vpop.f32.mrf.mxu0
        %v2269 = vadd.f32 %v2220, %v2268
        %v2270 = vpop.f32.mrf.mxu0
        %v2271 = vadd.f32 %v2222, %v2270
        %2272 = vdwg.mxu0
        %v2273 = vld [vmem:[%s2] sm:$0x1]
        %v2274 = vld [vmem:[%s3] sm:$0x1]
        %v2275 = vadd.f32 %v2234, %v2236
        %v2276 = vadd.f32 %v2275, %v2239
        %v2277 = vadd.f32 %v2276, %v2241
        %v2278 = vadd.f32 %v2277, %v2244
        %v2279 = vadd.f32 %v2278, %v2246
        %v2280 = vadd.f32 %v2279, %v2249
        %v2281 = vadd.f32 %v2280, %v2251
        %v2282 = vrot.slane %v2281, 4
        %v2283 = vadd.f32 %v2281, %v2282
        %v2284 = vrot.slane %v2283, 2
        %v2285 = vadd.f32 %v2283, %v2284
        %v2286 = vrot.slane %v2285, 1
        %v2287 = vadd.f32 %v2285, %v2286
        %v2288 = vadd.f32 %v2254, %v2256
        %v2289 = vadd.f32 %v2288, %v2259
        %v2290 = vadd.f32 %v2289, %v2261
        %v2291 = vadd.f32 %v2290, %v2264
        %v2292 = vadd.f32 %v2291, %v2266
        %v2293 = vadd.f32 %v2292, %v2269
        %v2294 = vadd.f32 %v2293, %v2271
        %v2295 = vrot.slane %v2294, 4
        %v2296 = vadd.f32 %v2294, %v2295
        %v2297 = vrot.slane %v2296, 2
        %v2298 = vadd.f32 %v2296, %v2297
        %v2299 = vrot.slane %v2298, 1
        %v2300 = vadd.f32 %v2298, %v2299
        %v2301 = vld [vmem:[%s7] sm:$0xff]
        %v2302 = vld [vmem:[%s7 + $0x8] sm:$0xff]
        %v2303 = vld [vmem:[%s7 + $0x10] sm:$0xff]
        %v2304 = vld [vmem:[%s7 + $0x18] sm:$0xff]
        %v2305 = vld [vmem:[%s7 + $0x20] sm:$0xff]
        %v2306 = vld [vmem:[%s7 + $0x28] sm:$0xff]
        %v2307 = vld [vmem:[%s7 + $0x30] sm:$0xff]
        %v2308 = vld [vmem:[%s7 + $0x38] sm:$0xff]
        %v2309 = vld [vmem:[%s7 + $0x40] sm:$0xff]
        %v2310 = vld [vmem:[%s7 + $0x48] sm:$0xff]
        %v2311 = vld [vmem:[%s7 + $0x50] sm:$0xff]
        %v2312 = vld [vmem:[%s7 + $0x58] sm:$0xff]
        %v2313 = vld [vmem:[%s7 + $0x60] sm:$0xff]
        %v2314 = vld [vmem:[%s7 + $0x68] sm:$0xff]
        %v2315 = vld [vmem:[%s7 + $0x70] sm:$0xff]
        %v2316 = vld [vmem:[%s7 + $0x78] sm:$0xff]
        %vm2319 = vcmask 1041409
        %v2320 = vsel %vm2319, %v2300, %v2287
        %2322 = vmatpush.msra.mxu0 %v2316
        %2323 = vmatpush.msra.mxu0 %v2315
        %2324 = vmatpush.msra.mxu0 %v2314
        %2325 = vmatpush.msra.mxu0 %v2313
        %2326 = vmatpush.msra.mxu0 %v2312
        %2327 = vmatpush.msra.mxu0 %v2311
        %2328 = vmatpush.msra.mxu0 %v2310
        %2329 = vmatpush.msra.mxu0 %v2309
        %2330 = vmatpush.msra.mxu0 %v2308
        %2331 = vmatpush.msra.mxu0 %v2307
        %2332 = vmatpush.msra.mxu0 %v2306
        %2333 = vmatpush.msra.mxu0 %v2305
        %2334 = vmatpush.msra.mxu0 %v2304
        %2335 = vmatpush.msra.mxu0 %v2303
        %2336 = vmatpush.msra.mxu0 %v2302
        %2337 = vmatpush.msra.mxu0 %v2301
        %2338 = vmatmul.f32.gmra.mxu0 %v2320
        %v2339 = vpop.f32.mrf.mxu0
        %v2340 = vadd.f32 0.0, %v2339
        %2341 = vdwg.mxu0
        %v2342 = vmul.f32 %v2340, 0.00390625
        %v2344 = vrot.slane %v2342, 1
        %v2345 = vperm.slane %v2342, 0
        %v2346 = vperm.slane %v2344, 0
        %v2349 = vsub.f32 %v2234, %v2345
        %v2350 = vsub.f32 %v2236, %v2345
        %v2351 = vsub.f32 %v2239, %v2345
        %v2352 = vsub.f32 %v2241, %v2345
        %v2353 = vsub.f32 %v2244, %v2345
        %v2354 = vsub.f32 %v2246, %v2345
        %v2355 = vsub.f32 %v2249, %v2345
        %v2356 = vsub.f32 %v2251, %v2345
        %v2357 = vsub.f32 %v2254, %v2346
        %v2358 = vsub.f32 %v2256, %v2346
        %v2359 = vsub.f32 %v2259, %v2346
        %v2360 = vsub.f32 %v2261, %v2346
        %v2361 = vsub.f32 %v2264, %v2346
        %v2362 = vsub.f32 %v2266, %v2346
        %v2363 = vsub.f32 %v2269, %v2346
        %v2364 = vsub.f32 %v2271, %v2346
        %v2365 = vmul.f32 %v2349, %v2349
        %v2366 = vmul.f32 %v2350, %v2350
        %v2367 = vmul.f32 %v2351, %v2351
        %v2368 = vmul.f32 %v2352, %v2352
        %v2369 = vmul.f32 %v2353, %v2353
        %v2370 = vmul.f32 %v2354, %v2354
        %v2371 = vmul.f32 %v2355, %v2355
        %v2372 = vmul.f32 %v2356, %v2356
        %v2373 = vmul.f32 %v2357, %v2357
        %v2374 = vmul.f32 %v2358, %v2358
        %v2375 = vmul.f32 %v2359, %v2359
        %v2376 = vmul.f32 %v2360, %v2360
        %v2377 = vmul.f32 %v2361, %v2361
        %v2378 = vmul.f32 %v2362, %v2362
        %v2379 = vmul.f32 %v2363, %v2363
        %v2380 = vmul.f32 %v2364, %v2364
        %v2381 = vadd.f32 %v2365, %v2366
        %v2382 = vadd.f32 %v2381, %v2367
        %v2383 = vadd.f32 %v2382, %v2368
        %v2384 = vadd.f32 %v2383, %v2369
        %v2385 = vadd.f32 %v2384, %v2370
        %v2386 = vadd.f32 %v2385, %v2371
        %v2387 = vadd.f32 %v2386, %v2372
        %v2388 = vrot.slane %v2387, 4
        %v2389 = vadd.f32 %v2387, %v2388
        %v2390 = vrot.slane %v2389, 2
        %v2391 = vadd.f32 %v2389, %v2390
        %v2392 = vrot.slane %v2391, 1
        %v2393 = vadd.f32 %v2391, %v2392
        %v2394 = vadd.f32 %v2373, %v2374
        %v2395 = vadd.f32 %v2394, %v2375
        %v2396 = vadd.f32 %v2395, %v2376
        %v2397 = vadd.f32 %v2396, %v2377
        %v2398 = vadd.f32 %v2397, %v2378
        %v2399 = vadd.f32 %v2398, %v2379
        %v2400 = vadd.f32 %v2399, %v2380
        %v2401 = vrot.slane %v2400, 4
        %v2402 = vadd.f32 %v2400, %v2401
        %v2403 = vrot.slane %v2402, 2
        %v2404 = vadd.f32 %v2402, %v2403
        %v2405 = vrot.slane %v2404, 1
        %v2406 = vadd.f32 %v2404, %v2405
        %v2409 = vsel %vm2319, %v2406, %v2393
        %2411 = vmatpush.msra.mxu0 %v2316
        %2412 = vmatpush.msra.mxu0 %v2315
        %2413 = vmatpush.msra.mxu0 %v2314
        %2414 = vmatpush.msra.mxu0 %v2313
        %2415 = vmatpush.msra.mxu0 %v2312
        %2416 = vmatpush.msra.mxu0 %v2311
        %2417 = vmatpush.msra.mxu0 %v2310
        %2418 = vmatpush.msra.mxu0 %v2309
        %2419 = vmatpush.msra.mxu0 %v2308
        %2420 = vmatpush.msra.mxu0 %v2307
        %2421 = vmatpush.msra.mxu0 %v2306
        %2422 = vmatpush.msra.mxu0 %v2305
        %2423 = vmatpush.msra.mxu0 %v2304
        %2424 = vmatpush.msra.mxu0 %v2303
        %2425 = vmatpush.msra.mxu0 %v2302
        %2426 = vmatpush.msra.mxu0 %v2301
        %2427 = vmatmul.f32.gmra.mxu0 %v2409
        %v2428 = vpop.f32.mrf.mxu0
        %v2429 = vadd.f32 0.0, %v2428
        %2430 = vdwg.mxu0
        %v2431 = vmul.f32 %v2429, 0.00390625
        %v2432 = vadd.f32 %v2431, 1e-05
        %v2433 = vrsqrt.pop %v2432
        %v2434 = vmul.f32 %v2433, %v2432
        %v2435 = vmul.f32 %v2434, %v2433
        %v2436 = vmul.f32 0.5, %v2435
        %v2437 = vsub.f32 1.5, %v2436
        %v2438 = vmul.f32 %v2433, %v2437
        %vm2439 = vweird.f32 %v2432
        %vm2440 = vweird.f32 %v2433
        %vm2441 = vmor %vm2439, %vm2440
        %v2442 = vsel %vm2441, %v2433, %v2438
        %v2444 = vrot.slane %v2442, 1
        %v2446 = vmul.f32 %v2442, %v2273
        %v2447 = vmul.f32 %v2444, %v2273
        %v2450 = vperm.slane %v2446, 0
        %v2451 = vperm.slane %v2447, 0
        %v2454 = vmul.f32 %v2349, %v2450
        %v2455 = vmul.f32 %v2350, %v2450
        %v2456 = vmul.f32 %v2351, %v2450
        %v2457 = vmul.f32 %v2352, %v2450
        %v2458 = vmul.f32 %v2353, %v2450
        %v2459 = vmul.f32 %v2354, %v2450
        %v2460 = vmul.f32 %v2355, %v2450
        %v2461 = vmul.f32 %v2356, %v2450
        %v2462 = vmul.f32 %v2357, %v2451
        %v2463 = vmul.f32 %v2358, %v2451
        %v2464 = vmul.f32 %v2359, %v2451
        %v2465 = vmul.f32 %v2360, %v2451
        %v2466 = vmul.f32 %v2361, %v2451
        %v2467 = vmul.f32 %v2362, %v2451
        %v2468 = vmul.f32 %v2363, %v2451
        %v2469 = vmul.f32 %v2364, %v2451
        %v2471 = vperm.slane %v2274, 0
        %v2473 = vadd.f32 %v2454, %v2471
        %v2474 = vadd.f32 %v2455, %v2471
        %v2475 = vadd.f32 %v2456, %v2471
        %v2476 = vadd.f32 %v2457, %v2471
        %v2477 = vadd.f32 %v2458, %v2471
        %v2478 = vadd.f32 %v2459, %v2471
        %v2479 = vadd.f32 %v2460, %v2471
        %v2480 = vadd.f32 %v2461, %v2471
        %v2481 = vadd.f32 %v2462, %v2471
        %v2482 = vadd.f32 %v2463, %v2471
        %v2483 = vadd.f32 %v2464, %v2471
        %v2484 = vadd.f32 %v2465, %v2471
        %v2485 = vadd.f32 %v2466, %v2471
        %v2486 = vadd.f32 %v2467, %v2471
        %v2487 = vadd.f32 %v2468, %v2471
        %v2488 = vadd.f32 %v2469, %v2471
        %v2489 = vxor.u32 %v2473, 2147483648
        %v2490 = vxor.u32 %v2474, 2147483648
        %v2491 = vxor.u32 %v2475, 2147483648
        %v2492 = vxor.u32 %v2476, 2147483648
        %v2493 = vxor.u32 %v2477, 2147483648
        %v2494 = vxor.u32 %v2478, 2147483648
        %v2495 = vxor.u32 %v2479, 2147483648
        %v2496 = vxor.u32 %v2480, 2147483648
        %v2497 = vxor.u32 %v2481, 2147483648
        %v2498 = vxor.u32 %v2482, 2147483648
        %v2499 = vxor.u32 %v2483, 2147483648
        %v2500 = vxor.u32 %v2484, 2147483648
        %v2501 = vxor.u32 %v2485, 2147483648
        %v2502 = vxor.u32 %v2486, 2147483648
        %v2503 = vxor.u32 %v2487, 2147483648
        %v2504 = vxor.u32 %v2488, 2147483648
        %v2505 = vmul.f32 %v2489, 1.442695
        %v2506 = vpow.pop %v2505
        %v2507 = vmul.f32 %v2490, 1.442695
        %v2508 = vpow.pop %v2507
        %v2509 = vmul.f32 %v2491, 1.442695
        %v2510 = vpow.pop %v2509
        %v2511 = vmul.f32 %v2492, 1.442695
        %v2512 = vpow.pop %v2511
        %v2513 = vmul.f32 %v2493, 1.442695
        %v2514 = vpow.pop %v2513
        %v2515 = vmul.f32 %v2494, 1.442695
        %v2516 = vpow.pop %v2515
        %v2517 = vmul.f32 %v2495, 1.442695
        %v2518 = vpow.pop %v2517
        %v2519 = vmul.f32 %v2496, 1.442695
        %v2520 = vpow.pop %v2519
        %v2521 = vmul.f32 %v2497, 1.442695
        %v2522 = vpow.pop %v2521
        %v2523 = vmul.f32 %v2498, 1.442695
        %v2524 = vpow.pop %v2523
        %v2525 = vmul.f32 %v2499, 1.442695
        %v2526 = vpow.pop %v2525
        %v2527 = vmul.f32 %v2500, 1.442695
        %v2528 = vpow.pop %v2527
        %v2529 = vmul.f32 %v2501, 1.442695
        %v2530 = vpow.pop %v2529
        %v2531 = vmul.f32 %v2502, 1.442695
        %v2532 = vpow.pop %v2531
        %v2533 = vmul.f32 %v2503, 1.442695
        %v2534 = vpow.pop %v2533
        %v2535 = vmul.f32 %v2504, 1.442695
        %v2536 = vpow.pop %v2535
        %v2537 = vadd.f32 %v2506, 1.0
        %v2538 = vadd.f32 %v2508, 1.0
        %v2539 = vadd.f32 %v2510, 1.0
        %v2540 = vadd.f32 %v2512, 1.0
        %v2541 = vadd.f32 %v2514, 1.0
        %v2542 = vadd.f32 %v2516, 1.0
        %v2543 = vadd.f32 %v2518, 1.0
        %v2544 = vadd.f32 %v2520, 1.0
        %v2545 = vadd.f32 %v2522, 1.0
        %v2546 = vadd.f32 %v2524, 1.0
        %v2547 = vadd.f32 %v2526, 1.0
        %v2548 = vadd.f32 %v2528, 1.0
        %v2549 = vadd.f32 %v2530, 1.0
        %v2550 = vadd.f32 %v2532, 1.0
        %v2551 = vadd.f32 %v2534, 1.0
        %v2552 = vadd.f32 %v2536, 1.0
        %v2553 = vrcp.pop %v2537
        %v2554 = vmul.f32 %v2537, %v2553
        %v2555 = vsub.f32 1.0, %v2554
        %v2556 = vmul.f32 %v2553, %v2555
        %v2557 = vadd.f32 %v2553, %v2556
        %vm2558 = vweird.f32 %v2537
        %vm2559 = vweird.f32 %v2553
        %vm2560 = vmor %vm2558, %vm2559
        %v2561 = vsel %vm2560, %v2553, %v2557
        %v2562 = vand.u32 2147483647, %v2537
        %vm2563 = vcmp.eq.f32.partialorder %v2562, 8.507059e+37
        %v2564 = vand.u32 %v2537, 2147483648
        %v2565 = vor.u32 1.1754944e-38, %v2564
        %v2566 = vsel %vm2563, %v2565, %v2561
        %v2567 = vmul.f32 1.0, %v2566
        %v2568 = vrcp.pop %v2538
        %v2569 = vmul.f32 %v2538, %v2568
        %v2570 = vsub.f32 1.0, %v2569
        %v2571 = vmul.f32 %v2568, %v2570
        %v2572 = vadd.f32 %v2568, %v2571
        %vm2573 = vweird.f32 %v2538
        %vm2574 = vweird.f32 %v2568
        %vm2575 = vmor %vm2573, %vm2574
        %v2576 = vsel %vm2575, %v2568, %v2572
        %v2577 = vand.u32 2147483647, %v2538
        %vm2578 = vcmp.eq.f32.partialorder %v2577, 8.507059e+37
        %v2579 = vand.u32 %v2538, 2147483648
        %v2580 = vor.u32 1.1754944e-38, %v2579
        %v2581 = vsel %vm2578, %v2580, %v2576
        %v2582 = vmul.f32 1.0, %v2581
        %v2583 = vrcp.pop %v2539
        %v2584 = vmul.f32 %v2539, %v2583
        %v2585 = vsub.f32 1.0, %v2584
        %v2586 = vmul.f32 %v2583, %v2585
        %v2587 = vadd.f32 %v2583, %v2586
        %vm2588 = vweird.f32 %v2539
        %vm2589 = vweird.f32 %v2583
        %vm2590 = vmor %vm2588, %vm2589
        %v2591 = vsel %vm2590, %v2583, %v2587
        %v2592 = vand.u32 2147483647, %v2539
        %vm2593 = vcmp.eq.f32.partialorder %v2592, 8.507059e+37
        %v2594 = vand.u32 %v2539, 2147483648
        %v2595 = vor.u32 1.1754944e-38, %v2594
        %v2596 = vsel %vm2593, %v2595, %v2591
        %v2597 = vmul.f32 1.0, %v2596
        %v2598 = vrcp.pop %v2540
        %v2599 = vmul.f32 %v2540, %v2598
        %v2600 = vsub.f32 1.0, %v2599
        %v2601 = vmul.f32 %v2598, %v2600
        %v2602 = vadd.f32 %v2598, %v2601
        %vm2603 = vweird.f32 %v2540
        %vm2604 = vweird.f32 %v2598
        %vm2605 = vmor %vm2603, %vm2604
        %v2606 = vsel %vm2605, %v2598, %v2602
        %v2607 = vand.u32 2147483647, %v2540
        %vm2608 = vcmp.eq.f32.partialorder %v2607, 8.507059e+37
        %v2609 = vand.u32 %v2540, 2147483648
        %v2610 = vor.u32 1.1754944e-38, %v2609
        %v2611 = vsel %vm2608, %v2610, %v2606
        %v2612 = vmul.f32 1.0, %v2611
        %v2613 = vrcp.pop %v2541
        %v2614 = vmul.f32 %v2541, %v2613
        %v2615 = vsub.f32 1.0, %v2614
        %v2616 = vmul.f32 %v2613, %v2615
        %v2617 = vadd.f32 %v2613, %v2616
        %vm2618 = vweird.f32 %v2541
        %vm2619 = vweird.f32 %v2613
        %vm2620 = vmor %vm2618, %vm2619
        %v2621 = vsel %vm2620, %v2613, %v2617
        %v2622 = vand.u32 2147483647, %v2541
        %vm2623 = vcmp.eq.f32.partialorder %v2622, 8.507059e+37
        %v2624 = vand.u32 %v2541, 2147483648
        %v2625 = vor.u32 1.1754944e-38, %v2624
        %v2626 = vsel %vm2623, %v2625, %v2621
        %v2627 = vmul.f32 1.0, %v2626
        %v2628 = vrcp.pop %v2542
        %v2629 = vmul.f32 %v2542, %v2628
        %v2630 = vsub.f32 1.0, %v2629
        %v2631 = vmul.f32 %v2628, %v2630
        %v2632 = vadd.f32 %v2628, %v2631
        %vm2633 = vweird.f32 %v2542
        %vm2634 = vweird.f32 %v2628
        %vm2635 = vmor %vm2633, %vm2634
        %v2636 = vsel %vm2635, %v2628, %v2632
        %v2637 = vand.u32 2147483647, %v2542
        %vm2638 = vcmp.eq.f32.partialorder %v2637, 8.507059e+37
        %v2639 = vand.u32 %v2542, 2147483648
        %v2640 = vor.u32 1.1754944e-38, %v2639
        %v2641 = vsel %vm2638, %v2640, %v2636
        %v2642 = vmul.f32 1.0, %v2641
        %v2643 = vrcp.pop %v2543
        %v2644 = vmul.f32 %v2543, %v2643
        %v2645 = vsub.f32 1.0, %v2644
        %v2646 = vmul.f32 %v2643, %v2645
        %v2647 = vadd.f32 %v2643, %v2646
        %vm2648 = vweird.f32 %v2543
        %vm2649 = vweird.f32 %v2643
        %vm2650 = vmor %vm2648, %vm2649
        %v2651 = vsel %vm2650, %v2643, %v2647
        %v2652 = vand.u32 2147483647, %v2543
        %vm2653 = vcmp.eq.f32.partialorder %v2652, 8.507059e+37
        %v2654 = vand.u32 %v2543, 2147483648
        %v2655 = vor.u32 1.1754944e-38, %v2654
        %v2656 = vsel %vm2653, %v2655, %v2651
        %v2657 = vmul.f32 1.0, %v2656
        %v2658 = vrcp.pop %v2544
        %v2659 = vmul.f32 %v2544, %v2658
        %v2660 = vsub.f32 1.0, %v2659
        %v2661 = vmul.f32 %v2658, %v2660
        %v2662 = vadd.f32 %v2658, %v2661
        %vm2663 = vweird.f32 %v2544
        %vm2664 = vweird.f32 %v2658
        %vm2665 = vmor %vm2663, %vm2664
        %v2666 = vsel %vm2665, %v2658, %v2662
        %v2667 = vand.u32 2147483647, %v2544
        %vm2668 = vcmp.eq.f32.partialorder %v2667, 8.507059e+37
        %v2669 = vand.u32 %v2544, 2147483648
        %v2670 = vor.u32 1.1754944e-38, %v2669
        %v2671 = vsel %vm2668, %v2670, %v2666
        %v2672 = vmul.f32 1.0, %v2671
        %v2673 = vrcp.pop %v2545
        %v2674 = vmul.f32 %v2545, %v2673
        %v2675 = vsub.f32 1.0, %v2674
        %v2676 = vmul.f32 %v2673, %v2675
        %v2677 = vadd.f32 %v2673, %v2676
        %vm2678 = vweird.f32 %v2545
        %vm2679 = vweird.f32 %v2673
        %vm2680 = vmor %vm2678, %vm2679
        %v2681 = vsel %vm2680, %v2673, %v2677
        %v2682 = vand.u32 2147483647, %v2545
        %vm2683 = vcmp.eq.f32.partialorder %v2682, 8.507059e+37
        %v2684 = vand.u32 %v2545, 2147483648
        %v2685 = vor.u32 1.1754944e-38, %v2684
        %v2686 = vsel %vm2683, %v2685, %v2681
        %v2687 = vmul.f32 1.0, %v2686
        %v2688 = vrcp.pop %v2546
        %v2689 = vmul.f32 %v2546, %v2688
        %v2690 = vsub.f32 1.0, %v2689
        %v2691 = vmul.f32 %v2688, %v2690
        %v2692 = vadd.f32 %v2688, %v2691
        %vm2693 = vweird.f32 %v2546
        %vm2694 = vweird.f32 %v2688
        %vm2695 = vmor %vm2693, %vm2694
        %v2696 = vsel %vm2695, %v2688, %v2692
        %v2697 = vand.u32 2147483647, %v2546
        %vm2698 = vcmp.eq.f32.partialorder %v2697, 8.507059e+37
        %v2699 = vand.u32 %v2546, 2147483648
        %v2700 = vor.u32 1.1754944e-38, %v2699
        %v2701 = vsel %vm2698, %v2700, %v2696
        %v2702 = vmul.f32 1.0, %v2701
        %v2703 = vrcp.pop %v2547
        %v2704 = vmul.f32 %v2547, %v2703
        %v2705 = vsub.f32 1.0, %v2704
        %v2706 = vmul.f32 %v2703, %v2705
        %v2707 = vadd.f32 %v2703, %v2706
        %vm2708 = vweird.f32 %v2547
        %vm2709 = vweird.f32 %v2703
        %vm2710 = vmor %vm2708, %vm2709
        %v2711 = vsel %vm2710, %v2703, %v2707
        %v2712 = vand.u32 2147483647, %v2547
        %vm2713 = vcmp.eq.f32.partialorder %v2712, 8.507059e+37
        %v2714 = vand.u32 %v2547, 2147483648
        %v2715 = vor.u32 1.1754944e-38, %v2714
        %v2716 = vsel %vm2713, %v2715, %v2711
        %v2717 = vmul.f32 1.0, %v2716
        %v2718 = vrcp.pop %v2548
        %v2719 = vmul.f32 %v2548, %v2718
        %v2720 = vsub.f32 1.0, %v2719
        %v2721 = vmul.f32 %v2718, %v2720
        %v2722 = vadd.f32 %v2718, %v2721
        %vm2723 = vweird.f32 %v2548
        %vm2724 = vweird.f32 %v2718
        %vm2725 = vmor %vm2723, %vm2724
        %v2726 = vsel %vm2725, %v2718, %v2722
        %v2727 = vand.u32 2147483647, %v2548
        %vm2728 = vcmp.eq.f32.partialorder %v2727, 8.507059e+37
        %v2729 = vand.u32 %v2548, 2147483648
        %v2730 = vor.u32 1.1754944e-38, %v2729
        %v2731 = vsel %vm2728, %v2730, %v2726
        %v2732 = vmul.f32 1.0, %v2731
        %v2733 = vrcp.pop %v2549
        %v2734 = vmul.f32 %v2549, %v2733
        %v2735 = vsub.f32 1.0, %v2734
        %v2736 = vmul.f32 %v2733, %v2735
        %v2737 = vadd.f32 %v2733, %v2736
        %vm2738 = vweird.f32 %v2549
        %vm2739 = vweird.f32 %v2733
        %vm2740 = vmor %vm2738, %vm2739
        %v2741 = vsel %vm2740, %v2733, %v2737
        %v2742 = vand.u32 2147483647, %v2549
        %vm2743 = vcmp.eq.f32.partialorder %v2742, 8.507059e+37
        %v2744 = vand.u32 %v2549, 2147483648
        %v2745 = vor.u32 1.1754944e-38, %v2744
        %v2746 = vsel %vm2743, %v2745, %v2741
        %v2747 = vmul.f32 1.0, %v2746
        %v2748 = vrcp.pop %v2550
        %v2749 = vmul.f32 %v2550, %v2748
        %v2750 = vsub.f32 1.0, %v2749
        %v2751 = vmul.f32 %v2748, %v2750
        %v2752 = vadd.f32 %v2748, %v2751
        %vm2753 = vweird.f32 %v2550
        %vm2754 = vweird.f32 %v2748
        %vm2755 = vmor %vm2753, %vm2754
        %v2756 = vsel %vm2755, %v2748, %v2752
        %v2757 = vand.u32 2147483647, %v2550
        %vm2758 = vcmp.eq.f32.partialorder %v2757, 8.507059e+37
        %v2759 = vand.u32 %v2550, 2147483648
        %v2760 = vor.u32 1.1754944e-38, %v2759
        %v2761 = vsel %vm2758, %v2760, %v2756
        %v2762 = vmul.f32 1.0, %v2761
        %v2763 = vrcp.pop %v2551
        %v2764 = vmul.f32 %v2551, %v2763
        %v2765 = vsub.f32 1.0, %v2764
        %v2766 = vmul.f32 %v2763, %v2765
        %v2767 = vadd.f32 %v2763, %v2766
        %vm2768 = vweird.f32 %v2551
        %vm2769 = vweird.f32 %v2763
        %vm2770 = vmor %vm2768, %vm2769
        %v2771 = vsel %vm2770, %v2763, %v2767
        %v2772 = vand.u32 2147483647, %v2551
        %vm2773 = vcmp.eq.f32.partialorder %v2772, 8.507059e+37
        %v2774 = vand.u32 %v2551, 2147483648
        %v2775 = vor.u32 1.1754944e-38, %v2774
        %v2776 = vsel %vm2773, %v2775, %v2771
        %v2777 = vmul.f32 1.0, %v2776
        %v2778 = vrcp.pop %v2552
        %v2779 = vmul.f32 %v2552, %v2778
        %v2780 = vsub.f32 1.0, %v2779
        %v2781 = vmul.f32 %v2778, %v2780
        %v2782 = vadd.f32 %v2778, %v2781
        %vm2783 = vweird.f32 %v2552
        %vm2784 = vweird.f32 %v2778
        %vm2785 = vmor %vm2783, %vm2784
        %v2786 = vsel %vm2785, %v2778, %v2782
        %v2787 = vand.u32 2147483647, %v2552
        %vm2788 = vcmp.eq.f32.partialorder %v2787, 8.507059e+37
        %v2789 = vand.u32 %v2552, 2147483648
        %v2790 = vor.u32 1.1754944e-38, %v2789
        %v2791 = vsel %vm2788, %v2790, %v2786
        %v2792 = vmul.f32 1.0, %v2791
        %v2793 = vmul.f32 %v2473, %v2567
        %v2794 = vmul.f32 %v2474, %v2582
        %v2795 = vmul.f32 %v2475, %v2597
        %v2796 = vmul.f32 %v2476, %v2612
        %v2797 = vmul.f32 %v2477, %v2627
        %v2798 = vmul.f32 %v2478, %v2642
        %v2799 = vmul.f32 %v2479, %v2657
        %v2800 = vmul.f32 %v2480, %v2672
        %v2801 = vmul.f32 %v2481, %v2687
        %v2802 = vmul.f32 %v2482, %v2702
        %v2803 = vmul.f32 %v2483, %v2717
        %v2804 = vmul.f32 %v2484, %v2732
        %v2805 = vmul.f32 %v2485, %v2747
        %v2806 = vmul.f32 %v2486, %v2762
        %v2807 = vmul.f32 %v2487, %v2777
        %v2808 = vmul.f32 %v2488, %v2792
        %2809 = vst [vmem:[#allocation3] sm:$0xf] 0
        %2810 = vst [vmem:[#allocation3 + $0x4] sm:$0x1] 0
        %2811 = vst [vmem:[#allocation3 + $0x50] sm:$0xf] 0
        %2812 = vst [vmem:[#allocation3 + $0x54] sm:$0x1] 0
        %s2813 = scalar_lea.vmem [#allocation3], 72
        %2814 = vst [vmem:[%s2813] sm:$0xf] 0
        %2815 = vst [vmem:[%s2813 + $0x4] sm:$0x1] 0
        %2816 = vst [vmem:[%s2813 + $0x50] sm:$0xf] 0
        %2817 = vst [vmem:[%s2813 + $0x54] sm:$0x1] 0
        %vm2818 = vcmask 1040384
        %vm2819 = vsmask.f32 256
        %vm2820 = vmand %vm2818, %vm2819
        %v2821 = vld [vmem:[#allocation3] sm:$0x1]
        %v2822 = vsel %vm2820, 0, %v2821
        %2823 = vst [vmem:[#allocation3] sm:$0x1] %v2822
        %v2824 = vld [vmem:[#allocation3 + $0x8] sm:$0x1]
        %v2825 = vsel %vm2820, 0, %v2824
        %2826 = vst [vmem:[#allocation3 + $0x8] sm:$0x1] %v2825
        %v2827 = vld [vmem:[#allocation3 + $0x10] sm:$0x1]
        %v2828 = vsel %vm2820, 0, %v2827
        %2829 = vst [vmem:[#allocation3 + $0x10] sm:$0x1] %v2828
        %v2830 = vld [vmem:[#allocation3 + $0x18] sm:$0x1]
        %v2831 = vsel %vm2820, 0, %v2830
        %2832 = vst [vmem:[#allocation3 + $0x18] sm:$0x1] %v2831
        %v2833 = vld [vmem:[#allocation3 + $0x20] sm:$0x1]
        %v2834 = vsel %vm2820, 0, %v2833
        %2835 = vst [vmem:[#allocation3 + $0x20] sm:$0x1] %v2834
        %v2836 = vld [vmem:[#allocation3 + $0x28] sm:$0x1]
        %v2837 = vsel %vm2820, 0, %v2836
        %2838 = vst [vmem:[#allocation3 + $0x28] sm:$0x1] %v2837
        %v2839 = vld [vmem:[#allocation3 + $0x30] sm:$0x1]
        %v2840 = vsel %vm2820, 0, %v2839
        %2841 = vst [vmem:[#allocation3 + $0x30] sm:$0x1] %v2840
        %v2842 = vld [vmem:[#allocation3 + $0x38] sm:$0x1]
        %v2843 = vsel %vm2820, 0, %v2842
        %2844 = vst [vmem:[#allocation3 + $0x38] sm:$0x1] %v2843
        %v2845 = vld [vmem:[#allocation3 + $0x40] sm:$0x1]
        %v2846 = vsel %vm2820, 0, %v2845
        %2847 = vst [vmem:[#allocation3 + $0x40] sm:$0x1] %v2846
        %v2848 = vld [vmem:[#allocation3 + $0x48] sm:$0x1]
        %v2849 = vsel %vm2820, 0, %v2848
        %2850 = vst [vmem:[#allocation3 + $0x48] sm:$0x1] %v2849
        %v2851 = vld [vmem:[#allocation3 + $0x50] sm:$0x1]
        %v2852 = vsel %vm2820, 0, %v2851
        %2853 = vst [vmem:[#allocation3 + $0x50] sm:$0x1] %v2852
        %v2854 = vld [vmem:[#allocation3 + $0x58] sm:$0x1]
        %v2855 = vsel %vm2820, 0, %v2854
        %2856 = vst [vmem:[#allocation3 + $0x58] sm:$0x1] %v2855
        %v2857 = vld [vmem:[#allocation3 + $0x60] sm:$0x1]
        %v2858 = vsel %vm2820, 0, %v2857
        %2859 = vst [vmem:[#allocation3 + $0x60] sm:$0x1] %v2858
        %v2860 = vld [vmem:[#allocation3 + $0x68] sm:$0x1]
        %v2861 = vsel %vm2820, 0, %v2860
        %2862 = vst [vmem:[#allocation3 + $0x68] sm:$0x1] %v2861
        %v2863 = vld [vmem:[#allocation3 + $0x70] sm:$0x1]
        %v2864 = vsel %vm2820, 0, %v2863
        %2865 = vst [vmem:[#allocation3 + $0x70] sm:$0x1] %v2864
        %v2866 = vld [vmem:[#allocation3 + $0x78] sm:$0x1]
        %v2867 = vsel %vm2820, 0, %v2866
        %2868 = vst [vmem:[#allocation3 + $0x78] sm:$0x1] %v2867
        %v2869 = vld [vmem:[#allocation3 + $0x80] sm:$0x1]
        %v2870 = vsel %vm2820, 0, %v2869
        %2871 = vst [vmem:[#allocation3 + $0x80] sm:$0x1] %v2870
        %v2872 = vld [vmem:[#allocation3 + $0x88] sm:$0x1]
        %v2873 = vsel %vm2820, 0, %v2872
        %2874 = vst [vmem:[#allocation3 + $0x88] sm:$0x1] %v2873
        %v2875 = vld [vmem:[#allocation3 + $0x90] sm:$0x1]
        %v2876 = vsel %vm2820, 0, %v2875
        %2877 = vst [vmem:[#allocation3 + $0x90] sm:$0x1] %v2876
        %v2878 = vld [vmem:[#allocation3 + $0x98] sm:$0x1]
        %v2879 = vsel %vm2820, 0, %v2878
        %2880 = vst [vmem:[#allocation3 + $0x98] sm:$0x1] %v2879
        %vm2881 = vsmask.f32 7938
        %vm2882 = vmand %vm2818, %vm2881
        %v2883 = vld [vmem:[#allocation3 + $0x4] sm:$0x1]
        %v2884 = vsel %vm2882, 0, %v2883
        %2885 = vst [vmem:[#allocation3 + $0x4] sm:$0x1] %v2884
        %v2886 = vld [vmem:[#allocation3 + $0xc] sm:$0x1]
        %v2887 = vsel %vm2882, 0, %v2886
        %2888 = vst [vmem:[#allocation3 + $0xc] sm:$0x1] %v2887
        %v2889 = vld [vmem:[#allocation3 + $0x14] sm:$0x1]
        %v2890 = vsel %vm2882, 0, %v2889
        %2891 = vst [vmem:[#allocation3 + $0x14] sm:$0x1] %v2890
        %v2892 = vld [vmem:[#allocation3 + $0x1c] sm:$0x1]
        %v2893 = vsel %vm2882, 0, %v2892
        %2894 = vst [vmem:[#allocation3 + $0x1c] sm:$0x1] %v2893
        %v2895 = vld [vmem:[#allocation3 + $0x24] sm:$0x1]
        %v2896 = vsel %vm2882, 0, %v2895
        %2897 = vst [vmem:[#allocation3 + $0x24] sm:$0x1] %v2896
        %v2898 = vld [vmem:[#allocation3 + $0x2c] sm:$0x1]
        %v2899 = vsel %vm2882, 0, %v2898
        %2900 = vst [vmem:[#allocation3 + $0x2c] sm:$0x1] %v2899
        %v2901 = vld [vmem:[#allocation3 + $0x34] sm:$0x1]
        %v2902 = vsel %vm2882, 0, %v2901
        %2903 = vst [vmem:[#allocation3 + $0x34] sm:$0x1] %v2902
        %v2904 = vld [vmem:[#allocation3 + $0x3c] sm:$0x1]
        %v2905 = vsel %vm2882, 0, %v2904
        %2906 = vst [vmem:[#allocation3 + $0x3c] sm:$0x1] %v2905
        %v2907 = vld [vmem:[#allocation3 + $0x44] sm:$0x1]
        %v2908 = vsel %vm2882, 0, %v2907
        %2909 = vst [vmem:[#allocation3 + $0x44] sm:$0x1] %v2908
        %v2910 = vld [vmem:[#allocation3 + $0x4c] sm:$0x1]
        %v2911 = vsel %vm2882, 0, %v2910
        %2912 = vst [vmem:[#allocation3 + $0x4c] sm:$0x1] %v2911
        %v2913 = vld [vmem:[#allocation3 + $0x54] sm:$0x1]
        %v2914 = vsel %vm2882, 0, %v2913
        %2915 = vst [vmem:[#allocation3 + $0x54] sm:$0x1] %v2914
        %v2916 = vld [vmem:[#allocation3 + $0x5c] sm:$0x1]
        %v2917 = vsel %vm2882, 0, %v2916
        %2918 = vst [vmem:[#allocation3 + $0x5c] sm:$0x1] %v2917
        %v2919 = vld [vmem:[#allocation3 + $0x64] sm:$0x1]
        %v2920 = vsel %vm2882, 0, %v2919
        %2921 = vst [vmem:[#allocation3 + $0x64] sm:$0x1] %v2920
        %v2922 = vld [vmem:[#allocation3 + $0x6c] sm:$0x1]
        %v2923 = vsel %vm2882, 0, %v2922
        %2924 = vst [vmem:[#allocation3 + $0x6c] sm:$0x1] %v2923
        %v2925 = vld [vmem:[#allocation3 + $0x74] sm:$0x1]
        %v2926 = vsel %vm2882, 0, %v2925
        %2927 = vst [vmem:[#allocation3 + $0x74] sm:$0x1] %v2926
        %v2928 = vld [vmem:[#allocation3 + $0x7c] sm:$0x1]
        %v2929 = vsel %vm2882, 0, %v2928
        %2930 = vst [vmem:[#allocation3 + $0x7c] sm:$0x1] %v2929
        %v2931 = vld [vmem:[#allocation3 + $0x84] sm:$0x1]
        %v2932 = vsel %vm2882, 0, %v2931
        %2933 = vst [vmem:[#allocation3 + $0x84] sm:$0x1] %v2932
        %v2934 = vld [vmem:[#allocation3 + $0x8c] sm:$0x1]
        %v2935 = vsel %vm2882, 0, %v2934
        %2936 = vst [vmem:[#allocation3 + $0x8c] sm:$0x1] %v2935
        %v2937 = vld [vmem:[#allocation3 + $0x94] sm:$0x1]
        %v2938 = vsel %vm2882, 0, %v2937
        %2939 = vst [vmem:[#allocation3 + $0x94] sm:$0x1] %v2938
        %v2940 = vld [vmem:[#allocation3 + $0x9c] sm:$0x1]
        %v2941 = vsel %vm2882, 0, %v2940
        %2942 = vst [vmem:[#allocation3 + $0x9c] sm:$0x1] %v2941
        %v2943 = vpack.c.bf16 %v2793, %v2793
        %v2944 = vpack.c.bf16 %v2794, %v2794
        %v2945 = vpack.c.bf16 %v2795, %v2795
        %v2946 = vpack.c.bf16 %v2796, %v2796
        %v2947 = vpack.c.bf16 %v2797, %v2797
        %v2948 = vpack.c.bf16 %v2798, %v2798
        %v2949 = vpack.c.bf16 %v2799, %v2799
        %v2950 = vpack.c.bf16 %v2800, %v2800
        %v2951 = vpack.c.bf16 %v2801, %v2801
        %v2952 = vpack.c.bf16 %v2802, %v2802
        %v2953 = vpack.c.bf16 %v2803, %v2803
        %v2954 = vpack.c.bf16 %v2804, %v2804
        %v2955 = vpack.c.bf16 %v2805, %v2805
        %v2956 = vpack.c.bf16 %v2806, %v2806
        %v2957 = vpack.c.bf16 %v2807, %v2807
        %v2958 = vpack.c.bf16 %v2808, %v2808
        %v2960 = vshrl.u32 %v2943, 16
        %v2962 = vrot.slane %v2960, 7
        %v2963 = vshll.u32 %v2943, 16
        %v2965 = vor.u32 %v2962, %v2963
        %v2966 = vrot.slane %v2962, 4
        %v2968 = vshrl.u32 %v2944, 16
        %v2970 = vrot.slane %v2968, 7
        %v2971 = vshll.u32 %v2944, 16
        %v2973 = vor.u32 %v2970, %v2971
        %v2974 = vrot.slane %v2970, 4
        %v2976 = vshrl.u32 %v2945, 16
        %v2978 = vrot.slane %v2976, 7
        %v2979 = vshll.u32 %v2945, 16
        %v2981 = vor.u32 %v2978, %v2979
        %v2982 = vrot.slane %v2978, 4
        %v2984 = vshrl.u32 %v2946, 16
        %v2986 = vrot.slane %v2984, 7
        %v2987 = vshll.u32 %v2946, 16
        %v2989 = vor.u32 %v2986, %v2987
        %v2990 = vrot.slane %v2986, 4
        %v2992 = vshrl.u32 %v2947, 16
        %v2994 = vrot.slane %v2992, 7
        %v2995 = vshll.u32 %v2947, 16
        %v2997 = vor.u32 %v2994, %v2995
        %v2998 = vrot.slane %v2994, 4
        %v3000 = vshrl.u32 %v2948, 16
        %v3002 = vrot.slane %v3000, 7
        %v3003 = vshll.u32 %v2948, 16
        %v3005 = vor.u32 %v3002, %v3003
        %v3006 = vrot.slane %v3002, 4
        %v3008 = vshrl.u32 %v2949, 16
        %v3010 = vrot.slane %v3008, 7
        %v3011 = vshll.u32 %v2949, 16
        %v3013 = vor.u32 %v3010, %v3011
        %v3014 = vrot.slane %v3010, 4
        %v3016 = vshrl.u32 %v2950, 16
        %v3018 = vrot.slane %v3016, 7
        %v3019 = vshll.u32 %v2950, 16
        %v3021 = vor.u32 %v3018, %v3019
        %v3022 = vrot.slane %v3018, 4
        %v3024 = vshrl.u32 %v2951, 16
        %v3026 = vrot.slane %v3024, 7
        %v3027 = vshll.u32 %v2951, 16
        %v3029 = vor.u32 %v3026, %v3027
        %v3030 = vrot.slane %v3026, 4
        %v3032 = vshrl.u32 %v2952, 16
        %v3034 = vrot.slane %v3032, 7
        %v3035 = vshll.u32 %v2952, 16
        %v3037 = vor.u32 %v3034, %v3035
        %v3038 = vrot.slane %v3034, 4
        %v3040 = vshrl.u32 %v2953, 16
        %v3042 = vrot.slane %v3040, 7
        %v3043 = vshll.u32 %v2953, 16
        %v3045 = vor.u32 %v3042, %v3043
        %v3046 = vrot.slane %v3042, 4
        %v3048 = vshrl.u32 %v2954, 16
        %v3050 = vrot.slane %v3048, 7
        %v3051 = vshll.u32 %v2954, 16
        %v3053 = vor.u32 %v3050, %v3051
        %v3054 = vrot.slane %v3050, 4
        %v3056 = vshrl.u32 %v2955, 16
        %v3058 = vrot.slane %v3056, 7
        %v3059 = vshll.u32 %v2955, 16
        %v3061 = vor.u32 %v3058, %v3059
        %v3062 = vrot.slane %v3058, 4
        %v3064 = vshrl.u32 %v2956, 16
        %v3066 = vrot.slane %v3064, 7
        %v3067 = vshll.u32 %v2956, 16
        %v3069 = vor.u32 %v3066, %v3067
        %v3070 = vrot.slane %v3066, 4
        %v3072 = vshrl.u32 %v2957, 16
        %v3074 = vrot.slane %v3072, 7
        %v3075 = vshll.u32 %v2957, 16
        %v3077 = vor.u32 %v3074, %v3075
        %v3078 = vrot.slane %v3074, 4
        %v3080 = vshrl.u32 %v2958, 16
        %v3082 = vrot.slane %v3080, 7
        %v3083 = vshll.u32 %v2958, 16
        %v3085 = vor.u32 %v3082, %v3083
        %v3086 = vrot.slane %v3082, 4
        %s3119 = scalar_lea.vmem [#allocation3], 8
        %vm3120 = vcmask 1043456
        %vm3121 = vmand %vm3120, %vm2881
        %v3122 = vld [vmem:[%s3119] sm:$0xf]
        %v3123 = vsel %vm3121, %v2965, %v3122
        %3124 = vst [vmem:[%s3119] sm:$0xf] %v3123
        %v3125 = vld [vmem:[%s3119 + $0x4] sm:$0x1]
        %v3126 = vsel %vm2820, %v2966, %v3125
        %3127 = vst [vmem:[%s3119 + $0x4] sm:$0x1] %v3126
        %v3128 = vld [vmem:[%s3119 + $0x8] sm:$0xf]
        %v3129 = vsel %vm3121, %v2973, %v3128
        %3130 = vst [vmem:[%s3119 + $0x8] sm:$0xf] %v3129
        %v3131 = vld [vmem:[%s3119 + $0xc] sm:$0x1]
        %v3132 = vsel %vm2820, %v2974, %v3131
        %3133 = vst [vmem:[%s3119 + $0xc] sm:$0x1] %v3132
        %v3134 = vld [vmem:[%s3119 + $0x10] sm:$0xf]
        %v3135 = vsel %vm3121, %v2981, %v3134
        %3136 = vst [vmem:[%s3119 + $0x10] sm:$0xf] %v3135
        %v3137 = vld [vmem:[%s3119 + $0x14] sm:$0x1]
        %v3138 = vsel %vm2820, %v2982, %v3137
        %3139 = vst [vmem:[%s3119 + $0x14] sm:$0x1] %v3138
        %v3140 = vld [vmem:[%s3119 + $0x18] sm:$0xf]
        %v3141 = vsel %vm3121, %v2989, %v3140
        %3142 = vst [vmem:[%s3119 + $0x18] sm:$0xf] %v3141
        %v3143 = vld [vmem:[%s3119 + $0x1c] sm:$0x1]
        %v3144 = vsel %vm2820, %v2990, %v3143
        %3145 = vst [vmem:[%s3119 + $0x1c] sm:$0x1] %v3144
        %v3146 = vld [vmem:[%s3119 + $0x20] sm:$0xf]
        %v3147 = vsel %vm3121, %v2997, %v3146
        %3148 = vst [vmem:[%s3119 + $0x20] sm:$0xf] %v3147
        %v3149 = vld [vmem:[%s3119 + $0x24] sm:$0x1]
        %v3150 = vsel %vm2820, %v2998, %v3149
        %3151 = vst [vmem:[%s3119 + $0x24] sm:$0x1] %v3150
        %v3152 = vld [vmem:[%s3119 + $0x28] sm:$0xf]
        %v3153 = vsel %vm3121, %v3005, %v3152
        %3154 = vst [vmem:[%s3119 + $0x28] sm:$0xf] %v3153
        %v3155 = vld [vmem:[%s3119 + $0x2c] sm:$0x1]
        %v3156 = vsel %vm2820, %v3006, %v3155
        %3157 = vst [vmem:[%s3119 + $0x2c] sm:$0x1] %v3156
        %v3158 = vld [vmem:[%s3119 + $0x30] sm:$0xf]
        %v3159 = vsel %vm3121, %v3013, %v3158
        %3160 = vst [vmem:[%s3119 + $0x30] sm:$0xf] %v3159
        %v3161 = vld [vmem:[%s3119 + $0x34] sm:$0x1]
        %v3162 = vsel %vm2820, %v3014, %v3161
        %3163 = vst [vmem:[%s3119 + $0x34] sm:$0x1] %v3162
        %v3164 = vld [vmem:[%s3119 + $0x38] sm:$0xf]
        %v3165 = vsel %vm3121, %v3021, %v3164
        %3166 = vst [vmem:[%s3119 + $0x38] sm:$0xf] %v3165
        %v3167 = vld [vmem:[%s3119 + $0x3c] sm:$0x1]
        %v3168 = vsel %vm2820, %v3022, %v3167
        %3169 = vst [vmem:[%s3119 + $0x3c] sm:$0x1] %v3168
        %v3170 = vld [vmem:[%s3119 + $0x50] sm:$0xf]
        %v3171 = vsel %vm3121, %v3029, %v3170
        %3172 = vst [vmem:[%s3119 + $0x50] sm:$0xf] %v3171
        %v3173 = vld [vmem:[%s3119 + $0x54] sm:$0x1]
        %v3174 = vsel %vm2820, %v3030, %v3173
        %3175 = vst [vmem:[%s3119 + $0x54] sm:$0x1] %v3174
        %v3176 = vld [vmem:[%s3119 + $0x58] sm:$0xf]
        %v3177 = vsel %vm3121, %v3037, %v3176
        %3178 = vst [vmem:[%s3119 + $0x58] sm:$0xf] %v3177
        %v3179 = vld [vmem:[%s3119 + $0x5c] sm:$0x1]
        %v3180 = vsel %vm2820, %v3038, %v3179
        %3181 = vst [vmem:[%s3119 + $0x5c] sm:$0x1] %v3180
        %v3182 = vld [vmem:[%s3119 + $0x60] sm:$0xf]
        %v3183 = vsel %vm3121, %v3045, %v3182
        %3184 = vst [vmem:[%s3119 + $0x60] sm:$0xf] %v3183
        %v3185 = vld [vmem:[%s3119 + $0x64] sm:$0x1]
        %v3186 = vsel %vm2820, %v3046, %v3185
        %3187 = vst [vmem:[%s3119 + $0x64] sm:$0x1] %v3186
        %v3188 = vld [vmem:[%s3119 + $0x68] sm:$0xf]
        %v3189 = vsel %vm3121, %v3053, %v3188
        %3190 = vst [vmem:[%s3119 + $0x68] sm:$0xf] %v3189
        %v3191 = vld [vmem:[%s3119 + $0x6c] sm:$0x1]
        %v3192 = vsel %vm2820, %v3054, %v3191
        %3193 = vst [vmem:[%s3119 + $0x6c] sm:$0x1] %v3192
        %v3194 = vld [vmem:[%s3119 + $0x70] sm:$0xf]
        %v3195 = vsel %vm3121, %v3061, %v3194
        %3196 = vst [vmem:[%s3119 + $0x70] sm:$0xf] %v3195
        %v3197 = vld [vmem:[%s3119 + $0x74] sm:$0x1]
        %v3198 = vsel %vm2820, %v3062, %v3197
        %3199 = vst [vmem:[%s3119 + $0x74] sm:$0x1] %v3198
        %v3200 = vld [vmem:[%s3119 + $0x78] sm:$0xf]
        %v3201 = vsel %vm3121, %v3069, %v3200
        %3202 = vst [vmem:[%s3119 + $0x78] sm:$0xf] %v3201
        %v3203 = vld [vmem:[%s3119 + $0x7c] sm:$0x1]
        %v3204 = vsel %vm2820, %v3070, %v3203
        %3205 = vst [vmem:[%s3119 + $0x7c] sm:$0x1] %v3204
        %v3206 = vld [vmem:[%s3119 + $0x80] sm:$0xf]
        %v3207 = vsel %vm3121, %v3077, %v3206
        %3208 = vst [vmem:[%s3119 + $0x80] sm:$0xf] %v3207
        %v3209 = vld [vmem:[%s3119 + $0x84] sm:$0x1]
        %v3210 = vsel %vm2820, %v3078, %v3209
        %3211 = vst [vmem:[%s3119 + $0x84] sm:$0x1] %v3210
        %v3212 = vld [vmem:[%s3119 + $0x88] sm:$0xf]
        %v3213 = vsel %vm3121, %v3085, %v3212
        %3214 = vst [vmem:[%s3119 + $0x88] sm:$0xf] %v3213
        %v3215 = vld [vmem:[%s3119 + $0x8c] sm:$0x1]
        %v3216 = vsel %vm2820, %v3086, %v3215
        %3217 = vst [vmem:[%s3119 + $0x8c] sm:$0x1] %v3216
        %v3218 = vld [vmem:[#allocation3] sm:$0xf]
        %v3219 = vld [vmem:[#allocation3 + $0x8] sm:$0xf]
        %v3220 = vld [vmem:[#allocation3 + $0x10] sm:$0xf]
        %v3221 = vld [vmem:[#allocation3 + $0x18] sm:$0xf]
        %v3222 = vld [vmem:[#allocation3 + $0x20] sm:$0xf]
        %v3223 = vld [vmem:[#allocation3 + $0x28] sm:$0xf]
        %v3224 = vld [vmem:[#allocation3 + $0x30] sm:$0xf]
        %v3225 = vld [vmem:[#allocation3 + $0x38] sm:$0xf]
        %v3226 = vld [vmem:[#allocation3 + $0x50] sm:$0xf]
        %v3227 = vld [vmem:[#allocation3 + $0x58] sm:$0xf]
        %v3228 = vld [vmem:[#allocation3 + $0x60] sm:$0xf]
        %v3229 = vld [vmem:[#allocation3 + $0x68] sm:$0xf]
        %v3230 = vld [vmem:[#allocation3 + $0x70] sm:$0xf]
        %v3231 = vld [vmem:[#allocation3 + $0x78] sm:$0xf]
        %v3232 = vld [vmem:[#allocation3 + $0x80] sm:$0xf]
        %v3233 = vld [vmem:[#allocation3 + $0x88] sm:$0xf]
        %3234 = vst [vmem:[#allocation2] sm:$0xf] %v3218
        %3235 = vst [vmem:[#allocation2 + $0x24] sm:$0xf] %v3219
        %3236 = vst [vmem:[#allocation2 + $0x48] sm:$0xf] %v3220
        %3237 = vst [vmem:[#allocation2 + $0x6c] sm:$0xf] %v3221
        %3238 = vst [vmem:[#allocation2 + $0x90] sm:$0xf] %v3222
        %3239 = vst [vmem:[#allocation2 + $0xb4] sm:$0xf] %v3223
        %3240 = vst [vmem:[#allocation2 + $0xd8] sm:$0xf] %v3224
        %3241 = vst [vmem:[#allocation2 + $0xfc] sm:$0xf] %v3225
        %3242 = vst [vmem:[#allocation2 + $0x120] sm:$0xf] %v3226
        %3243 = vst [vmem:[#allocation2 + $0x144] sm:$0xf] %v3227
        %3244 = vst [vmem:[#allocation2 + $0x168] sm:$0xf] %v3228
        %3245 = vst [vmem:[#allocation2 + $0x18c] sm:$0xf] %v3229
        %3246 = vst [vmem:[#allocation2 + $0x1b0] sm:$0xf] %v3230
        %3247 = vst [vmem:[#allocation2 + $0x1d4] sm:$0xf] %v3231
        %3248 = vst [vmem:[#allocation2 + $0x1f8] sm:$0xf] %v3232
        %3249 = vst [vmem:[#allocation2 + $0x21c] sm:$0xf] %v3233
        %v3250 = vld [vmem:[#allocation3] sm:$0xf]
        %v3251 = vld [vmem:[#allocation3 + $0x4] sm:$0x1]
        %v3252 = vld [vmem:[#allocation3 + $0x8] sm:$0xf]
        %v3253 = vld [vmem:[#allocation3 + $0xc] sm:$0x1]
        %v3254 = vld [vmem:[#allocation3 + $0x10] sm:$0xf]
        %v3255 = vld [vmem:[#allocation3 + $0x14] sm:$0x1]
        %v3256 = vld [vmem:[#allocation3 + $0x18] sm:$0xf]
        %v3257 = vld [vmem:[#allocation3 + $0x1c] sm:$0x1]
        %v3258 = vld [vmem:[#allocation3 + $0x20] sm:$0xf]
        %v3259 = vld [vmem:[#allocation3 + $0x24] sm:$0x1]
        %v3260 = vld [vmem:[#allocation3 + $0x28] sm:$0xf]
        %v3261 = vld [vmem:[#allocation3 + $0x2c] sm:$0x1]
        %v3262 = vld [vmem:[#allocation3 + $0x30] sm:$0xf]
        %v3263 = vld [vmem:[#allocation3 + $0x34] sm:$0x1]
        %v3264 = vld [vmem:[#allocation3 + $0x38] sm:$0xf]
        %v3265 = vld [vmem:[#allocation3 + $0x3c] sm:$0x1]
        %v3266 = vld [vmem:[#allocation3 + $0x50] sm:$0xf]
        %v3267 = vld [vmem:[#allocation3 + $0x54] sm:$0x1]
        %v3268 = vld [vmem:[#allocation3 + $0x58] sm:$0xf]
        %v3269 = vld [vmem:[#allocation3 + $0x5c] sm:$0x1]
        %v3270 = vld [vmem:[#allocation3 + $0x60] sm:$0xf]
        %v3271 = vld [vmem:[#allocation3 + $0x64] sm:$0x1]
        %v3272 = vld [vmem:[#allocation3 + $0x68] sm:$0xf]
        %v3273 = vld [vmem:[#allocation3 + $0x6c] sm:$0x1]
        %v3274 = vld [vmem:[#allocation3 + $0x70] sm:$0xf]
        %v3275 = vld [vmem:[#allocation3 + $0x74] sm:$0x1]
        %v3276 = vld [vmem:[#allocation3 + $0x78] sm:$0xf]
        %v3277 = vld [vmem:[#allocation3 + $0x7c] sm:$0x1]
        %v3278 = vld [vmem:[#allocation3 + $0x80] sm:$0xf]
        %v3279 = vld [vmem:[#allocation3 + $0x84] sm:$0x1]
        %v3280 = vld [vmem:[#allocation3 + $0x88] sm:$0xf]
        %v3281 = vld [vmem:[#allocation3 + $0x8c] sm:$0x1]
        %vm3282 = vsmask.f32 3328
        %vm3283 = vsmask.f32 7440
        %vm3284 = vmor %vm3282, %vm3283
        %v3286 = vshrl.u32 %v3250, 16
        %v3288 = vrot.slane %v3286, 4
        %v3289 = vshll.u32 %v3250, 16
        %v3291 = vrot.slane %v3289, 5
        %v3292 = vor.u32 %v3288, %v3291
        %v3293 = vrot.slane %v3292, 4
        %v3295 = vshll.u32 %v3251, 16
        %v3297 = vrot.slane %v3295, 5
        %v3298 = vsel %vm3284, %v3293, %v3297
        %v3300 = vshrl.u32 %v3252, 16
        %v3302 = vrot.slane %v3300, 4
        %v3303 = vshll.u32 %v3252, 16
        %v3305 = vrot.slane %v3303, 5
        %v3306 = vor.u32 %v3302, %v3305
        %v3307 = vrot.slane %v3306, 4
        %v3309 = vshll.u32 %v3253, 16
        %v3311 = vrot.slane %v3309, 5
        %v3312 = vsel %vm3284, %v3307, %v3311
        %v3314 = vshrl.u32 %v3254, 16
        %v3316 = vrot.slane %v3314, 4
        %v3317 = vshll.u32 %v3254, 16
        %v3319 = vrot.slane %v3317, 5
        %v3320 = vor.u32 %v3316, %v3319
        %v3321 = vrot.slane %v3320, 4
        %v3323 = vshll.u32 %v3255, 16
        %v3325 = vrot.slane %v3323, 5
        %v3326 = vsel %vm3284, %v3321, %v3325
        %v3328 = vshrl.u32 %v3256, 16
        %v3330 = vrot.slane %v3328, 4
        %v3331 = vshll.u32 %v3256, 16
        %v3333 = vrot.slane %v3331, 5
        %v3334 = vor.u32 %v3330, %v3333
        %v3335 = vrot.slane %v3334, 4
        %v3337 = vshll.u32 %v3257, 16
        %v3339 = vrot.slane %v3337, 5
        %v3340 = vsel %vm3284, %v3335, %v3339
        %v3342 = vshrl.u32 %v3258, 16
        %v3344 = vrot.slane %v3342, 4
        %v3345 = vshll.u32 %v3258, 16
        %v3347 = vrot.slane %v3345, 5
        %v3348 = vor.u32 %v3344, %v3347
        %v3349 = vrot.slane %v3348, 4
        %v3351 = vshll.u32 %v3259, 16
        %v3353 = vrot.slane %v3351, 5
        %v3354 = vsel %vm3284, %v3349, %v3353
        %v3356 = vshrl.u32 %v3260, 16
        %v3358 = vrot.slane %v3356, 4
        %v3359 = vshll.u32 %v3260, 16
        %v3361 = vrot.slane %v3359, 5
        %v3362 = vor.u32 %v3358, %v3361
        %v3363 = vrot.slane %v3362, 4
        %v3365 = vshll.u32 %v3261, 16
        %v3367 = vrot.slane %v3365, 5
        %v3368 = vsel %vm3284, %v3363, %v3367
        %v3370 = vshrl.u32 %v3262, 16
        %v3372 = vrot.slane %v3370, 4
        %v3373 = vshll.u32 %v3262, 16
        %v3375 = vrot.slane %v3373, 5
        %v3376 = vor.u32 %v3372, %v3375
        %v3377 = vrot.slane %v3376, 4
        %v3379 = vshll.u32 %v3263, 16
        %v3381 = vrot.slane %v3379, 5
        %v3382 = vsel %vm3284, %v3377, %v3381
        %v3384 = vshrl.u32 %v3264, 16
        %v3386 = vrot.slane %v3384, 4
        %v3387 = vshll.u32 %v3264, 16
        %v3389 = vrot.slane %v3387, 5
        %v3390 = vor.u32 %v3386, %v3389
        %v3391 = vrot.slane %v3390, 4
        %v3393 = vshll.u32 %v3265, 16
        %v3395 = vrot.slane %v3393, 5
        %v3396 = vsel %vm3284, %v3391, %v3395
        %v3398 = vshrl.u32 %v3266, 16
        %v3400 = vrot.slane %v3398, 4
        %v3401 = vshll.u32 %v3266, 16
        %v3403 = vrot.slane %v3401, 5
        %v3404 = vor.u32 %v3400, %v3403
        %v3405 = vrot.slane %v3404, 4
        %v3407 = vshll.u32 %v3267, 16
        %v3409 = vrot.slane %v3407, 5
        %v3410 = vsel %vm3284, %v3405, %v3409
        %v3412 = vshrl.u32 %v3268, 16
        %v3414 = vrot.slane %v3412, 4
        %v3415 = vshll.u32 %v3268, 16
        %v3417 = vrot.slane %v3415, 5
        %v3418 = vor.u32 %v3414, %v3417
        %v3419 = vrot.slane %v3418, 4
        %v3421 = vshll.u32 %v3269, 16
        %v3423 = vrot.slane %v3421, 5
        %v3424 = vsel %vm3284, %v3419, %v3423
        %v3426 = vshrl.u32 %v3270, 16
        %v3428 = vrot.slane %v3426, 4
        %v3429 = vshll.u32 %v3270, 16
        %v3431 = vrot.slane %v3429, 5
        %v3432 = vor.u32 %v3428, %v3431
        %v3433 = vrot.slane %v3432, 4
        %v3435 = vshll.u32 %v3271, 16
        %v3437 = vrot.slane %v3435, 5
        %v3438 = vsel %vm3284, %v3433, %v3437
        %v3440 = vshrl.u32 %v3272, 16
        %v3442 = vrot.slane %v3440, 4
        %v3443 = vshll.u32 %v3272, 16
        %v3445 = vrot.slane %v3443, 5
        %v3446 = vor.u32 %v3442, %v3445
        %v3447 = vrot.slane %v3446, 4
        %v3449 = vshll.u32 %v3273, 16
        %v3451 = vrot.slane %v3449, 5
        %v3452 = vsel %vm3284, %v3447, %v3451
        %v3454 = vshrl.u32 %v3274, 16
        %v3456 = vrot.slane %v3454, 4
        %v3457 = vshll.u32 %v3274, 16
        %v3459 = vrot.slane %v3457, 5
        %v3460 = vor.u32 %v3456, %v3459
        %v3461 = vrot.slane %v3460, 4
        %v3463 = vshll.u32 %v3275, 16
        %v3465 = vrot.slane %v3463, 5
        %v3466 = vsel %vm3284, %v3461, %v3465
        %v3468 = vshrl.u32 %v3276, 16
        %v3470 = vrot.slane %v3468, 4
        %v3471 = vshll.u32 %v3276, 16
        %v3473 = vrot.slane %v3471, 5
        %v3474 = vor.u32 %v3470, %v3473
        %v3475 = vrot.slane %v3474, 4
        %v3477 = vshll.u32 %v3277, 16
        %v3479 = vrot.slane %v3477, 5
        %v3480 = vsel %vm3284, %v3475, %v3479
        %v3482 = vshrl.u32 %v3278, 16
        %v3484 = vrot.slane %v3482, 4
        %v3485 = vshll.u32 %v3278, 16
        %v3487 = vrot.slane %v3485, 5
        %v3488 = vor.u32 %v3484, %v3487
        %v3489 = vrot.slane %v3488, 4
        %v3491 = vshll.u32 %v3279, 16
        %v3493 = vrot.slane %v3491, 5
        %v3494 = vsel %vm3284, %v3489, %v3493
        %v3496 = vshrl.u32 %v3280, 16
        %v3498 = vrot.slane %v3496, 4
        %v3499 = vshll.u32 %v3280, 16
        %v3501 = vrot.slane %v3499, 5
        %v3502 = vor.u32 %v3498, %v3501
        %v3503 = vrot.slane %v3502, 4
        %v3505 = vshll.u32 %v3281, 16
        %v3507 = vrot.slane %v3505, 5
        %v3508 = vsel %vm3284, %v3503, %v3507
        %3525 = vst [vmem:[#allocation2 + $0x4] sm:$0xf] %v3298
        %3526 = vst [vmem:[#allocation2 + $0x28] sm:$0xf] %v3312
        %3527 = vst [vmem:[#allocation2 + $0x4c] sm:$0xf] %v3326
        %3528 = vst [vmem:[#allocation2 + $0x70] sm:$0xf] %v3340
        %3529 = vst [vmem:[#allocation2 + $0x94] sm:$0xf] %v3354
        %3530 = vst [vmem:[#allocation2 + $0xb8] sm:$0xf] %v3368
        %3531 = vst [vmem:[#allocation2 + $0xdc] sm:$0xf] %v3382
        %3532 = vst [vmem:[#allocation2 + $0x100] sm:$0xf] %v3396
        %3533 = vst [vmem:[#allocation2 + $0x124] sm:$0xf] %v3410
        %3534 = vst [vmem:[#allocation2 + $0x148] sm:$0xf] %v3424
        %3535 = vst [vmem:[#allocation2 + $0x16c] sm:$0xf] %v3438
        %3536 = vst [vmem:[#allocation2 + $0x190] sm:$0xf] %v3452
        %3537 = vst [vmem:[#allocation2 + $0x1b4] sm:$0xf] %v3466
        %3538 = vst [vmem:[#allocation2 + $0x1d8] sm:$0xf] %v3480
        %3539 = vst [vmem:[#allocation2 + $0x1fc] sm:$0xf] %v3494
        %3540 = vst [vmem:[#allocation2 + $0x220] sm:$0xf] %v3508
        %v3541 = vld [vmem:[#allocation3] sm:$0xe]
        %v3542 = vld [vmem:[#allocation3 + $0x4] sm:$0x1]
        %v3543 = vld [vmem:[#allocation3 + $0x8] sm:$0xe]
        %v3544 = vld [vmem:[#allocation3 + $0xc] sm:$0x1]
        %v3545 = vld [vmem:[#allocation3 + $0x10] sm:$0xe]
        %v3546 = vld [vmem:[#allocation3 + $0x14] sm:$0x1]
        %v3547 = vld [vmem:[#allocation3 + $0x18] sm:$0xe]
        %v3548 = vld [vmem:[#allocation3 + $0x1c] sm:$0x1]
        %v3549 = vld [vmem:[#allocation3 + $0x20] sm:$0xe]
        %v3550 = vld [vmem:[#allocation3 + $0x24] sm:$0x1]
        %v3551 = vld [vmem:[#allocation3 + $0x28] sm:$0xe]
        %v3552 = vld [vmem:[#allocation3 + $0x2c] sm:$0x1]
        %v3553 = vld [vmem:[#allocation3 + $0x30] sm:$0xe]
        %v3554 = vld [vmem:[#allocation3 + $0x34] sm:$0x1]
        %v3555 = vld [vmem:[#allocation3 + $0x38] sm:$0xe]
        %v3556 = vld [vmem:[#allocation3 + $0x3c] sm:$0x1]
        %v3557 = vld [vmem:[#allocation3 + $0x50] sm:$0xe]
        %v3558 = vld [vmem:[#allocation3 + $0x54] sm:$0x1]
        %v3559 = vld [vmem:[#allocation3 + $0x58] sm:$0xe]
        %v3560 = vld [vmem:[#allocation3 + $0x5c] sm:$0x1]
        %v3561 = vld [vmem:[#allocation3 + $0x60] sm:$0xe]
        %v3562 = vld [vmem:[#allocation3 + $0x64] sm:$0x1]
        %v3563 = vld [vmem:[#allocation3 + $0x68] sm:$0xe]
        %v3564 = vld [vmem:[#allocation3 + $0x6c] sm:$0x1]
        %v3565 = vld [vmem:[#allocation3 + $0x70] sm:$0xe]
        %v3566 = vld [vmem:[#allocation3 + $0x74] sm:$0x1]
        %v3567 = vld [vmem:[#allocation3 + $0x78] sm:$0xe]
        %v3568 = vld [vmem:[#allocation3 + $0x7c] sm:$0x1]
        %v3569 = vld [vmem:[#allocation3 + $0x80] sm:$0xe]
        %v3570 = vld [vmem:[#allocation3 + $0x84] sm:$0x1]
        %v3571 = vld [vmem:[#allocation3 + $0x88] sm:$0xe]
        %v3572 = vld [vmem:[#allocation3 + $0x8c] sm:$0x1]
        %vm3605 = vcmask 1042432
        %vm3606 = vcmask 1046532
        %vm3607 = vmor %vm3605, %vm3606
        %v3608 = vrot.slane %v3541, 5
        %v3609 = vrot.slane %v3608, 4
        %v3610 = vrot.slane %v3542, 5
        %v3611 = vsel %vm3607, %v3609, %v3610
        %v3612 = vrot.slane %v3543, 5
        %v3613 = vrot.slane %v3612, 4
        %v3614 = vrot.slane %v3544, 5
        %v3615 = vsel %vm3607, %v3613, %v3614
        %v3616 = vrot.slane %v3545, 5
        %v3617 = vrot.slane %v3616, 4
        %v3618 = vrot.slane %v3546, 5
        %v3619 = vsel %vm3607, %v3617, %v3618
        %v3620 = vrot.slane %v3547, 5
        %v3621 = vrot.slane %v3620, 4
        %v3622 = vrot.slane %v3548, 5
        %v3623 = vsel %vm3607, %v3621, %v3622
        %v3624 = vrot.slane %v3549, 5
        %v3625 = vrot.slane %v3624, 4
        %v3626 = vrot.slane %v3550, 5
        %v3627 = vsel %vm3607, %v3625, %v3626
        %v3628 = vrot.slane %v3551, 5
        %v3629 = vrot.slane %v3628, 4
        %v3630 = vrot.slane %v3552, 5
        %v3631 = vsel %vm3607, %v3629, %v3630
        %v3632 = vrot.slane %v3553, 5
        %v3633 = vrot.slane %v3632, 4
        %v3634 = vrot.slane %v3554, 5
        %v3635 = vsel %vm3607, %v3633, %v3634
        %v3636 = vrot.slane %v3555, 5
        %v3637 = vrot.slane %v3636, 4
        %v3638 = vrot.slane %v3556, 5
        %v3639 = vsel %vm3607, %v3637, %v3638
        %v3640 = vrot.slane %v3557, 5
        %v3641 = vrot.slane %v3640, 4
        %v3642 = vrot.slane %v3558, 5
        %v3643 = vsel %vm3607, %v3641, %v3642
        %v3644 = vrot.slane %v3559, 5
        %v3645 = vrot.slane %v3644, 4
        %v3646 = vrot.slane %v3560, 5
        %v3647 = vsel %vm3607, %v3645, %v3646
        %v3648 = vrot.slane %v3561, 5
        %v3649 = vrot.slane %v3648, 4
        %v3650 = vrot.slane %v3562, 5
        %v3651 = vsel %vm3607, %v3649, %v3650
        %v3652 = vrot.slane %v3563, 5
        %v3653 = vrot.slane %v3652, 4
        %v3654 = vrot.slane %v3564, 5
        %v3655 = vsel %vm3607, %v3653, %v3654
        %v3656 = vrot.slane %v3565, 5
        %v3657 = vrot.slane %v3656, 4
        %v3658 = vrot.slane %v3566, 5
        %v3659 = vsel %vm3607, %v3657, %v3658
        %v3660 = vrot.slane %v3567, 5
        %v3661 = vrot.slane %v3660, 4
        %v3662 = vrot.slane %v3568, 5
        %v3663 = vsel %vm3607, %v3661, %v3662
        %v3664 = vrot.slane %v3569, 5
        %v3665 = vrot.slane %v3664, 4
        %v3666 = vrot.slane %v3570, 5
        %v3667 = vsel %vm3607, %v3665, %v3666
        %v3668 = vrot.slane %v3571, 5
        %v3669 = vrot.slane %v3668, 4
        %v3670 = vrot.slane %v3572, 5
        %v3671 = vsel %vm3607, %v3669, %v3670
        %3688 = vst [vmem:[#allocation2 + $0x8] sm:$0xf] %v3611
        %3689 = vst [vmem:[#allocation2 + $0x2c] sm:$0xf] %v3615
        %3690 = vst [vmem:[#allocation2 + $0x50] sm:$0xf] %v3619
        %3691 = vst [vmem:[#allocation2 + $0x74] sm:$0xf] %v3623
        %3692 = vst [vmem:[#allocation2 + $0x98] sm:$0xf] %v3627
        %3693 = vst [vmem:[#allocation2 + $0xbc] sm:$0xf] %v3631
        %3694 = vst [vmem:[#allocation2 + $0xe0] sm:$0xf] %v3635
        %3695 = vst [vmem:[#allocation2 + $0x104] sm:$0xf] %v3639
        %3696 = vst [vmem:[#allocation2 + $0x128] sm:$0xf] %v3643
        %3697 = vst [vmem:[#allocation2 + $0x14c] sm:$0xf] %v3647
        %3698 = vst [vmem:[#allocation2 + $0x170] sm:$0xf] %v3651
        %3699 = vst [vmem:[#allocation2 + $0x194] sm:$0xf] %v3655
        %3700 = vst [vmem:[#allocation2 + $0x1b8] sm:$0xf] %v3659
        %3701 = vst [vmem:[#allocation2 + $0x1dc] sm:$0xf] %v3663
        %3702 = vst [vmem:[#allocation2 + $0x200] sm:$0xf] %v3667
        %3703 = vst [vmem:[#allocation2 + $0x224] sm:$0xf] %v3671
        %v3704 = vld [vmem:[%s3119] sm:$0xf]
        %v3705 = vld [vmem:[%s3119 + $0x8] sm:$0xf]
        %v3706 = vld [vmem:[%s3119 + $0x10] sm:$0xf]
        %v3707 = vld [vmem:[%s3119 + $0x18] sm:$0xf]
        %v3708 = vld [vmem:[%s3119 + $0x20] sm:$0xf]
        %v3709 = vld [vmem:[%s3119 + $0x28] sm:$0xf]
        %v3710 = vld [vmem:[%s3119 + $0x30] sm:$0xf]
        %v3711 = vld [vmem:[%s3119 + $0x38] sm:$0xf]
        %v3712 = vld [vmem:[%s3119 + $0x50] sm:$0xf]
        %v3713 = vld [vmem:[%s3119 + $0x58] sm:$0xf]
        %v3714 = vld [vmem:[%s3119 + $0x60] sm:$0xf]
        %v3715 = vld [vmem:[%s3119 + $0x68] sm:$0xf]
        %v3716 = vld [vmem:[%s3119 + $0x70] sm:$0xf]
        %v3717 = vld [vmem:[%s3119 + $0x78] sm:$0xf]
        %v3718 = vld [vmem:[%s3119 + $0x80] sm:$0xf]
        %v3719 = vld [vmem:[%s3119 + $0x88] sm:$0xf]
        %3720 = vst [vmem:[#allocation2 + $0xc] sm:$0xf] %v3704
        %3721 = vst [vmem:[#allocation2 + $0x30] sm:$0xf] %v3705
        %3722 = vst [vmem:[#allocation2 + $0x54] sm:$0xf] %v3706
        %3723 = vst [vmem:[#allocation2 + $0x78] sm:$0xf] %v3707
        %3724 = vst [vmem:[#allocation2 + $0x9c] sm:$0xf] %v3708
        %3725 = vst [vmem:[#allocation2 + $0xc0] sm:$0xf] %v3709
        %3726 = vst [vmem:[#allocation2 + $0xe4] sm:$0xf] %v3710
        %3727 = vst [vmem:[#allocation2 + $0x108] sm:$0xf] %v3711
        %3728 = vst [vmem:[#allocation2 + $0x12c] sm:$0xf] %v3712
        %3729 = vst [vmem:[#allocation2 + $0x150] sm:$0xf] %v3713
        %3730 = vst [vmem:[#allocation2 + $0x174] sm:$0xf] %v3714
        %3731 = vst [vmem:[#allocation2 + $0x198] sm:$0xf] %v3715
        %3732 = vst [vmem:[#allocation2 + $0x1bc] sm:$0xf] %v3716
        %3733 = vst [vmem:[#allocation2 + $0x1e0] sm:$0xf] %v3717
        %3734 = vst [vmem:[#allocation2 + $0x204] sm:$0xf] %v3718
        %3735 = vst [vmem:[#allocation2 + $0x228] sm:$0xf] %v3719
        %v3736 = vld [vmem:[%s3119] sm:$0xf]
        %v3737 = vld [vmem:[%s3119 + $0x4] sm:$0x1]
        %v3738 = vld [vmem:[%s3119 + $0x8] sm:$0xf]
        %v3739 = vld [vmem:[%s3119 + $0xc] sm:$0x1]
        %v3740 = vld [vmem:[%s3119 + $0x10] sm:$0xf]
        %v3741 = vld [vmem:[%s3119 + $0x14] sm:$0x1]
        %v3742 = vld [vmem:[%s3119 + $0x18] sm:$0xf]
        %v3743 = vld [vmem:[%s3119 + $0x1c] sm:$0x1]
        %v3744 = vld [vmem:[%s3119 + $0x20] sm:$0xf]
        %v3745 = vld [vmem:[%s3119 + $0x24] sm:$0x1]
        %v3746 = vld [vmem:[%s3119 + $0x28] sm:$0xf]
        %v3747 = vld [vmem:[%s3119 + $0x2c] sm:$0x1]
        %v3748 = vld [vmem:[%s3119 + $0x30] sm:$0xf]
        %v3749 = vld [vmem:[%s3119 + $0x34] sm:$0x1]
        %v3750 = vld [vmem:[%s3119 + $0x38] sm:$0xf]
        %v3751 = vld [vmem:[%s3119 + $0x3c] sm:$0x1]
        %v3752 = vld [vmem:[%s3119 + $0x50] sm:$0xf]
        %v3753 = vld [vmem:[%s3119 + $0x54] sm:$0x1]
        %v3754 = vld [vmem:[%s3119 + $0x58] sm:$0xf]
        %v3755 = vld [vmem:[%s3119 + $0x5c] sm:$0x1]
        %v3756 = vld [vmem:[%s3119 + $0x60] sm:$0xf]
        %v3757 = vld [vmem:[%s3119 + $0x64] sm:$0x1]
        %v3758 = vld [vmem:[%s3119 + $0x68] sm:$0xf]
        %v3759 = vld [vmem:[%s3119 + $0x6c] sm:$0x1]
        %v3760 = vld [vmem:[%s3119 + $0x70] sm:$0xf]
        %v3761 = vld [vmem:[%s3119 + $0x74] sm:$0x1]
        %v3762 = vld [vmem:[%s3119 + $0x78] sm:$0xf]
        %v3763 = vld [vmem:[%s3119 + $0x7c] sm:$0x1]
        %v3764 = vld [vmem:[%s3119 + $0x80] sm:$0xf]
        %v3765 = vld [vmem:[%s3119 + $0x84] sm:$0x1]
        %v3766 = vld [vmem:[%s3119 + $0x88] sm:$0xf]
        %v3767 = vld [vmem:[%s3119 + $0x8c] sm:$0x1]
        %v3769 = vshrl.u32 %v3736, 16
        %v3771 = vrot.slane %v3769, 4
        %v3772 = vshll.u32 %v3736, 16
        %v3774 = vrot.slane %v3772, 5
        %v3775 = vor.u32 %v3771, %v3774
        %v3776 = vrot.slane %v3775, 4
        %v3778 = vshll.u32 %v3737, 16
        %v3780 = vrot.slane %v3778, 5
        %v3781 = vsel %vm3284, %v3776, %v3780
        %v3783 = vshrl.u32 %v3738, 16
        %v3785 = vrot.slane %v3783, 4
        %v3786 = vshll.u32 %v3738, 16
        %v3788 = vrot.slane %v3786, 5
        %v3789 = vor.u32 %v3785, %v3788
        %v3790 = vrot.slane %v3789, 4
        %v3792 = vshll.u32 %v3739, 16
        %v3794 = vrot.slane %v3792, 5
        %v3795 = vsel %vm3284, %v3790, %v3794
        %v3797 = vshrl.u32 %v3740, 16
        %v3799 = vrot.slane %v3797, 4
        %v3800 = vshll.u32 %v3740, 16
        %v3802 = vrot.slane %v3800, 5
        %v3803 = vor.u32 %v3799, %v3802
        %v3804 = vrot.slane %v3803, 4
        %v3806 = vshll.u32 %v3741, 16
        %v3808 = vrot.slane %v3806, 5
        %v3809 = vsel %vm3284, %v3804, %v3808
        %v3811 = vshrl.u32 %v3742, 16
        %v3813 = vrot.slane %v3811, 4
        %v3814 = vshll.u32 %v3742, 16
        %v3816 = vrot.slane %v3814, 5
        %v3817 = vor.u32 %v3813, %v3816
        %v3818 = vrot.slane %v3817, 4
        %v3820 = vshll.u32 %v3743, 16
        %v3822 = vrot.slane %v3820, 5
        %v3823 = vsel %vm3284, %v3818, %v3822
        %v3825 = vshrl.u32 %v3744, 16
        %v3827 = vrot.slane %v3825, 4
        %v3828 = vshll.u32 %v3744, 16
        %v3830 = vrot.slane %v3828, 5
        %v3831 = vor.u32 %v3827, %v3830
        %v3832 = vrot.slane %v3831, 4
        %v3834 = vshll.u32 %v3745, 16
        %v3836 = vrot.slane %v3834, 5
        %v3837 = vsel %vm3284, %v3832, %v3836
        %v3839 = vshrl.u32 %v3746, 16
        %v3841 = vrot.slane %v3839, 4
        %v3842 = vshll.u32 %v3746, 16
        %v3844 = vrot.slane %v3842, 5
        %v3845 = vor.u32 %v3841, %v3844
        %v3846 = vrot.slane %v3845, 4
        %v3848 = vshll.u32 %v3747, 16
        %v3850 = vrot.slane %v3848, 5
        %v3851 = vsel %vm3284, %v3846, %v3850
        %v3853 = vshrl.u32 %v3748, 16
        %v3855 = vrot.slane %v3853, 4
        %v3856 = vshll.u32 %v3748, 16
        %v3858 = vrot.slane %v3856, 5
        %v3859 = vor.u32 %v3855, %v3858
        %v3860 = vrot.slane %v3859, 4
        %v3862 = vshll.u32 %v3749, 16
        %v3864 = vrot.slane %v3862, 5
        %v3865 = vsel %vm3284, %v3860, %v3864
        %v3867 = vshrl.u32 %v3750, 16
        %v3869 = vrot.slane %v3867, 4
        %v3870 = vshll.u32 %v3750, 16
        %v3872 = vrot.slane %v3870, 5
        %v3873 = vor.u32 %v3869, %v3872
        %v3874 = vrot.slane %v3873, 4
        %v3876 = vshll.u32 %v3751, 16
        %v3878 = vrot.slane %v3876, 5
        %v3879 = vsel %vm3284, %v3874, %v3878
        %v3881 = vshrl.u32 %v3752, 16
        %v3883 = vrot.slane %v3881, 4
        %v3884 = vshll.u32 %v3752, 16
        %v3886 = vrot.slane %v3884, 5
        %v3887 = vor.u32 %v3883, %v3886
        %v3888 = vrot.slane %v3887, 4
        %v3890 = vshll.u32 %v3753, 16
        %v3892 = vrot.slane %v3890, 5
        %v3893 = vsel %vm3284, %v3888, %v3892
        %v3895 = vshrl.u32 %v3754, 16
        %v3897 = vrot.slane %v3895, 4
        %v3898 = vshll.u32 %v3754, 16
        %v3900 = vrot.slane %v3898, 5
        %v3901 = vor.u32 %v3897, %v3900
        %v3902 = vrot.slane %v3901, 4
        %v3904 = vshll.u32 %v3755, 16
        %v3906 = vrot.slane %v3904, 5
        %v3907 = vsel %vm3284, %v3902, %v3906
        %v3909 = vshrl.u32 %v3756, 16
        %v3911 = vrot.slane %v3909, 4
        %v3912 = vshll.u32 %v3756, 16
        %v3914 = vrot.slane %v3912, 5
        %v3915 = vor.u32 %v3911, %v3914
        %v3916 = vrot.slane %v3915, 4
        %v3918 = vshll.u32 %v3757, 16
        %v3920 = vrot.slane %v3918, 5
        %v3921 = vsel %vm3284, %v3916, %v3920
        %v3923 = vshrl.u32 %v3758, 16
        %v3925 = vrot.slane %v3923, 4
        %v3926 = vshll.u32 %v3758, 16
        %v3928 = vrot.slane %v3926, 5
        %v3929 = vor.u32 %v3925, %v3928
        %v3930 = vrot.slane %v3929, 4
        %v3932 = vshll.u32 %v3759, 16
        %v3934 = vrot.slane %v3932, 5
        %v3935 = vsel %vm3284, %v3930, %v3934
        %v3937 = vshrl.u32 %v3760, 16
        %v3939 = vrot.slane %v3937, 4
        %v3940 = vshll.u32 %v3760, 16
        %v3942 = vrot.slane %v3940, 5
        %v3943 = vor.u32 %v3939, %v3942
        %v3944 = vrot.slane %v3943, 4
        %v3946 = vshll.u32 %v3761, 16
        %v3948 = vrot.slane %v3946, 5
        %v3949 = vsel %vm3284, %v3944, %v3948
        %v3951 = vshrl.u32 %v3762, 16
        %v3953 = vrot.slane %v3951, 4
        %v3954 = vshll.u32 %v3762, 16
        %v3956 = vrot.slane %v3954, 5
        %v3957 = vor.u32 %v3953, %v3956
        %v3958 = vrot.slane %v3957, 4
        %v3960 = vshll.u32 %v3763, 16
        %v3962 = vrot.slane %v3960, 5
        %v3963 = vsel %vm3284, %v3958, %v3962
        %v3965 = vshrl.u32 %v3764, 16
        %v3967 = vrot.slane %v3965, 4
        %v3968 = vshll.u32 %v3764, 16
        %v3970 = vrot.slane %v3968, 5
        %v3971 = vor.u32 %v3967, %v3970
        %v3972 = vrot.slane %v3971, 4
        %v3974 = vshll.u32 %v3765, 16
        %v3976 = vrot.slane %v3974, 5
        %v3977 = vsel %vm3284, %v3972, %v3976
        %v3979 = vshrl.u32 %v3766, 16
        %v3981 = vrot.slane %v3979, 4
        %v3982 = vshll.u32 %v3766, 16
        %v3984 = vrot.slane %v3982, 5
        %v3985 = vor.u32 %v3981, %v3984
        %v3986 = vrot.slane %v3985, 4
        %v3988 = vshll.u32 %v3767, 16
        %v3990 = vrot.slane %v3988, 5
        %v3991 = vsel %vm3284, %v3986, %v3990
        %4008 = vst [vmem:[#allocation2 + $0x10] sm:$0xf] %v3781
        %4009 = vst [vmem:[#allocation2 + $0x34] sm:$0xf] %v3795
        %4010 = vst [vmem:[#allocation2 + $0x58] sm:$0xf] %v3809
        %4011 = vst [vmem:[#allocation2 + $0x7c] sm:$0xf] %v3823
        %4012 = vst [vmem:[#allocation2 + $0xa0] sm:$0xf] %v3837
        %4013 = vst [vmem:[#allocation2 + $0xc4] sm:$0xf] %v3851
        %4014 = vst [vmem:[#allocation2 + $0xe8] sm:$0xf] %v3865
        %4015 = vst [vmem:[#allocation2 + $0x10c] sm:$0xf] %v3879
        %4016 = vst [vmem:[#allocation2 + $0x130] sm:$0xf] %v3893
        %4017 = vst [vmem:[#allocation2 + $0x154] sm:$0xf] %v3907
        %4018 = vst [vmem:[#allocation2 + $0x178] sm:$0xf] %v3921
        %4019 = vst [vmem:[#allocation2 + $0x19c] sm:$0xf] %v3935
        %4020 = vst [vmem:[#allocation2 + $0x1c0] sm:$0xf] %v3949
        %4021 = vst [vmem:[#allocation2 + $0x1e4] sm:$0xf] %v3963
        %4022 = vst [vmem:[#allocation2 + $0x208] sm:$0xf] %v3977
        %4023 = vst [vmem:[#allocation2 + $0x22c] sm:$0xf] %v3991
        %v4024 = vld [vmem:[%s3119] sm:$0xe]
        %v4025 = vld [vmem:[%s3119 + $0x4] sm:$0x1]
        %v4026 = vld [vmem:[%s3119 + $0x8] sm:$0xe]
        %v4027 = vld [vmem:[%s3119 + $0xc] sm:$0x1]
        %v4028 = vld [vmem:[%s3119 + $0x10] sm:$0xe]
        %v4029 = vld [vmem:[%s3119 + $0x14] sm:$0x1]
        %v4030 = vld [vmem:[%s3119 + $0x18] sm:$0xe]
        %v4031 = vld [vmem:[%s3119 + $0x1c] sm:$0x1]
        %v4032 = vld [vmem:[%s3119 + $0x20] sm:$0xe]
        %v4033 = vld [vmem:[%s3119 + $0x24] sm:$0x1]
        %v4034 = vld [vmem:[%s3119 + $0x28] sm:$0xe]
        %v4035 = vld [vmem:[%s3119 + $0x2c] sm:$0x1]
        %v4036 = vld [vmem:[%s3119 + $0x30] sm:$0xe]
        %v4037 = vld [vmem:[%s3119 + $0x34] sm:$0x1]
        %v4038 = vld [vmem:[%s3119 + $0x38] sm:$0xe]
        %v4039 = vld [vmem:[%s3119 + $0x3c] sm:$0x1]
        %v4040 = vld [vmem:[%s3119 + $0x50] sm:$0xe]
        %v4041 = vld [vmem:[%s3119 + $0x54] sm:$0x1]
        %v4042 = vld [vmem:[%s3119 + $0x58] sm:$0xe]
        %v4043 = vld [vmem:[%s3119 + $0x5c] sm:$0x1]
        %v4044 = vld [vmem:[%s3119 + $0x60] sm:$0xe]
        %v4045 = vld [vmem:[%s3119 + $0x64] sm:$0x1]
        %v4046 = vld [vmem:[%s3119 + $0x68] sm:$0xe]
        %v4047 = vld [vmem:[%s3119 + $0x6c] sm:$0x1]
        %v4048 = vld [vmem:[%s3119 + $0x70] sm:$0xe]
        %v4049 = vld [vmem:[%s3119 + $0x74] sm:$0x1]
        %v4050 = vld [vmem:[%s3119 + $0x78] sm:$0xe]
        %v4051 = vld [vmem:[%s3119 + $0x7c] sm:$0x1]
        %v4052 = vld [vmem:[%s3119 + $0x80] sm:$0xe]
        %v4053 = vld [vmem:[%s3119 + $0x84] sm:$0x1]
        %v4054 = vld [vmem:[%s3119 + $0x88] sm:$0xe]
        %v4055 = vld [vmem:[%s3119 + $0x8c] sm:$0x1]
        %v4088 = vrot.slane %v4024, 5
        %v4089 = vrot.slane %v4088, 4
        %v4090 = vrot.slane %v4025, 5
        %v4091 = vsel %vm3607, %v4089, %v4090
        %v4092 = vrot.slane %v4026, 5
        %v4093 = vrot.slane %v4092, 4
        %v4094 = vrot.slane %v4027, 5
        %v4095 = vsel %vm3607, %v4093, %v4094
        %v4096 = vrot.slane %v4028, 5
        %v4097 = vrot.slane %v4096, 4
        %v4098 = vrot.slane %v4029, 5
        %v4099 = vsel %vm3607, %v4097, %v4098
        %v4100 = vrot.slane %v4030, 5
        %v4101 = vrot.slane %v4100, 4
        %v4102 = vrot.slane %v4031, 5
        %v4103 = vsel %vm3607, %v4101, %v4102
        %v4104 = vrot.slane %v4032, 5
        %v4105 = vrot.slane %v4104, 4
        %v4106 = vrot.slane %v4033, 5
        %v4107 = vsel %vm3607, %v4105, %v4106
        %v4108 = vrot.slane %v4034, 5
        %v4109 = vrot.slane %v4108, 4
        %v4110 = vrot.slane %v4035, 5
        %v4111 = vsel %vm3607, %v4109, %v4110
        %v4112 = vrot.slane %v4036, 5
        %v4113 = vrot.slane %v4112, 4
        %v4114 = vrot.slane %v4037, 5
        %v4115 = vsel %vm3607, %v4113, %v4114
        %v4116 = vrot.slane %v4038, 5
        %v4117 = vrot.slane %v4116, 4
        %v4118 = vrot.slane %v4039, 5
        %v4119 = vsel %vm3607, %v4117, %v4118
        %v4120 = vrot.slane %v4040, 5
        %v4121 = vrot.slane %v4120, 4
        %v4122 = vrot.slane %v4041, 5
        %v4123 = vsel %vm3607, %v4121, %v4122
        %v4124 = vrot.slane %v4042, 5
        %v4125 = vrot.slane %v4124, 4
        %v4126 = vrot.slane %v4043, 5
        %v4127 = vsel %vm3607, %v4125, %v4126
        %v4128 = vrot.slane %v4044, 5
        %v4129 = vrot.slane %v4128, 4
        %v4130 = vrot.slane %v4045, 5
        %v4131 = vsel %vm3607, %v4129, %v4130
        %v4132 = vrot.slane %v4046, 5
        %v4133 = vrot.slane %v4132, 4
        %v4134 = vrot.slane %v4047, 5
        %v4135 = vsel %vm3607, %v4133, %v4134
        %v4136 = vrot.slane %v4048, 5
        %v4137 = vrot.slane %v4136, 4
        %v4138 = vrot.slane %v4049, 5
        %v4139 = vsel %vm3607, %v4137, %v4138
        %v4140 = vrot.slane %v4050, 5
        %v4141 = vrot.slane %v4140, 4
        %v4142 = vrot.slane %v4051, 5
        %v4143 = vsel %vm3607, %v4141, %v4142
        %v4144 = vrot.slane %v4052, 5
        %v4145 = vrot.slane %v4144, 4
        %v4146 = vrot.slane %v4053, 5
        %v4147 = vsel %vm3607, %v4145, %v4146
        %v4148 = vrot.slane %v4054, 5
        %v4149 = vrot.slane %v4148, 4
        %v4150 = vrot.slane %v4055, 5
        %v4151 = vsel %vm3607, %v4149, %v4150
        %4168 = vst [vmem:[#allocation2 + $0x14] sm:$0xf] %v4091
        %4169 = vst [vmem:[#allocation2 + $0x38] sm:$0xf] %v4095
        %4170 = vst [vmem:[#allocation2 + $0x5c] sm:$0xf] %v4099
        %4171 = vst [vmem:[#allocation2 + $0x80] sm:$0xf] %v4103
        %4172 = vst [vmem:[#allocation2 + $0xa4] sm:$0xf] %v4107
        %4173 = vst [vmem:[#allocation2 + $0xc8] sm:$0xf] %v4111
        %4174 = vst [vmem:[#allocation2 + $0xec] sm:$0xf] %v4115
        %4175 = vst [vmem:[#allocation2 + $0x110] sm:$0xf] %v4119
        %4176 = vst [vmem:[#allocation2 + $0x134] sm:$0xf] %v4123
        %4177 = vst [vmem:[#allocation2 + $0x158] sm:$0xf] %v4127
        %4178 = vst [vmem:[#allocation2 + $0x17c] sm:$0xf] %v4131
        %4179 = vst [vmem:[#allocation2 + $0x1a0] sm:$0xf] %v4135
        %4180 = vst [vmem:[#allocation2 + $0x1c4] sm:$0xf] %v4139
        %4181 = vst [vmem:[#allocation2 + $0x1e8] sm:$0xf] %v4143
        %4182 = vst [vmem:[#allocation2 + $0x20c] sm:$0xf] %v4147
        %4183 = vst [vmem:[#allocation2 + $0x230] sm:$0xf] %v4151
        %s4184 = scalar_lea.vmem [#allocation3], 16
        %v4185 = vld [vmem:[%s4184] sm:$0xf]
        %v4186 = vld [vmem:[%s4184 + $0x8] sm:$0xf]
        %v4187 = vld [vmem:[%s4184 + $0x10] sm:$0xf]
        %v4188 = vld [vmem:[%s4184 + $0x18] sm:$0xf]
        %v4189 = vld [vmem:[%s4184 + $0x20] sm:$0xf]
        %v4190 = vld [vmem:[%s4184 + $0x28] sm:$0xf]
        %v4191 = vld [vmem:[%s4184 + $0x30] sm:$0xf]
        %v4192 = vld [vmem:[%s4184 + $0x38] sm:$0xf]
        %v4193 = vld [vmem:[%s4184 + $0x50] sm:$0xf]
        %v4194 = vld [vmem:[%s4184 + $0x58] sm:$0xf]
        %v4195 = vld [vmem:[%s4184 + $0x60] sm:$0xf]
        %v4196 = vld [vmem:[%s4184 + $0x68] sm:$0xf]
        %v4197 = vld [vmem:[%s4184 + $0x70] sm:$0xf]
        %v4198 = vld [vmem:[%s4184 + $0x78] sm:$0xf]
        %v4199 = vld [vmem:[%s4184 + $0x80] sm:$0xf]
        %v4200 = vld [vmem:[%s4184 + $0x88] sm:$0xf]
        %4201 = vst [vmem:[#allocation2 + $0x18] sm:$0xf] %v4185
        %4202 = vst [vmem:[#allocation2 + $0x3c] sm:$0xf] %v4186
        %4203 = vst [vmem:[#allocation2 + $0x60] sm:$0xf] %v4187
        %4204 = vst [vmem:[#allocation2 + $0x84] sm:$0xf] %v4188
        %4205 = vst [vmem:[#allocation2 + $0xa8] sm:$0xf] %v4189
        %4206 = vst [vmem:[#allocation2 + $0xcc] sm:$0xf] %v4190
        %4207 = vst [vmem:[#allocation2 + $0xf0] sm:$0xf] %v4191
        %4208 = vst [vmem:[#allocation2 + $0x114] sm:$0xf] %v4192
        %4209 = vst [vmem:[#allocation2 + $0x138] sm:$0xf] %v4193
        %4210 = vst [vmem:[#allocation2 + $0x15c] sm:$0xf] %v4194
        %4211 = vst [vmem:[#allocation2 + $0x180] sm:$0xf] %v4195
        %4212 = vst [vmem:[#allocation2 + $0x1a4] sm:$0xf] %v4196
        %4213 = vst [vmem:[#allocation2 + $0x1c8] sm:$0xf] %v4197
        %4214 = vst [vmem:[#allocation2 + $0x1ec] sm:$0xf] %v4198
        %4215 = vst [vmem:[#allocation2 + $0x210] sm:$0xf] %v4199
        %4216 = vst [vmem:[#allocation2 + $0x234] sm:$0xf] %v4200
        %v4217 = vld [vmem:[%s4184] sm:$0xf]
        %v4218 = vld [vmem:[%s4184 + $0x4] sm:$0x1]
        %v4219 = vld [vmem:[%s4184 + $0x8] sm:$0xf]
        %v4220 = vld [vmem:[%s4184 + $0xc] sm:$0x1]
        %v4221 = vld [vmem:[%s4184 + $0x10] sm:$0xf]
        %v4222 = vld [vmem:[%s4184 + $0x14] sm:$0x1]
        %v4223 = vld [vmem:[%s4184 + $0x18] sm:$0xf]
        %v4224 = vld [vmem:[%s4184 + $0x1c] sm:$0x1]
        %v4225 = vld [vmem:[%s4184 + $0x20] sm:$0xf]
        %v4226 = vld [vmem:[%s4184 + $0x24] sm:$0x1]
        %v4227 = vld [vmem:[%s4184 + $0x28] sm:$0xf]
        %v4228 = vld [vmem:[%s4184 + $0x2c] sm:$0x1]
        %v4229 = vld [vmem:[%s4184 + $0x30] sm:$0xf]
        %v4230 = vld [vmem:[%s4184 + $0x34] sm:$0x1]
        %v4231 = vld [vmem:[%s4184 + $0x38] sm:$0xf]
        %v4232 = vld [vmem:[%s4184 + $0x3c] sm:$0x1]
        %v4233 = vld [vmem:[%s4184 + $0x50] sm:$0xf]
        %v4234 = vld [vmem:[%s4184 + $0x54] sm:$0x1]
        %v4235 = vld [vmem:[%s4184 + $0x58] sm:$0xf]
        %v4236 = vld [vmem:[%s4184 + $0x5c] sm:$0x1]
        %v4237 = vld [vmem:[%s4184 + $0x60] sm:$0xf]
        %v4238 = vld [vmem:[%s4184 + $0x64] sm:$0x1]
        %v4239 = vld [vmem:[%s4184 + $0x68] sm:$0xf]
        %v4240 = vld [vmem:[%s4184 + $0x6c] sm:$0x1]
        %v4241 = vld [vmem:[%s4184 + $0x70] sm:$0xf]
        %v4242 = vld [vmem:[%s4184 + $0x74] sm:$0x1]
        %v4243 = vld [vmem:[%s4184 + $0x78] sm:$0xf]
        %v4244 = vld [vmem:[%s4184 + $0x7c] sm:$0x1]
        %v4245 = vld [vmem:[%s4184 + $0x80] sm:$0xf]
        %v4246 = vld [vmem:[%s4184 + $0x84] sm:$0x1]
        %v4247 = vld [vmem:[%s4184 + $0x88] sm:$0xf]
        %v4248 = vld [vmem:[%s4184 + $0x8c] sm:$0x1]
        %v4250 = vshrl.u32 %v4217, 16
        %v4252 = vrot.slane %v4250, 4
        %v4253 = vshll.u32 %v4217, 16
        %v4255 = vrot.slane %v4253, 5
        %v4256 = vor.u32 %v4252, %v4255
        %v4257 = vrot.slane %v4256, 4
        %v4259 = vshll.u32 %v4218, 16
        %v4261 = vrot.slane %v4259, 5
        %v4262 = vsel %vm3284, %v4257, %v4261
        %v4264 = vshrl.u32 %v4219, 16
        %v4266 = vrot.slane %v4264, 4
        %v4267 = vshll.u32 %v4219, 16
        %v4269 = vrot.slane %v4267, 5
        %v4270 = vor.u32 %v4266, %v4269
        %v4271 = vrot.slane %v4270, 4
        %v4273 = vshll.u32 %v4220, 16
        %v4275 = vrot.slane %v4273, 5
        %v4276 = vsel %vm3284, %v4271, %v4275
        %v4278 = vshrl.u32 %v4221, 16
        %v4280 = vrot.slane %v4278, 4
        %v4281 = vshll.u32 %v4221, 16
        %v4283 = vrot.slane %v4281, 5
        %v4284 = vor.u32 %v4280, %v4283
        %v4285 = vrot.slane %v4284, 4
        %v4287 = vshll.u32 %v4222, 16
        %v4289 = vrot.slane %v4287, 5
        %v4290 = vsel %vm3284, %v4285, %v4289
        %v4292 = vshrl.u32 %v4223, 16
        %v4294 = vrot.slane %v4292, 4
        %v4295 = vshll.u32 %v4223, 16
        %v4297 = vrot.slane %v4295, 5
        %v4298 = vor.u32 %v4294, %v4297
        %v4299 = vrot.slane %v4298, 4
        %v4301 = vshll.u32 %v4224, 16
        %v4303 = vrot.slane %v4301, 5
        %v4304 = vsel %vm3284, %v4299, %v4303
        %v4306 = vshrl.u32 %v4225, 16
        %v4308 = vrot.slane %v4306, 4
        %v4309 = vshll.u32 %v4225, 16
        %v4311 = vrot.slane %v4309, 5
        %v4312 = vor.u32 %v4308, %v4311
        %v4313 = vrot.slane %v4312, 4
        %v4315 = vshll.u32 %v4226, 16
        %v4317 = vrot.slane %v4315, 5
        %v4318 = vsel %vm3284, %v4313, %v4317
        %v4320 = vshrl.u32 %v4227, 16
        %v4322 = vrot.slane %v4320, 4
        %v4323 = vshll.u32 %v4227, 16
        %v4325 = vrot.slane %v4323, 5
        %v4326 = vor.u32 %v4322, %v4325
        %v4327 = vrot.slane %v4326, 4
        %v4329 = vshll.u32 %v4228, 16
        %v4331 = vrot.slane %v4329, 5
        %v4332 = vsel %vm3284, %v4327, %v4331
        %v4334 = vshrl.u32 %v4229, 16
        %v4336 = vrot.slane %v4334, 4
        %v4337 = vshll.u32 %v4229, 16
        %v4339 = vrot.slane %v4337, 5
        %v4340 = vor.u32 %v4336, %v4339
        %v4341 = vrot.slane %v4340, 4
        %v4343 = vshll.u32 %v4230, 16
        %v4345 = vrot.slane %v4343, 5
        %v4346 = vsel %vm3284, %v4341, %v4345
        %v4348 = vshrl.u32 %v4231, 16
        %v4350 = vrot.slane %v4348, 4
        %v4351 = vshll.u32 %v4231, 16
        %v4353 = vrot.slane %v4351, 5
        %v4354 = vor.u32 %v4350, %v4353
        %v4355 = vrot.slane %v4354, 4
        %v4357 = vshll.u32 %v4232, 16
        %v4359 = vrot.slane %v4357, 5
        %v4360 = vsel %vm3284, %v4355, %v4359
        %v4362 = vshrl.u32 %v4233, 16
        %v4364 = vrot.slane %v4362, 4
        %v4365 = vshll.u32 %v4233, 16
        %v4367 = vrot.slane %v4365, 5
        %v4368 = vor.u32 %v4364, %v4367
        %v4369 = vrot.slane %v4368, 4
        %v4371 = vshll.u32 %v4234, 16
        %v4373 = vrot.slane %v4371, 5
        %v4374 = vsel %vm3284, %v4369, %v4373
        %v4376 = vshrl.u32 %v4235, 16
        %v4378 = vrot.slane %v4376, 4
        %v4379 = vshll.u32 %v4235, 16
        %v4381 = vrot.slane %v4379, 5
        %v4382 = vor.u32 %v4378, %v4381
        %v4383 = vrot.slane %v4382, 4
        %v4385 = vshll.u32 %v4236, 16
        %v4387 = vrot.slane %v4385, 5
        %v4388 = vsel %vm3284, %v4383, %v4387
        %v4390 = vshrl.u32 %v4237, 16
        %v4392 = vrot.slane %v4390, 4
        %v4393 = vshll.u32 %v4237, 16
        %v4395 = vrot.slane %v4393, 5
        %v4396 = vor.u32 %v4392, %v4395
        %v4397 = vrot.slane %v4396, 4
        %v4399 = vshll.u32 %v4238, 16
        %v4401 = vrot.slane %v4399, 5
        %v4402 = vsel %vm3284, %v4397, %v4401
        %v4404 = vshrl.u32 %v4239, 16
        %v4406 = vrot.slane %v4404, 4
        %v4407 = vshll.u32 %v4239, 16
        %v4409 = vrot.slane %v4407, 5
        %v4410 = vor.u32 %v4406, %v4409
        %v4411 = vrot.slane %v4410, 4
        %v4413 = vshll.u32 %v4240, 16
        %v4415 = vrot.slane %v4413, 5
        %v4416 = vsel %vm3284, %v4411, %v4415
        %v4418 = vshrl.u32 %v4241, 16
        %v4420 = vrot.slane %v4418, 4
        %v4421 = vshll.u32 %v4241, 16
        %v4423 = vrot.slane %v4421, 5
        %v4424 = vor.u32 %v4420, %v4423
        %v4425 = vrot.slane %v4424, 4
        %v4427 = vshll.u32 %v4242, 16
        %v4429 = vrot.slane %v4427, 5
        %v4430 = vsel %vm3284, %v4425, %v4429
        %v4432 = vshrl.u32 %v4243, 16
        %v4434 = vrot.slane %v4432, 4
        %v4435 = vshll.u32 %v4243, 16
        %v4437 = vrot.slane %v4435, 5
        %v4438 = vor.u32 %v4434, %v4437
        %v4439 = vrot.slane %v4438, 4
        %v4441 = vshll.u32 %v4244, 16
        %v4443 = vrot.slane %v4441, 5
        %v4444 = vsel %vm3284, %v4439, %v4443
        %v4446 = vshrl.u32 %v4245, 16
        %v4448 = vrot.slane %v4446, 4
        %v4449 = vshll.u32 %v4245, 16
        %v4451 = vrot.slane %v4449, 5
        %v4452 = vor.u32 %v4448, %v4451
        %v4453 = vrot.slane %v4452, 4
        %v4455 = vshll.u32 %v4246, 16
        %v4457 = vrot.slane %v4455, 5
        %v4458 = vsel %vm3284, %v4453, %v4457
        %v4460 = vshrl.u32 %v4247, 16
        %v4462 = vrot.slane %v4460, 4
        %v4463 = vshll.u32 %v4247, 16
        %v4465 = vrot.slane %v4463, 5
        %v4466 = vor.u32 %v4462, %v4465
        %v4467 = vrot.slane %v4466, 4
        %v4469 = vshll.u32 %v4248, 16
        %v4471 = vrot.slane %v4469, 5
        %v4472 = vsel %vm3284, %v4467, %v4471
        %4489 = vst [vmem:[#allocation2 + $0x1c] sm:$0xf] %v4262
        %4490 = vst [vmem:[#allocation2 + $0x40] sm:$0xf] %v4276
        %4491 = vst [vmem:[#allocation2 + $0x64] sm:$0xf] %v4290
        %4492 = vst [vmem:[#allocation2 + $0x88] sm:$0xf] %v4304
        %4493 = vst [vmem:[#allocation2 + $0xac] sm:$0xf] %v4318
        %4494 = vst [vmem:[#allocation2 + $0xd0] sm:$0xf] %v4332
        %4495 = vst [vmem:[#allocation2 + $0xf4] sm:$0xf] %v4346
        %4496 = vst [vmem:[#allocation2 + $0x118] sm:$0xf] %v4360
        %4497 = vst [vmem:[#allocation2 + $0x13c] sm:$0xf] %v4374
        %4498 = vst [vmem:[#allocation2 + $0x160] sm:$0xf] %v4388
        %4499 = vst [vmem:[#allocation2 + $0x184] sm:$0xf] %v4402
        %4500 = vst [vmem:[#allocation2 + $0x1a8] sm:$0xf] %v4416
        %4501 = vst [vmem:[#allocation2 + $0x1cc] sm:$0xf] %v4430
        %4502 = vst [vmem:[#allocation2 + $0x1f0] sm:$0xf] %v4444
        %4503 = vst [vmem:[#allocation2 + $0x214] sm:$0xf] %v4458
        %4504 = vst [vmem:[#allocation2 + $0x238] sm:$0xf] %v4472
        %v4505 = vld [vmem:[%s4184] sm:$0xe]
        %v4506 = vld [vmem:[%s4184 + $0x4] sm:$0x1]
        %v4507 = vld [vmem:[%s4184 + $0x8] sm:$0xe]
        %v4508 = vld [vmem:[%s4184 + $0xc] sm:$0x1]
        %v4509 = vld [vmem:[%s4184 + $0x10] sm:$0xe]
        %v4510 = vld [vmem:[%s4184 + $0x14] sm:$0x1]
        %v4511 = vld [vmem:[%s4184 + $0x18] sm:$0xe]
        %v4512 = vld [vmem:[%s4184 + $0x1c] sm:$0x1]
        %v4513 = vld [vmem:[%s4184 + $0x20] sm:$0xe]
        %v4514 = vld [vmem:[%s4184 + $0x24] sm:$0x1]
        %v4515 = vld [vmem:[%s4184 + $0x28] sm:$0xe]
        %v4516 = vld [vmem:[%s4184 + $0x2c] sm:$0x1]
        %v4517 = vld [vmem:[%s4184 + $0x30] sm:$0xe]
        %v4518 = vld [vmem:[%s4184 + $0x34] sm:$0x1]
        %v4519 = vld [vmem:[%s4184 + $0x38] sm:$0xe]
        %v4520 = vld [vmem:[%s4184 + $0x3c] sm:$0x1]
        %v4521 = vld [vmem:[%s4184 + $0x50] sm:$0xe]
        %v4522 = vld [vmem:[%s4184 + $0x54] sm:$0x1]
        %v4523 = vld [vmem:[%s4184 + $0x58] sm:$0xe]
        %v4524 = vld [vmem:[%s4184 + $0x5c] sm:$0x1]
        %v4525 = vld [vmem:[%s4184 + $0x60] sm:$0xe]
        %v4526 = vld [vmem:[%s4184 + $0x64] sm:$0x1]
        %v4527 = vld [vmem:[%s4184 + $0x68] sm:$0xe]
        %v4528 = vld [vmem:[%s4184 + $0x6c] sm:$0x1]
        %v4529 = vld [vmem:[%s4184 + $0x70] sm:$0xe]
        %v4530 = vld [vmem:[%s4184 + $0x74] sm:$0x1]
        %v4531 = vld [vmem:[%s4184 + $0x78] sm:$0xe]
        %v4532 = vld [vmem:[%s4184 + $0x7c] sm:$0x1]
        %v4533 = vld [vmem:[%s4184 + $0x80] sm:$0xe]
        %v4534 = vld [vmem:[%s4184 + $0x84] sm:$0x1]
        %v4535 = vld [vmem:[%s4184 + $0x88] sm:$0xe]
        %v4536 = vld [vmem:[%s4184 + $0x8c] sm:$0x1]
        %v4569 = vrot.slane %v4505, 5
        %v4570 = vrot.slane %v4569, 4
        %v4571 = vrot.slane %v4506, 5
        %v4572 = vsel %vm3607, %v4570, %v4571
        %v4573 = vrot.slane %v4507, 5
        %v4574 = vrot.slane %v4573, 4
        %v4575 = vrot.slane %v4508, 5
        %v4576 = vsel %vm3607, %v4574, %v4575
        %v4577 = vrot.slane %v4509, 5
        %v4578 = vrot.slane %v4577, 4
        %v4579 = vrot.slane %v4510, 5
        %v4580 = vsel %vm3607, %v4578, %v4579
        %v4581 = vrot.slane %v4511, 5
        %v4582 = vrot.slane %v4581, 4
        %v4583 = vrot.slane %v4512, 5
        %v4584 = vsel %vm3607, %v4582, %v4583
        %v4585 = vrot.slane %v4513, 5
        %v4586 = vrot.slane %v4585, 4
        %v4587 = vrot.slane %v4514, 5
        %v4588 = vsel %vm3607, %v4586, %v4587
        %v4589 = vrot.slane %v4515, 5
        %v4590 = vrot.slane %v4589, 4
        %v4591 = vrot.slane %v4516, 5
        %v4592 = vsel %vm3607, %v4590, %v4591
        %v4593 = vrot.slane %v4517, 5
        %v4594 = vrot.slane %v4593, 4
        %v4595 = vrot.slane %v4518, 5
        %v4596 = vsel %vm3607, %v4594, %v4595
        %v4597 = vrot.slane %v4519, 5
        %v4598 = vrot.slane %v4597, 4
        %v4599 = vrot.slane %v4520, 5
        %v4600 = vsel %vm3607, %v4598, %v4599
        %v4601 = vrot.slane %v4521, 5
        %v4602 = vrot.slane %v4601, 4
        %v4603 = vrot.slane %v4522, 5
        %v4604 = vsel %vm3607, %v4602, %v4603
        %v4605 = vrot.slane %v4523, 5
        %v4606 = vrot.slane %v4605, 4
        %v4607 = vrot.slane %v4524, 5
        %v4608 = vsel %vm3607, %v4606, %v4607
        %v4609 = vrot.slane %v4525, 5
        %v4610 = vrot.slane %v4609, 4
        %v4611 = vrot.slane %v4526, 5
        %v4612 = vsel %vm3607, %v4610, %v4611
        %v4613 = vrot.slane %v4527, 5
        %v4614 = vrot.slane %v4613, 4
        %v4615 = vrot.slane %v4528, 5
        %v4616 = vsel %vm3607, %v4614, %v4615
        %v4617 = vrot.slane %v4529, 5
        %v4618 = vrot.slane %v4617, 4
        %v4619 = vrot.slane %v4530, 5
        %v4620 = vsel %vm3607, %v4618, %v4619
        %v4621 = vrot.slane %v4531, 5
        %v4622 = vrot.slane %v4621, 4
        %v4623 = vrot.slane %v4532, 5
        %v4624 = vsel %vm3607, %v4622, %v4623
        %v4625 = vrot.slane %v4533, 5
        %v4626 = vrot.slane %v4625, 4
        %v4627 = vrot.slane %v4534, 5
        %v4628 = vsel %vm3607, %v4626, %v4627
        %v4629 = vrot.slane %v4535, 5
        %v4630 = vrot.slane %v4629, 4
        %v4631 = vrot.slane %v4536, 5
        %v4632 = vsel %vm3607, %v4630, %v4631
        %4649 = vst [vmem:[#allocation2 + $0x20] sm:$0xf] %v4572
        %4650 = vst [vmem:[#allocation2 + $0x44] sm:$0xf] %v4576
        %4651 = vst [vmem:[#allocation2 + $0x68] sm:$0xf] %v4580
        %4652 = vst [vmem:[#allocation2 + $0x8c] sm:$0xf] %v4584
        %4653 = vst [vmem:[#allocation2 + $0xb0] sm:$0xf] %v4588
        %4654 = vst [vmem:[#allocation2 + $0xd4] sm:$0xf] %v4592
        %4655 = vst [vmem:[#allocation2 + $0xf8] sm:$0xf] %v4596
        %4656 = vst [vmem:[#allocation2 + $0x11c] sm:$0xf] %v4600
        %4657 = vst [vmem:[#allocation2 + $0x140] sm:$0xf] %v4604
        %4658 = vst [vmem:[#allocation2 + $0x164] sm:$0xf] %v4608
        %4659 = vst [vmem:[#allocation2 + $0x188] sm:$0xf] %v4612
        %4660 = vst [vmem:[#allocation2 + $0x1ac] sm:$0xf] %v4616
        %4661 = vst [vmem:[#allocation2 + $0x1d0] sm:$0xf] %v4620
        %4662 = vst [vmem:[#allocation2 + $0x1f4] sm:$0xf] %v4624
        %4663 = vst [vmem:[#allocation2 + $0x218] sm:$0xf] %v4628
        %4664 = vst [vmem:[#allocation2 + $0x23c] sm:$0xf] %v4632
        %v4665 = vld [vmem:[#allocation2] sm:$0xff]
        %v4666 = vld [vmem:[#allocation2 + $0x8] sm:$0xff]
        %v4667 = vld [vmem:[#allocation2 + $0x10] sm:$0xff]
        %v4668 = vld [vmem:[#allocation2 + $0x18] sm:$0xff]
        %v4669 = vld [vmem:[#allocation2 + $0x20] sm:$0xf]
        %v4670 = vld [vmem:[#allocation2 + $0x24] sm:$0xff]
        %v4671 = vld [vmem:[#allocation2 + $0x2c] sm:$0xff]
        %v4672 = vld [vmem:[#allocation2 + $0x34] sm:$0xff]
        %v4673 = vld [vmem:[#allocation2 + $0x3c] sm:$0xff]
        %v4674 = vld [vmem:[#allocation2 + $0x44] sm:$0xf]
        %v4675 = vld [vmem:[#allocation2 + $0x48] sm:$0xff]
        %v4676 = vld [vmem:[#allocation2 + $0x50] sm:$0xff]
        %v4677 = vld [vmem:[#allocation2 + $0x58] sm:$0xff]
        %v4678 = vld [vmem:[#allocation2 + $0x60] sm:$0xff]
        %v4679 = vld [vmem:[#allocation2 + $0x68] sm:$0xf]
        %v4680 = vld [vmem:[#allocation2 + $0x6c] sm:$0xff]
        %v4681 = vld [vmem:[#allocation2 + $0x74] sm:$0xff]
        %v4682 = vld [vmem:[#allocation2 + $0x7c] sm:$0xff]
        %v4683 = vld [vmem:[#allocation2 + $0x84] sm:$0xff]
        %v4684 = vld [vmem:[#allocation2 + $0x8c] sm:$0xf]
        %v4685 = vld [vmem:[#allocation2 + $0x90] sm:$0xff]
        %v4686 = vld [vmem:[#allocation2 + $0x98] sm:$0xff]
        %v4687 = vld [vmem:[#allocation2 + $0xa0] sm:$0xff]
        %v4688 = vld [vmem:[#allocation2 + $0xa8] sm:$0xff]
        %v4689 = vld [vmem:[#allocation2 + $0xb0] sm:$0xf]
        %v4690 = vld [vmem:[#allocation2 + $0xb4] sm:$0xff]
        %v4691 = vld [vmem:[#allocation2 + $0xbc] sm:$0xff]
        %v4692 = vld [vmem:[#allocation2 + $0xc4] sm:$0xff]
        %v4693 = vld [vmem:[#allocation2 + $0xcc] sm:$0xff]
        %v4694 = vld [vmem:[#allocation2 + $0xd4] sm:$0xf]
        %v4695 = vld [vmem:[#allocation2 + $0xd8] sm:$0xff]
        %v4696 = vld [vmem:[#allocation2 + $0xe0] sm:$0xff]
        %v4697 = vld [vmem:[#allocation2 + $0xe8] sm:$0xff]
        %v4698 = vld [vmem:[#allocation2 + $0xf0] sm:$0xff]
        %v4699 = vld [vmem:[#allocation2 + $0xf8] sm:$0xf]
        %v4700 = vld [vmem:[#allocation2 + $0xfc] sm:$0xff]
        %v4701 = vld [vmem:[#allocation2 + $0x104] sm:$0xff]
        %v4702 = vld [vmem:[#allocation2 + $0x10c] sm:$0xff]
        %v4703 = vld [vmem:[#allocation2 + $0x114] sm:$0xff]
        %v4704 = vld [vmem:[#allocation2 + $0x11c] sm:$0xf]
        %v4705 = vld [vmem:[#allocation2 + $0x120] sm:$0xff]
        %v4706 = vld [vmem:[#allocation2 + $0x128] sm:$0xff]
        %v4707 = vld [vmem:[#allocation2 + $0x130] sm:$0xff]
        %v4708 = vld [vmem:[#allocation2 + $0x138] sm:$0xff]
        %v4709 = vld [vmem:[#allocation2 + $0x140] sm:$0xf]
        %v4710 = vld [vmem:[#allocation2 + $0x144] sm:$0xff]
        %v4711 = vld [vmem:[#allocation2 + $0x14c] sm:$0xff]
        %v4712 = vld [vmem:[#allocation2 + $0x154] sm:$0xff]
        %v4713 = vld [vmem:[#allocation2 + $0x15c] sm:$0xff]
        %v4714 = vld [vmem:[#allocation2 + $0x164] sm:$0xf]
        %v4715 = vld [vmem:[#allocation2 + $0x168] sm:$0xff]
        %v4716 = vld [vmem:[#allocation2 + $0x170] sm:$0xff]
        %v4717 = vld [vmem:[#allocation2 + $0x178] sm:$0xff]
        %v4718 = vld [vmem:[#allocation2 + $0x180] sm:$0xff]
        %v4719 = vld [vmem:[#allocation2 + $0x188] sm:$0xf]
        %v4720 = vld [vmem:[#allocation2 + $0x18c] sm:$0xff]
        %v4721 = vld [vmem:[#allocation2 + $0x194] sm:$0xff]
        %v4722 = vld [vmem:[#allocation2 + $0x19c] sm:$0xff]
        %v4723 = vld [vmem:[#allocation2 + $0x1a4] sm:$0xff]
        %v4724 = vld [vmem:[#allocation2 + $0x1ac] sm:$0xf]
        %v4725 = vld [vmem:[#allocation2 + $0x1b0] sm:$0xff]
        %v4726 = vld [vmem:[#allocation2 + $0x1b8] sm:$0xff]
        %v4727 = vld [vmem:[#allocation2 + $0x1c0] sm:$0xff]
        %v4728 = vld [vmem:[#allocation2 + $0x1c8] sm:$0xff]
        %v4729 = vld [vmem:[#allocation2 + $0x1d0] sm:$0xf]
        %v4730 = vld [vmem:[#allocation2 + $0x1d4] sm:$0xff]
        %v4731 = vld [vmem:[#allocation2 + $0x1dc] sm:$0xff]
        %v4732 = vld [vmem:[#allocation2 + $0x1e4] sm:$0xff]
        %v4733 = vld [vmem:[#allocation2 + $0x1ec] sm:$0xff]
        %v4734 = vld [vmem:[#allocation2 + $0x1f4] sm:$0xf]
        %v4735 = vld [vmem:[#allocation2 + $0x1f8] sm:$0xff]
        %v4736 = vld [vmem:[#allocation2 + $0x200] sm:$0xff]
        %v4737 = vld [vmem:[#allocation2 + $0x208] sm:$0xff]
        %v4738 = vld [vmem:[#allocation2 + $0x210] sm:$0xff]
        %v4739 = vld [vmem:[#allocation2 + $0x218] sm:$0xf]
        %v4740 = vld [vmem:[#allocation2 + $0x21c] sm:$0xff]
        %v4741 = vld [vmem:[#allocation2 + $0x224] sm:$0xff]
        %v4742 = vld [vmem:[#allocation2 + $0x22c] sm:$0xff]
        %v4743 = vld [vmem:[#allocation2 + $0x234] sm:$0xff]
        %v4744 = vld [vmem:[#allocation2 + $0x23c] sm:$0xf]
        %v4745 = vld [vmem:[#allocation4] sm:$0xf]
        %v4746 = vld [vmem:[#allocation4 + $0x4] sm:$0xf]
        %v4747 = vld [vmem:[#allocation4 + $0x8] sm:$0xf]
        %v4748 = vld [vmem:[#allocation4 + $0xc] sm:$0xf]
        %v4749 = vld [vmem:[#allocation4 + $0x10] sm:$0xf]
        %v4750 = vld [vmem:[#allocation4 + $0x14] sm:$0xf]
        %v4751 = vld [vmem:[#allocation4 + $0x18] sm:$0xf]
        %v4752 = vld [vmem:[#allocation4 + $0x1c] sm:$0xf]
        %v4753 = vld [vmem:[#allocation4 + $0x20] sm:$0xf]
        %v4754 = vld [vmem:[#allocation4 + $0x24] sm:$0xf]
        %v4755 = vld [vmem:[#allocation4 + $0x28] sm:$0xf]
        %v4756 = vld [vmem:[#allocation4 + $0x2c] sm:$0xf]
        %v4757 = vld [vmem:[#allocation4 + $0x30] sm:$0xf]
        %v4758 = vld [vmem:[#allocation4 + $0x34] sm:$0xf]
        %v4759 = vld [vmem:[#allocation4 + $0x38] sm:$0xf]
        %v4760 = vld [vmem:[#allocation4 + $0x3c] sm:$0xf]
        %v4761 = vld [vmem:[#allocation4 + $0x40] sm:$0xf]
        %v4762 = vld [vmem:[#allocation4 + $0x44] sm:$0xf]
        %v4763 = vld [vmem:[#allocation4 + $0x48] sm:$0xf]
        %v4764 = vld [vmem:[#allocation4 + $0x4c] sm:$0xf]
        %v4765 = vld [vmem:[#allocation4 + $0x50] sm:$0xf]
        %v4766 = vld [vmem:[#allocation4 + $0x54] sm:$0xf]
        %v4767 = vld [vmem:[#allocation4 + $0x58] sm:$0xf]
        %v4768 = vld [vmem:[#allocation4 + $0x5c] sm:$0xf]
        %v4769 = vld [vmem:[#allocation4 + $0x60] sm:$0xf]
        %v4770 = vld [vmem:[#allocation4 + $0x64] sm:$0xf]
        %v4771 = vld [vmem:[#allocation4 + $0x68] sm:$0xf]
        %v4772 = vld [vmem:[#allocation4 + $0x6c] sm:$0xf]
        %v4773 = vld [vmem:[#allocation4 + $0x70] sm:$0xf]
        %v4774 = vld [vmem:[#allocation4 + $0x74] sm:$0xf]
        %v4775 = vld [vmem:[#allocation4 + $0x78] sm:$0xf]
        %v4776 = vld [vmem:[#allocation4 + $0x7c] sm:$0xf]
        %v4777 = vld [vmem:[#allocation4 + $0x80] sm:$0xf]
        %v4778 = vld [vmem:[#allocation4 + $0x84] sm:$0xf]
        %v4779 = vld [vmem:[#allocation4 + $0x88] sm:$0xf]
        %v4780 = vld [vmem:[#allocation4 + $0x8c] sm:$0xf]
        %v4781 = vld [vmem:[#allocation4 + $0x90] sm:$0xf]
        %v4782 = vld [vmem:[#allocation4 + $0x94] sm:$0xf]
        %v4783 = vld [vmem:[#allocation4 + $0x98] sm:$0xf]
        %v4784 = vld [vmem:[#allocation4 + $0x9c] sm:$0xf]
        %v4785 = vld [vmem:[#allocation4 + $0xa0] sm:$0xf]
        %v4786 = vld [vmem:[#allocation4 + $0xa4] sm:$0xf]
        %v4787 = vld [vmem:[#allocation4 + $0xa8] sm:$0xf]
        %v4788 = vld [vmem:[#allocation4 + $0xac] sm:$0xf]
        %v4789 = vld [vmem:[#allocation4 + $0xb0] sm:$0xf]
        %v4790 = vld [vmem:[#allocation4 + $0xb4] sm:$0xf]
        %v4791 = vld [vmem:[#allocation4 + $0xb8] sm:$0xf]
        %v4792 = vld [vmem:[#allocation4 + $0xbc] sm:$0xf]
        %v4793 = vld [vmem:[#allocation4 + $0xc0] sm:$0xf]
        %v4794 = vld [vmem:[#allocation4 + $0xc4] sm:$0xf]
        %v4795 = vld [vmem:[#allocation4 + $0xc8] sm:$0xf]
        %v4796 = vld [vmem:[#allocation4 + $0xcc] sm:$0xf]
        %v4797 = vld [vmem:[#allocation4 + $0xd0] sm:$0xf]
        %v4798 = vld [vmem:[#allocation4 + $0xd4] sm:$0xf]
        %v4799 = vld [vmem:[#allocation4 + $0xd8] sm:$0xf]
        %v4800 = vld [vmem:[#allocation4 + $0xdc] sm:$0xf]
        %v4801 = vld [vmem:[#allocation4 + $0xe0] sm:$0xf]
        %v4802 = vld [vmem:[#allocation4 + $0xe4] sm:$0xf]
        %v4803 = vld [vmem:[#allocation4 + $0xe8] sm:$0xf]
        %v4804 = vld [vmem:[#allocation4 + $0xec] sm:$0xf]
        %v4805 = vld [vmem:[#allocation4 + $0xf0] sm:$0xf]
        %v4806 = vld [vmem:[#allocation4 + $0xf4] sm:$0xf]
        %v4807 = vld [vmem:[#allocation4 + $0xf8] sm:$0xf]
        %v4808 = vld [vmem:[#allocation4 + $0xfc] sm:$0xf]
        %v4809 = vld [vmem:[#allocation4 + $0x100] sm:$0xf]
        %v4810 = vld [vmem:[#allocation4 + $0x104] sm:$0xf]
        %v4811 = vld [vmem:[#allocation4 + $0x108] sm:$0xf]
        %v4812 = vld [vmem:[#allocation4 + $0x10c] sm:$0xf]
        %v4813 = vld [vmem:[#allocation4 + $0x110] sm:$0xf]
        %v4814 = vld [vmem:[#allocation4 + $0x114] sm:$0xf]
        %v4815 = vld [vmem:[#allocation4 + $0x118] sm:$0xf]
        %v4816 = vld [vmem:[#allocation4 + $0x11c] sm:$0xf]
        %v4817 = vld [vmem:[#allocation4 + $0x120] sm:$0xf]
        %v4818 = vld [vmem:[#allocation4 + $0x124] sm:$0xf]
        %v4819 = vld [vmem:[#allocation4 + $0x128] sm:$0xf]
        %v4820 = vld [vmem:[#allocation4 + $0x12c] sm:$0xf]
        %v4821 = vld [vmem:[#allocation4 + $0x130] sm:$0xf]
        %v4822 = vld [vmem:[#allocation4 + $0x134] sm:$0xf]
        %v4823 = vld [vmem:[#allocation4 + $0x138] sm:$0xf]
        %v4824 = vld [vmem:[#allocation4 + $0x13c] sm:$0xf]
        %v4825 = vld [vmem:[#allocation4 + $0x140] sm:$0xf]
        %v4826 = vld [vmem:[#allocation4 + $0x144] sm:$0xf]
        %v4827 = vld [vmem:[#allocation4 + $0x148] sm:$0xf]
        %v4828 = vld [vmem:[#allocation4 + $0x14c] sm:$0xf]
        %v4829 = vld [vmem:[#allocation4 + $0x150] sm:$0xf]
        %v4830 = vld [vmem:[#allocation4 + $0x154] sm:$0xf]
        %v4831 = vld [vmem:[#allocation4 + $0x158] sm:$0xf]
        %v4832 = vld [vmem:[#allocation4 + $0x15c] sm:$0xf]
        %v4833 = vld [vmem:[#allocation4 + $0x160] sm:$0xf]
        %v4834 = vld [vmem:[#allocation4 + $0x164] sm:$0xf]
        %v4835 = vld [vmem:[#allocation4 + $0x168] sm:$0xf]
        %v4836 = vld [vmem:[#allocation4 + $0x16c] sm:$0xf]
        %v4837 = vld [vmem:[#allocation4 + $0x170] sm:$0xf]
        %v4838 = vld [vmem:[#allocation4 + $0x174] sm:$0xf]
        %v4839 = vld [vmem:[#allocation4 + $0x178] sm:$0xf]
        %v4840 = vld [vmem:[#allocation4 + $0x17c] sm:$0xf]
        %v4841 = vld [vmem:[#allocation4 + $0x180] sm:$0xf]
        %v4842 = vld [vmem:[#allocation4 + $0x184] sm:$0xf]
        %v4843 = vld [vmem:[#allocation4 + $0x188] sm:$0xf]
        %v4844 = vld [vmem:[#allocation4 + $0x18c] sm:$0xf]
        %v4845 = vld [vmem:[#allocation4 + $0x190] sm:$0xf]
        %v4846 = vld [vmem:[#allocation4 + $0x194] sm:$0xf]
        %v4847 = vld [vmem:[#allocation4 + $0x198] sm:$0xf]
        %v4848 = vld [vmem:[#allocation4 + $0x19c] sm:$0xf]
        %v4849 = vld [vmem:[#allocation4 + $0x1a0] sm:$0xf]
        %v4850 = vld [vmem:[#allocation4 + $0x1a4] sm:$0xf]
        %v4851 = vld [vmem:[#allocation4 + $0x1a8] sm:$0xf]
        %v4852 = vld [vmem:[#allocation4 + $0x1ac] sm:$0xf]
        %v4853 = vld [vmem:[#allocation4 + $0x1b0] sm:$0xf]
        %v4854 = vld [vmem:[#allocation4 + $0x1b4] sm:$0xf]
        %v4855 = vld [vmem:[#allocation4 + $0x1b8] sm:$0xf]
        %v4856 = vld [vmem:[#allocation4 + $0x1bc] sm:$0xf]
        %v4857 = vld [vmem:[#allocation4 + $0x1c0] sm:$0xf]
        %v4858 = vld [vmem:[#allocation4 + $0x1c4] sm:$0xf]
        %v4859 = vld [vmem:[#allocation4 + $0x1c8] sm:$0xf]
        %v4860 = vld [vmem:[#allocation4 + $0x1cc] sm:$0xf]
        %v4861 = vld [vmem:[#allocation4 + $0x1d0] sm:$0xf]
        %v4862 = vld [vmem:[#allocation4 + $0x1d4] sm:$0xf]
        %v4863 = vld [vmem:[#allocation4 + $0x1d8] sm:$0xf]
        %v4864 = vld [vmem:[#allocation4 + $0x1dc] sm:$0xf]
        %v4865 = vld [vmem:[#allocation4 + $0x1e0] sm:$0xf]
        %v4866 = vld [vmem:[#allocation4 + $0x1e4] sm:$0xf]
        %v4867 = vld [vmem:[#allocation4 + $0x1e8] sm:$0xf]
        %v4868 = vld [vmem:[#allocation4 + $0x1ec] sm:$0xf]
        %v4869 = vld [vmem:[#allocation4 + $0x1f0] sm:$0xf]
        %v4870 = vld [vmem:[#allocation4 + $0x1f4] sm:$0xf]
        %v4871 = vld [vmem:[#allocation4 + $0x1f8] sm:$0xf]
        %v4872 = vld [vmem:[#allocation4 + $0x1fc] sm:$0xf]
        %v4873 = vld [vmem:[#allocation4 + $0x200] sm:$0xf]
        %v4874 = vld [vmem:[#allocation4 + $0x204] sm:$0xf]
        %v4875 = vld [vmem:[#allocation4 + $0x208] sm:$0xf]
        %v4876 = vld [vmem:[#allocation4 + $0x20c] sm:$0xf]
        %v4877 = vld [vmem:[#allocation4 + $0x210] sm:$0xf]
        %v4878 = vld [vmem:[#allocation4 + $0x214] sm:$0xf]
        %v4879 = vld [vmem:[#allocation4 + $0x218] sm:$0xf]
        %v4880 = vld [vmem:[#allocation4 + $0x21c] sm:$0xf]
        %v4881 = vld [vmem:[#allocation4 + $0x220] sm:$0xf]
        %v4882 = vld [vmem:[#allocation4 + $0x224] sm:$0xf]
        %v4883 = vld [vmem:[#allocation4 + $0x228] sm:$0xf]
        %v4884 = vld [vmem:[#allocation4 + $0x22c] sm:$0xf]
        %v4885 = vld [vmem:[#allocation4 + $0x230] sm:$0xf]
        %v4886 = vld [vmem:[#allocation4 + $0x234] sm:$0xf]
        %v4887 = vld [vmem:[#allocation4 + $0x238] sm:$0xf]
        %v4888 = vld [vmem:[#allocation4 + $0x23c] sm:$0xf]
        %v4969 = vunpack.c.l.b16 %v4665
        %v4970 = vunpack.c.h.b16 %v4665
        %v4971 = vunpack.c.l.b16 %v4666
        %v4972 = vunpack.c.h.b16 %v4666
        %v4973 = vunpack.c.l.b16 %v4667
        %v4974 = vunpack.c.h.b16 %v4667
        %v4975 = vunpack.c.l.b16 %v4668
        %v4976 = vunpack.c.h.b16 %v4668
        %v4977 = vunpack.c.l.b16 %v4669
        %v4978 = vunpack.c.l.b16 %v4670
        %v4979 = vunpack.c.h.b16 %v4670
        %v4980 = vunpack.c.l.b16 %v4671
        %v4981 = vunpack.c.h.b16 %v4671
        %v4982 = vunpack.c.l.b16 %v4672
        %v4983 = vunpack.c.h.b16 %v4672
        %v4984 = vunpack.c.l.b16 %v4673
        %v4985 = vunpack.c.h.b16 %v4673
        %v4986 = vunpack.c.l.b16 %v4674
        %v4987 = vunpack.c.l.b16 %v4675
        %v4988 = vunpack.c.h.b16 %v4675
        %v4989 = vunpack.c.l.b16 %v4676
        %v4990 = vunpack.c.h.b16 %v4676
        %v4991 = vunpack.c.l.b16 %v4677
        %v4992 = vunpack.c.h.b16 %v4677
        %v4993 = vunpack.c.l.b16 %v4678
        %v4994 = vunpack.c.h.b16 %v4678
        %v4995 = vunpack.c.l.b16 %v4679
        %v4996 = vunpack.c.l.b16 %v4680
        %v4997 = vunpack.c.h.b16 %v4680
        %v4998 = vunpack.c.l.b16 %v4681
        %v4999 = vunpack.c.h.b16 %v4681
        %v5000 = vunpack.c.l.b16 %v4682
        %v5001 = vunpack.c.h.b16 %v4682
        %v5002 = vunpack.c.l.b16 %v4683
        %v5003 = vunpack.c.h.b16 %v4683
        %v5004 = vunpack.c.l.b16 %v4684
        %v5005 = vunpack.c.l.b16 %v4685
        %v5006 = vunpack.c.h.b16 %v4685
        %v5007 = vunpack.c.l.b16 %v4686
        %v5008 = vunpack.c.h.b16 %v4686
        %v5009 = vunpack.c.l.b16 %v4687
        %v5010 = vunpack.c.h.b16 %v4687
        %v5011 = vunpack.c.l.b16 %v4688
        %v5012 = vunpack.c.h.b16 %v4688
        %v5013 = vunpack.c.l.b16 %v4689
        %v5014 = vunpack.c.l.b16 %v4690
        %v5015 = vunpack.c.h.b16 %v4690
        %v5016 = vunpack.c.l.b16 %v4691
        %v5017 = vunpack.c.h.b16 %v4691
        %v5018 = vunpack.c.l.b16 %v4692
        %v5019 = vunpack.c.h.b16 %v4692
        %v5020 = vunpack.c.l.b16 %v4693
        %v5021 = vunpack.c.h.b16 %v4693
        %v5022 = vunpack.c.l.b16 %v4694
        %v5023 = vunpack.c.l.b16 %v4695
        %v5024 = vunpack.c.h.b16 %v4695
        %v5025 = vunpack.c.l.b16 %v4696
        %v5026 = vunpack.c.h.b16 %v4696
        %v5027 = vunpack.c.l.b16 %v4697
        %v5028 = vunpack.c.h.b16 %v4697
        %v5029 = vunpack.c.l.b16 %v4698
        %v5030 = vunpack.c.h.b16 %v4698
        %v5031 = vunpack.c.l.b16 %v4699
        %v5032 = vunpack.c.l.b16 %v4700
        %v5033 = vunpack.c.h.b16 %v4700
        %v5034 = vunpack.c.l.b16 %v4701
        %v5035 = vunpack.c.h.b16 %v4701
        %v5036 = vunpack.c.l.b16 %v4702
        %v5037 = vunpack.c.h.b16 %v4702
        %v5038 = vunpack.c.l.b16 %v4703
        %v5039 = vunpack.c.h.b16 %v4703
        %v5040 = vunpack.c.l.b16 %v4704
        %v5041 = vunpack.c.l.b16 %v4705
        %v5042 = vunpack.c.h.b16 %v4705
        %v5043 = vunpack.c.l.b16 %v4706
        %v5044 = vunpack.c.h.b16 %v4706
        %v5045 = vunpack.c.l.b16 %v4707
        %v5046 = vunpack.c.h.b16 %v4707
        %v5047 = vunpack.c.l.b16 %v4708
        %v5048 = vunpack.c.h.b16 %v4708
        %v5049 = vunpack.c.l.b16 %v4709
        %v5050 = vunpack.c.l.b16 %v4710
        %v5051 = vunpack.c.h.b16 %v4710
        %v5052 = vunpack.c.l.b16 %v4711
        %v5053 = vunpack.c.h.b16 %v4711
        %v5054 = vunpack.c.l.b16 %v4712
        %v5055 = vunpack.c.h.b16 %v4712
        %v5056 = vunpack.c.l.b16 %v4713
        %v5057 = vunpack.c.h.b16 %v4713
        %v5058 = vunpack.c.l.b16 %v4714
        %v5059 = vunpack.c.l.b16 %v4715
        %v5060 = vunpack.c.h.b16 %v4715
        %v5061 = vunpack.c.l.b16 %v4716
        %v5062 = vunpack.c.h.b16 %v4716
        %v5063 = vunpack.c.l.b16 %v4717
        %v5064 = vunpack.c.h.b16 %v4717
        %v5065 = vunpack.c.l.b16 %v4718
        %v5066 = vunpack.c.h.b16 %v4718
        %v5067 = vunpack.c.l.b16 %v4719
        %v5068 = vunpack.c.l.b16 %v4720
        %v5069 = vunpack.c.h.b16 %v4720
        %v5070 = vunpack.c.l.b16 %v4721
        %v5071 = vunpack.c.h.b16 %v4721
        %v5072 = vunpack.c.l.b16 %v4722
        %v5073 = vunpack.c.h.b16 %v4722
        %v5074 = vunpack.c.l.b16 %v4723
        %v5075 = vunpack.c.h.b16 %v4723
        %v5076 = vunpack.c.l.b16 %v4724
        %v5077 = vunpack.c.l.b16 %v4725
        %v5078 = vunpack.c.h.b16 %v4725
        %v5079 = vunpack.c.l.b16 %v4726
        %v5080 = vunpack.c.h.b16 %v4726
        %v5081 = vunpack.c.l.b16 %v4727
        %v5082 = vunpack.c.h.b16 %v4727
        %v5083 = vunpack.c.l.b16 %v4728
        %v5084 = vunpack.c.h.b16 %v4728
        %v5085 = vunpack.c.l.b16 %v4729
        %v5086 = vunpack.c.l.b16 %v4730
        %v5087 = vunpack.c.h.b16 %v4730
        %v5088 = vunpack.c.l.b16 %v4731
        %v5089 = vunpack.c.h.b16 %v4731
        %v5090 = vunpack.c.l.b16 %v4732
        %v5091 = vunpack.c.h.b16 %v4732
        %v5092 = vunpack.c.l.b16 %v4733
        %v5093 = vunpack.c.h.b16 %v4733
        %v5094 = vunpack.c.l.b16 %v4734
        %v5095 = vunpack.c.l.b16 %v4735
        %v5096 = vunpack.c.h.b16 %v4735
        %v5097 = vunpack.c.l.b16 %v4736
        %v5098 = vunpack.c.h.b16 %v4736
        %v5099 = vunpack.c.l.b16 %v4737
        %v5100 = vunpack.c.h.b16 %v4737
        %v5101 = vunpack.c.l.b16 %v4738
        %v5102 = vunpack.c.h.b16 %v4738
        %v5103 = vunpack.c.l.b16 %v4739
        %v5104 = vunpack.c.l.b16 %v4740
        %v5105 = vunpack.c.h.b16 %v4740
        %v5106 = vunpack.c.l.b16 %v4741
        %v5107 = vunpack.c.h.b16 %v4741
        %v5108 = vunpack.c.l.b16 %v4742
        %v5109 = vunpack.c.h.b16 %v4742
        %v5110 = vunpack.c.l.b16 %v4743
        %v5111 = vunpack.c.h.b16 %v4743
        %v5112 = vunpack.c.l.b16 %v4744
        %v5113 = vpack.c.b16 %v4978, %v4969
        %v5114 = vpack.c.b16 %v4979, %v4970
        %v5115 = vpack.c.b16 %v4980, %v4971
        %v5116 = vpack.c.b16 %v4981, %v4972
        %v5117 = vpack.c.b16 %v4982, %v4973
        %v5118 = vpack.c.b16 %v4983, %v4974
        %v5119 = vpack.c.b16 %v4984, %v4975
        %v5120 = vpack.c.b16 %v4985, %v4976
        %v5121 = vpack.c.b16 %v4986, %v4977
        %v5122 = vpack.c.b16 %v4996, %v4987
        %v5123 = vpack.c.b16 %v4997, %v4988
        %v5124 = vpack.c.b16 %v4998, %v4989
        %v5125 = vpack.c.b16 %v4999, %v4990
        %v5126 = vpack.c.b16 %v5000, %v4991
        %v5127 = vpack.c.b16 %v5001, %v4992
        %v5128 = vpack.c.b16 %v5002, %v4993
        %v5129 = vpack.c.b16 %v5003, %v4994
        %v5130 = vpack.c.b16 %v5004, %v4995
        %v5131 = vpack.c.b16 %v5014, %v5005
        %v5132 = vpack.c.b16 %v5015, %v5006
        %v5133 = vpack.c.b16 %v5016, %v5007
        %v5134 = vpack.c.b16 %v5017, %v5008
        %v5135 = vpack.c.b16 %v5018, %v5009
        %v5136 = vpack.c.b16 %v5019, %v5010
        %v5137 = vpack.c.b16 %v5020, %v5011
        %v5138 = vpack.c.b16 %v5021, %v5012
        %v5139 = vpack.c.b16 %v5022, %v5013
        %v5140 = vpack.c.b16 %v5032, %v5023
        %v5141 = vpack.c.b16 %v5033, %v5024
        %v5142 = vpack.c.b16 %v5034, %v5025
        %v5143 = vpack.c.b16 %v5035, %v5026
        %v5144 = vpack.c.b16 %v5036, %v5027
        %v5145 = vpack.c.b16 %v5037, %v5028
        %v5146 = vpack.c.b16 %v5038, %v5029
        %v5147 = vpack.c.b16 %v5039, %v5030
        %v5148 = vpack.c.b16 %v5040, %v5031
        %v5149 = vpack.c.b16 %v5050, %v5041
        %v5150 = vpack.c.b16 %v5051, %v5042
        %v5151 = vpack.c.b16 %v5052, %v5043
        %v5152 = vpack.c.b16 %v5053, %v5044
        %v5153 = vpack.c.b16 %v5054, %v5045
        %v5154 = vpack.c.b16 %v5055, %v5046
        %v5155 = vpack.c.b16 %v5056, %v5047
        %v5156 = vpack.c.b16 %v5057, %v5048
        %v5157 = vpack.c.b16 %v5058, %v5049
        %v5158 = vpack.c.b16 %v5068, %v5059
        %v5159 = vpack.c.b16 %v5069, %v5060
        %v5160 = vpack.c.b16 %v5070, %v5061
        %v5161 = vpack.c.b16 %v5071, %v5062
        %v5162 = vpack.c.b16 %v5072, %v5063
        %v5163 = vpack.c.b16 %v5073, %v5064
        %v5164 = vpack.c.b16 %v5074, %v5065
        %v5165 = vpack.c.b16 %v5075, %v5066
        %v5166 = vpack.c.b16 %v5076, %v5067
        %v5167 = vpack.c.b16 %v5086, %v5077
        %v5168 = vpack.c.b16 %v5087, %v5078
        %v5169 = vpack.c.b16 %v5088, %v5079
        %v5170 = vpack.c.b16 %v5089, %v5080
        %v5171 = vpack.c.b16 %v5090, %v5081
        %v5172 = vpack.c.b16 %v5091, %v5082
        %v5173 = vpack.c.b16 %v5092, %v5083
        %v5174 = vpack.c.b16 %v5093, %v5084
        %v5175 = vpack.c.b16 %v5094, %v5085
        %v5176 = vpack.c.b16 %v5104, %v5095
        %v5177 = vpack.c.b16 %v5105, %v5096
        %v5178 = vpack.c.b16 %v5106, %v5097
        %v5179 = vpack.c.b16 %v5107, %v5098
        %v5180 = vpack.c.b16 %v5108, %v5099
        %v5181 = vpack.c.b16 %v5109, %v5100
        %v5182 = vpack.c.b16 %v5110, %v5101
        %v5183 = vpack.c.b16 %v5111, %v5102
        %v5184 = vpack.c.b16 %v5112, %v5103
        %v5401 = vunpack.c.l.b16 %v4745
        %v5402 = vunpack.c.l.b16 %v4746
        %v5403 = vunpack.c.l.b16 %v4747
        %v5404 = vunpack.c.l.b16 %v4748
        %v5405 = vunpack.c.l.b16 %v4749
        %v5406 = vunpack.c.l.b16 %v4750
        %v5407 = vunpack.c.l.b16 %v4751
        %v5408 = vunpack.c.l.b16 %v4752
        %v5409 = vunpack.c.l.b16 %v4753
        %v5410 = vunpack.c.l.b16 %v4754
        %v5411 = vunpack.c.l.b16 %v4755
        %v5412 = vunpack.c.l.b16 %v4756
        %v5413 = vunpack.c.l.b16 %v4757
        %v5414 = vunpack.c.l.b16 %v4758
        %v5415 = vunpack.c.l.b16 %v4759
        %v5416 = vunpack.c.l.b16 %v4760
        %v5417 = vunpack.c.l.b16 %v4761
        %v5418 = vunpack.c.l.b16 %v4762
        %v5419 = vunpack.c.l.b16 %v4763
        %v5420 = vunpack.c.l.b16 %v4764
        %v5421 = vunpack.c.l.b16 %v4765
        %v5422 = vunpack.c.l.b16 %v4766
        %v5423 = vunpack.c.l.b16 %v4767
        %v5424 = vunpack.c.l.b16 %v4768
        %v5425 = vunpack.c.l.b16 %v4769
        %v5426 = vunpack.c.l.b16 %v4770
        %v5427 = vunpack.c.l.b16 %v4771
        %v5428 = vunpack.c.l.b16 %v4772
        %v5429 = vunpack.c.l.b16 %v4773
        %v5430 = vunpack.c.l.b16 %v4774
        %v5431 = vunpack.c.l.b16 %v4775
        %v5432 = vunpack.c.l.b16 %v4776
        %v5433 = vunpack.c.l.b16 %v4777
        %v5434 = vunpack.c.l.b16 %v4778
        %v5435 = vunpack.c.l.b16 %v4779
        %v5436 = vunpack.c.l.b16 %v4780
        %v5437 = vunpack.c.l.b16 %v4781
        %v5438 = vunpack.c.l.b16 %v4782
        %v5439 = vunpack.c.l.b16 %v4783
        %v5440 = vunpack.c.l.b16 %v4784
        %v5441 = vunpack.c.l.b16 %v4785
        %v5442 = vunpack.c.l.b16 %v4786
        %v5443 = vunpack.c.l.b16 %v4787
        %v5444 = vunpack.c.l.b16 %v4788
        %v5445 = vunpack.c.l.b16 %v4789
        %v5446 = vunpack.c.l.b16 %v4790
        %v5447 = vunpack.c.l.b16 %v4791
        %v5448 = vunpack.c.l.b16 %v4792
        %v5449 = vunpack.c.l.b16 %v4793
        %v5450 = vunpack.c.l.b16 %v4794
        %v5451 = vunpack.c.l.b16 %v4795
        %v5452 = vunpack.c.l.b16 %v4796
        %v5453 = vunpack.c.l.b16 %v4797
        %v5454 = vunpack.c.l.b16 %v4798
        %v5455 = vunpack.c.l.b16 %v4799
        %v5456 = vunpack.c.l.b16 %v4800
        %v5457 = vunpack.c.l.b16 %v4801
        %v5458 = vunpack.c.l.b16 %v4802
        %v5459 = vunpack.c.l.b16 %v4803
        %v5460 = vunpack.c.l.b16 %v4804
        %v5461 = vunpack.c.l.b16 %v4805
        %v5462 = vunpack.c.l.b16 %v4806
        %v5463 = vunpack.c.l.b16 %v4807
        %v5464 = vunpack.c.l.b16 %v4808
        %v5465 = vunpack.c.l.b16 %v4809
        %v5466 = vunpack.c.l.b16 %v4810
        %v5467 = vunpack.c.l.b16 %v4811
        %v5468 = vunpack.c.l.b16 %v4812
        %v5469 = vunpack.c.l.b16 %v4813
        %v5470 = vunpack.c.l.b16 %v4814
        %v5471 = vunpack.c.l.b16 %v4815
        %v5472 = vunpack.c.l.b16 %v4816
        %v5473 = vunpack.c.l.b16 %v4817
        %v5474 = vunpack.c.l.b16 %v4818
        %v5475 = vunpack.c.l.b16 %v4819
        %v5476 = vunpack.c.l.b16 %v4820
        %v5477 = vunpack.c.l.b16 %v4821
        %v5478 = vunpack.c.l.b16 %v4822
        %v5479 = vunpack.c.l.b16 %v4823
        %v5480 = vunpack.c.l.b16 %v4824
        %v5481 = vunpack.c.l.b16 %v4825
        %v5482 = vunpack.c.l.b16 %v4826
        %v5483 = vunpack.c.l.b16 %v4827
        %v5484 = vunpack.c.l.b16 %v4828
        %v5485 = vunpack.c.l.b16 %v4829
        %v5486 = vunpack.c.l.b16 %v4830
        %v5487 = vunpack.c.l.b16 %v4831
        %v5488 = vunpack.c.l.b16 %v4832
        %v5489 = vunpack.c.l.b16 %v4833
        %v5490 = vunpack.c.l.b16 %v4834
        %v5491 = vunpack.c.l.b16 %v4835
        %v5492 = vunpack.c.l.b16 %v4836
        %v5493 = vunpack.c.l.b16 %v4837
        %v5494 = vunpack.c.l.b16 %v4838
        %v5495 = vunpack.c.l.b16 %v4839
        %v5496 = vunpack.c.l.b16 %v4840
        %v5497 = vunpack.c.l.b16 %v4841
        %v5498 = vunpack.c.l.b16 %v4842
        %v5499 = vunpack.c.l.b16 %v4843
        %v5500 = vunpack.c.l.b16 %v4844
        %v5501 = vunpack.c.l.b16 %v4845
        %v5502 = vunpack.c.l.b16 %v4846
        %v5503 = vunpack.c.l.b16 %v4847
        %v5504 = vunpack.c.l.b16 %v4848
        %v5505 = vunpack.c.l.b16 %v4849
        %v5506 = vunpack.c.l.b16 %v4850
        %v5507 = vunpack.c.l.b16 %v4851
        %v5508 = vunpack.c.l.b16 %v4852
        %v5509 = vunpack.c.l.b16 %v4853
        %v5510 = vunpack.c.l.b16 %v4854
        %v5511 = vunpack.c.l.b16 %v4855
        %v5512 = vunpack.c.l.b16 %v4856
        %v5513 = vunpack.c.l.b16 %v4857
        %v5514 = vunpack.c.l.b16 %v4858
        %v5515 = vunpack.c.l.b16 %v4859
        %v5516 = vunpack.c.l.b16 %v4860
        %v5517 = vunpack.c.l.b16 %v4861
        %v5518 = vunpack.c.l.b16 %v4862
        %v5519 = vunpack.c.l.b16 %v4863
        %v5520 = vunpack.c.l.b16 %v4864
        %v5521 = vunpack.c.l.b16 %v4865
        %v5522 = vunpack.c.l.b16 %v4866
        %v5523 = vunpack.c.l.b16 %v4867
        %v5524 = vunpack.c.l.b16 %v4868
        %v5525 = vunpack.c.l.b16 %v4869
        %v5526 = vunpack.c.l.b16 %v4870
        %v5527 = vunpack.c.l.b16 %v4871
        %v5528 = vunpack.c.l.b16 %v4872
        %v5529 = vunpack.c.l.b16 %v4873
        %v5530 = vunpack.c.l.b16 %v4874
        %v5531 = vunpack.c.l.b16 %v4875
        %v5532 = vunpack.c.l.b16 %v4876
        %v5533 = vunpack.c.l.b16 %v4877
        %v5534 = vunpack.c.l.b16 %v4878
        %v5535 = vunpack.c.l.b16 %v4879
        %v5536 = vunpack.c.l.b16 %v4880
        %v5537 = vunpack.c.l.b16 %v4881
        %v5538 = vunpack.c.l.b16 %v4882
        %v5539 = vunpack.c.l.b16 %v4883
        %v5540 = vunpack.c.l.b16 %v4884
        %v5541 = vunpack.c.l.b16 %v4885
        %v5542 = vunpack.c.l.b16 %v4886
        %v5543 = vunpack.c.l.b16 %v4887
        %v5544 = vunpack.c.l.b16 %v4888
        %v5545 = vpack.c.b16 %v5402, %v5401
        %v5546 = vpack.c.b16 %v5404, %v5403
        %v5547 = vpack.c.b16 %v5406, %v5405
        %v5548 = vpack.c.b16 %v5408, %v5407
        %v5549 = vpack.c.b16 %v5410, %v5409
        %v5550 = vpack.c.b16 %v5412, %v5411
        %v5551 = vpack.c.b16 %v5414, %v5413
        %v5552 = vpack.c.b16 %v5416, %v5415
        %v5553 = vpack.c.b16 %v5418, %v5417
        %v5554 = vpack.c.b16 %v5420, %v5419
        %v5555 = vpack.c.b16 %v5422, %v5421
        %v5556 = vpack.c.b16 %v5424, %v5423
        %v5557 = vpack.c.b16 %v5426, %v5425
        %v5558 = vpack.c.b16 %v5428, %v5427
        %v5559 = vpack.c.b16 %v5430, %v5429
        %v5560 = vpack.c.b16 %v5432, %v5431
        %v5561 = vpack.c.b16 %v5434, %v5433
        %v5562 = vpack.c.b16 %v5436, %v5435
        %v5563 = vpack.c.b16 %v5438, %v5437
        %v5564 = vpack.c.b16 %v5440, %v5439
        %v5565 = vpack.c.b16 %v5442, %v5441
        %v5566 = vpack.c.b16 %v5444, %v5443
        %v5567 = vpack.c.b16 %v5446, %v5445
        %v5568 = vpack.c.b16 %v5448, %v5447
        %v5569 = vpack.c.b16 %v5450, %v5449
        %v5570 = vpack.c.b16 %v5452, %v5451
        %v5571 = vpack.c.b16 %v5454, %v5453
        %v5572 = vpack.c.b16 %v5456, %v5455
        %v5573 = vpack.c.b16 %v5458, %v5457
        %v5574 = vpack.c.b16 %v5460, %v5459
        %v5575 = vpack.c.b16 %v5462, %v5461
        %v5576 = vpack.c.b16 %v5464, %v5463
        %v5577 = vpack.c.b16 %v5466, %v5465
        %v5578 = vpack.c.b16 %v5468, %v5467
        %v5579 = vpack.c.b16 %v5470, %v5469
        %v5580 = vpack.c.b16 %v5472, %v5471
        %v5581 = vpack.c.b16 %v5474, %v5473
        %v5582 = vpack.c.b16 %v5476, %v5475
        %v5583 = vpack.c.b16 %v5478, %v5477
        %v5584 = vpack.c.b16 %v5480, %v5479
        %v5585 = vpack.c.b16 %v5482, %v5481
        %v5586 = vpack.c.b16 %v5484, %v5483
        %v5587 = vpack.c.b16 %v5486, %v5485
        %v5588 = vpack.c.b16 %v5488, %v5487
        %v5589 = vpack.c.b16 %v5490, %v5489
        %v5590 = vpack.c.b16 %v5492, %v5491
        %v5591 = vpack.c.b16 %v5494, %v5493
        %v5592 = vpack.c.b16 %v5496, %v5495
        %v5593 = vpack.c.b16 %v5498, %v5497
        %v5594 = vpack.c.b16 %v5500, %v5499
        %v5595 = vpack.c.b16 %v5502, %v5501
        %v5596 = vpack.c.b16 %v5504, %v5503
        %v5597 = vpack.c.b16 %v5506, %v5505
        %v5598 = vpack.c.b16 %v5508, %v5507
        %v5599 = vpack.c.b16 %v5510, %v5509
        %v5600 = vpack.c.b16 %v5512, %v5511
        %v5601 = vpack.c.b16 %v5514, %v5513
        %v5602 = vpack.c.b16 %v5516, %v5515
        %v5603 = vpack.c.b16 %v5518, %v5517
        %v5604 = vpack.c.b16 %v5520, %v5519
        %v5605 = vpack.c.b16 %v5522, %v5521
        %v5606 = vpack.c.b16 %v5524, %v5523
        %v5607 = vpack.c.b16 %v5526, %v5525
        %v5608 = vpack.c.b16 %v5528, %v5527
        %v5609 = vpack.c.b16 %v5530, %v5529
        %v5610 = vpack.c.b16 %v5532, %v5531
        %v5611 = vpack.c.b16 %v5534, %v5533
        %v5612 = vpack.c.b16 %v5536, %v5535
        %v5613 = vpack.c.b16 %v5538, %v5537
        %v5614 = vpack.c.b16 %v5540, %v5539
        %v5615 = vpack.c.b16 %v5542, %v5541
        %v5616 = vpack.c.b16 %v5544, %v5543
        %5689 = vmatpush.bf16.msra.mxu0 %v5552
        %5690 = vmatpush.bf16.msra.mxu0 %v5551
        %5691 = vmatpush.bf16.msra.mxu0 %v5550
        %5692 = vmatpush.bf16.msra.mxu0 %v5549
        %5693 = vmatpush.bf16.msra.mxu0 %v5548
        %5694 = vmatpush.bf16.msra.mxu0 %v5547
        %5695 = vmatpush.bf16.msra.mxu0 %v5546
        %5696 = vmatpush.bf16.msra.mxu0 %v5545
        %5697 = vmatmul.bf16.gmra.mxu0 %v5113
        %v5698 = vpop.f32.mrf.mxu0
        %v5699 = vadd.f32 0.0, %v5698
        %v5700 = vpop.f32.mrf.mxu0
        %v5701 = vadd.f32 0.0, %v5700
        %5702 = vmatmul.bf16.gmra.mxu0 %v5122
        %v5703 = vpop.f32.mrf.mxu0
        %v5704 = vadd.f32 0.0, %v5703
        %v5705 = vpop.f32.mrf.mxu0
        %v5706 = vadd.f32 0.0, %v5705
        %5707 = vmatmul.bf16.gmra.mxu0 %v5131
        %v5708 = vpop.f32.mrf.mxu0
        %v5709 = vadd.f32 0.0, %v5708
        %v5710 = vpop.f32.mrf.mxu0
        %v5711 = vadd.f32 0.0, %v5710
        %5712 = vmatmul.bf16.gmra.mxu0 %v5140
        %v5713 = vpop.f32.mrf.mxu0
        %v5714 = vadd.f32 0.0, %v5713
        %v5715 = vpop.f32.mrf.mxu0
        %v5716 = vadd.f32 0.0, %v5715
        %5717 = vmatmul.bf16.gmra.mxu0 %v5149
        %v5718 = vpop.f32.mrf.mxu0
        %v5719 = vadd.f32 0.0, %v5718
        %v5720 = vpop.f32.mrf.mxu0
        %v5721 = vadd.f32 0.0, %v5720
        %5722 = vmatmul.bf16.gmra.mxu0 %v5158
        %v5723 = vpop.f32.mrf.mxu0
        %v5724 = vadd.f32 0.0, %v5723
        %v5725 = vpop.f32.mrf.mxu0
        %v5726 = vadd.f32 0.0, %v5725
        %5727 = vmatmul.bf16.gmra.mxu0 %v5167
        %v5728 = vpop.f32.mrf.mxu0
        %v5729 = vadd.f32 0.0, %v5728
        %v5730 = vpop.f32.mrf.mxu0
        %v5731 = vadd.f32 0.0, %v5730
        %5732 = vmatmul.bf16.gmra.mxu0 %v5176
        %v5733 = vpop.f32.mrf.mxu0
        %v5734 = vadd.f32 0.0, %v5733
        %v5735 = vpop.f32.mrf.mxu0
        %v5736 = vadd.f32 0.0, %v5735
        %5737 = vdwg.mxu0
        %5738 = vmatpush.bf16.msra.mxu0 %v5560
        %5739 = vmatpush.bf16.msra.mxu0 %v5559
        %5740 = vmatpush.bf16.msra.mxu0 %v5558
        %5741 = vmatpush.bf16.msra.mxu0 %v5557
        %5742 = vmatpush.bf16.msra.mxu0 %v5556
        %5743 = vmatpush.bf16.msra.mxu0 %v5555
        %5744 = vmatpush.bf16.msra.mxu0 %v5554
        %5745 = vmatpush.bf16.msra.mxu0 %v5553
        %5746 = vmatmul.bf16.gmra.mxu0 %v5114
        %v5747 = vpop.f32.mrf.mxu0
        %v5748 = vadd.f32 %v5699, %v5747
        %v5749 = vpop.f32.mrf.mxu0
        %v5750 = vadd.f32 %v5701, %v5749
        %5751 = vmatmul.bf16.gmra.mxu0 %v5123
        %v5752 = vpop.f32.mrf.mxu0
        %v5753 = vadd.f32 %v5704, %v5752
        %v5754 = vpop.f32.mrf.mxu0
        %v5755 = vadd.f32 %v5706, %v5754
        %5756 = vmatmul.bf16.gmra.mxu0 %v5132
        %v5757 = vpop.f32.mrf.mxu0
        %v5758 = vadd.f32 %v5709, %v5757
        %v5759 = vpop.f32.mrf.mxu0
        %v5760 = vadd.f32 %v5711, %v5759
        %5761 = vmatmul.bf16.gmra.mxu0 %v5141
        %v5762 = vpop.f32.mrf.mxu0
        %v5763 = vadd.f32 %v5714, %v5762
        %v5764 = vpop.f32.mrf.mxu0
        %v5765 = vadd.f32 %v5716, %v5764
        %5766 = vmatmul.bf16.gmra.mxu0 %v5150
        %v5767 = vpop.f32.mrf.mxu0
        %v5768 = vadd.f32 %v5719, %v5767
        %v5769 = vpop.f32.mrf.mxu0
        %v5770 = vadd.f32 %v5721, %v5769
        %5771 = vmatmul.bf16.gmra.mxu0 %v5159
        %v5772 = vpop.f32.mrf.mxu0
        %v5773 = vadd.f32 %v5724, %v5772
        %v5774 = vpop.f32.mrf.mxu0
        %v5775 = vadd.f32 %v5726, %v5774
        %5776 = vmatmul.bf16.gmra.mxu0 %v5168
        %v5777 = vpop.f32.mrf.mxu0
        %v5778 = vadd.f32 %v5729, %v5777
        %v5779 = vpop.f32.mrf.mxu0
        %v5780 = vadd.f32 %v5731, %v5779
        %5781 = vmatmul.bf16.gmra.mxu0 %v5177
        %v5782 = vpop.f32.mrf.mxu0
        %v5783 = vadd.f32 %v5734, %v5782
        %v5784 = vpop.f32.mrf.mxu0
        %v5785 = vadd.f32 %v5736, %v5784
        %5786 = vdwg.mxu0
        %5787 = vmatpush.bf16.msra.mxu0 %v5568
        %5788 = vmatpush.bf16.msra.mxu0 %v5567
        %5789 = vmatpush.bf16.msra.mxu0 %v5566
        %5790 = vmatpush.bf16.msra.mxu0 %v5565
        %5791 = vmatpush.bf16.msra.mxu0 %v5564
        %5792 = vmatpush.bf16.msra.mxu0 %v5563
        %5793 = vmatpush.bf16.msra.mxu0 %v5562
        %5794 = vmatpush.bf16.msra.mxu0 %v5561
        %5795 = vmatmul.bf16.gmra.mxu0 %v5115
        %v5796 = vpop.f32.mrf.mxu0
        %v5797 = vadd.f32 %v5748, %v5796
        %v5798 = vpop.f32.mrf.mxu0
        %v5799 = vadd.f32 %v5750, %v5798
        %5800 = vmatmul.bf16.gmra.mxu0 %v5124
        %v5801 = vpop.f32.mrf.mxu0
        %v5802 = vadd.f32 %v5753, %v5801
        %v5803 = vpop.f32.mrf.mxu0
        %v5804 = vadd.f32 %v5755, %v5803
        %5805 = vmatmul.bf16.gmra.mxu0 %v5133
        %v5806 = vpop.f32.mrf.mxu0
        %v5807 = vadd.f32 %v5758, %v5806
        %v5808 = vpop.f32.mrf.mxu0
        %v5809 = vadd.f32 %v5760, %v5808
        %5810 = vmatmul.bf16.gmra.mxu0 %v5142
        %v5811 = vpop.f32.mrf.mxu0
        %v5812 = vadd.f32 %v5763, %v5811
        %v5813 = vpop.f32.mrf.mxu0
        %v5814 = vadd.f32 %v5765, %v5813
        %5815 = vmatmul.bf16.gmra.mxu0 %v5151
        %v5816 = vpop.f32.mrf.mxu0
        %v5817 = vadd.f32 %v5768, %v5816
        %v5818 = vpop.f32.mrf.mxu0
        %v5819 = vadd.f32 %v5770, %v5818
        %5820 = vmatmul.bf16.gmra.mxu0 %v5160
        %v5821 = vpop.f32.mrf.mxu0
        %v5822 = vadd.f32 %v5773, %v5821
        %v5823 = vpop.f32.mrf.mxu0
        %v5824 = vadd.f32 %v5775, %v5823
        %5825 = vmatmul.bf16.gmra.mxu0 %v5169
        %v5826 = vpop.f32.mrf.mxu0
        %v5827 = vadd.f32 %v5778, %v5826
        %v5828 = vpop.f32.mrf.mxu0
        %v5829 = vadd.f32 %v5780, %v5828
        %5830 = vmatmul.bf16.gmra.mxu0 %v5178
        %v5831 = vpop.f32.mrf.mxu0
        %v5832 = vadd.f32 %v5783, %v5831
        %v5833 = vpop.f32.mrf.mxu0
        %v5834 = vadd.f32 %v5785, %v5833
        %5835 = vdwg.mxu0
        %5836 = vmatpush.bf16.msra.mxu0 %v5576
        %5837 = vmatpush.bf16.msra.mxu0 %v5575
        %5838 = vmatpush.bf16.msra.mxu0 %v5574
        %5839 = vmatpush.bf16.msra.mxu0 %v5573
        %5840 = vmatpush.bf16.msra.mxu0 %v5572
        %5841 = vmatpush.bf16.msra.mxu0 %v5571
        %5842 = vmatpush.bf16.msra.mxu0 %v5570
        %5843 = vmatpush.bf16.msra.mxu0 %v5569
        %5844 = vmatmul.bf16.gmra.mxu0 %v5116
        %v5845 = vpop.f32.mrf.mxu0
        %v5846 = vadd.f32 %v5797, %v5845
        %v5847 = vpop.f32.mrf.mxu0
        %v5848 = vadd.f32 %v5799, %v5847
        %5849 = vmatmul.bf16.gmra.mxu0 %v5125
        %v5850 = vpop.f32.mrf.mxu0
        %v5851 = vadd.f32 %v5802, %v5850
        %v5852 = vpop.f32.mrf.mxu0
        %v5853 = vadd.f32 %v5804, %v5852
        %5854 = vmatmul.bf16.gmra.mxu0 %v5134
        %v5855 = vpop.f32.mrf.mxu0
        %v5856 = vadd.f32 %v5807, %v5855
        %v5857 = vpop.f32.mrf.mxu0
        %v5858 = vadd.f32 %v5809, %v5857
        %5859 = vmatmul.bf16.gmra.mxu0 %v5143
        %v5860 = vpop.f32.mrf.mxu0
        %v5861 = vadd.f32 %v5812, %v5860
        %v5862 = vpop.f32.mrf.mxu0
        %v5863 = vadd.f32 %v5814, %v5862
        %5864 = vmatmul.bf16.gmra.mxu0 %v5152
        %v5865 = vpop.f32.mrf.mxu0
        %v5866 = vadd.f32 %v5817, %v5865
        %v5867 = vpop.f32.mrf.mxu0
        %v5868 = vadd.f32 %v5819, %v5867
        %5869 = vmatmul.bf16.gmra.mxu0 %v5161
        %v5870 = vpop.f32.mrf.mxu0
        %v5871 = vadd.f32 %v5822, %v5870
        %v5872 = vpop.f32.mrf.mxu0
        %v5873 = vadd.f32 %v5824, %v5872
        %5874 = vmatmul.bf16.gmra.mxu0 %v5170
        %v5875 = vpop.f32.mrf.mxu0
        %v5876 = vadd.f32 %v5827, %v5875
        %v5877 = vpop.f32.mrf.mxu0
        %v5878 = vadd.f32 %v5829, %v5877
        %5879 = vmatmul.bf16.gmra.mxu0 %v5179
        %v5880 = vpop.f32.mrf.mxu0
        %v5881 = vadd.f32 %v5832, %v5880
        %v5882 = vpop.f32.mrf.mxu0
        %v5883 = vadd.f32 %v5834, %v5882
        %5884 = vdwg.mxu0
        %5885 = vmatpush.bf16.msra.mxu0 %v5584
        %5886 = vmatpush.bf16.msra.mxu0 %v5583
        %5887 = vmatpush.bf16.msra.mxu0 %v5582
        %5888 = vmatpush.bf16.msra.mxu0 %v5581
        %5889 = vmatpush.bf16.msra.mxu0 %v5580
        %5890 = vmatpush.bf16.msra.mxu0 %v5579
        %5891 = vmatpush.bf16.msra.mxu0 %v5578
        %5892 = vmatpush.bf16.msra.mxu0 %v5577
        %5893 = vmatmul.bf16.gmra.mxu0 %v5117
        %v5894 = vpop.f32.mrf.mxu0
        %v5895 = vadd.f32 %v5846, %v5894
        %v5896 = vpop.f32.mrf.mxu0
        %v5897 = vadd.f32 %v5848, %v5896
        %5898 = vmatmul.bf16.gmra.mxu0 %v5126
        %v5899 = vpop.f32.mrf.mxu0
        %v5900 = vadd.f32 %v5851, %v5899
        %v5901 = vpop.f32.mrf.mxu0
        %v5902 = vadd.f32 %v5853, %v5901
        %5903 = vmatmul.bf16.gmra.mxu0 %v5135
        %v5904 = vpop.f32.mrf.mxu0
        %v5905 = vadd.f32 %v5856, %v5904
        %v5906 = vpop.f32.mrf.mxu0
        %v5907 = vadd.f32 %v5858, %v5906
        %5908 = vmatmul.bf16.gmra.mxu0 %v5144
        %v5909 = vpop.f32.mrf.mxu0
        %v5910 = vadd.f32 %v5861, %v5909
        %v5911 = vpop.f32.mrf.mxu0
        %v5912 = vadd.f32 %v5863, %v5911
        %5913 = vmatmul.bf16.gmra.mxu0 %v5153
        %v5914 = vpop.f32.mrf.mxu0
        %v5915 = vadd.f32 %v5866, %v5914
        %v5916 = vpop.f32.mrf.mxu0
        %v5917 = vadd.f32 %v5868, %v5916
        %5918 = vmatmul.bf16.gmra.mxu0 %v5162
        %v5919 = vpop.f32.mrf.mxu0
        %v5920 = vadd.f32 %v5871, %v5919
        %v5921 = vpop.f32.mrf.mxu0
        %v5922 = vadd.f32 %v5873, %v5921
        %5923 = vmatmul.bf16.gmra.mxu0 %v5171
        %v5924 = vpop.f32.mrf.mxu0
        %v5925 = vadd.f32 %v5876, %v5924
        %v5926 = vpop.f32.mrf.mxu0
        %v5927 = vadd.f32 %v5878, %v5926
        %5928 = vmatmul.bf16.gmra.mxu0 %v5180
        %v5929 = vpop.f32.mrf.mxu0
        %v5930 = vadd.f32 %v5881, %v5929
        %v5931 = vpop.f32.mrf.mxu0
        %v5932 = vadd.f32 %v5883, %v5931
        %5933 = vdwg.mxu0
        %5934 = vmatpush.bf16.msra.mxu0 %v5592
        %5935 = vmatpush.bf16.msra.mxu0 %v5591
        %5936 = vmatpush.bf16.msra.mxu0 %v5590
        %5937 = vmatpush.bf16.msra.mxu0 %v5589
        %5938 = vmatpush.bf16.msra.mxu0 %v5588
        %5939 = vmatpush.bf16.msra.mxu0 %v5587
        %5940 = vmatpush.bf16.msra.mxu0 %v5586
        %5941 = vmatpush.bf16.msra.mxu0 %v5585
        %5942 = vmatmul.bf16.gmra.mxu0 %v5118
        %v5943 = vpop.f32.mrf.mxu0
        %v5944 = vadd.f32 %v5895, %v5943
        %v5945 = vpop.f32.mrf.mxu0
        %v5946 = vadd.f32 %v5897, %v5945
        %5947 = vmatmul.bf16.gmra.mxu0 %v5127
        %v5948 = vpop.f32.mrf.mxu0
        %v5949 = vadd.f32 %v5900, %v5948
        %v5950 = vpop.f32.mrf.mxu0
        %v5951 = vadd.f32 %v5902, %v5950
        %5952 = vmatmul.bf16.gmra.mxu0 %v5136
        %v5953 = vpop.f32.mrf.mxu0
        %v5954 = vadd.f32 %v5905, %v5953
        %v5955 = vpop.f32.mrf.mxu0
        %v5956 = vadd.f32 %v5907, %v5955
        %5957 = vmatmul.bf16.gmra.mxu0 %v5145
        %v5958 = vpop.f32.mrf.mxu0
        %v5959 = vadd.f32 %v5910, %v5958
        %v5960 = vpop.f32.mrf.mxu0
        %v5961 = vadd.f32 %v5912, %v5960
        %5962 = vmatmul.bf16.gmra.mxu0 %v5154
        %v5963 = vpop.f32.mrf.mxu0
        %v5964 = vadd.f32 %v5915, %v5963
        %v5965 = vpop.f32.mrf.mxu0
        %v5966 = vadd.f32 %v5917, %v5965
        %5967 = vmatmul.bf16.gmra.mxu0 %v5163
        %v5968 = vpop.f32.mrf.mxu0
        %v5969 = vadd.f32 %v5920, %v5968
        %v5970 = vpop.f32.mrf.mxu0
        %v5971 = vadd.f32 %v5922, %v5970
        %5972 = vmatmul.bf16.gmra.mxu0 %v5172
        %v5973 = vpop.f32.mrf.mxu0
        %v5974 = vadd.f32 %v5925, %v5973
        %v5975 = vpop.f32.mrf.mxu0
        %v5976 = vadd.f32 %v5927, %v5975
        %5977 = vmatmul.bf16.gmra.mxu0 %v5181
        %v5978 = vpop.f32.mrf.mxu0
        %v5979 = vadd.f32 %v5930, %v5978
        %v5980 = vpop.f32.mrf.mxu0
        %v5981 = vadd.f32 %v5932, %v5980
        %5982 = vdwg.mxu0
        %5983 = vmatpush.bf16.msra.mxu0 %v5600
        %5984 = vmatpush.bf16.msra.mxu0 %v5599
        %5985 = vmatpush.bf16.msra.mxu0 %v5598
        %5986 = vmatpush.bf16.msra.mxu0 %v5597
        %5987 = vmatpush.bf16.msra.mxu0 %v5596
        %5988 = vmatpush.bf16.msra.mxu0 %v5595
        %5989 = vmatpush.bf16.msra.mxu0 %v5594
        %5990 = vmatpush.bf16.msra.mxu0 %v5593
        %5991 = vmatmul.bf16.gmra.mxu0 %v5119
        %v5992 = vpop.f32.mrf.mxu0
        %v5993 = vadd.f32 %v5944, %v5992
        %v5994 = vpop.f32.mrf.mxu0
        %v5995 = vadd.f32 %v5946, %v5994
        %5996 = vmatmul.bf16.gmra.mxu0 %v5128
        %v5997 = vpop.f32.mrf.mxu0
        %v5998 = vadd.f32 %v5949, %v5997
        %v5999 = vpop.f32.mrf.mxu0
        %v6000 = vadd.f32 %v5951, %v5999
        %6001 = vmatmul.bf16.gmra.mxu0 %v5137
        %v6002 = vpop.f32.mrf.mxu0
        %v6003 = vadd.f32 %v5954, %v6002
        %v6004 = vpop.f32.mrf.mxu0
        %v6005 = vadd.f32 %v5956, %v6004
        %6006 = vmatmul.bf16.gmra.mxu0 %v5146
        %v6007 = vpop.f32.mrf.mxu0
        %v6008 = vadd.f32 %v5959, %v6007
        %v6009 = vpop.f32.mrf.mxu0
        %v6010 = vadd.f32 %v5961, %v6009
        %6011 = vmatmul.bf16.gmra.mxu0 %v5155
        %v6012 = vpop.f32.mrf.mxu0
        %v6013 = vadd.f32 %v5964, %v6012
        %v6014 = vpop.f32.mrf.mxu0
        %v6015 = vadd.f32 %v5966, %v6014
        %6016 = vmatmul.bf16.gmra.mxu0 %v5164
        %v6017 = vpop.f32.mrf.mxu0
        %v6018 = vadd.f32 %v5969, %v6017
        %v6019 = vpop.f32.mrf.mxu0
        %v6020 = vadd.f32 %v5971, %v6019
        %6021 = vmatmul.bf16.gmra.mxu0 %v5173
        %v6022 = vpop.f32.mrf.mxu0
        %v6023 = vadd.f32 %v5974, %v6022
        %v6024 = vpop.f32.mrf.mxu0
        %v6025 = vadd.f32 %v5976, %v6024
        %6026 = vmatmul.bf16.gmra.mxu0 %v5182
        %v6027 = vpop.f32.mrf.mxu0
        %v6028 = vadd.f32 %v5979, %v6027
        %v6029 = vpop.f32.mrf.mxu0
        %v6030 = vadd.f32 %v5981, %v6029
        %6031 = vdwg.mxu0
        %6032 = vmatpush.bf16.msra.mxu0 %v5608
        %6033 = vmatpush.bf16.msra.mxu0 %v5607
        %6034 = vmatpush.bf16.msra.mxu0 %v5606
        %6035 = vmatpush.bf16.msra.mxu0 %v5605
        %6036 = vmatpush.bf16.msra.mxu0 %v5604
        %6037 = vmatpush.bf16.msra.mxu0 %v5603
        %6038 = vmatpush.bf16.msra.mxu0 %v5602
        %6039 = vmatpush.bf16.msra.mxu0 %v5601
        %6040 = vmatmul.bf16.gmra.mxu0 %v5120
        %v6041 = vpop.f32.mrf.mxu0
        %v6042 = vadd.f32 %v5993, %v6041
        %v6043 = vpop.f32.mrf.mxu0
        %v6044 = vadd.f32 %v5995, %v6043
        %6045 = vmatmul.bf16.gmra.mxu0 %v5129
        %v6046 = vpop.f32.mrf.mxu0
        %v6047 = vadd.f32 %v5998, %v6046
        %v6048 = vpop.f32.mrf.mxu0
        %v6049 = vadd.f32 %v6000, %v6048
        %6050 = vmatmul.bf16.gmra.mxu0 %v5138
        %v6051 = vpop.f32.mrf.mxu0
        %v6052 = vadd.f32 %v6003, %v6051
        %v6053 = vpop.f32.mrf.mxu0
        %v6054 = vadd.f32 %v6005, %v6053
        %6055 = vmatmul.bf16.gmra.mxu0 %v5147
        %v6056 = vpop.f32.mrf.mxu0
        %v6057 = vadd.f32 %v6008, %v6056
        %v6058 = vpop.f32.mrf.mxu0
        %v6059 = vadd.f32 %v6010, %v6058
        %6060 = vmatmul.bf16.gmra.mxu0 %v5156
        %v6061 = vpop.f32.mrf.mxu0
        %v6062 = vadd.f32 %v6013, %v6061
        %v6063 = vpop.f32.mrf.mxu0
        %v6064 = vadd.f32 %v6015, %v6063
        %6065 = vmatmul.bf16.gmra.mxu0 %v5165
        %v6066 = vpop.f32.mrf.mxu0
        %v6067 = vadd.f32 %v6018, %v6066
        %v6068 = vpop.f32.mrf.mxu0
        %v6069 = vadd.f32 %v6020, %v6068
        %6070 = vmatmul.bf16.gmra.mxu0 %v5174
        %v6071 = vpop.f32.mrf.mxu0
        %v6072 = vadd.f32 %v6023, %v6071
        %v6073 = vpop.f32.mrf.mxu0
        %v6074 = vadd.f32 %v6025, %v6073
        %6075 = vmatmul.bf16.gmra.mxu0 %v5183
        %v6076 = vpop.f32.mrf.mxu0
        %v6077 = vadd.f32 %v6028, %v6076
        %v6078 = vpop.f32.mrf.mxu0
        %v6079 = vadd.f32 %v6030, %v6078
        %6080 = vdwg.mxu0
        %6081 = vmatpush.bf16.msra.mxu0 %v5616
        %6082 = vmatpush.bf16.msra.mxu0 %v5615
        %6083 = vmatpush.bf16.msra.mxu0 %v5614
        %6084 = vmatpush.bf16.msra.mxu0 %v5613
        %6085 = vmatpush.bf16.msra.mxu0 %v5612
        %6086 = vmatpush.bf16.msra.mxu0 %v5611
        %6087 = vmatpush.bf16.msra.mxu0 %v5610
        %6088 = vmatpush.bf16.msra.mxu0 %v5609
        %6089 = vmatmul.bf16.gmra.mxu0 %v5121
        %v6090 = vpop.f32.mrf.mxu0
        %v6091 = vadd.f32 %v6042, %v6090
        %v6092 = vpop.f32.mrf.mxu0
        %v6093 = vadd.f32 %v6044, %v6092
        %6094 = vmatmul.bf16.gmra.mxu0 %v5130
        %v6095 = vpop.f32.mrf.mxu0
        %v6096 = vadd.f32 %v6047, %v6095
        %v6097 = vpop.f32.mrf.mxu0
        %v6098 = vadd.f32 %v6049, %v6097
        %6099 = vmatmul.bf16.gmra.mxu0 %v5139
        %v6100 = vpop.f32.mrf.mxu0
        %v6101 = vadd.f32 %v6052, %v6100
        %v6102 = vpop.f32.mrf.mxu0
        %v6103 = vadd.f32 %v6054, %v6102
        %6104 = vmatmul.bf16.gmra.mxu0 %v5148
        %v6105 = vpop.f32.mrf.mxu0
        %v6106 = vadd.f32 %v6057, %v6105
        %v6107 = vpop.f32.mrf.mxu0
        %v6108 = vadd.f32 %v6059, %v6107
        %6109 = vmatmul.bf16.gmra.mxu0 %v5157
        %v6110 = vpop.f32.mrf.mxu0
        %v6111 = vadd.f32 %v6062, %v6110
        %v6112 = vpop.f32.mrf.mxu0
        %v6113 = vadd.f32 %v6064, %v6112
        %6114 = vmatmul.bf16.gmra.mxu0 %v5166
        %v6115 = vpop.f32.mrf.mxu0
        %v6116 = vadd.f32 %v6067, %v6115
        %v6117 = vpop.f32.mrf.mxu0
        %v6118 = vadd.f32 %v6069, %v6117
        %6119 = vmatmul.bf16.gmra.mxu0 %v5175
        %v6120 = vpop.f32.mrf.mxu0
        %v6121 = vadd.f32 %v6072, %v6120
        %v6122 = vpop.f32.mrf.mxu0
        %v6123 = vadd.f32 %v6074, %v6122
        %6124 = vmatmul.bf16.gmra.mxu0 %v5184
        %v6125 = vpop.f32.mrf.mxu0
        %v6126 = vadd.f32 %v6077, %v6125
        %v6127 = vpop.f32.mrf.mxu0
        %v6128 = vadd.f32 %v6079, %v6127
        %6129 = vdwg.mxu0
        %v6130 = vld [vmem:[%s5] sm:$0x1]
        %v6131 = vld [vmem:[%s6] sm:$0x1]
        %v6132 = vadd.f32 %v6091, %v6093
        %v6133 = vadd.f32 %v6132, %v6096
        %v6134 = vadd.f32 %v6133, %v6098
        %v6135 = vadd.f32 %v6134, %v6101
        %v6136 = vadd.f32 %v6135, %v6103
        %v6137 = vadd.f32 %v6136, %v6106
        %v6138 = vadd.f32 %v6137, %v6108
        %v6139 = vrot.slane %v6138, 4
        %v6140 = vadd.f32 %v6138, %v6139
        %v6141 = vrot.slane %v6140, 2
        %v6142 = vadd.f32 %v6140, %v6141
        %v6143 = vrot.slane %v6142, 1
        %v6144 = vadd.f32 %v6142, %v6143
        %v6145 = vadd.f32 %v6111, %v6113
        %v6146 = vadd.f32 %v6145, %v6116
        %v6147 = vadd.f32 %v6146, %v6118
        %v6148 = vadd.f32 %v6147, %v6121
        %v6149 = vadd.f32 %v6148, %v6123
        %v6150 = vadd.f32 %v6149, %v6126
        %v6151 = vadd.f32 %v6150, %v6128
        %v6152 = vrot.slane %v6151, 4
        %v6153 = vadd.f32 %v6151, %v6152
        %v6154 = vrot.slane %v6153, 2
        %v6155 = vadd.f32 %v6153, %v6154
        %v6156 = vrot.slane %v6155, 1
        %v6157 = vadd.f32 %v6155, %v6156
        %v6158 = vld [vmem:[%s7] sm:$0xff]
        %v6159 = vld [vmem:[%s7 + $0x8] sm:$0xff]
        %v6160 = vld [vmem:[%s7 + $0x10] sm:$0xff]
        %v6161 = vld [vmem:[%s7 + $0x18] sm:$0xff]
        %v6162 = vld [vmem:[%s7 + $0x20] sm:$0xff]
        %v6163 = vld [vmem:[%s7 + $0x28] sm:$0xff]
        %v6164 = vld [vmem:[%s7 + $0x30] sm:$0xff]
        %v6165 = vld [vmem:[%s7 + $0x38] sm:$0xff]
        %v6166 = vld [vmem:[%s7 + $0x40] sm:$0xff]
        %v6167 = vld [vmem:[%s7 + $0x48] sm:$0xff]
        %v6168 = vld [vmem:[%s7 + $0x50] sm:$0xff]
        %v6169 = vld [vmem:[%s7 + $0x58] sm:$0xff]
        %v6170 = vld [vmem:[%s7 + $0x60] sm:$0xff]
        %v6171 = vld [vmem:[%s7 + $0x68] sm:$0xff]
        %v6172 = vld [vmem:[%s7 + $0x70] sm:$0xff]
        %v6173 = vld [vmem:[%s7 + $0x78] sm:$0xff]
        %v6176 = vsel %vm2319, %v6157, %v6144
        %6178 = vmatpush.msra.mxu0 %v6173
        %6179 = vmatpush.msra.mxu0 %v6172
        %6180 = vmatpush.msra.mxu0 %v6171
        %6181 = vmatpush.msra.mxu0 %v6170
        %6182 = vmatpush.msra.mxu0 %v6169
        %6183 = vmatpush.msra.mxu0 %v6168
        %6184 = vmatpush.msra.mxu0 %v6167
        %6185 = vmatpush.msra.mxu0 %v6166
        %6186 = vmatpush.msra.mxu0 %v6165
        %6187 = vmatpush.msra.mxu0 %v6164
        %6188 = vmatpush.msra.mxu0 %v6163
        %6189 = vmatpush.msra.mxu0 %v6162
        %6190 = vmatpush.msra.mxu0 %v6161
        %6191 = vmatpush.msra.mxu0 %v6160
        %6192 = vmatpush.msra.mxu0 %v6159
        %6193 = vmatpush.msra.mxu0 %v6158
        %6194 = vmatmul.f32.gmra.mxu0 %v6176
        %v6195 = vpop.f32.mrf.mxu0
        %v6196 = vadd.f32 0.0, %v6195
        %6197 = vdwg.mxu0
        %v6198 = vmul.f32 %v6196, 0.00390625
        %v6200 = vrot.slane %v6198, 1
        %v6201 = vperm.slane %v6198, 0
        %v6202 = vperm.slane %v6200, 0
        %v6205 = vsub.f32 %v6091, %v6201
        %v6206 = vsub.f32 %v6093, %v6201
        %v6207 = vsub.f32 %v6096, %v6201
        %v6208 = vsub.f32 %v6098, %v6201
        %v6209 = vsub.f32 %v6101, %v6201
        %v6210 = vsub.f32 %v6103, %v6201
        %v6211 = vsub.f32 %v6106, %v6201
        %v6212 = vsub.f32 %v6108, %v6201
        %v6213 = vsub.f32 %v6111, %v6202
        %v6214 = vsub.f32 %v6113, %v6202
        %v6215 = vsub.f32 %v6116, %v6202
        %v6216 = vsub.f32 %v6118, %v6202
        %v6217 = vsub.f32 %v6121, %v6202
        %v6218 = vsub.f32 %v6123, %v6202
        %v6219 = vsub.f32 %v6126, %v6202
        %v6220 = vsub.f32 %v6128, %v6202
        %v6221 = vmul.f32 %v6205, %v6205
        %v6222 = vmul.f32 %v6206, %v6206
        %v6223 = vmul.f32 %v6207, %v6207
        %v6224 = vmul.f32 %v6208, %v6208
        %v6225 = vmul.f32 %v6209, %v6209
        %v6226 = vmul.f32 %v6210, %v6210
        %v6227 = vmul.f32 %v6211, %v6211
        %v6228 = vmul.f32 %v6212, %v6212
        %v6229 = vmul.f32 %v6213, %v6213
        %v6230 = vmul.f32 %v6214, %v6214
        %v6231 = vmul.f32 %v6215, %v6215
        %v6232 = vmul.f32 %v6216, %v6216
        %v6233 = vmul.f32 %v6217, %v6217
        %v6234 = vmul.f32 %v6218, %v6218
        %v6235 = vmul.f32 %v6219, %v6219
        %v6236 = vmul.f32 %v6220, %v6220
        %v6237 = vadd.f32 %v6221, %v6222
        %v6238 = vadd.f32 %v6237, %v6223
        %v6239 = vadd.f32 %v6238, %v6224
        %v6240 = vadd.f32 %v6239, %v6225
        %v6241 = vadd.f32 %v6240, %v6226
        %v6242 = vadd.f32 %v6241, %v6227
        %v6243 = vadd.f32 %v6242, %v6228
        %v6244 = vrot.slane %v6243, 4
        %v6245 = vadd.f32 %v6243, %v6244
        %v6246 = vrot.slane %v6245, 2
        %v6247 = vadd.f32 %v6245, %v6246
        %v6248 = vrot.slane %v6247, 1
        %v6249 = vadd.f32 %v6247, %v6248
        %v6250 = vadd.f32 %v6229, %v6230
        %v6251 = vadd.f32 %v6250, %v6231
        %v6252 = vadd.f32 %v6251, %v6232
        %v6253 = vadd.f32 %v6252, %v6233
        %v6254 = vadd.f32 %v6253, %v6234
        %v6255 = vadd.f32 %v6254, %v6235
        %v6256 = vadd.f32 %v6255, %v6236
        %v6257 = vrot.slane %v6256, 4
        %v6258 = vadd.f32 %v6256, %v6257
        %v6259 = vrot.slane %v6258, 2
        %v6260 = vadd.f32 %v6258, %v6259
        %v6261 = vrot.slane %v6260, 1
        %v6262 = vadd.f32 %v6260, %v6261
        %v6265 = vsel %vm2319, %v6262, %v6249
        %6267 = vmatpush.msra.mxu0 %v6173
        %6268 = vmatpush.msra.mxu0 %v6172
        %6269 = vmatpush.msra.mxu0 %v6171
        %6270 = vmatpush.msra.mxu0 %v6170
        %6271 = vmatpush.msra.mxu0 %v6169
        %6272 = vmatpush.msra.mxu0 %v6168
        %6273 = vmatpush.msra.mxu0 %v6167
        %6274 = vmatpush.msra.mxu0 %v6166
        %6275 = vmatpush.msra.mxu0 %v6165
        %6276 = vmatpush.msra.mxu0 %v6164
        %6277 = vmatpush.msra.mxu0 %v6163
        %6278 = vmatpush.msra.mxu0 %v6162
        %6279 = vmatpush.msra.mxu0 %v6161
        %6280 = vmatpush.msra.mxu0 %v6160
        %6281 = vmatpush.msra.mxu0 %v6159
        %6282 = vmatpush.msra.mxu0 %v6158
        %6283 = vmatmul.f32.gmra.mxu0 %v6265
        %v6284 = vpop.f32.mrf.mxu0
        %v6285 = vadd.f32 0.0, %v6284
        %6286 = vdwg.mxu0
        %v6287 = vmul.f32 %v6285, 0.00390625
        %v6288 = vadd.f32 %v6287, 1e-05
        %v6289 = vrsqrt.pop %v6288
        %v6290 = vmul.f32 %v6289, %v6288
        %v6291 = vmul.f32 %v6290, %v6289
        %v6292 = vmul.f32 0.5, %v6291
        %v6293 = vsub.f32 1.5, %v6292
        %v6294 = vmul.f32 %v6289, %v6293
        %vm6295 = vweird.f32 %v6288
        %vm6296 = vweird.f32 %v6289
        %vm6297 = vmor %vm6295, %vm6296
        %v6298 = vsel %vm6297, %v6289, %v6294
        %v6300 = vrot.slane %v6298, 1
        %v6302 = vmul.f32 %v6298, %v6130
        %v6303 = vmul.f32 %v6300, %v6130
        %v6306 = vperm.slane %v6302, 0
        %v6307 = vperm.slane %v6303, 0
        %v6310 = vmul.f32 %v6205, %v6306
        %v6311 = vmul.f32 %v6206, %v6306
        %v6312 = vmul.f32 %v6207, %v6306
        %v6313 = vmul.f32 %v6208, %v6306
        %v6314 = vmul.f32 %v6209, %v6306
        %v6315 = vmul.f32 %v6210, %v6306
        %v6316 = vmul.f32 %v6211, %v6306
        %v6317 = vmul.f32 %v6212, %v6306
        %v6318 = vmul.f32 %v6213, %v6307
        %v6319 = vmul.f32 %v6214, %v6307
        %v6320 = vmul.f32 %v6215, %v6307
        %v6321 = vmul.f32 %v6216, %v6307
        %v6322 = vmul.f32 %v6217, %v6307
        %v6323 = vmul.f32 %v6218, %v6307
        %v6324 = vmul.f32 %v6219, %v6307
        %v6325 = vmul.f32 %v6220, %v6307
        %v6327 = vperm.slane %v6131, 0
        %v6329 = vadd.f32 %v6310, %v6327
        %v6330 = vadd.f32 %v6311, %v6327
        %v6331 = vadd.f32 %v6312, %v6327
        %v6332 = vadd.f32 %v6313, %v6327
        %v6333 = vadd.f32 %v6314, %v6327
        %v6334 = vadd.f32 %v6315, %v6327
        %v6335 = vadd.f32 %v6316, %v6327
        %v6336 = vadd.f32 %v6317, %v6327
        %v6337 = vadd.f32 %v6318, %v6327
        %v6338 = vadd.f32 %v6319, %v6327
        %v6339 = vadd.f32 %v6320, %v6327
        %v6340 = vadd.f32 %v6321, %v6327
        %v6341 = vadd.f32 %v6322, %v6327
        %v6342 = vadd.f32 %v6323, %v6327
        %v6343 = vadd.f32 %v6324, %v6327
        %v6344 = vadd.f32 %v6325, %v6327
        %v6345 = vld [vmem:[%s518 + $0x1] sm:$0xff]
        %v6346 = vld [vmem:[%s518 + $0x11] sm:$0xff]
        %v6347 = vld [vmem:[%s518 + $0x21] sm:$0xff]
        %v6348 = vld [vmem:[%s518 + $0x31] sm:$0xff]
        %v6349 = vld [vmem:[%s518 + $0x41] sm:$0xff]
        %v6350 = vld [vmem:[%s518 + $0x51] sm:$0xff]
        %v6351 = vld [vmem:[%s518 + $0x61] sm:$0xff]
        %v6352 = vld [vmem:[%s518 + $0x71] sm:$0xff]
        %v6353 = vld [vmem:[%s518 + $0xa1] sm:$0xff]
        %v6354 = vld [vmem:[%s518 + $0xb1] sm:$0xff]
        %v6355 = vld [vmem:[%s518 + $0xc1] sm:$0xff]
        %v6356 = vld [vmem:[%s518 + $0xd1] sm:$0xff]
        %v6357 = vld [vmem:[%s518 + $0xe1] sm:$0xff]
        %v6358 = vld [vmem:[%s518 + $0xf1] sm:$0xff]
        %v6359 = vld [vmem:[%s518 + $0x101] sm:$0xff]
        %v6360 = vld [vmem:[%s518 + $0x111] sm:$0xff]
        %v6361 = vadd.f32 %v6345, %v6329
        %v6362 = vadd.f32 %v6346, %v6330
        %v6363 = vadd.f32 %v6347, %v6331
        %v6364 = vadd.f32 %v6348, %v6332
        %v6365 = vadd.f32 %v6349, %v6333
        %v6366 = vadd.f32 %v6350, %v6334
        %v6367 = vadd.f32 %v6351, %v6335
        %v6368 = vadd.f32 %v6352, %v6336
        %v6369 = vadd.f32 %v6353, %v6337
        %v6370 = vadd.f32 %v6354, %v6338
        %v6371 = vadd.f32 %v6355, %v6339
        %v6372 = vadd.f32 %v6356, %v6340
        %v6373 = vadd.f32 %v6357, %v6341
        %v6374 = vadd.f32 %v6358, %v6342
        %v6375 = vadd.f32 %v6359, %v6343
        %v6376 = vadd.f32 %v6360, %v6344
        %v6377 = vxor.u32 %v6361, 2147483648
        %v6378 = vxor.u32 %v6362, 2147483648
        %v6379 = vxor.u32 %v6363, 2147483648
        %v6380 = vxor.u32 %v6364, 2147483648
        %v6381 = vxor.u32 %v6365, 2147483648
        %v6382 = vxor.u32 %v6366, 2147483648
        %v6383 = vxor.u32 %v6367, 2147483648
        %v6384 = vxor.u32 %v6368, 2147483648
        %v6385 = vxor.u32 %v6369, 2147483648
        %v6386 = vxor.u32 %v6370, 2147483648
        %v6387 = vxor.u32 %v6371, 2147483648
        %v6388 = vxor.u32 %v6372, 2147483648
        %v6389 = vxor.u32 %v6373, 2147483648
        %v6390 = vxor.u32 %v6374, 2147483648
        %v6391 = vxor.u32 %v6375, 2147483648
        %v6392 = vxor.u32 %v6376, 2147483648
        %v6393 = vmul.f32 %v6377, 1.442695
        %v6394 = vpow.pop %v6393
        %v6395 = vmul.f32 %v6378, 1.442695
        %v6396 = vpow.pop %v6395
        %v6397 = vmul.f32 %v6379, 1.442695
        %v6398 = vpow.pop %v6397
        %v6399 = vmul.f32 %v6380, 1.442695
        %v6400 = vpow.pop %v6399
        %v6401 = vmul.f32 %v6381, 1.442695
        %v6402 = vpow.pop %v6401
        %v6403 = vmul.f32 %v6382, 1.442695
        %v6404 = vpow.pop %v6403
        %v6405 = vmul.f32 %v6383, 1.442695
        %v6406 = vpow.pop %v6405
        %v6407 = vmul.f32 %v6384, 1.442695
        %v6408 = vpow.pop %v6407
        %v6409 = vmul.f32 %v6385, 1.442695
        %v6410 = vpow.pop %v6409
        %v6411 = vmul.f32 %v6386, 1.442695
        %v6412 = vpow.pop %v6411
        %v6413 = vmul.f32 %v6387, 1.442695
        %v6414 = vpow.pop %v6413
        %v6415 = vmul.f32 %v6388, 1.442695
        %v6416 = vpow.pop %v6415
        %v6417 = vmul.f32 %v6389, 1.442695
        %v6418 = vpow.pop %v6417
        %v6419 = vmul.f32 %v6390, 1.442695
        %v6420 = vpow.pop %v6419
        %v6421 = vmul.f32 %v6391, 1.442695
        %v6422 = vpow.pop %v6421
        %v6423 = vmul.f32 %v6392, 1.442695
        %v6424 = vpow.pop %v6423
        %v6425 = vadd.f32 %v6394, 1.0
        %v6426 = vadd.f32 %v6396, 1.0
        %v6427 = vadd.f32 %v6398, 1.0
        %v6428 = vadd.f32 %v6400, 1.0
        %v6429 = vadd.f32 %v6402, 1.0
        %v6430 = vadd.f32 %v6404, 1.0
        %v6431 = vadd.f32 %v6406, 1.0
        %v6432 = vadd.f32 %v6408, 1.0
        %v6433 = vadd.f32 %v6410, 1.0
        %v6434 = vadd.f32 %v6412, 1.0
        %v6435 = vadd.f32 %v6414, 1.0
        %v6436 = vadd.f32 %v6416, 1.0
        %v6437 = vadd.f32 %v6418, 1.0
        %v6438 = vadd.f32 %v6420, 1.0
        %v6439 = vadd.f32 %v6422, 1.0
        %v6440 = vadd.f32 %v6424, 1.0
        %v6441 = vrcp.pop %v6425
        %v6442 = vmul.f32 %v6425, %v6441
        %v6443 = vsub.f32 1.0, %v6442
        %v6444 = vmul.f32 %v6441, %v6443
        %v6445 = vadd.f32 %v6441, %v6444
        %vm6446 = vweird.f32 %v6425
        %vm6447 = vweird.f32 %v6441
        %vm6448 = vmor %vm6446, %vm6447
        %v6449 = vsel %vm6448, %v6441, %v6445
        %v6450 = vand.u32 2147483647, %v6425
        %vm6451 = vcmp.eq.f32.partialorder %v6450, 8.507059e+37
        %v6452 = vand.u32 %v6425, 2147483648
        %v6453 = vor.u32 1.1754944e-38, %v6452
        %v6454 = vsel %vm6451, %v6453, %v6449
        %v6455 = vmul.f32 1.0, %v6454
        %v6456 = vrcp.pop %v6426
        %v6457 = vmul.f32 %v6426, %v6456
        %v6458 = vsub.f32 1.0, %v6457
        %v6459 = vmul.f32 %v6456, %v6458
        %v6460 = vadd.f32 %v6456, %v6459
        %vm6461 = vweird.f32 %v6426
        %vm6462 = vweird.f32 %v6456
        %vm6463 = vmor %vm6461, %vm6462
        %v6464 = vsel %vm6463, %v6456, %v6460
        %v6465 = vand.u32 2147483647, %v6426
        %vm6466 = vcmp.eq.f32.partialorder %v6465, 8.507059e+37
        %v6467 = vand.u32 %v6426, 2147483648
        %v6468 = vor.u32 1.1754944e-38, %v6467
        %v6469 = vsel %vm6466, %v6468, %v6464
        %v6470 = vmul.f32 1.0, %v6469
        %v6471 = vrcp.pop %v6427
        %v6472 = vmul.f32 %v6427, %v6471
        %v6473 = vsub.f32 1.0, %v6472
        %v6474 = vmul.f32 %v6471, %v6473
        %v6475 = vadd.f32 %v6471, %v6474
        %vm6476 = vweird.f32 %v6427
        %vm6477 = vweird.f32 %v6471
        %vm6478 = vmor %vm6476, %vm6477
        %v6479 = vsel %vm6478, %v6471, %v6475
        %v6480 = vand.u32 2147483647, %v6427
        %vm6481 = vcmp.eq.f32.partialorder %v6480, 8.507059e+37
        %v6482 = vand.u32 %v6427, 2147483648
        %v6483 = vor.u32 1.1754944e-38, %v6482
        %v6484 = vsel %vm6481, %v6483, %v6479
        %v6485 = vmul.f32 1.0, %v6484
        %v6486 = vrcp.pop %v6428
        %v6487 = vmul.f32 %v6428, %v6486
        %v6488 = vsub.f32 1.0, %v6487
        %v6489 = vmul.f32 %v6486, %v6488
        %v6490 = vadd.f32 %v6486, %v6489
        %vm6491 = vweird.f32 %v6428
        %vm6492 = vweird.f32 %v6486
        %vm6493 = vmor %vm6491, %vm6492
        %v6494 = vsel %vm6493, %v6486, %v6490
        %v6495 = vand.u32 2147483647, %v6428
        %vm6496 = vcmp.eq.f32.partialorder %v6495, 8.507059e+37
        %v6497 = vand.u32 %v6428, 2147483648
        %v6498 = vor.u32 1.1754944e-38, %v6497
        %v6499 = vsel %vm6496, %v6498, %v6494
        %v6500 = vmul.f32 1.0, %v6499
        %v6501 = vrcp.pop %v6429
        %v6502 = vmul.f32 %v6429, %v6501
        %v6503 = vsub.f32 1.0, %v6502
        %v6504 = vmul.f32 %v6501, %v6503
        %v6505 = vadd.f32 %v6501, %v6504
        %vm6506 = vweird.f32 %v6429
        %vm6507 = vweird.f32 %v6501
        %vm6508 = vmor %vm6506, %vm6507
        %v6509 = vsel %vm6508, %v6501, %v6505
        %v6510 = vand.u32 2147483647, %v6429
        %vm6511 = vcmp.eq.f32.partialorder %v6510, 8.507059e+37
        %v6512 = vand.u32 %v6429, 2147483648
        %v6513 = vor.u32 1.1754944e-38, %v6512
        %v6514 = vsel %vm6511, %v6513, %v6509
        %v6515 = vmul.f32 1.0, %v6514
        %v6516 = vrcp.pop %v6430
        %v6517 = vmul.f32 %v6430, %v6516
        %v6518 = vsub.f32 1.0, %v6517
        %v6519 = vmul.f32 %v6516, %v6518
        %v6520 = vadd.f32 %v6516, %v6519
        %vm6521 = vweird.f32 %v6430
        %vm6522 = vweird.f32 %v6516
        %vm6523 = vmor %vm6521, %vm6522
        %v6524 = vsel %vm6523, %v6516, %v6520
        %v6525 = vand.u32 2147483647, %v6430
        %vm6526 = vcmp.eq.f32.partialorder %v6525, 8.507059e+37
        %v6527 = vand.u32 %v6430, 2147483648
        %v6528 = vor.u32 1.1754944e-38, %v6527
        %v6529 = vsel %vm6526, %v6528, %v6524
        %v6530 = vmul.f32 1.0, %v6529
        %v6531 = vrcp.pop %v6431
        %v6532 = vmul.f32 %v6431, %v6531
        %v6533 = vsub.f32 1.0, %v6532
        %v6534 = vmul.f32 %v6531, %v6533
        %v6535 = vadd.f32 %v6531, %v6534
        %vm6536 = vweird.f32 %v6431
        %vm6537 = vweird.f32 %v6531
        %vm6538 = vmor %vm6536, %vm6537
        %v6539 = vsel %vm6538, %v6531, %v6535
        %v6540 = vand.u32 2147483647, %v6431
        %vm6541 = vcmp.eq.f32.partialorder %v6540, 8.507059e+37
        %v6542 = vand.u32 %v6431, 2147483648
        %v6543 = vor.u32 1.1754944e-38, %v6542
        %v6544 = vsel %vm6541, %v6543, %v6539
        %v6545 = vmul.f32 1.0, %v6544
        %v6546 = vrcp.pop %v6432
        %v6547 = vmul.f32 %v6432, %v6546
        %v6548 = vsub.f32 1.0, %v6547
        %v6549 = vmul.f32 %v6546, %v6548
        %v6550 = vadd.f32 %v6546, %v6549
        %vm6551 = vweird.f32 %v6432
        %vm6552 = vweird.f32 %v6546
        %vm6553 = vmor %vm6551, %vm6552
        %v6554 = vsel %vm6553, %v6546, %v6550
        %v6555 = vand.u32 2147483647, %v6432
        %vm6556 = vcmp.eq.f32.partialorder %v6555, 8.507059e+37
        %v6557 = vand.u32 %v6432, 2147483648
        %v6558 = vor.u32 1.1754944e-38, %v6557
        %v6559 = vsel %vm6556, %v6558, %v6554
        %v6560 = vmul.f32 1.0, %v6559
        %v6561 = vrcp.pop %v6433
        %v6562 = vmul.f32 %v6433, %v6561
        %v6563 = vsub.f32 1.0, %v6562
        %v6564 = vmul.f32 %v6561, %v6563
        %v6565 = vadd.f32 %v6561, %v6564
        %vm6566 = vweird.f32 %v6433
        %vm6567 = vweird.f32 %v6561
        %vm6568 = vmor %vm6566, %vm6567
        %v6569 = vsel %vm6568, %v6561, %v6565
        %v6570 = vand.u32 2147483647, %v6433
        %vm6571 = vcmp.eq.f32.partialorder %v6570, 8.507059e+37
        %v6572 = vand.u32 %v6433, 2147483648
        %v6573 = vor.u32 1.1754944e-38, %v6572
        %v6574 = vsel %vm6571, %v6573, %v6569
        %v6575 = vmul.f32 1.0, %v6574
        %v6576 = vrcp.pop %v6434
        %v6577 = vmul.f32 %v6434, %v6576
        %v6578 = vsub.f32 1.0, %v6577
        %v6579 = vmul.f32 %v6576, %v6578
        %v6580 = vadd.f32 %v6576, %v6579
        %vm6581 = vweird.f32 %v6434
        %vm6582 = vweird.f32 %v6576
        %vm6583 = vmor %vm6581, %vm6582
        %v6584 = vsel %vm6583, %v6576, %v6580
        %v6585 = vand.u32 2147483647, %v6434
        %vm6586 = vcmp.eq.f32.partialorder %v6585, 8.507059e+37
        %v6587 = vand.u32 %v6434, 2147483648
        %v6588 = vor.u32 1.1754944e-38, %v6587
        %v6589 = vsel %vm6586, %v6588, %v6584
        %v6590 = vmul.f32 1.0, %v6589
        %v6591 = vrcp.pop %v6435
        %v6592 = vmul.f32 %v6435, %v6591
        %v6593 = vsub.f32 1.0, %v6592
        %v6594 = vmul.f32 %v6591, %v6593
        %v6595 = vadd.f32 %v6591, %v6594
        %vm6596 = vweird.f32 %v6435
        %vm6597 = vweird.f32 %v6591
        %vm6598 = vmor %vm6596, %vm6597
        %v6599 = vsel %vm6598, %v6591, %v6595
        %v6600 = vand.u32 2147483647, %v6435
        %vm6601 = vcmp.eq.f32.partialorder %v6600, 8.507059e+37
        %v6602 = vand.u32 %v6435, 2147483648
        %v6603 = vor.u32 1.1754944e-38, %v6602
        %v6604 = vsel %vm6601, %v6603, %v6599
        %v6605 = vmul.f32 1.0, %v6604
        %v6606 = vrcp.pop %v6436
        %v6607 = vmul.f32 %v6436, %v6606
        %v6608 = vsub.f32 1.0, %v6607
        %v6609 = vmul.f32 %v6606, %v6608
        %v6610 = vadd.f32 %v6606, %v6609
        %vm6611 = vweird.f32 %v6436
        %vm6612 = vweird.f32 %v6606
        %vm6613 = vmor %vm6611, %vm6612
        %v6614 = vsel %vm6613, %v6606, %v6610
        %v6615 = vand.u32 2147483647, %v6436
        %vm6616 = vcmp.eq.f32.partialorder %v6615, 8.507059e+37
        %v6617 = vand.u32 %v6436, 2147483648
        %v6618 = vor.u32 1.1754944e-38, %v6617
        %v6619 = vsel %vm6616, %v6618, %v6614
        %v6620 = vmul.f32 1.0, %v6619
        %v6621 = vrcp.pop %v6437
        %v6622 = vmul.f32 %v6437, %v6621
        %v6623 = vsub.f32 1.0, %v6622
        %v6624 = vmul.f32 %v6621, %v6623
        %v6625 = vadd.f32 %v6621, %v6624
        %vm6626 = vweird.f32 %v6437
        %vm6627 = vweird.f32 %v6621
        %vm6628 = vmor %vm6626, %vm6627
        %v6629 = vsel %vm6628, %v6621, %v6625
        %v6630 = vand.u32 2147483647, %v6437
        %vm6631 = vcmp.eq.f32.partialorder %v6630, 8.507059e+37
        %v6632 = vand.u32 %v6437, 2147483648
        %v6633 = vor.u32 1.1754944e-38, %v6632
        %v6634 = vsel %vm6631, %v6633, %v6629
        %v6635 = vmul.f32 1.0, %v6634
        %v6636 = vrcp.pop %v6438
        %v6637 = vmul.f32 %v6438, %v6636
        %v6638 = vsub.f32 1.0, %v6637
        %v6639 = vmul.f32 %v6636, %v6638
        %v6640 = vadd.f32 %v6636, %v6639
        %vm6641 = vweird.f32 %v6438
        %vm6642 = vweird.f32 %v6636
        %vm6643 = vmor %vm6641, %vm6642
        %v6644 = vsel %vm6643, %v6636, %v6640
        %v6645 = vand.u32 2147483647, %v6438
        %vm6646 = vcmp.eq.f32.partialorder %v6645, 8.507059e+37
        %v6647 = vand.u32 %v6438, 2147483648
        %v6648 = vor.u32 1.1754944e-38, %v6647
        %v6649 = vsel %vm6646, %v6648, %v6644
        %v6650 = vmul.f32 1.0, %v6649
        %v6651 = vrcp.pop %v6439
        %v6652 = vmul.f32 %v6439, %v6651
        %v6653 = vsub.f32 1.0, %v6652
        %v6654 = vmul.f32 %v6651, %v6653
        %v6655 = vadd.f32 %v6651, %v6654
        %vm6656 = vweird.f32 %v6439
        %vm6657 = vweird.f32 %v6651
        %vm6658 = vmor %vm6656, %vm6657
        %v6659 = vsel %vm6658, %v6651, %v6655
        %v6660 = vand.u32 2147483647, %v6439
        %vm6661 = vcmp.eq.f32.partialorder %v6660, 8.507059e+37
        %v6662 = vand.u32 %v6439, 2147483648
        %v6663 = vor.u32 1.1754944e-38, %v6662
        %v6664 = vsel %vm6661, %v6663, %v6659
        %v6665 = vmul.f32 1.0, %v6664
        %v6666 = vrcp.pop %v6440
        %v6667 = vmul.f32 %v6440, %v6666
        %v6668 = vsub.f32 1.0, %v6667
        %v6669 = vmul.f32 %v6666, %v6668
        %v6670 = vadd.f32 %v6666, %v6669
        %vm6671 = vweird.f32 %v6440
        %vm6672 = vweird.f32 %v6666
        %vm6673 = vmor %vm6671, %vm6672
        %v6674 = vsel %vm6673, %v6666, %v6670
        %v6675 = vand.u32 2147483647, %v6440
        %vm6676 = vcmp.eq.f32.partialorder %v6675, 8.507059e+37
        %v6677 = vand.u32 %v6440, 2147483648
        %v6678 = vor.u32 1.1754944e-38, %v6677
        %v6679 = vsel %vm6676, %v6678, %v6674
        %v6680 = vmul.f32 1.0, %v6679
        %v6681 = vmul.f32 %v6361, %v6455
        %v6682 = vmul.f32 %v6362, %v6470
        %v6683 = vmul.f32 %v6363, %v6485
        %v6684 = vmul.f32 %v6364, %v6500
        %v6685 = vmul.f32 %v6365, %v6515
        %v6686 = vmul.f32 %v6366, %v6530
        %v6687 = vmul.f32 %v6367, %v6545
        %v6688 = vmul.f32 %v6368, %v6560
        %v6689 = vmul.f32 %v6369, %v6575
        %v6690 = vmul.f32 %v6370, %v6590
        %v6691 = vmul.f32 %v6371, %v6605
        %v6692 = vmul.f32 %v6372, %v6620
        %v6693 = vmul.f32 %v6373, %v6635
        %v6694 = vmul.f32 %v6374, %v6650
        %v6695 = vmul.f32 %v6375, %v6665
        %v6696 = vmul.f32 %v6376, %v6680
        %v6697 = vld [vmem:[%s370] sm:$0x1]
        %v6698 = vld [vmem:[%s370 + $0x1] sm:$0x1]
        %v6701 = vperm.slane %v6697, 0
        %v6702 = vperm.slane %v6698, 0
        %v6705 = vadd.f32 %v6681, %v6701
        %v6706 = vadd.f32 %v6682, %v6701
        %v6707 = vadd.f32 %v6683, %v6701
        %v6708 = vadd.f32 %v6684, %v6701
        %v6709 = vadd.f32 %v6685, %v6701
        %v6710 = vadd.f32 %v6686, %v6701
        %v6711 = vadd.f32 %v6687, %v6701
        %v6712 = vadd.f32 %v6688, %v6701
        %v6713 = vadd.f32 %v6689, %v6702
        %v6714 = vadd.f32 %v6690, %v6702
        %v6715 = vadd.f32 %v6691, %v6702
        %v6716 = vadd.f32 %v6692, %v6702
        %v6717 = vadd.f32 %v6693, %v6702
        %v6718 = vadd.f32 %v6694, %v6702
        %v6719 = vadd.f32 %v6695, %v6702
        %v6720 = vadd.f32 %v6696, %v6702
        %6721 = vst [vmem:[%s359] sm:$0xff] %v6705
        %6722 = vst [vmem:[%s359 + $0x8] sm:$0xff] %v6706
        %6723 = vst [vmem:[%s359 + $0x10] sm:$0xff] %v6707
        %6724 = vst [vmem:[%s359 + $0x18] sm:$0xff] %v6708
        %6725 = vst [vmem:[%s359 + $0x20] sm:$0xff] %v6709
        %6726 = vst [vmem:[%s359 + $0x28] sm:$0xff] %v6710
        %6727 = vst [vmem:[%s359 + $0x30] sm:$0xff] %v6711
        %6728 = vst [vmem:[%s359 + $0x38] sm:$0xff] %v6712
        %6729 = vst [vmem:[%s359 + $0x40] sm:$0xff] %v6713
        %6730 = vst [vmem:[%s359 + $0x48] sm:$0xff] %v6714
        %6731 = vst [vmem:[%s359 + $0x50] sm:$0xff] %v6715
        %6732 = vst [vmem:[%s359 + $0x58] sm:$0xff] %v6716
        %6733 = vst [vmem:[%s359 + $0x60] sm:$0xff] %v6717
        %6734 = vst [vmem:[%s359 + $0x68] sm:$0xff] %v6718
        %6735 = vst [vmem:[%s359 + $0x70] sm:$0xff] %v6719
        %6736 = vst [vmem:[%s359 + $0x78] sm:$0xff] %v6720
        %s6737 = sand.u32 %s231, 1
        %s6738 = scalar_lea.sflag [#allocation6], %s6737
        %s6739 = sand.u32 %s231, 1
        %s6740 = smul.addr %s6739, 128
        %s6741 = scalar_lea.vmem [#allocation7], %s6740
        // Predicated region
        $region61: #{tpu_custom_call.1} parent=55 // pred_check
          %p6742 = pneg %p241
        $region62: #{tpu_custom_call.1} parent=55 // pred_check_branch
          %6744 = sbr.rel (%p6742) target = $region64
        $region63: #{tpu_custom_call.1} parent=55 // pred_region
          %s6745 = smul.u32 2, %s24
          %6747 = vsyncadd %s6738, 0
          %s6748 = smul.addr %s6745, 8
          %s6749 = smul.addr %s6748, 8
          %s6750 = scalar_lea.hbm %s9, %s6749
          %s6751 = sshll.u32 %s6741, 4
          %s6752 = int_to_ptr.vmem [resolvable:$true] %s6751
          %s6753 = sshll.u32 %s6750, 4
          %s6754 = int_to_ptr.hbm [resolvable:$true] %s6753
          %6759 = dma.vmem_to_hbm [thread:$0]  %s6752, 2048, %s6754, %s6738, 128, 128, 8
        $region64: #{tpu_custom_call.1} parent=55 // pred_fallthru
          _
      $region56: #{tpu_custom_call.1} parent=5 // pred_fallthru
        _
      %p6760 = scmp.le.s32.totalorder 2, %s19
      // Predicated region
      $region65: #{tpu_custom_call.1} parent=5 // pred_check
        %p6761 = pneg %p6760
      $region66: #{tpu_custom_call.1} parent=5 // pred_check_branch
        %6763 = sbr.rel (%p6761) target = $region68
      $region67: #{tpu_custom_call.1} parent=5 // pred_region
        %s6764 = ssub.s32 %s19, 2
        // Predicated region
        $region69: #{tpu_custom_call.1} parent=67 // pred_check
          %p6765 = pneg %p247
        $region70: #{tpu_custom_call.1} parent=67 // pred_check_branch
          %6767 = sbr.rel (%p6765) target = $region72
        $region71: #{tpu_custom_call.1} parent=67 // pred_region
          %s6768 = sand.u32 %s232, 1
          %s6769 = scalar_lea.sflag [#allocation6], %s6768
          %s6770 = sand.u32 %s232, 1
          %s6771 = smul.addr %s6770, 128
          %s6772 = scalar_lea.vmem [#allocation7], %s6771
          %6774 = dma.done %s6769, 2048
        $region72: #{tpu_custom_call.1} parent=67 // pred_fallthru
          _
      $region68: #{tpu_custom_call.1} parent=5 // pred_fallthru
        _
    $region6: #{tpu_custom_call.1} parent=1 // loop_footer
      %s23 = sadd.s32 1, %s19
    $region7: #{tpu_custom_call.1} parent=1 // loop_footer_branch
      %18 = sbr.rel target = $region3
    $region8: #{tpu_custom_call.1} parent=1 // loop_exit
      _
    %6775 = vsyncpa [#allocation5], 1
    %s6776 = scalar_lea.sflag [#allocation5], 1
    %6777 = vsyncpa %s6776, 1
    %6778 = vsyncpa [#allocation6], 1
    %s6779 = scalar_lea.sflag [#allocation6], 1
    %6780 = vsyncpa %s6779, 1

</llo_original>
